<compile_context>
chip_gen: v7x
topology: tpu7x:2x2x1
jax: 0.10.0
libtpu: 0.0.40
codegen_flags: <defaults>
</compile_context>

<pallas_src>
import functools
from math import sqrt

import jax
import jax.numpy as jnp
from jax import lax
from jax.experimental import pallas as pl
from jax.experimental.pallas import tpu as pltpu


# ----------------------------------------------------------------------------
# Fused kernel: runs every DPM-Solver-1 step of the sampler in-kernel.
#
#   sched_ref : SMEM float32[num_steps*4], per step i (stride 4):
#                 [4i+0] a   scale for x
#                 [4i+1] m   scale for (x @ W)
#                 [4i+2] bb  scale for bias
#                 [4i+3] pad
#   x0_ref    : VMEM [B, D] f32   initial x = sigmas[0] * noise
#   w_ref     : VMEM [D, D] bf16  denoiser-net weight (resident, DMA'd once)
#   b_ref     : VMEM [1, D] f32   denoiser-net bias   (resident)
#   o_ref     : VMEM [B, D] f32   final (clamped) sample
# ----------------------------------------------------------------------------
def dpm_fused_kernel(sched_ref, x0_ref, w_ref, b_ref, o_ref, *, num_steps, unroll):
    bias = b_ref[...]  # [1, D] f32, hoisted out of the step loop

    def step_body(i, x):
        base = 4 * i
        a = sched_ref[base + 0]
        m = sched_ref[base + 1]
        bb = sched_ref[base + 2]
        # Denoiser "net" body: (c_in * x) @ W + b, with c_in / c_out / c_skip /
        # cond_scale / expm1(-h) all folded into (a, m, bb) host-side.
        # NOTE: x is rounded to bf16 each step to feed the MXU; validate drift
        # against an f32 reference at realistic step counts (20-50).
        acc = jnp.dot(
            x.astype(jnp.bfloat16), w_ref[...],
            preferred_element_type=jnp.float32,
        )
        return a * x + m * acc + bb * bias

    x = lax.fori_loop(0, num_steps, step_body, x0_ref[...], unroll=unroll)

    # Final clamp(-1, 1), applied once (matches the PyTorch reference, which
    # clamps only the returned x).
    o_ref[...] = jnp.clip(x, -1.0, 1.0)


def dpm_sampler_pallas(sched, x0, w_bf16, b, *, num_steps):
    B, D = x0.shape

    kernel = functools.partial(
        dpm_fused_kernel, num_steps=num_steps, unroll=(num_steps <= 8)
    )

    # Explicit VMEM budget (single-buffered): W (bf16) + x0 + bias + out,
    # plus generous headroom for the f32 carry / matmul temporaries.  Sized so
    # it is valid on v5e (16 MiB default scoped) and v7x (64 MiB physical).
    operand_bytes = (D * D * 2) + (B * D * 4) * 2 + (D * 4)
    vmem_limit = int(min(max(2 * operand_bytes + (4 << 20), 16 << 20), 64 << 20))

    return pl.pallas_call(
        kernel,
        out_shape=jax.ShapeDtypeStruct((B, D), jnp.float32),
        in_specs=[
            pl.BlockSpec(memory_space=pltpu.MemorySpace.SMEM),  # schedule scalars
            pl.BlockSpec(memory_space=pltpu.MemorySpace.VMEM),  # x0
            pl.BlockSpec(memory_space=pltpu.MemorySpace.VMEM),  # W (resident)
            pl.BlockSpec(memory_space=pltpu.MemorySpace.VMEM),  # bias
        ],
        out_specs=pl.BlockSpec(memory_space=pltpu.MemorySpace.VMEM),
        compiler_params=pltpu.CompilerParams(vmem_limit_bytes=vmem_limit),
    )(sched, x0, w_bf16, b)


# ----------------------------------------------------------------------------
# DPMSampler.forward (order=1, multisteps=False, x0_pred=True,
#                     log_time_spacing=True) with a synthetic EDM-preconditioned
#     linear denoiser "net" (Linear(D, D)).
# ----------------------------------------------------------------------------
@functools.partial(jax.jit, static_argnames=("num_steps", "cond_scale", "sigma_data"))
def dpm_sampler_forward(noise_nchw, w, b, sigmas, *, num_steps, cond_scale,
                        sigma_data=0.5):
    B, C, H, W = noise_nchw.shape
    D = C * H * W

    # x = sigmas[0] * noise  (glue)
    x0 = (sigmas[0] * noise_nchw).reshape(B, D).astype(jnp.float32)

    # get_lambda: lambd = -log(sigma), linearly spaced over K+1 points
    # (order == 1 -> K = num_steps, orders = [1] * num_steps).
    lambd_start = -jnp.log(sigmas[0])
    lambd_end = -jnp.log(sigmas[-1])
    lambds = jnp.linspace(lambd_start, lambd_end, num_steps + 1)
    lambd_cur = lambds[:-1]
    lambd_next = lambds[1:]
    sigma_cur = jnp.exp(-lambd_cur)
    sigma_next = jnp.exp(-lambd_next)
    h = lambd_next - lambd_cur
    em1 = jnp.expm1(-h)

    # EDM preconditioning coefficients, whole schedule vectorized.
    sd2 = jnp.float32(sigma_data * sigma_data)
    denom = sigma_cur * sigma_cur + sd2
    c_in = 1.0 / jnp.sqrt(denom)
    c_skip = sd2 / denom
    c_out = sigma_cur * jnp.float32(sigma_data) / jnp.sqrt(denom)
    c_out_cs = c_out * jnp.float32(cond_scale)

    # DPM-Solver-1 (x0 prediction) update folded into 3 FMA coefficients:
    #   x_next = a*x + m*(x @ W) + bb*bias
    a = sigma_next / sigma_cur - em1 * c_skip
    m = -em1 * c_out_cs * c_in
    bb = -em1 * c_out_cs

    sched = jnp.stack([a, m, bb, jnp.zeros_like(a)], axis=1)  # [num_steps, 4]
    sched = sched.reshape(-1).astype(jnp.float32)             # 1-D for SMEM

    w_bf16 = w.astype(jnp.bfloat16)  # halves HBM traffic / VMEM residency

    out = dpm_sampler_pallas(sched, x0, w_bf16, b, num_steps=num_steps)
    return out.reshape(B, C, H, W)


if __name__ == "__main__":
    key = jax.random.PRNGKey(0)
    B, C, H, W = 2, 4, 16, 16
    D = C * H * W
    num_steps = 6
    cond_scale = 1.5

    noise = jax.random.normal(key, (B, C, H, W), dtype=jnp.float32)

    # Deterministic synthetic denoiser-net parameters (single Linear(D, D)).
    kw, kb = jax.random.split(jax.random.PRNGKey(1))
    w_mat = jax.random.normal(kw, (D, D), dtype=jnp.float32) / jnp.float32(sqrt(D))
    b_vec = 0.01 * jax.random.normal(kb, (1, D), dtype=jnp.float32)

    # EDM sigma schedule (only sigmas[0] / sigmas[-1] matter for log spacing).
    sigma_min, sigma_max, rho = 0.002, 80.0, 7.0
    idx = jnp.arange(num_steps + 1, dtype=jnp.float32)
    sigmas = (
        sigma_max ** (1.0 / rho)
        + idx / num_steps * (sigma_min ** (1.0 / rho) - sigma_max ** (1.0 / rho))
    ) ** rho

    out = dpm_sampler_forward(
        noise, w_mat, b_vec, sigmas, num_steps=num_steps, cond_scale=cond_scale
    )
    jax.block_until_ready(out)
    assert out.shape == (B, C, H, W)
    assert bool(jnp.all(jnp.isfinite(out)))
    assert bool(jnp.all(jnp.abs(out) <= 1.0 + 1e-6))  # final clamp(-1, 1)
    print("KERNEL_OK")
</pallas_src>

<mosaic_0001>
module attributes {stable_mosaic.version = 11 : i64} {
  func.func @dpm_fused_kernel(%arg0: memref<24xf32, #tpu.memory_space<smem>>, %arg1: memref<2x1024xf32, #tpu.memory_space<vmem>>, %arg2: memref<1024x1024xbf16, #tpu.memory_space<vmem>>, %arg3: memref<1x1024xf32, #tpu.memory_space<vmem>>, %arg4: memref<2x1024xf32, #tpu.memory_space<vmem>>) attributes {dimension_semantics = [], scalar_prefetch = 0 : i64, scratch_operands = 0 : i64, tpu.core_type = #tpu.core_type<tc>} {
    %c0 = arith.constant 0 : index
    %c0_0 = arith.constant 0 : index
    %0 = vector.load %arg3[%c0, %c0_0] : memref<1x1024xf32, #tpu.memory_space<vmem>>, vector<1x1024xf32>
    %c0_1 = arith.constant 0 : index
    %c0_2 = arith.constant 0 : index
    %1 = vector.load %arg1[%c0_1, %c0_2] : memref<2x1024xf32, #tpu.memory_space<vmem>>, vector<2x1024xf32>
    %c0_i32 = arith.constant 0 : i32
    %c4_i32 = arith.constant 4 : i32
    %2 = arith.muli %c4_i32, %c0_i32 : i32
    %c0_i32_3 = arith.constant 0 : i32
    %3 = arith.addi %2, %c0_i32_3 : i32
    %4 = arith.index_cast %3 : i32 to index
    %5 = memref.load %arg0[%4] : memref<24xf32, #tpu.memory_space<smem>>
    %c1_i32 = arith.constant 1 : i32
    %6 = arith.addi %2, %c1_i32 : i32
    %7 = arith.index_cast %6 : i32 to index
    %8 = memref.load %arg0[%7] : memref<24xf32, #tpu.memory_space<smem>>
    %c2_i32 = arith.constant 2 : i32
    %9 = arith.addi %2, %c2_i32 : i32
    %10 = arith.index_cast %9 : i32 to index
    %11 = memref.load %arg0[%10] : memref<24xf32, #tpu.memory_space<smem>>
    %12 = arith.truncf %1 : vector<2x1024xf32> to vector<2x1024xbf16>
    %c0_4 = arith.constant 0 : index
    %c0_5 = arith.constant 0 : index
    %13 = vector.load %arg2[%c0_4, %c0_5] : memref<1024x1024xbf16, #tpu.memory_space<vmem>>, vector<1024x1024xbf16>
    %cst = arith.constant dense<0.000000e+00> : vector<2x1024xf32>
    %14 = tpu.matmul %12, %13, %cst {dimension_numbers = #tpu.dot_dimension_numbers<[1], [0], [0], [1], [0, 0, 1, 1], [], []>} : vector<2x1024xbf16>, vector<1024x1024xbf16>, vector<2x1024xf32> -> vector<2x1024xf32>
    %15 = vector.broadcast %5 : f32 to vector<2x1024xf32>
    %16 = arith.mulf %15, %1 : vector<2x1024xf32>
    %17 = vector.broadcast %8 : f32 to vector<2x1024xf32>
    %18 = arith.mulf %17, %14 : vector<2x1024xf32>
    %19 = arith.addf %16, %18 : vector<2x1024xf32>
    %20 = vector.broadcast %11 : f32 to vector<1x1024xf32>
    %21 = arith.mulf %20, %0 : vector<1x1024xf32>
    %22 = vector.broadcast %21 : vector<1x1024xf32> to vector<2x1024xf32>
    %23 = arith.addf %19, %22 : vector<2x1024xf32>
    %c1_i32_6 = arith.constant 1 : i32
    %c4_i32_7 = arith.constant 4 : i32
    %24 = arith.muli %c4_i32_7, %c1_i32_6 : i32
    %c0_i32_8 = arith.constant 0 : i32
    %25 = arith.addi %24, %c0_i32_8 : i32
    %26 = arith.index_cast %25 : i32 to index
    %27 = memref.load %arg0[%26] : memref<24xf32, #tpu.memory_space<smem>>
    %c1_i32_9 = arith.constant 1 : i32
    %28 = arith.addi %24, %c1_i32_9 : i32
    %29 = arith.index_cast %28 : i32 to index
    %30 = memref.load %arg0[%29] : memref<24xf32, #tpu.memory_space<smem>>
    %c2_i32_10 = arith.constant 2 : i32
    %31 = arith.addi %24, %c2_i32_10 : i32
    %32 = arith.index_cast %31 : i32 to index
    %33 = memref.load %arg0[%32] : memref<24xf32, #tpu.memory_space<smem>>
    %34 = arith.truncf %23 : vector<2x1024xf32> to vector<2x1024xbf16>
    %c0_11 = arith.constant 0 : index
    %c0_12 = arith.constant 0 : index
    %35 = vector.load %arg2[%c0_11, %c0_12] : memref<1024x1024xbf16, #tpu.memory_space<vmem>>, vector<1024x1024xbf16>
    %cst_13 = arith.constant dense<0.000000e+00> : vector<2x1024xf32>
    %36 = tpu.matmul %34, %35, %cst_13 {dimension_numbers = #tpu.dot_dimension_numbers<[1], [0], [0], [1], [0, 0, 1, 1], [], []>} : vector<2x1024xbf16>, vector<1024x1024xbf16>, vector<2x1024xf32> -> vector<2x1024xf32>
    %37 = vector.broadcast %27 : f32 to vector<2x1024xf32>
    %38 = arith.mulf %37, %23 : vector<2x1024xf32>
    %39 = vector.broadcast %30 : f32 to vector<2x1024xf32>
    %40 = arith.mulf %39, %36 : vector<2x1024xf32>
    %41 = arith.addf %38, %40 : vector<2x1024xf32>
    %42 = vector.broadcast %33 : f32 to vector<1x1024xf32>
    %43 = arith.mulf %42, %0 : vector<1x1024xf32>
    %44 = vector.broadcast %43 : vector<1x1024xf32> to vector<2x1024xf32>
    %45 = arith.addf %41, %44 : vector<2x1024xf32>
    %c2_i32_14 = arith.constant 2 : i32
    %c4_i32_15 = arith.constant 4 : i32
    %46 = arith.muli %c4_i32_15, %c2_i32_14 : i32
    %c0_i32_16 = arith.constant 0 : i32
    %47 = arith.addi %46, %c0_i32_16 : i32
    %48 = arith.index_cast %47 : i32 to index
    %49 = memref.load %arg0[%48] : memref<24xf32, #tpu.memory_space<smem>>
    %c1_i32_17 = arith.constant 1 : i32
    %50 = arith.addi %46, %c1_i32_17 : i32
    %51 = arith.index_cast %50 : i32 to index
    %52 = memref.load %arg0[%51] : memref<24xf32, #tpu.memory_space<smem>>
    %c2_i32_18 = arith.constant 2 : i32
    %53 = arith.addi %46, %c2_i32_18 : i32
    %54 = arith.index_cast %53 : i32 to index
    %55 = memref.load %arg0[%54] : memref<24xf32, #tpu.memory_space<smem>>
    %56 = arith.truncf %45 : vector<2x1024xf32> to vector<2x1024xbf16>
    %c0_19 = arith.constant 0 : index
    %c0_20 = arith.constant 0 : index
    %57 = vector.load %arg2[%c0_19, %c0_20] : memref<1024x1024xbf16, #tpu.memory_space<vmem>>, vector<1024x1024xbf16>
    %cst_21 = arith.constant dense<0.000000e+00> : vector<2x1024xf32>
    %58 = tpu.matmul %56, %57, %cst_21 {dimension_numbers = #tpu.dot_dimension_numbers<[1], [0], [0], [1], [0, 0, 1, 1], [], []>} : vector<2x1024xbf16>, vector<1024x1024xbf16>, vector<2x1024xf32> -> vector<2x1024xf32>
    %59 = vector.broadcast %49 : f32 to vector<2x1024xf32>
    %60 = arith.mulf %59, %45 : vector<2x1024xf32>
    %61 = vector.broadcast %52 : f32 to vector<2x1024xf32>
    %62 = arith.mulf %61, %58 : vector<2x1024xf32>
    %63 = arith.addf %60, %62 : vector<2x1024xf32>
    %64 = vector.broadcast %55 : f32 to vector<1x1024xf32>
    %65 = arith.mulf %64, %0 : vector<1x1024xf32>
    %66 = vector.broadcast %65 : vector<1x1024xf32> to vector<2x1024xf32>
    %67 = arith.addf %63, %66 : vector<2x1024xf32>
    %c3_i32 = arith.constant 3 : i32
    %c4_i32_22 = arith.constant 4 : i32
    %68 = arith.muli %c4_i32_22, %c3_i32 : i32
    %c0_i32_23 = arith.constant 0 : i32
    %69 = arith.addi %68, %c0_i32_23 : i32
    %70 = arith.index_cast %69 : i32 to index
    %71 = memref.load %arg0[%70] : memref<24xf32, #tpu.memory_space<smem>>
    %c1_i32_24 = arith.constant 1 : i32
    %72 = arith.addi %68, %c1_i32_24 : i32
    %73 = arith.index_cast %72 : i32 to index
    %74 = memref.load %arg0[%73] : memref<24xf32, #tpu.memory_space<smem>>
    %c2_i32_25 = arith.constant 2 : i32
    %75 = arith.addi %68, %c2_i32_25 : i32
    %76 = arith.index_cast %75 : i32 to index
    %77 = memref.load %arg0[%76] : memref<24xf32, #tpu.memory_space<smem>>
    %78 = arith.truncf %67 : vector<2x1024xf32> to vector<2x1024xbf16>
    %c0_26 = arith.constant 0 : index
    %c0_27 = arith.constant 0 : index
    %79 = vector.load %arg2[%c0_26, %c0_27] : memref<1024x1024xbf16, #tpu.memory_space<vmem>>, vector<1024x1024xbf16>
    %cst_28 = arith.constant dense<0.000000e+00> : vector<2x1024xf32>
    %80 = tpu.matmul %78, %79, %cst_28 {dimension_numbers = #tpu.dot_dimension_numbers<[1], [0], [0], [1], [0, 0, 1, 1], [], []>} : vector<2x1024xbf16>, vector<1024x1024xbf16>, vector<2x1024xf32> -> vector<2x1024xf32>
    %81 = vector.broadcast %71 : f32 to vector<2x1024xf32>
    %82 = arith.mulf %81, %67 : vector<2x1024xf32>
    %83 = vector.broadcast %74 : f32 to vector<2x1024xf32>
    %84 = arith.mulf %83, %80 : vector<2x1024xf32>
    %85 = arith.addf %82, %84 : vector<2x1024xf32>
    %86 = vector.broadcast %77 : f32 to vector<1x1024xf32>
    %87 = arith.mulf %86, %0 : vector<1x1024xf32>
    %88 = vector.broadcast %87 : vector<1x1024xf32> to vector<2x1024xf32>
    %89 = arith.addf %85, %88 : vector<2x1024xf32>
    %c4_i32_29 = arith.constant 4 : i32
    %c4_i32_30 = arith.constant 4 : i32
    %90 = arith.muli %c4_i32_30, %c4_i32_29 : i32
    %c0_i32_31 = arith.constant 0 : i32
    %91 = arith.addi %90, %c0_i32_31 : i32
    %92 = arith.index_cast %91 : i32 to index
    %93 = memref.load %arg0[%92] : memref<24xf32, #tpu.memory_space<smem>>
    %c1_i32_32 = arith.constant 1 : i32
    %94 = arith.addi %90, %c1_i32_32 : i32
    %95 = arith.index_cast %94 : i32 to index
    %96 = memref.load %arg0[%95] : memref<24xf32, #tpu.memory_space<smem>>
    %c2_i32_33 = arith.constant 2 : i32
    %97 = arith.addi %90, %c2_i32_33 : i32
    %98 = arith.index_cast %97 : i32 to index
    %99 = memref.load %arg0[%98] : memref<24xf32, #tpu.memory_space<smem>>
    %100 = arith.truncf %89 : vector<2x1024xf32> to vector<2x1024xbf16>
    %c0_34 = arith.constant 0 : index
    %c0_35 = arith.constant 0 : index
    %101 = vector.load %arg2[%c0_34, %c0_35] : memref<1024x1024xbf16, #tpu.memory_space<vmem>>, vector<1024x1024xbf16>
    %cst_36 = arith.constant dense<0.000000e+00> : vector<2x1024xf32>
    %102 = tpu.matmul %100, %101, %cst_36 {dimension_numbers = #tpu.dot_dimension_numbers<[1], [0], [0], [1], [0, 0, 1, 1], [], []>} : vector<2x1024xbf16>, vector<1024x1024xbf16>, vector<2x1024xf32> -> vector<2x1024xf32>
    %103 = vector.broadcast %93 : f32 to vector<2x1024xf32>
    %104 = arith.mulf %103, %89 : vector<2x1024xf32>
    %105 = vector.broadcast %96 : f32 to vector<2x1024xf32>
    %106 = arith.mulf %105, %102 : vector<2x1024xf32>
    %107 = arith.addf %104, %106 : vector<2x1024xf32>
    %108 = vector.broadcast %99 : f32 to vector<1x1024xf32>
    %109 = arith.mulf %108, %0 : vector<1x1024xf32>
    %110 = vector.broadcast %109 : vector<1x1024xf32> to vector<2x1024xf32>
    %111 = arith.addf %107, %110 : vector<2x1024xf32>
    %c5_i32 = arith.constant 5 : i32
    %c4_i32_37 = arith.constant 4 : i32
    %112 = arith.muli %c4_i32_37, %c5_i32 : i32
    %c0_i32_38 = arith.constant 0 : i32
    %113 = arith.addi %112, %c0_i32_38 : i32
    %114 = arith.index_cast %113 : i32 to index
    %115 = memref.load %arg0[%114] : memref<24xf32, #tpu.memory_space<smem>>
    %c1_i32_39 = arith.constant 1 : i32
    %116 = arith.addi %112, %c1_i32_39 : i32
    %117 = arith.index_cast %116 : i32 to index
    %118 = memref.load %arg0[%117] : memref<24xf32, #tpu.memory_space<smem>>
    %c2_i32_40 = arith.constant 2 : i32
    %119 = arith.addi %112, %c2_i32_40 : i32
    %120 = arith.index_cast %119 : i32 to index
    %121 = memref.load %arg0[%120] : memref<24xf32, #tpu.memory_space<smem>>
    %122 = arith.truncf %111 : vector<2x1024xf32> to vector<2x1024xbf16>
    %c0_41 = arith.constant 0 : index
    %c0_42 = arith.constant 0 : index
    %123 = vector.load %arg2[%c0_41, %c0_42] : memref<1024x1024xbf16, #tpu.memory_space<vmem>>, vector<1024x1024xbf16>
    %cst_43 = arith.constant dense<0.000000e+00> : vector<2x1024xf32>
    %124 = tpu.matmul %122, %123, %cst_43 {dimension_numbers = #tpu.dot_dimension_numbers<[1], [0], [0], [1], [0, 0, 1, 1], [], []>} : vector<2x1024xbf16>, vector<1024x1024xbf16>, vector<2x1024xf32> -> vector<2x1024xf32>
    %125 = vector.broadcast %115 : f32 to vector<2x1024xf32>
    %126 = arith.mulf %125, %111 : vector<2x1024xf32>
    %127 = vector.broadcast %118 : f32 to vector<2x1024xf32>
    %128 = arith.mulf %127, %124 : vector<2x1024xf32>
    %129 = arith.addf %126, %128 : vector<2x1024xf32>
    %130 = vector.broadcast %121 : f32 to vector<1x1024xf32>
    %131 = arith.mulf %130, %0 : vector<1x1024xf32>
    %132 = vector.broadcast %131 : vector<1x1024xf32> to vector<2x1024xf32>
    %133 = arith.addf %129, %132 : vector<2x1024xf32>
    %c6_i32 = arith.constant 6 : i32
    %cst_44 = arith.constant -1.000000e+00 : f32
    %cst_45 = arith.constant 1.000000e+00 : f32
    %134 = vector.broadcast %cst_44 : f32 to vector<2x1024xf32>
    %135 = arith.maximumf %134, %133 : vector<2x1024xf32>
    %136 = vector.broadcast %cst_45 : f32 to vector<2x1024xf32>
    %137 = arith.minimumf %136, %135 : vector<2x1024xf32>
    %c0_46 = arith.constant 0 : index
    %c0_47 = arith.constant 0 : index
    %138 = vector.load %arg4[%c0_46, %c0_47] : memref<2x1024xf32, #tpu.memory_space<vmem>>, vector<2x1024xf32>
    tpu.vector_store %arg4[%c0_46, %c0_47], %137 {strides = array<i32>} : memref<2x1024xf32, #tpu.memory_space<vmem>>, vector<2x1024xf32>,
    return
  }
}

</mosaic_0001>

<llo_original>
// kernel: dpm_sampler_forward.1
$region0: #{dpm_sampler_forward.1}
  #allocation0 [shape = 'u32[]', space=smem, size = 0x4, offset = 0x4, fixed_abs, tag = 'smem constant byte address 0x4 - core index']
  #allocation1 [shape = 'u32[144,128]{1,0:T(1,128)}', space=vmem, size = 0x12000, scoped, tag = 'internal scratch']
  %s0 = inlined_call_operand.vmem [shape: f32[24], index: 0, kind: input, shape index: {}]
  %s1 = inlined_call_operand.vmem [shape: f32[2,1024], index: 1, kind: input, shape index: {}]
  %s2 = inlined_call_operand.vmem [shape: bf16[1024,1024], index: 2, kind: input, shape index: {}]
  %s3 = inlined_call_operand.vmem [shape: f32[1,1024], index: 3, kind: input, shape index: {}]
  %s4 = inlined_call_operand.vmem [shape: f32[2,1024], index: 4, kind: output, shape index: {}]
  %s5 = sld [smem:[#allocation0]]
  $region30: #{dpm_sampler_forward.1} parent=0
    _
  %s7 = ssub.s32 1, %s5
  %s8 = scalar_select 0, %s7, %s5
  $region1: #{dpm_sampler_forward.1} parent=0
    #allocation2 [shape = 'u8[512]{0}', space=smem, size = 0x200, scoped, tag = 'input window, operand 0, single buffered']
    #allocation3 [shape = 's32[1]{0}', space=sflag, size = 0x4, scoped, tag = 'scoped memory for dpm_sampler_forward.1']
    %9 = vsyncpa [#allocation3], 0
    // Predicated region
    $region2: #{dpm_sampler_forward.1} parent=1 // pred_check
      _
    $region3: #{dpm_sampler_forward.1} parent=1 // pred_check_branch
      %11 = sbr.rel (0) target = $region5
    $region4: #{dpm_sampler_forward.1} parent=1 // pred_region
      %s13 = ssub.s32 16, 16
      %14 = vsyncadd [#allocation3], %s13
      %s16 = sshll.u32 %s0, 4
      %s17 = int_to_ptr.vmem [resolvable:$true] %s16
      %19 = dma.vmem_to_smem %s17, 16, [#allocation2], [#allocation3]
    $region5: #{dpm_sampler_forward.1} parent=1 // pred_fallthru
      _
    // Predicated region
    $region6: #{dpm_sampler_forward.1} parent=1 // pred_check
      _
    $region7: #{dpm_sampler_forward.1} parent=1 // pred_check_branch
      %21 = sbr.rel (0) target = $region9
    $region8: #{dpm_sampler_forward.1} parent=1 // pred_region
      _
    $region9: #{dpm_sampler_forward.1} parent=1 // pred_fallthru
      _
    // Predicated region
    $region10: #{dpm_sampler_forward.1} parent=1 // pred_check
      _
    $region11: #{dpm_sampler_forward.1} parent=1 // pred_check_branch
      %23 = sbr.rel (0) target = $region13
    $region12: #{dpm_sampler_forward.1} parent=1 // pred_region
      _
    $region13: #{dpm_sampler_forward.1} parent=1 // pred_fallthru
      _
    // Predicated region
    $region14: #{dpm_sampler_forward.1} parent=1 // pred_check
      _
    $region15: #{dpm_sampler_forward.1} parent=1 // pred_check_branch
      %25 = sbr.rel (0) target = $region17
    $region16: #{dpm_sampler_forward.1} parent=1 // pred_region
      _
    $region17: #{dpm_sampler_forward.1} parent=1 // pred_fallthru
      _
    // Predicated region
    $region18: #{dpm_sampler_forward.1} parent=1 // pred_check
      _
    $region19: #{dpm_sampler_forward.1} parent=1 // pred_check_branch
      %27 = sbr.rel (0) target = $region21
    $region20: #{dpm_sampler_forward.1} parent=1 // pred_region
      %28 = dma.done [#allocation3], 16
    $region21: #{dpm_sampler_forward.1} parent=1 // pred_fallthru
      _
    %29 = sfence
    %v30 = vld [vmem:[%s3] sm:$0xff]
    %v31 = vld [vmem:[%s1] sm:$0xff]
    %v32 = vld [vmem:[%s1 + $0x8] sm:$0xff]
    %s33 = sld [smem:[#allocation2]]
    %s34 = sld [smem:[#allocation2 + $0x1]]
    %s35 = sld [smem:[#allocation2 + $0x2]]
    %v38 = vcombine.high %v31, %v31
    %v40 = vunpack.c.l.s4 1983009808
    %v41 = vunpack.c.0.s8 %v40
    %v42 = vlaneseq
    %v43 = vshrl.u32 %v42, 7
    %v44 = vsub.s32 %v41, %v43
    %v45 = vrot.slane %v31, %v44
    %v47 = vunpack.c.l.s4 1983009808
    %v48 = vunpack.c.0.s8 %v47
    %v49 = vlaneseq
    %v50 = vshrl.u32 %v49, 7
    %v51 = vsub.s32 %v48, %v50
    %v52 = vrot.slane %v38, %v51
    %v53 = vcombine.high %v45, %v45
    %v54 = vcombine.high %v52, %v52
    %v55 = vcombine.high %v32, %v32
    %v57 = vunpack.c.l.s4 1983009808
    %v58 = vunpack.c.0.s8 %v57
    %v59 = vlaneseq
    %v60 = vshrl.u32 %v59, 7
    %v61 = vsub.s32 %v58, %v60
    %v62 = vrot.slane %v32, %v61
    %v64 = vunpack.c.l.s4 1983009808
    %v65 = vunpack.c.0.s8 %v64
    %v66 = vlaneseq
    %v67 = vshrl.u32 %v66, 7
    %v68 = vsub.s32 %v65, %v67
    %v69 = vrot.slane %v55, %v68
    %v70 = vcombine.high %v62, %v62
    %v71 = vcombine.high %v69, %v69
    %v80 = vpack.c.bf16 %v45, %v45
    %v81 = vpack.c.bf16 %v53, %v53
    %v82 = vpack.c.bf16 %v52, %v52
    %v83 = vpack.c.bf16 %v54, %v54
    %v84 = vpack.c.bf16 %v62, %v62
    %v85 = vpack.c.bf16 %v70, %v70
    %v86 = vpack.c.bf16 %v69, %v69
    %v87 = vpack.c.bf16 %v71, %v71
    %v88 = vld [vmem:[%s2] sm:$0xff]
    %v89 = vld [vmem:[%s2 + $0x8] sm:$0xff]
    %v90 = vld [vmem:[%s2 + $0x10] sm:$0xff]
    %v91 = vld [vmem:[%s2 + $0x18] sm:$0xff]
    %v92 = vld [vmem:[%s2 + $0x20] sm:$0xff]
    %v93 = vld [vmem:[%s2 + $0x28] sm:$0xff]
    %v94 = vld [vmem:[%s2 + $0x30] sm:$0xff]
    %v95 = vld [vmem:[%s2 + $0x38] sm:$0xff]
    %v96 = vld [vmem:[%s2 + $0x40] sm:$0xff]
    %v97 = vld [vmem:[%s2 + $0x48] sm:$0xff]
    %v98 = vld [vmem:[%s2 + $0x50] sm:$0xff]
    %v99 = vld [vmem:[%s2 + $0x58] sm:$0xff]
    %v100 = vld [vmem:[%s2 + $0x60] sm:$0xff]
    %v101 = vld [vmem:[%s2 + $0x68] sm:$0xff]
    %v102 = vld [vmem:[%s2 + $0x70] sm:$0xff]
    %v103 = vld [vmem:[%s2 + $0x78] sm:$0xff]
    %v104 = vld [vmem:[%s2 + $0x80] sm:$0xff]
    %v105 = vld [vmem:[%s2 + $0x88] sm:$0xff]
    %v106 = vld [vmem:[%s2 + $0x90] sm:$0xff]
    %v107 = vld [vmem:[%s2 + $0x98] sm:$0xff]
    %v108 = vld [vmem:[%s2 + $0xa0] sm:$0xff]
    %v109 = vld [vmem:[%s2 + $0xa8] sm:$0xff]
    %v110 = vld [vmem:[%s2 + $0xb0] sm:$0xff]
    %v111 = vld [vmem:[%s2 + $0xb8] sm:$0xff]
    %v112 = vld [vmem:[%s2 + $0xc0] sm:$0xff]
    %v113 = vld [vmem:[%s2 + $0xc8] sm:$0xff]
    %v114 = vld [vmem:[%s2 + $0xd0] sm:$0xff]
    %v115 = vld [vmem:[%s2 + $0xd8] sm:$0xff]
    %v116 = vld [vmem:[%s2 + $0xe0] sm:$0xff]
    %v117 = vld [vmem:[%s2 + $0xe8] sm:$0xff]
    %v118 = vld [vmem:[%s2 + $0xf0] sm:$0xff]
    %v119 = vld [vmem:[%s2 + $0xf8] sm:$0xff]
    %v120 = vld [vmem:[%s2 + $0x100] sm:$0xff]
    %v121 = vld [vmem:[%s2 + $0x108] sm:$0xff]
    %v122 = vld [vmem:[%s2 + $0x110] sm:$0xff]
    %v123 = vld [vmem:[%s2 + $0x118] sm:$0xff]
    %v124 = vld [vmem:[%s2 + $0x120] sm:$0xff]
    %v125 = vld [vmem:[%s2 + $0x128] sm:$0xff]
    %v126 = vld [vmem:[%s2 + $0x130] sm:$0xff]
    %v127 = vld [vmem:[%s2 + $0x138] sm:$0xff]
    %v128 = vld [vmem:[%s2 + $0x140] sm:$0xff]
    %v129 = vld [vmem:[%s2 + $0x148] sm:$0xff]
    %v130 = vld [vmem:[%s2 + $0x150] sm:$0xff]
    %v131 = vld [vmem:[%s2 + $0x158] sm:$0xff]
    %v132 = vld [vmem:[%s2 + $0x160] sm:$0xff]
    %v133 = vld [vmem:[%s2 + $0x168] sm:$0xff]
    %v134 = vld [vmem:[%s2 + $0x170] sm:$0xff]
    %v135 = vld [vmem:[%s2 + $0x178] sm:$0xff]
    %v136 = vld [vmem:[%s2 + $0x180] sm:$0xff]
    %v137 = vld [vmem:[%s2 + $0x188] sm:$0xff]
    %v138 = vld [vmem:[%s2 + $0x190] sm:$0xff]
    %v139 = vld [vmem:[%s2 + $0x198] sm:$0xff]
    %v140 = vld [vmem:[%s2 + $0x1a0] sm:$0xff]
    %v141 = vld [vmem:[%s2 + $0x1a8] sm:$0xff]
    %v142 = vld [vmem:[%s2 + $0x1b0] sm:$0xff]
    %v143 = vld [vmem:[%s2 + $0x1b8] sm:$0xff]
    %v144 = vld [vmem:[%s2 + $0x1c0] sm:$0xff]
    %v145 = vld [vmem:[%s2 + $0x1c8] sm:$0xff]
    %v146 = vld [vmem:[%s2 + $0x1d0] sm:$0xff]
    %v147 = vld [vmem:[%s2 + $0x1d8] sm:$0xff]
    %v148 = vld [vmem:[%s2 + $0x1e0] sm:$0xff]
    %v149 = vld [vmem:[%s2 + $0x1e8] sm:$0xff]
    %v150 = vld [vmem:[%s2 + $0x1f0] sm:$0xff]
    %v151 = vld [vmem:[%s2 + $0x1f8] sm:$0xff]
    %v152 = vld [vmem:[%s2 + $0x200] sm:$0xff]
    %v153 = vld [vmem:[%s2 + $0x208] sm:$0xff]
    %v154 = vld [vmem:[%s2 + $0x210] sm:$0xff]
    %v155 = vld [vmem:[%s2 + $0x218] sm:$0xff]
    %v156 = vld [vmem:[%s2 + $0x220] sm:$0xff]
    %v157 = vld [vmem:[%s2 + $0x228] sm:$0xff]
    %v158 = vld [vmem:[%s2 + $0x230] sm:$0xff]
    %v159 = vld [vmem:[%s2 + $0x238] sm:$0xff]
    %v160 = vld [vmem:[%s2 + $0x240] sm:$0xff]
    %v161 = vld [vmem:[%s2 + $0x248] sm:$0xff]
    %v162 = vld [vmem:[%s2 + $0x250] sm:$0xff]
    %v163 = vld [vmem:[%s2 + $0x258] sm:$0xff]
    %v164 = vld [vmem:[%s2 + $0x260] sm:$0xff]
    %v165 = vld [vmem:[%s2 + $0x268] sm:$0xff]
    %v166 = vld [vmem:[%s2 + $0x270] sm:$0xff]
    %v167 = vld [vmem:[%s2 + $0x278] sm:$0xff]
    %v168 = vld [vmem:[%s2 + $0x280] sm:$0xff]
    %v169 = vld [vmem:[%s2 + $0x288] sm:$0xff]
    %v170 = vld [vmem:[%s2 + $0x290] sm:$0xff]
    %v171 = vld [vmem:[%s2 + $0x298] sm:$0xff]
    %v172 = vld [vmem:[%s2 + $0x2a0] sm:$0xff]
    %v173 = vld [vmem:[%s2 + $0x2a8] sm:$0xff]
    %v174 = vld [vmem:[%s2 + $0x2b0] sm:$0xff]
    %v175 = vld [vmem:[%s2 + $0x2b8] sm:$0xff]
    %v176 = vld [vmem:[%s2 + $0x2c0] sm:$0xff]
    %v177 = vld [vmem:[%s2 + $0x2c8] sm:$0xff]
    %v178 = vld [vmem:[%s2 + $0x2d0] sm:$0xff]
    %v179 = vld [vmem:[%s2 + $0x2d8] sm:$0xff]
    %v180 = vld [vmem:[%s2 + $0x2e0] sm:$0xff]
    %v181 = vld [vmem:[%s2 + $0x2e8] sm:$0xff]
    %v182 = vld [vmem:[%s2 + $0x2f0] sm:$0xff]
    %v183 = vld [vmem:[%s2 + $0x2f8] sm:$0xff]
    %v184 = vld [vmem:[%s2 + $0x300] sm:$0xff]
    %v185 = vld [vmem:[%s2 + $0x308] sm:$0xff]
    %v186 = vld [vmem:[%s2 + $0x310] sm:$0xff]
    %v187 = vld [vmem:[%s2 + $0x318] sm:$0xff]
    %v188 = vld [vmem:[%s2 + $0x320] sm:$0xff]
    %v189 = vld [vmem:[%s2 + $0x328] sm:$0xff]
    %v190 = vld [vmem:[%s2 + $0x330] sm:$0xff]
    %v191 = vld [vmem:[%s2 + $0x338] sm:$0xff]
    %v192 = vld [vmem:[%s2 + $0x340] sm:$0xff]
    %v193 = vld [vmem:[%s2 + $0x348] sm:$0xff]
    %v194 = vld [vmem:[%s2 + $0x350] sm:$0xff]
    %v195 = vld [vmem:[%s2 + $0x358] sm:$0xff]
    %v196 = vld [vmem:[%s2 + $0x360] sm:$0xff]
    %v197 = vld [vmem:[%s2 + $0x368] sm:$0xff]
    %v198 = vld [vmem:[%s2 + $0x370] sm:$0xff]
    %v199 = vld [vmem:[%s2 + $0x378] sm:$0xff]
    %v200 = vld [vmem:[%s2 + $0x380] sm:$0xff]
    %v201 = vld [vmem:[%s2 + $0x388] sm:$0xff]
    %v202 = vld [vmem:[%s2 + $0x390] sm:$0xff]
    %v203 = vld [vmem:[%s2 + $0x398] sm:$0xff]
    %v204 = vld [vmem:[%s2 + $0x3a0] sm:$0xff]
    %v205 = vld [vmem:[%s2 + $0x3a8] sm:$0xff]
    %v206 = vld [vmem:[%s2 + $0x3b0] sm:$0xff]
    %v207 = vld [vmem:[%s2 + $0x3b8] sm:$0xff]
    %v208 = vld [vmem:[%s2 + $0x3c0] sm:$0xff]
    %v209 = vld [vmem:[%s2 + $0x3c8] sm:$0xff]
    %v210 = vld [vmem:[%s2 + $0x3d0] sm:$0xff]
    %v211 = vld [vmem:[%s2 + $0x3d8] sm:$0xff]
    %v212 = vld [vmem:[%s2 + $0x3e0] sm:$0xff]
    %v213 = vld [vmem:[%s2 + $0x3e8] sm:$0xff]
    %v214 = vld [vmem:[%s2 + $0x3f0] sm:$0xff]
    %v215 = vld [vmem:[%s2 + $0x3f8] sm:$0xff]
    %v216 = vld [vmem:[%s2 + $0x400] sm:$0xff]
    %v217 = vld [vmem:[%s2 + $0x408] sm:$0xff]
    %v218 = vld [vmem:[%s2 + $0x410] sm:$0xff]
    %v219 = vld [vmem:[%s2 + $0x418] sm:$0xff]
    %v220 = vld [vmem:[%s2 + $0x420] sm:$0xff]
    %v221 = vld [vmem:[%s2 + $0x428] sm:$0xff]
    %v222 = vld [vmem:[%s2 + $0x430] sm:$0xff]
    %v223 = vld [vmem:[%s2 + $0x438] sm:$0xff]
    %v224 = vld [vmem:[%s2 + $0x440] sm:$0xff]
    %v225 = vld [vmem:[%s2 + $0x448] sm:$0xff]
    %v226 = vld [vmem:[%s2 + $0x450] sm:$0xff]
    %v227 = vld [vmem:[%s2 + $0x458] sm:$0xff]
    %v228 = vld [vmem:[%s2 + $0x460] sm:$0xff]
    %v229 = vld [vmem:[%s2 + $0x468] sm:$0xff]
    %v230 = vld [vmem:[%s2 + $0x470] sm:$0xff]
    %v231 = vld [vmem:[%s2 + $0x478] sm:$0xff]
    %v232 = vld [vmem:[%s2 + $0x480] sm:$0xff]
    %v233 = vld [vmem:[%s2 + $0x488] sm:$0xff]
    %v234 = vld [vmem:[%s2 + $0x490] sm:$0xff]
    %v235 = vld [vmem:[%s2 + $0x498] sm:$0xff]
    %v236 = vld [vmem:[%s2 + $0x4a0] sm:$0xff]
    %v237 = vld [vmem:[%s2 + $0x4a8] sm:$0xff]
    %v238 = vld [vmem:[%s2 + $0x4b0] sm:$0xff]
    %v239 = vld [vmem:[%s2 + $0x4b8] sm:$0xff]
    %v240 = vld [vmem:[%s2 + $0x4c0] sm:$0xff]
    %v241 = vld [vmem:[%s2 + $0x4c8] sm:$0xff]
    %v242 = vld [vmem:[%s2 + $0x4d0] sm:$0xff]
    %v243 = vld [vmem:[%s2 + $0x4d8] sm:$0xff]
    %v244 = vld [vmem:[%s2 + $0x4e0] sm:$0xff]
    %v245 = vld [vmem:[%s2 + $0x4e8] sm:$0xff]
    %v246 = vld [vmem:[%s2 + $0x4f0] sm:$0xff]
    %v247 = vld [vmem:[%s2 + $0x4f8] sm:$0xff]
    %v248 = vld [vmem:[%s2 + $0x500] sm:$0xff]
    %v249 = vld [vmem:[%s2 + $0x508] sm:$0xff]
    %v250 = vld [vmem:[%s2 + $0x510] sm:$0xff]
    %v251 = vld [vmem:[%s2 + $0x518] sm:$0xff]
    %v252 = vld [vmem:[%s2 + $0x520] sm:$0xff]
    %v253 = vld [vmem:[%s2 + $0x528] sm:$0xff]
    %v254 = vld [vmem:[%s2 + $0x530] sm:$0xff]
    %v255 = vld [vmem:[%s2 + $0x538] sm:$0xff]
    %v256 = vld [vmem:[%s2 + $0x540] sm:$0xff]
    %v257 = vld [vmem:[%s2 + $0x548] sm:$0xff]
    %v258 = vld [vmem:[%s2 + $0x550] sm:$0xff]
    %v259 = vld [vmem:[%s2 + $0x558] sm:$0xff]
    %v260 = vld [vmem:[%s2 + $0x560] sm:$0xff]
    %v261 = vld [vmem:[%s2 + $0x568] sm:$0xff]
    %v262 = vld [vmem:[%s2 + $0x570] sm:$0xff]
    %v263 = vld [vmem:[%s2 + $0x578] sm:$0xff]
    %v264 = vld [vmem:[%s2 + $0x580] sm:$0xff]
    %v265 = vld [vmem:[%s2 + $0x588] sm:$0xff]
    %v266 = vld [vmem:[%s2 + $0x590] sm:$0xff]
    %v267 = vld [vmem:[%s2 + $0x598] sm:$0xff]
    %v268 = vld [vmem:[%s2 + $0x5a0] sm:$0xff]
    %v269 = vld [vmem:[%s2 + $0x5a8] sm:$0xff]
    %v270 = vld [vmem:[%s2 + $0x5b0] sm:$0xff]
    %v271 = vld [vmem:[%s2 + $0x5b8] sm:$0xff]
    %v272 = vld [vmem:[%s2 + $0x5c0] sm:$0xff]
    %v273 = vld [vmem:[%s2 + $0x5c8] sm:$0xff]
    %v274 = vld [vmem:[%s2 + $0x5d0] sm:$0xff]
    %v275 = vld [vmem:[%s2 + $0x5d8] sm:$0xff]
    %v276 = vld [vmem:[%s2 + $0x5e0] sm:$0xff]
    %v277 = vld [vmem:[%s2 + $0x5e8] sm:$0xff]
    %v278 = vld [vmem:[%s2 + $0x5f0] sm:$0xff]
    %v279 = vld [vmem:[%s2 + $0x5f8] sm:$0xff]
    %v280 = vld [vmem:[%s2 + $0x600] sm:$0xff]
    %v281 = vld [vmem:[%s2 + $0x608] sm:$0xff]
    %v282 = vld [vmem:[%s2 + $0x610] sm:$0xff]
    %v283 = vld [vmem:[%s2 + $0x618] sm:$0xff]
    %v284 = vld [vmem:[%s2 + $0x620] sm:$0xff]
    %v285 = vld [vmem:[%s2 + $0x628] sm:$0xff]
    %v286 = vld [vmem:[%s2 + $0x630] sm:$0xff]
    %v287 = vld [vmem:[%s2 + $0x638] sm:$0xff]
    %v288 = vld [vmem:[%s2 + $0x640] sm:$0xff]
    %v289 = vld [vmem:[%s2 + $0x648] sm:$0xff]
    %v290 = vld [vmem:[%s2 + $0x650] sm:$0xff]
    %v291 = vld [vmem:[%s2 + $0x658] sm:$0xff]
    %v292 = vld [vmem:[%s2 + $0x660] sm:$0xff]
    %v293 = vld [vmem:[%s2 + $0x668] sm:$0xff]
    %v294 = vld [vmem:[%s2 + $0x670] sm:$0xff]
    %v295 = vld [vmem:[%s2 + $0x678] sm:$0xff]
    %v296 = vld [vmem:[%s2 + $0x680] sm:$0xff]
    %v297 = vld [vmem:[%s2 + $0x688] sm:$0xff]
    %v298 = vld [vmem:[%s2 + $0x690] sm:$0xff]
    %v299 = vld [vmem:[%s2 + $0x698] sm:$0xff]
    %v300 = vld [vmem:[%s2 + $0x6a0] sm:$0xff]
    %v301 = vld [vmem:[%s2 + $0x6a8] sm:$0xff]
    %v302 = vld [vmem:[%s2 + $0x6b0] sm:$0xff]
    %v303 = vld [vmem:[%s2 + $0x6b8] sm:$0xff]
    %v304 = vld [vmem:[%s2 + $0x6c0] sm:$0xff]
    %v305 = vld [vmem:[%s2 + $0x6c8] sm:$0xff]
    %v306 = vld [vmem:[%s2 + $0x6d0] sm:$0xff]
    %v307 = vld [vmem:[%s2 + $0x6d8] sm:$0xff]
    %v308 = vld [vmem:[%s2 + $0x6e0] sm:$0xff]
    %v309 = vld [vmem:[%s2 + $0x6e8] sm:$0xff]
    %v310 = vld [vmem:[%s2 + $0x6f0] sm:$0xff]
    %v311 = vld [vmem:[%s2 + $0x6f8] sm:$0xff]
    %v312 = vld [vmem:[%s2 + $0x700] sm:$0xff]
    %v313 = vld [vmem:[%s2 + $0x708] sm:$0xff]
    %v314 = vld [vmem:[%s2 + $0x710] sm:$0xff]
    %v315 = vld [vmem:[%s2 + $0x718] sm:$0xff]
    %v316 = vld [vmem:[%s2 + $0x720] sm:$0xff]
    %v317 = vld [vmem:[%s2 + $0x728] sm:$0xff]
    %v318 = vld [vmem:[%s2 + $0x730] sm:$0xff]
    %v319 = vld [vmem:[%s2 + $0x738] sm:$0xff]
    %v320 = vld [vmem:[%s2 + $0x740] sm:$0xff]
    %v321 = vld [vmem:[%s2 + $0x748] sm:$0xff]
    %v322 = vld [vmem:[%s2 + $0x750] sm:$0xff]
    %v323 = vld [vmem:[%s2 + $0x758] sm:$0xff]
    %v324 = vld [vmem:[%s2 + $0x760] sm:$0xff]
    %v325 = vld [vmem:[%s2 + $0x768] sm:$0xff]
    %v326 = vld [vmem:[%s2 + $0x770] sm:$0xff]
    %v327 = vld [vmem:[%s2 + $0x778] sm:$0xff]
    %v328 = vld [vmem:[%s2 + $0x780] sm:$0xff]
    %v329 = vld [vmem:[%s2 + $0x788] sm:$0xff]
    %v330 = vld [vmem:[%s2 + $0x790] sm:$0xff]
    %v331 = vld [vmem:[%s2 + $0x798] sm:$0xff]
    %v332 = vld [vmem:[%s2 + $0x7a0] sm:$0xff]
    %v333 = vld [vmem:[%s2 + $0x7a8] sm:$0xff]
    %v334 = vld [vmem:[%s2 + $0x7b0] sm:$0xff]
    %v335 = vld [vmem:[%s2 + $0x7b8] sm:$0xff]
    %v336 = vld [vmem:[%s2 + $0x7c0] sm:$0xff]
    %v337 = vld [vmem:[%s2 + $0x7c8] sm:$0xff]
    %v338 = vld [vmem:[%s2 + $0x7d0] sm:$0xff]
    %v339 = vld [vmem:[%s2 + $0x7d8] sm:$0xff]
    %v340 = vld [vmem:[%s2 + $0x7e0] sm:$0xff]
    %v341 = vld [vmem:[%s2 + $0x7e8] sm:$0xff]
    %v342 = vld [vmem:[%s2 + $0x7f0] sm:$0xff]
    %v343 = vld [vmem:[%s2 + $0x7f8] sm:$0xff]
    %v344 = vld [vmem:[%s2 + $0x800] sm:$0xff]
    %v345 = vld [vmem:[%s2 + $0x808] sm:$0xff]
    %v346 = vld [vmem:[%s2 + $0x810] sm:$0xff]
    %v347 = vld [vmem:[%s2 + $0x818] sm:$0xff]
    %v348 = vld [vmem:[%s2 + $0x820] sm:$0xff]
    %v349 = vld [vmem:[%s2 + $0x828] sm:$0xff]
    %v350 = vld [vmem:[%s2 + $0x830] sm:$0xff]
    %v351 = vld [vmem:[%s2 + $0x838] sm:$0xff]
    %v352 = vld [vmem:[%s2 + $0x840] sm:$0xff]
    %v353 = vld [vmem:[%s2 + $0x848] sm:$0xff]
    %v354 = vld [vmem:[%s2 + $0x850] sm:$0xff]
    %v355 = vld [vmem:[%s2 + $0x858] sm:$0xff]
    %v356 = vld [vmem:[%s2 + $0x860] sm:$0xff]
    %v357 = vld [vmem:[%s2 + $0x868] sm:$0xff]
    %v358 = vld [vmem:[%s2 + $0x870] sm:$0xff]
    %v359 = vld [vmem:[%s2 + $0x878] sm:$0xff]
    %v360 = vld [vmem:[%s2 + $0x880] sm:$0xff]
    %v361 = vld [vmem:[%s2 + $0x888] sm:$0xff]
    %v362 = vld [vmem:[%s2 + $0x890] sm:$0xff]
    %v363 = vld [vmem:[%s2 + $0x898] sm:$0xff]
    %v364 = vld [vmem:[%s2 + $0x8a0] sm:$0xff]
    %v365 = vld [vmem:[%s2 + $0x8a8] sm:$0xff]
    %v366 = vld [vmem:[%s2 + $0x8b0] sm:$0xff]
    %v367 = vld [vmem:[%s2 + $0x8b8] sm:$0xff]
    %v368 = vld [vmem:[%s2 + $0x8c0] sm:$0xff]
    %v369 = vld [vmem:[%s2 + $0x8c8] sm:$0xff]
    %v370 = vld [vmem:[%s2 + $0x8d0] sm:$0xff]
    %v371 = vld [vmem:[%s2 + $0x8d8] sm:$0xff]
    %v372 = vld [vmem:[%s2 + $0x8e0] sm:$0xff]
    %v373 = vld [vmem:[%s2 + $0x8e8] sm:$0xff]
    %v374 = vld [vmem:[%s2 + $0x8f0] sm:$0xff]
    %v375 = vld [vmem:[%s2 + $0x8f8] sm:$0xff]
    %v376 = vld [vmem:[%s2 + $0x900] sm:$0xff]
    %v377 = vld [vmem:[%s2 + $0x908] sm:$0xff]
    %v378 = vld [vmem:[%s2 + $0x910] sm:$0xff]
    %v379 = vld [vmem:[%s2 + $0x918] sm:$0xff]
    %v380 = vld [vmem:[%s2 + $0x920] sm:$0xff]
    %v381 = vld [vmem:[%s2 + $0x928] sm:$0xff]
    %v382 = vld [vmem:[%s2 + $0x930] sm:$0xff]
    %v383 = vld [vmem:[%s2 + $0x938] sm:$0xff]
    %v384 = vld [vmem:[%s2 + $0x940] sm:$0xff]
    %v385 = vld [vmem:[%s2 + $0x948] sm:$0xff]
    %v386 = vld [vmem:[%s2 + $0x950] sm:$0xff]
    %v387 = vld [vmem:[%s2 + $0x958] sm:$0xff]
    %v388 = vld [vmem:[%s2 + $0x960] sm:$0xff]
    %v389 = vld [vmem:[%s2 + $0x968] sm:$0xff]
    %v390 = vld [vmem:[%s2 + $0x970] sm:$0xff]
    %v391 = vld [vmem:[%s2 + $0x978] sm:$0xff]
    %v392 = vld [vmem:[%s2 + $0x980] sm:$0xff]
    %v393 = vld [vmem:[%s2 + $0x988] sm:$0xff]
    %v394 = vld [vmem:[%s2 + $0x990] sm:$0xff]
    %v395 = vld [vmem:[%s2 + $0x998] sm:$0xff]
    %v396 = vld [vmem:[%s2 + $0x9a0] sm:$0xff]
    %v397 = vld [vmem:[%s2 + $0x9a8] sm:$0xff]
    %v398 = vld [vmem:[%s2 + $0x9b0] sm:$0xff]
    %v399 = vld [vmem:[%s2 + $0x9b8] sm:$0xff]
    %v400 = vld [vmem:[%s2 + $0x9c0] sm:$0xff]
    %v401 = vld [vmem:[%s2 + $0x9c8] sm:$0xff]
    %v402 = vld [vmem:[%s2 + $0x9d0] sm:$0xff]
    %v403 = vld [vmem:[%s2 + $0x9d8] sm:$0xff]
    %v404 = vld [vmem:[%s2 + $0x9e0] sm:$0xff]
    %v405 = vld [vmem:[%s2 + $0x9e8] sm:$0xff]
    %v406 = vld [vmem:[%s2 + $0x9f0] sm:$0xff]
    %v407 = vld [vmem:[%s2 + $0x9f8] sm:$0xff]
    %v408 = vld [vmem:[%s2 + $0xa00] sm:$0xff]
    %v409 = vld [vmem:[%s2 + $0xa08] sm:$0xff]
    %v410 = vld [vmem:[%s2 + $0xa10] sm:$0xff]
    %v411 = vld [vmem:[%s2 + $0xa18] sm:$0xff]
    %v412 = vld [vmem:[%s2 + $0xa20] sm:$0xff]
    %v413 = vld [vmem:[%s2 + $0xa28] sm:$0xff]
    %v414 = vld [vmem:[%s2 + $0xa30] sm:$0xff]
    %v415 = vld [vmem:[%s2 + $0xa38] sm:$0xff]
    %v416 = vld [vmem:[%s2 + $0xa40] sm:$0xff]
    %v417 = vld [vmem:[%s2 + $0xa48] sm:$0xff]
    %v418 = vld [vmem:[%s2 + $0xa50] sm:$0xff]
    %v419 = vld [vmem:[%s2 + $0xa58] sm:$0xff]
    %v420 = vld [vmem:[%s2 + $0xa60] sm:$0xff]
    %v421 = vld [vmem:[%s2 + $0xa68] sm:$0xff]
    %v422 = vld [vmem:[%s2 + $0xa70] sm:$0xff]
    %v423 = vld [vmem:[%s2 + $0xa78] sm:$0xff]
    %v424 = vld [vmem:[%s2 + $0xa80] sm:$0xff]
    %v425 = vld [vmem:[%s2 + $0xa88] sm:$0xff]
    %v426 = vld [vmem:[%s2 + $0xa90] sm:$0xff]
    %v427 = vld [vmem:[%s2 + $0xa98] sm:$0xff]
    %v428 = vld [vmem:[%s2 + $0xaa0] sm:$0xff]
    %v429 = vld [vmem:[%s2 + $0xaa8] sm:$0xff]
    %v430 = vld [vmem:[%s2 + $0xab0] sm:$0xff]
    %v431 = vld [vmem:[%s2 + $0xab8] sm:$0xff]
    %v432 = vld [vmem:[%s2 + $0xac0] sm:$0xff]
    %v433 = vld [vmem:[%s2 + $0xac8] sm:$0xff]
    %v434 = vld [vmem:[%s2 + $0xad0] sm:$0xff]
    %v435 = vld [vmem:[%s2 + $0xad8] sm:$0xff]
    %v436 = vld [vmem:[%s2 + $0xae0] sm:$0xff]
    %v437 = vld [vmem:[%s2 + $0xae8] sm:$0xff]
    %v438 = vld [vmem:[%s2 + $0xaf0] sm:$0xff]
    %v439 = vld [vmem:[%s2 + $0xaf8] sm:$0xff]
    %v440 = vld [vmem:[%s2 + $0xb00] sm:$0xff]
    %v441 = vld [vmem:[%s2 + $0xb08] sm:$0xff]
    %v442 = vld [vmem:[%s2 + $0xb10] sm:$0xff]
    %v443 = vld [vmem:[%s2 + $0xb18] sm:$0xff]
    %v444 = vld [vmem:[%s2 + $0xb20] sm:$0xff]
    %v445 = vld [vmem:[%s2 + $0xb28] sm:$0xff]
    %v446 = vld [vmem:[%s2 + $0xb30] sm:$0xff]
    %v447 = vld [vmem:[%s2 + $0xb38] sm:$0xff]
    %v448 = vld [vmem:[%s2 + $0xb40] sm:$0xff]
    %v449 = vld [vmem:[%s2 + $0xb48] sm:$0xff]
    %v450 = vld [vmem:[%s2 + $0xb50] sm:$0xff]
    %v451 = vld [vmem:[%s2 + $0xb58] sm:$0xff]
    %v452 = vld [vmem:[%s2 + $0xb60] sm:$0xff]
    %v453 = vld [vmem:[%s2 + $0xb68] sm:$0xff]
    %v454 = vld [vmem:[%s2 + $0xb70] sm:$0xff]
    %v455 = vld [vmem:[%s2 + $0xb78] sm:$0xff]
    %v456 = vld [vmem:[%s2 + $0xb80] sm:$0xff]
    %v457 = vld [vmem:[%s2 + $0xb88] sm:$0xff]
    %v458 = vld [vmem:[%s2 + $0xb90] sm:$0xff]
    %v459 = vld [vmem:[%s2 + $0xb98] sm:$0xff]
    %v460 = vld [vmem:[%s2 + $0xba0] sm:$0xff]
    %v461 = vld [vmem:[%s2 + $0xba8] sm:$0xff]
    %v462 = vld [vmem:[%s2 + $0xbb0] sm:$0xff]
    %v463 = vld [vmem:[%s2 + $0xbb8] sm:$0xff]
    %v464 = vld [vmem:[%s2 + $0xbc0] sm:$0xff]
    %v465 = vld [vmem:[%s2 + $0xbc8] sm:$0xff]
    %v466 = vld [vmem:[%s2 + $0xbd0] sm:$0xff]
    %v467 = vld [vmem:[%s2 + $0xbd8] sm:$0xff]
    %v468 = vld [vmem:[%s2 + $0xbe0] sm:$0xff]
    %v469 = vld [vmem:[%s2 + $0xbe8] sm:$0xff]
    %v470 = vld [vmem:[%s2 + $0xbf0] sm:$0xff]
    %v471 = vld [vmem:[%s2 + $0xbf8] sm:$0xff]
    %v472 = vld [vmem:[%s2 + $0xc00] sm:$0xff]
    %v473 = vld [vmem:[%s2 + $0xc08] sm:$0xff]
    %v474 = vld [vmem:[%s2 + $0xc10] sm:$0xff]
    %v475 = vld [vmem:[%s2 + $0xc18] sm:$0xff]
    %v476 = vld [vmem:[%s2 + $0xc20] sm:$0xff]
    %v477 = vld [vmem:[%s2 + $0xc28] sm:$0xff]
    %v478 = vld [vmem:[%s2 + $0xc30] sm:$0xff]
    %v479 = vld [vmem:[%s2 + $0xc38] sm:$0xff]
    %v480 = vld [vmem:[%s2 + $0xc40] sm:$0xff]
    %v481 = vld [vmem:[%s2 + $0xc48] sm:$0xff]
    %v482 = vld [vmem:[%s2 + $0xc50] sm:$0xff]
    %v483 = vld [vmem:[%s2 + $0xc58] sm:$0xff]
    %v484 = vld [vmem:[%s2 + $0xc60] sm:$0xff]
    %v485 = vld [vmem:[%s2 + $0xc68] sm:$0xff]
    %v486 = vld [vmem:[%s2 + $0xc70] sm:$0xff]
    %v487 = vld [vmem:[%s2 + $0xc78] sm:$0xff]
    %v488 = vld [vmem:[%s2 + $0xc80] sm:$0xff]
    %v489 = vld [vmem:[%s2 + $0xc88] sm:$0xff]
    %v490 = vld [vmem:[%s2 + $0xc90] sm:$0xff]
    %v491 = vld [vmem:[%s2 + $0xc98] sm:$0xff]
    %v492 = vld [vmem:[%s2 + $0xca0] sm:$0xff]
    %v493 = vld [vmem:[%s2 + $0xca8] sm:$0xff]
    %v494 = vld [vmem:[%s2 + $0xcb0] sm:$0xff]
    %v495 = vld [vmem:[%s2 + $0xcb8] sm:$0xff]
    %v496 = vld [vmem:[%s2 + $0xcc0] sm:$0xff]
    %v497 = vld [vmem:[%s2 + $0xcc8] sm:$0xff]
    %v498 = vld [vmem:[%s2 + $0xcd0] sm:$0xff]
    %v499 = vld [vmem:[%s2 + $0xcd8] sm:$0xff]
    %v500 = vld [vmem:[%s2 + $0xce0] sm:$0xff]
    %v501 = vld [vmem:[%s2 + $0xce8] sm:$0xff]
    %v502 = vld [vmem:[%s2 + $0xcf0] sm:$0xff]
    %v503 = vld [vmem:[%s2 + $0xcf8] sm:$0xff]
    %v504 = vld [vmem:[%s2 + $0xd00] sm:$0xff]
    %v505 = vld [vmem:[%s2 + $0xd08] sm:$0xff]
    %v506 = vld [vmem:[%s2 + $0xd10] sm:$0xff]
    %v507 = vld [vmem:[%s2 + $0xd18] sm:$0xff]
    %v508 = vld [vmem:[%s2 + $0xd20] sm:$0xff]
    %v509 = vld [vmem:[%s2 + $0xd28] sm:$0xff]
    %v510 = vld [vmem:[%s2 + $0xd30] sm:$0xff]
    %v511 = vld [vmem:[%s2 + $0xd38] sm:$0xff]
    %v512 = vld [vmem:[%s2 + $0xd40] sm:$0xff]
    %v513 = vld [vmem:[%s2 + $0xd48] sm:$0xff]
    %v514 = vld [vmem:[%s2 + $0xd50] sm:$0xff]
    %v515 = vld [vmem:[%s2 + $0xd58] sm:$0xff]
    %v516 = vld [vmem:[%s2 + $0xd60] sm:$0xff]
    %v517 = vld [vmem:[%s2 + $0xd68] sm:$0xff]
    %v518 = vld [vmem:[%s2 + $0xd70] sm:$0xff]
    %v519 = vld [vmem:[%s2 + $0xd78] sm:$0xff]
    %v520 = vld [vmem:[%s2 + $0xd80] sm:$0xff]
    %v521 = vld [vmem:[%s2 + $0xd88] sm:$0xff]
    %v522 = vld [vmem:[%s2 + $0xd90] sm:$0xff]
    %v523 = vld [vmem:[%s2 + $0xd98] sm:$0xff]
    %v524 = vld [vmem:[%s2 + $0xda0] sm:$0xff]
    %v525 = vld [vmem:[%s2 + $0xda8] sm:$0xff]
    %v526 = vld [vmem:[%s2 + $0xdb0] sm:$0xff]
    %v527 = vld [vmem:[%s2 + $0xdb8] sm:$0xff]
    %v528 = vld [vmem:[%s2 + $0xdc0] sm:$0xff]
    %v529 = vld [vmem:[%s2 + $0xdc8] sm:$0xff]
    %v530 = vld [vmem:[%s2 + $0xdd0] sm:$0xff]
    %v531 = vld [vmem:[%s2 + $0xdd8] sm:$0xff]
    %v532 = vld [vmem:[%s2 + $0xde0] sm:$0xff]
    %v533 = vld [vmem:[%s2 + $0xde8] sm:$0xff]
    %v534 = vld [vmem:[%s2 + $0xdf0] sm:$0xff]
    %v535 = vld [vmem:[%s2 + $0xdf8] sm:$0xff]
    %v536 = vld [vmem:[%s2 + $0xe00] sm:$0xff]
    %v537 = vld [vmem:[%s2 + $0xe08] sm:$0xff]
    %v538 = vld [vmem:[%s2 + $0xe10] sm:$0xff]
    %v539 = vld [vmem:[%s2 + $0xe18] sm:$0xff]
    %v540 = vld [vmem:[%s2 + $0xe20] sm:$0xff]
    %v541 = vld [vmem:[%s2 + $0xe28] sm:$0xff]
    %v542 = vld [vmem:[%s2 + $0xe30] sm:$0xff]
    %v543 = vld [vmem:[%s2 + $0xe38] sm:$0xff]
    %v544 = vld [vmem:[%s2 + $0xe40] sm:$0xff]
    %v545 = vld [vmem:[%s2 + $0xe48] sm:$0xff]
    %v546 = vld [vmem:[%s2 + $0xe50] sm:$0xff]
    %v547 = vld [vmem:[%s2 + $0xe58] sm:$0xff]
    %v548 = vld [vmem:[%s2 + $0xe60] sm:$0xff]
    %v549 = vld [vmem:[%s2 + $0xe68] sm:$0xff]
    %v550 = vld [vmem:[%s2 + $0xe70] sm:$0xff]
    %v551 = vld [vmem:[%s2 + $0xe78] sm:$0xff]
    %v552 = vld [vmem:[%s2 + $0xe80] sm:$0xff]
    %v553 = vld [vmem:[%s2 + $0xe88] sm:$0xff]
    %v554 = vld [vmem:[%s2 + $0xe90] sm:$0xff]
    %v555 = vld [vmem:[%s2 + $0xe98] sm:$0xff]
    %v556 = vld [vmem:[%s2 + $0xea0] sm:$0xff]
    %v557 = vld [vmem:[%s2 + $0xea8] sm:$0xff]
    %v558 = vld [vmem:[%s2 + $0xeb0] sm:$0xff]
    %v559 = vld [vmem:[%s2 + $0xeb8] sm:$0xff]
    %v560 = vld [vmem:[%s2 + $0xec0] sm:$0xff]
    %v561 = vld [vmem:[%s2 + $0xec8] sm:$0xff]
    %v562 = vld [vmem:[%s2 + $0xed0] sm:$0xff]
    %v563 = vld [vmem:[%s2 + $0xed8] sm:$0xff]
    %v564 = vld [vmem:[%s2 + $0xee0] sm:$0xff]
    %v565 = vld [vmem:[%s2 + $0xee8] sm:$0xff]
    %v566 = vld [vmem:[%s2 + $0xef0] sm:$0xff]
    %v567 = vld [vmem:[%s2 + $0xef8] sm:$0xff]
    %v568 = vld [vmem:[%s2 + $0xf00] sm:$0xff]
    %v569 = vld [vmem:[%s2 + $0xf08] sm:$0xff]
    %v570 = vld [vmem:[%s2 + $0xf10] sm:$0xff]
    %v571 = vld [vmem:[%s2 + $0xf18] sm:$0xff]
    %v572 = vld [vmem:[%s2 + $0xf20] sm:$0xff]
    %v573 = vld [vmem:[%s2 + $0xf28] sm:$0xff]
    %v574 = vld [vmem:[%s2 + $0xf30] sm:$0xff]
    %v575 = vld [vmem:[%s2 + $0xf38] sm:$0xff]
    %v576 = vld [vmem:[%s2 + $0xf40] sm:$0xff]
    %v577 = vld [vmem:[%s2 + $0xf48] sm:$0xff]
    %v578 = vld [vmem:[%s2 + $0xf50] sm:$0xff]
    %v579 = vld [vmem:[%s2 + $0xf58] sm:$0xff]
    %v580 = vld [vmem:[%s2 + $0xf60] sm:$0xff]
    %v581 = vld [vmem:[%s2 + $0xf68] sm:$0xff]
    %v582 = vld [vmem:[%s2 + $0xf70] sm:$0xff]
    %v583 = vld [vmem:[%s2 + $0xf78] sm:$0xff]
    %v584 = vld [vmem:[%s2 + $0xf80] sm:$0xff]
    %v585 = vld [vmem:[%s2 + $0xf88] sm:$0xff]
    %v586 = vld [vmem:[%s2 + $0xf90] sm:$0xff]
    %v587 = vld [vmem:[%s2 + $0xf98] sm:$0xff]
    %v588 = vld [vmem:[%s2 + $0xfa0] sm:$0xff]
    %v589 = vld [vmem:[%s2 + $0xfa8] sm:$0xff]
    %v590 = vld [vmem:[%s2 + $0xfb0] sm:$0xff]
    %v591 = vld [vmem:[%s2 + $0xfb8] sm:$0xff]
    %v592 = vld [vmem:[%s2 + $0xfc0] sm:$0xff]
    %v593 = vld [vmem:[%s2 + $0xfc8] sm:$0xff]
    %v594 = vld [vmem:[%s2 + $0xfd0] sm:$0xff]
    %v595 = vld [vmem:[%s2 + $0xfd8] sm:$0xff]
    %v596 = vld [vmem:[%s2 + $0xfe0] sm:$0xff]
    %v597 = vld [vmem:[%s2 + $0xfe8] sm:$0xff]
    %v598 = vld [vmem:[%s2 + $0xff0] sm:$0xff]
    %v599 = vld [vmem:[%s2 + $0xff8] sm:$0xff]
    %v1112 = vunpack.c.l.b16 %v88
    %v1113 = vunpack.c.h.b16 %v88
    %v1114 = vunpack.c.l.b16 %v89
    %v1115 = vunpack.c.h.b16 %v89
    %v1116 = vunpack.c.l.b16 %v90
    %v1117 = vunpack.c.h.b16 %v90
    %v1118 = vunpack.c.l.b16 %v91
    %v1119 = vunpack.c.h.b16 %v91
    %v1120 = vunpack.c.l.b16 %v92
    %v1121 = vunpack.c.h.b16 %v92
    %v1122 = vunpack.c.l.b16 %v93
    %v1123 = vunpack.c.h.b16 %v93
    %v1124 = vunpack.c.l.b16 %v94
    %v1125 = vunpack.c.h.b16 %v94
    %v1126 = vunpack.c.l.b16 %v95
    %v1127 = vunpack.c.h.b16 %v95
    %v1128 = vunpack.c.l.b16 %v96
    %v1129 = vunpack.c.h.b16 %v96
    %v1130 = vunpack.c.l.b16 %v97
    %v1131 = vunpack.c.h.b16 %v97
    %v1132 = vunpack.c.l.b16 %v98
    %v1133 = vunpack.c.h.b16 %v98
    %v1134 = vunpack.c.l.b16 %v99
    %v1135 = vunpack.c.h.b16 %v99
    %v1136 = vunpack.c.l.b16 %v100
    %v1137 = vunpack.c.h.b16 %v100
    %v1138 = vunpack.c.l.b16 %v101
    %v1139 = vunpack.c.h.b16 %v101
    %v1140 = vunpack.c.l.b16 %v102
    %v1141 = vunpack.c.h.b16 %v102
    %v1142 = vunpack.c.l.b16 %v103
    %v1143 = vunpack.c.h.b16 %v103
    %v1144 = vunpack.c.l.b16 %v104
    %v1145 = vunpack.c.h.b16 %v104
    %v1146 = vunpack.c.l.b16 %v105
    %v1147 = vunpack.c.h.b16 %v105
    %v1148 = vunpack.c.l.b16 %v106
    %v1149 = vunpack.c.h.b16 %v106
    %v1150 = vunpack.c.l.b16 %v107
    %v1151 = vunpack.c.h.b16 %v107
    %v1152 = vunpack.c.l.b16 %v108
    %v1153 = vunpack.c.h.b16 %v108
    %v1154 = vunpack.c.l.b16 %v109
    %v1155 = vunpack.c.h.b16 %v109
    %v1156 = vunpack.c.l.b16 %v110
    %v1157 = vunpack.c.h.b16 %v110
    %v1158 = vunpack.c.l.b16 %v111
    %v1159 = vunpack.c.h.b16 %v111
    %v1160 = vunpack.c.l.b16 %v112
    %v1161 = vunpack.c.h.b16 %v112
    %v1162 = vunpack.c.l.b16 %v113
    %v1163 = vunpack.c.h.b16 %v113
    %v1164 = vunpack.c.l.b16 %v114
    %v1165 = vunpack.c.h.b16 %v114
    %v1166 = vunpack.c.l.b16 %v115
    %v1167 = vunpack.c.h.b16 %v115
    %v1168 = vunpack.c.l.b16 %v116
    %v1169 = vunpack.c.h.b16 %v116
    %v1170 = vunpack.c.l.b16 %v117
    %v1171 = vunpack.c.h.b16 %v117
    %v1172 = vunpack.c.l.b16 %v118
    %v1173 = vunpack.c.h.b16 %v118
    %v1174 = vunpack.c.l.b16 %v119
    %v1175 = vunpack.c.h.b16 %v119
    %v1176 = vunpack.c.l.b16 %v120
    %v1177 = vunpack.c.h.b16 %v120
    %v1178 = vunpack.c.l.b16 %v121
    %v1179 = vunpack.c.h.b16 %v121
    %v1180 = vunpack.c.l.b16 %v122
    %v1181 = vunpack.c.h.b16 %v122
    %v1182 = vunpack.c.l.b16 %v123
    %v1183 = vunpack.c.h.b16 %v123
    %v1184 = vunpack.c.l.b16 %v124
    %v1185 = vunpack.c.h.b16 %v124
    %v1186 = vunpack.c.l.b16 %v125
    %v1187 = vunpack.c.h.b16 %v125
    %v1188 = vunpack.c.l.b16 %v126
    %v1189 = vunpack.c.h.b16 %v126
    %v1190 = vunpack.c.l.b16 %v127
    %v1191 = vunpack.c.h.b16 %v127
    %v1192 = vunpack.c.l.b16 %v128
    %v1193 = vunpack.c.h.b16 %v128
    %v1194 = vunpack.c.l.b16 %v129
    %v1195 = vunpack.c.h.b16 %v129
    %v1196 = vunpack.c.l.b16 %v130
    %v1197 = vunpack.c.h.b16 %v130
    %v1198 = vunpack.c.l.b16 %v131
    %v1199 = vunpack.c.h.b16 %v131
    %v1200 = vunpack.c.l.b16 %v132
    %v1201 = vunpack.c.h.b16 %v132
    %v1202 = vunpack.c.l.b16 %v133
    %v1203 = vunpack.c.h.b16 %v133
    %v1204 = vunpack.c.l.b16 %v134
    %v1205 = vunpack.c.h.b16 %v134
    %v1206 = vunpack.c.l.b16 %v135
    %v1207 = vunpack.c.h.b16 %v135
    %v1208 = vunpack.c.l.b16 %v136
    %v1209 = vunpack.c.h.b16 %v136
    %v1210 = vunpack.c.l.b16 %v137
    %v1211 = vunpack.c.h.b16 %v137
    %v1212 = vunpack.c.l.b16 %v138
    %v1213 = vunpack.c.h.b16 %v138
    %v1214 = vunpack.c.l.b16 %v139
    %v1215 = vunpack.c.h.b16 %v139
    %v1216 = vunpack.c.l.b16 %v140
    %v1217 = vunpack.c.h.b16 %v140
    %v1218 = vunpack.c.l.b16 %v141
    %v1219 = vunpack.c.h.b16 %v141
    %v1220 = vunpack.c.l.b16 %v142
    %v1221 = vunpack.c.h.b16 %v142
    %v1222 = vunpack.c.l.b16 %v143
    %v1223 = vunpack.c.h.b16 %v143
    %v1224 = vunpack.c.l.b16 %v144
    %v1225 = vunpack.c.h.b16 %v144
    %v1226 = vunpack.c.l.b16 %v145
    %v1227 = vunpack.c.h.b16 %v145
    %v1228 = vunpack.c.l.b16 %v146
    %v1229 = vunpack.c.h.b16 %v146
    %v1230 = vunpack.c.l.b16 %v147
    %v1231 = vunpack.c.h.b16 %v147
    %v1232 = vunpack.c.l.b16 %v148
    %v1233 = vunpack.c.h.b16 %v148
    %v1234 = vunpack.c.l.b16 %v149
    %v1235 = vunpack.c.h.b16 %v149
    %v1236 = vunpack.c.l.b16 %v150
    %v1237 = vunpack.c.h.b16 %v150
    %v1238 = vunpack.c.l.b16 %v151
    %v1239 = vunpack.c.h.b16 %v151
    %v1240 = vunpack.c.l.b16 %v152
    %v1241 = vunpack.c.h.b16 %v152
    %v1242 = vunpack.c.l.b16 %v153
    %v1243 = vunpack.c.h.b16 %v153
    %v1244 = vunpack.c.l.b16 %v154
    %v1245 = vunpack.c.h.b16 %v154
    %v1246 = vunpack.c.l.b16 %v155
    %v1247 = vunpack.c.h.b16 %v155
    %v1248 = vunpack.c.l.b16 %v156
    %v1249 = vunpack.c.h.b16 %v156
    %v1250 = vunpack.c.l.b16 %v157
    %v1251 = vunpack.c.h.b16 %v157
    %v1252 = vunpack.c.l.b16 %v158
    %v1253 = vunpack.c.h.b16 %v158
    %v1254 = vunpack.c.l.b16 %v159
    %v1255 = vunpack.c.h.b16 %v159
    %v1256 = vunpack.c.l.b16 %v160
    %v1257 = vunpack.c.h.b16 %v160
    %v1258 = vunpack.c.l.b16 %v161
    %v1259 = vunpack.c.h.b16 %v161
    %v1260 = vunpack.c.l.b16 %v162
    %v1261 = vunpack.c.h.b16 %v162
    %v1262 = vunpack.c.l.b16 %v163
    %v1263 = vunpack.c.h.b16 %v163
    %v1264 = vunpack.c.l.b16 %v164
    %v1265 = vunpack.c.h.b16 %v164
    %v1266 = vunpack.c.l.b16 %v165
    %v1267 = vunpack.c.h.b16 %v165
    %v1268 = vunpack.c.l.b16 %v166
    %v1269 = vunpack.c.h.b16 %v166
    %v1270 = vunpack.c.l.b16 %v167
    %v1271 = vunpack.c.h.b16 %v167
    %v1272 = vunpack.c.l.b16 %v168
    %v1273 = vunpack.c.h.b16 %v168
    %v1274 = vunpack.c.l.b16 %v169
    %v1275 = vunpack.c.h.b16 %v169
    %v1276 = vunpack.c.l.b16 %v170
    %v1277 = vunpack.c.h.b16 %v170
    %v1278 = vunpack.c.l.b16 %v171
    %v1279 = vunpack.c.h.b16 %v171
    %v1280 = vunpack.c.l.b16 %v172
    %v1281 = vunpack.c.h.b16 %v172
    %v1282 = vunpack.c.l.b16 %v173
    %v1283 = vunpack.c.h.b16 %v173
    %v1284 = vunpack.c.l.b16 %v174
    %v1285 = vunpack.c.h.b16 %v174
    %v1286 = vunpack.c.l.b16 %v175
    %v1287 = vunpack.c.h.b16 %v175
    %v1288 = vunpack.c.l.b16 %v176
    %v1289 = vunpack.c.h.b16 %v176
    %v1290 = vunpack.c.l.b16 %v177
    %v1291 = vunpack.c.h.b16 %v177
    %v1292 = vunpack.c.l.b16 %v178
    %v1293 = vunpack.c.h.b16 %v178
    %v1294 = vunpack.c.l.b16 %v179
    %v1295 = vunpack.c.h.b16 %v179
    %v1296 = vunpack.c.l.b16 %v180
    %v1297 = vunpack.c.h.b16 %v180
    %v1298 = vunpack.c.l.b16 %v181
    %v1299 = vunpack.c.h.b16 %v181
    %v1300 = vunpack.c.l.b16 %v182
    %v1301 = vunpack.c.h.b16 %v182
    %v1302 = vunpack.c.l.b16 %v183
    %v1303 = vunpack.c.h.b16 %v183
    %v1304 = vunpack.c.l.b16 %v184
    %v1305 = vunpack.c.h.b16 %v184
    %v1306 = vunpack.c.l.b16 %v185
    %v1307 = vunpack.c.h.b16 %v185
    %v1308 = vunpack.c.l.b16 %v186
    %v1309 = vunpack.c.h.b16 %v186
    %v1310 = vunpack.c.l.b16 %v187
    %v1311 = vunpack.c.h.b16 %v187
    %v1312 = vunpack.c.l.b16 %v188
    %v1313 = vunpack.c.h.b16 %v188
    %v1314 = vunpack.c.l.b16 %v189
    %v1315 = vunpack.c.h.b16 %v189
    %v1316 = vunpack.c.l.b16 %v190
    %v1317 = vunpack.c.h.b16 %v190
    %v1318 = vunpack.c.l.b16 %v191
    %v1319 = vunpack.c.h.b16 %v191
    %v1320 = vunpack.c.l.b16 %v192
    %v1321 = vunpack.c.h.b16 %v192
    %v1322 = vunpack.c.l.b16 %v193
    %v1323 = vunpack.c.h.b16 %v193
    %v1324 = vunpack.c.l.b16 %v194
    %v1325 = vunpack.c.h.b16 %v194
    %v1326 = vunpack.c.l.b16 %v195
    %v1327 = vunpack.c.h.b16 %v195
    %v1328 = vunpack.c.l.b16 %v196
    %v1329 = vunpack.c.h.b16 %v196
    %v1330 = vunpack.c.l.b16 %v197
    %v1331 = vunpack.c.h.b16 %v197
    %v1332 = vunpack.c.l.b16 %v198
    %v1333 = vunpack.c.h.b16 %v198
    %v1334 = vunpack.c.l.b16 %v199
    %v1335 = vunpack.c.h.b16 %v199
    %v1336 = vunpack.c.l.b16 %v200
    %v1337 = vunpack.c.h.b16 %v200
    %v1338 = vunpack.c.l.b16 %v201
    %v1339 = vunpack.c.h.b16 %v201
    %v1340 = vunpack.c.l.b16 %v202
    %v1341 = vunpack.c.h.b16 %v202
    %v1342 = vunpack.c.l.b16 %v203
    %v1343 = vunpack.c.h.b16 %v203
    %v1344 = vunpack.c.l.b16 %v204
    %v1345 = vunpack.c.h.b16 %v204
    %v1346 = vunpack.c.l.b16 %v205
    %v1347 = vunpack.c.h.b16 %v205
    %v1348 = vunpack.c.l.b16 %v206
    %v1349 = vunpack.c.h.b16 %v206
    %v1350 = vunpack.c.l.b16 %v207
    %v1351 = vunpack.c.h.b16 %v207
    %v1352 = vunpack.c.l.b16 %v208
    %v1353 = vunpack.c.h.b16 %v208
    %v1354 = vunpack.c.l.b16 %v209
    %v1355 = vunpack.c.h.b16 %v209
    %v1356 = vunpack.c.l.b16 %v210
    %v1357 = vunpack.c.h.b16 %v210
    %v1358 = vunpack.c.l.b16 %v211
    %v1359 = vunpack.c.h.b16 %v211
    %v1360 = vunpack.c.l.b16 %v212
    %v1361 = vunpack.c.h.b16 %v212
    %v1362 = vunpack.c.l.b16 %v213
    %v1363 = vunpack.c.h.b16 %v213
    %v1364 = vunpack.c.l.b16 %v214
    %v1365 = vunpack.c.h.b16 %v214
    %v1366 = vunpack.c.l.b16 %v215
    %v1367 = vunpack.c.h.b16 %v215
    %v1368 = vunpack.c.l.b16 %v216
    %v1369 = vunpack.c.h.b16 %v216
    %v1370 = vunpack.c.l.b16 %v217
    %v1371 = vunpack.c.h.b16 %v217
    %v1372 = vunpack.c.l.b16 %v218
    %v1373 = vunpack.c.h.b16 %v218
    %v1374 = vunpack.c.l.b16 %v219
    %v1375 = vunpack.c.h.b16 %v219
    %v1376 = vunpack.c.l.b16 %v220
    %v1377 = vunpack.c.h.b16 %v220
    %v1378 = vunpack.c.l.b16 %v221
    %v1379 = vunpack.c.h.b16 %v221
    %v1380 = vunpack.c.l.b16 %v222
    %v1381 = vunpack.c.h.b16 %v222
    %v1382 = vunpack.c.l.b16 %v223
    %v1383 = vunpack.c.h.b16 %v223
    %v1384 = vunpack.c.l.b16 %v224
    %v1385 = vunpack.c.h.b16 %v224
    %v1386 = vunpack.c.l.b16 %v225
    %v1387 = vunpack.c.h.b16 %v225
    %v1388 = vunpack.c.l.b16 %v226
    %v1389 = vunpack.c.h.b16 %v226
    %v1390 = vunpack.c.l.b16 %v227
    %v1391 = vunpack.c.h.b16 %v227
    %v1392 = vunpack.c.l.b16 %v228
    %v1393 = vunpack.c.h.b16 %v228
    %v1394 = vunpack.c.l.b16 %v229
    %v1395 = vunpack.c.h.b16 %v229
    %v1396 = vunpack.c.l.b16 %v230
    %v1397 = vunpack.c.h.b16 %v230
    %v1398 = vunpack.c.l.b16 %v231
    %v1399 = vunpack.c.h.b16 %v231
    %v1400 = vunpack.c.l.b16 %v232
    %v1401 = vunpack.c.h.b16 %v232
    %v1402 = vunpack.c.l.b16 %v233
    %v1403 = vunpack.c.h.b16 %v233
    %v1404 = vunpack.c.l.b16 %v234
    %v1405 = vunpack.c.h.b16 %v234
    %v1406 = vunpack.c.l.b16 %v235
    %v1407 = vunpack.c.h.b16 %v235
    %v1408 = vunpack.c.l.b16 %v236
    %v1409 = vunpack.c.h.b16 %v236
    %v1410 = vunpack.c.l.b16 %v237
    %v1411 = vunpack.c.h.b16 %v237
    %v1412 = vunpack.c.l.b16 %v238
    %v1413 = vunpack.c.h.b16 %v238
    %v1414 = vunpack.c.l.b16 %v239
    %v1415 = vunpack.c.h.b16 %v239
    %v1416 = vunpack.c.l.b16 %v240
    %v1417 = vunpack.c.h.b16 %v240
    %v1418 = vunpack.c.l.b16 %v241
    %v1419 = vunpack.c.h.b16 %v241
    %v1420 = vunpack.c.l.b16 %v242
    %v1421 = vunpack.c.h.b16 %v242
    %v1422 = vunpack.c.l.b16 %v243
    %v1423 = vunpack.c.h.b16 %v243
    %v1424 = vunpack.c.l.b16 %v244
    %v1425 = vunpack.c.h.b16 %v244
    %v1426 = vunpack.c.l.b16 %v245
    %v1427 = vunpack.c.h.b16 %v245
    %v1428 = vunpack.c.l.b16 %v246
    %v1429 = vunpack.c.h.b16 %v246
    %v1430 = vunpack.c.l.b16 %v247
    %v1431 = vunpack.c.h.b16 %v247
    %v1432 = vunpack.c.l.b16 %v248
    %v1433 = vunpack.c.h.b16 %v248
    %v1434 = vunpack.c.l.b16 %v249
    %v1435 = vunpack.c.h.b16 %v249
    %v1436 = vunpack.c.l.b16 %v250
    %v1437 = vunpack.c.h.b16 %v250
    %v1438 = vunpack.c.l.b16 %v251
    %v1439 = vunpack.c.h.b16 %v251
    %v1440 = vunpack.c.l.b16 %v252
    %v1441 = vunpack.c.h.b16 %v252
    %v1442 = vunpack.c.l.b16 %v253
    %v1443 = vunpack.c.h.b16 %v253
    %v1444 = vunpack.c.l.b16 %v254
    %v1445 = vunpack.c.h.b16 %v254
    %v1446 = vunpack.c.l.b16 %v255
    %v1447 = vunpack.c.h.b16 %v255
    %v1448 = vunpack.c.l.b16 %v256
    %v1449 = vunpack.c.h.b16 %v256
    %v1450 = vunpack.c.l.b16 %v257
    %v1451 = vunpack.c.h.b16 %v257
    %v1452 = vunpack.c.l.b16 %v258
    %v1453 = vunpack.c.h.b16 %v258
    %v1454 = vunpack.c.l.b16 %v259
    %v1455 = vunpack.c.h.b16 %v259
    %v1456 = vunpack.c.l.b16 %v260
    %v1457 = vunpack.c.h.b16 %v260
    %v1458 = vunpack.c.l.b16 %v261
    %v1459 = vunpack.c.h.b16 %v261
    %v1460 = vunpack.c.l.b16 %v262
    %v1461 = vunpack.c.h.b16 %v262
    %v1462 = vunpack.c.l.b16 %v263
    %v1463 = vunpack.c.h.b16 %v263
    %v1464 = vunpack.c.l.b16 %v264
    %v1465 = vunpack.c.h.b16 %v264
    %v1466 = vunpack.c.l.b16 %v265
    %v1467 = vunpack.c.h.b16 %v265
    %v1468 = vunpack.c.l.b16 %v266
    %v1469 = vunpack.c.h.b16 %v266
    %v1470 = vunpack.c.l.b16 %v267
    %v1471 = vunpack.c.h.b16 %v267
    %v1472 = vunpack.c.l.b16 %v268
    %v1473 = vunpack.c.h.b16 %v268
    %v1474 = vunpack.c.l.b16 %v269
    %v1475 = vunpack.c.h.b16 %v269
    %v1476 = vunpack.c.l.b16 %v270
    %v1477 = vunpack.c.h.b16 %v270
    %v1478 = vunpack.c.l.b16 %v271
    %v1479 = vunpack.c.h.b16 %v271
    %v1480 = vunpack.c.l.b16 %v272
    %v1481 = vunpack.c.h.b16 %v272
    %v1482 = vunpack.c.l.b16 %v273
    %v1483 = vunpack.c.h.b16 %v273
    %v1484 = vunpack.c.l.b16 %v274
    %v1485 = vunpack.c.h.b16 %v274
    %v1486 = vunpack.c.l.b16 %v275
    %v1487 = vunpack.c.h.b16 %v275
    %v1488 = vunpack.c.l.b16 %v276
    %v1489 = vunpack.c.h.b16 %v276
    %v1490 = vunpack.c.l.b16 %v277
    %v1491 = vunpack.c.h.b16 %v277
    %v1492 = vunpack.c.l.b16 %v278
    %v1493 = vunpack.c.h.b16 %v278
    %v1494 = vunpack.c.l.b16 %v279
    %v1495 = vunpack.c.h.b16 %v279
    %v1496 = vunpack.c.l.b16 %v280
    %v1497 = vunpack.c.h.b16 %v280
    %v1498 = vunpack.c.l.b16 %v281
    %v1499 = vunpack.c.h.b16 %v281
    %v1500 = vunpack.c.l.b16 %v282
    %v1501 = vunpack.c.h.b16 %v282
    %v1502 = vunpack.c.l.b16 %v283
    %v1503 = vunpack.c.h.b16 %v283
    %v1504 = vunpack.c.l.b16 %v284
    %v1505 = vunpack.c.h.b16 %v284
    %v1506 = vunpack.c.l.b16 %v285
    %v1507 = vunpack.c.h.b16 %v285
    %v1508 = vunpack.c.l.b16 %v286
    %v1509 = vunpack.c.h.b16 %v286
    %v1510 = vunpack.c.l.b16 %v287
    %v1511 = vunpack.c.h.b16 %v287
    %v1512 = vunpack.c.l.b16 %v288
    %v1513 = vunpack.c.h.b16 %v288
    %v1514 = vunpack.c.l.b16 %v289
    %v1515 = vunpack.c.h.b16 %v289
    %v1516 = vunpack.c.l.b16 %v290
    %v1517 = vunpack.c.h.b16 %v290
    %v1518 = vunpack.c.l.b16 %v291
    %v1519 = vunpack.c.h.b16 %v291
    %v1520 = vunpack.c.l.b16 %v292
    %v1521 = vunpack.c.h.b16 %v292
    %v1522 = vunpack.c.l.b16 %v293
    %v1523 = vunpack.c.h.b16 %v293
    %v1524 = vunpack.c.l.b16 %v294
    %v1525 = vunpack.c.h.b16 %v294
    %v1526 = vunpack.c.l.b16 %v295
    %v1527 = vunpack.c.h.b16 %v295
    %v1528 = vunpack.c.l.b16 %v296
    %v1529 = vunpack.c.h.b16 %v296
    %v1530 = vunpack.c.l.b16 %v297
    %v1531 = vunpack.c.h.b16 %v297
    %v1532 = vunpack.c.l.b16 %v298
    %v1533 = vunpack.c.h.b16 %v298
    %v1534 = vunpack.c.l.b16 %v299
    %v1535 = vunpack.c.h.b16 %v299
    %v1536 = vunpack.c.l.b16 %v300
    %v1537 = vunpack.c.h.b16 %v300
    %v1538 = vunpack.c.l.b16 %v301
    %v1539 = vunpack.c.h.b16 %v301
    %v1540 = vunpack.c.l.b16 %v302
    %v1541 = vunpack.c.h.b16 %v302
    %v1542 = vunpack.c.l.b16 %v303
    %v1543 = vunpack.c.h.b16 %v303
    %v1544 = vunpack.c.l.b16 %v304
    %v1545 = vunpack.c.h.b16 %v304
    %v1546 = vunpack.c.l.b16 %v305
    %v1547 = vunpack.c.h.b16 %v305
    %v1548 = vunpack.c.l.b16 %v306
    %v1549 = vunpack.c.h.b16 %v306
    %v1550 = vunpack.c.l.b16 %v307
    %v1551 = vunpack.c.h.b16 %v307
    %v1552 = vunpack.c.l.b16 %v308
    %v1553 = vunpack.c.h.b16 %v308
    %v1554 = vunpack.c.l.b16 %v309
    %v1555 = vunpack.c.h.b16 %v309
    %v1556 = vunpack.c.l.b16 %v310
    %v1557 = vunpack.c.h.b16 %v310
    %v1558 = vunpack.c.l.b16 %v311
    %v1559 = vunpack.c.h.b16 %v311
    %v1560 = vunpack.c.l.b16 %v312
    %v1561 = vunpack.c.h.b16 %v312
    %v1562 = vunpack.c.l.b16 %v313
    %v1563 = vunpack.c.h.b16 %v313
    %v1564 = vunpack.c.l.b16 %v314
    %v1565 = vunpack.c.h.b16 %v314
    %v1566 = vunpack.c.l.b16 %v315
    %v1567 = vunpack.c.h.b16 %v315
    %v1568 = vunpack.c.l.b16 %v316
    %v1569 = vunpack.c.h.b16 %v316
    %v1570 = vunpack.c.l.b16 %v317
    %v1571 = vunpack.c.h.b16 %v317
    %v1572 = vunpack.c.l.b16 %v318
    %v1573 = vunpack.c.h.b16 %v318
    %v1574 = vunpack.c.l.b16 %v319
    %v1575 = vunpack.c.h.b16 %v319
    %v1576 = vunpack.c.l.b16 %v320
    %v1577 = vunpack.c.h.b16 %v320
    %v1578 = vunpack.c.l.b16 %v321
    %v1579 = vunpack.c.h.b16 %v321
    %v1580 = vunpack.c.l.b16 %v322
    %v1581 = vunpack.c.h.b16 %v322
    %v1582 = vunpack.c.l.b16 %v323
    %v1583 = vunpack.c.h.b16 %v323
    %v1584 = vunpack.c.l.b16 %v324
    %v1585 = vunpack.c.h.b16 %v324
    %v1586 = vunpack.c.l.b16 %v325
    %v1587 = vunpack.c.h.b16 %v325
    %v1588 = vunpack.c.l.b16 %v326
    %v1589 = vunpack.c.h.b16 %v326
    %v1590 = vunpack.c.l.b16 %v327
    %v1591 = vunpack.c.h.b16 %v327
    %v1592 = vunpack.c.l.b16 %v328
    %v1593 = vunpack.c.h.b16 %v328
    %v1594 = vunpack.c.l.b16 %v329
    %v1595 = vunpack.c.h.b16 %v329
    %v1596 = vunpack.c.l.b16 %v330
    %v1597 = vunpack.c.h.b16 %v330
    %v1598 = vunpack.c.l.b16 %v331
    %v1599 = vunpack.c.h.b16 %v331
    %v1600 = vunpack.c.l.b16 %v332
    %v1601 = vunpack.c.h.b16 %v332
    %v1602 = vunpack.c.l.b16 %v333
    %v1603 = vunpack.c.h.b16 %v333
    %v1604 = vunpack.c.l.b16 %v334
    %v1605 = vunpack.c.h.b16 %v334
    %v1606 = vunpack.c.l.b16 %v335
    %v1607 = vunpack.c.h.b16 %v335
    %v1608 = vunpack.c.l.b16 %v336
    %v1609 = vunpack.c.h.b16 %v336
    %v1610 = vunpack.c.l.b16 %v337
    %v1611 = vunpack.c.h.b16 %v337
    %v1612 = vunpack.c.l.b16 %v338
    %v1613 = vunpack.c.h.b16 %v338
    %v1614 = vunpack.c.l.b16 %v339
    %v1615 = vunpack.c.h.b16 %v339
    %v1616 = vunpack.c.l.b16 %v340
    %v1617 = vunpack.c.h.b16 %v340
    %v1618 = vunpack.c.l.b16 %v341
    %v1619 = vunpack.c.h.b16 %v341
    %v1620 = vunpack.c.l.b16 %v342
    %v1621 = vunpack.c.h.b16 %v342
    %v1622 = vunpack.c.l.b16 %v343
    %v1623 = vunpack.c.h.b16 %v343
    %v1624 = vunpack.c.l.b16 %v344
    %v1625 = vunpack.c.h.b16 %v344
    %v1626 = vunpack.c.l.b16 %v345
    %v1627 = vunpack.c.h.b16 %v345
    %v1628 = vunpack.c.l.b16 %v346
    %v1629 = vunpack.c.h.b16 %v346
    %v1630 = vunpack.c.l.b16 %v347
    %v1631 = vunpack.c.h.b16 %v347
    %v1632 = vunpack.c.l.b16 %v348
    %v1633 = vunpack.c.h.b16 %v348
    %v1634 = vunpack.c.l.b16 %v349
    %v1635 = vunpack.c.h.b16 %v349
    %v1636 = vunpack.c.l.b16 %v350
    %v1637 = vunpack.c.h.b16 %v350
    %v1638 = vunpack.c.l.b16 %v351
    %v1639 = vunpack.c.h.b16 %v351
    %v1640 = vunpack.c.l.b16 %v352
    %v1641 = vunpack.c.h.b16 %v352
    %v1642 = vunpack.c.l.b16 %v353
    %v1643 = vunpack.c.h.b16 %v353
    %v1644 = vunpack.c.l.b16 %v354
    %v1645 = vunpack.c.h.b16 %v354
    %v1646 = vunpack.c.l.b16 %v355
    %v1647 = vunpack.c.h.b16 %v355
    %v1648 = vunpack.c.l.b16 %v356
    %v1649 = vunpack.c.h.b16 %v356
    %v1650 = vunpack.c.l.b16 %v357
    %v1651 = vunpack.c.h.b16 %v357
    %v1652 = vunpack.c.l.b16 %v358
    %v1653 = vunpack.c.h.b16 %v358
    %v1654 = vunpack.c.l.b16 %v359
    %v1655 = vunpack.c.h.b16 %v359
    %v1656 = vunpack.c.l.b16 %v360
    %v1657 = vunpack.c.h.b16 %v360
    %v1658 = vunpack.c.l.b16 %v361
    %v1659 = vunpack.c.h.b16 %v361
    %v1660 = vunpack.c.l.b16 %v362
    %v1661 = vunpack.c.h.b16 %v362
    %v1662 = vunpack.c.l.b16 %v363
    %v1663 = vunpack.c.h.b16 %v363
    %v1664 = vunpack.c.l.b16 %v364
    %v1665 = vunpack.c.h.b16 %v364
    %v1666 = vunpack.c.l.b16 %v365
    %v1667 = vunpack.c.h.b16 %v365
    %v1668 = vunpack.c.l.b16 %v366
    %v1669 = vunpack.c.h.b16 %v366
    %v1670 = vunpack.c.l.b16 %v367
    %v1671 = vunpack.c.h.b16 %v367
    %v1672 = vunpack.c.l.b16 %v368
    %v1673 = vunpack.c.h.b16 %v368
    %v1674 = vunpack.c.l.b16 %v369
    %v1675 = vunpack.c.h.b16 %v369
    %v1676 = vunpack.c.l.b16 %v370
    %v1677 = vunpack.c.h.b16 %v370
    %v1678 = vunpack.c.l.b16 %v371
    %v1679 = vunpack.c.h.b16 %v371
    %v1680 = vunpack.c.l.b16 %v372
    %v1681 = vunpack.c.h.b16 %v372
    %v1682 = vunpack.c.l.b16 %v373
    %v1683 = vunpack.c.h.b16 %v373
    %v1684 = vunpack.c.l.b16 %v374
    %v1685 = vunpack.c.h.b16 %v374
    %v1686 = vunpack.c.l.b16 %v375
    %v1687 = vunpack.c.h.b16 %v375
    %v1688 = vunpack.c.l.b16 %v376
    %v1689 = vunpack.c.h.b16 %v376
    %v1690 = vunpack.c.l.b16 %v377
    %v1691 = vunpack.c.h.b16 %v377
    %v1692 = vunpack.c.l.b16 %v378
    %v1693 = vunpack.c.h.b16 %v378
    %v1694 = vunpack.c.l.b16 %v379
    %v1695 = vunpack.c.h.b16 %v379
    %v1696 = vunpack.c.l.b16 %v380
    %v1697 = vunpack.c.h.b16 %v380
    %v1698 = vunpack.c.l.b16 %v381
    %v1699 = vunpack.c.h.b16 %v381
    %v1700 = vunpack.c.l.b16 %v382
    %v1701 = vunpack.c.h.b16 %v382
    %v1702 = vunpack.c.l.b16 %v383
    %v1703 = vunpack.c.h.b16 %v383
    %v1704 = vunpack.c.l.b16 %v384
    %v1705 = vunpack.c.h.b16 %v384
    %v1706 = vunpack.c.l.b16 %v385
    %v1707 = vunpack.c.h.b16 %v385
    %v1708 = vunpack.c.l.b16 %v386
    %v1709 = vunpack.c.h.b16 %v386
    %v1710 = vunpack.c.l.b16 %v387
    %v1711 = vunpack.c.h.b16 %v387
    %v1712 = vunpack.c.l.b16 %v388
    %v1713 = vunpack.c.h.b16 %v388
    %v1714 = vunpack.c.l.b16 %v389
    %v1715 = vunpack.c.h.b16 %v389
    %v1716 = vunpack.c.l.b16 %v390
    %v1717 = vunpack.c.h.b16 %v390
    %v1718 = vunpack.c.l.b16 %v391
    %v1719 = vunpack.c.h.b16 %v391
    %v1720 = vunpack.c.l.b16 %v392
    %v1721 = vunpack.c.h.b16 %v392
    %v1722 = vunpack.c.l.b16 %v393
    %v1723 = vunpack.c.h.b16 %v393
    %v1724 = vunpack.c.l.b16 %v394
    %v1725 = vunpack.c.h.b16 %v394
    %v1726 = vunpack.c.l.b16 %v395
    %v1727 = vunpack.c.h.b16 %v395
    %v1728 = vunpack.c.l.b16 %v396
    %v1729 = vunpack.c.h.b16 %v396
    %v1730 = vunpack.c.l.b16 %v397
    %v1731 = vunpack.c.h.b16 %v397
    %v1732 = vunpack.c.l.b16 %v398
    %v1733 = vunpack.c.h.b16 %v398
    %v1734 = vunpack.c.l.b16 %v399
    %v1735 = vunpack.c.h.b16 %v399
    %v1736 = vunpack.c.l.b16 %v400
    %v1737 = vunpack.c.h.b16 %v400
    %v1738 = vunpack.c.l.b16 %v401
    %v1739 = vunpack.c.h.b16 %v401
    %v1740 = vunpack.c.l.b16 %v402
    %v1741 = vunpack.c.h.b16 %v402
    %v1742 = vunpack.c.l.b16 %v403
    %v1743 = vunpack.c.h.b16 %v403
    %v1744 = vunpack.c.l.b16 %v404
    %v1745 = vunpack.c.h.b16 %v404
    %v1746 = vunpack.c.l.b16 %v405
    %v1747 = vunpack.c.h.b16 %v405
    %v1748 = vunpack.c.l.b16 %v406
    %v1749 = vunpack.c.h.b16 %v406
    %v1750 = vunpack.c.l.b16 %v407
    %v1751 = vunpack.c.h.b16 %v407
    %v1752 = vunpack.c.l.b16 %v408
    %v1753 = vunpack.c.h.b16 %v408
    %v1754 = vunpack.c.l.b16 %v409
    %v1755 = vunpack.c.h.b16 %v409
    %v1756 = vunpack.c.l.b16 %v410
    %v1757 = vunpack.c.h.b16 %v410
    %v1758 = vunpack.c.l.b16 %v411
    %v1759 = vunpack.c.h.b16 %v411
    %v1760 = vunpack.c.l.b16 %v412
    %v1761 = vunpack.c.h.b16 %v412
    %v1762 = vunpack.c.l.b16 %v413
    %v1763 = vunpack.c.h.b16 %v413
    %v1764 = vunpack.c.l.b16 %v414
    %v1765 = vunpack.c.h.b16 %v414
    %v1766 = vunpack.c.l.b16 %v415
    %v1767 = vunpack.c.h.b16 %v415
    %v1768 = vunpack.c.l.b16 %v416
    %v1769 = vunpack.c.h.b16 %v416
    %v1770 = vunpack.c.l.b16 %v417
    %v1771 = vunpack.c.h.b16 %v417
    %v1772 = vunpack.c.l.b16 %v418
    %v1773 = vunpack.c.h.b16 %v418
    %v1774 = vunpack.c.l.b16 %v419
    %v1775 = vunpack.c.h.b16 %v419
    %v1776 = vunpack.c.l.b16 %v420
    %v1777 = vunpack.c.h.b16 %v420
    %v1778 = vunpack.c.l.b16 %v421
    %v1779 = vunpack.c.h.b16 %v421
    %v1780 = vunpack.c.l.b16 %v422
    %v1781 = vunpack.c.h.b16 %v422
    %v1782 = vunpack.c.l.b16 %v423
    %v1783 = vunpack.c.h.b16 %v423
    %v1784 = vunpack.c.l.b16 %v424
    %v1785 = vunpack.c.h.b16 %v424
    %v1786 = vunpack.c.l.b16 %v425
    %v1787 = vunpack.c.h.b16 %v425
    %v1788 = vunpack.c.l.b16 %v426
    %v1789 = vunpack.c.h.b16 %v426
    %v1790 = vunpack.c.l.b16 %v427
    %v1791 = vunpack.c.h.b16 %v427
    %v1792 = vunpack.c.l.b16 %v428
    %v1793 = vunpack.c.h.b16 %v428
    %v1794 = vunpack.c.l.b16 %v429
    %v1795 = vunpack.c.h.b16 %v429
    %v1796 = vunpack.c.l.b16 %v430
    %v1797 = vunpack.c.h.b16 %v430
    %v1798 = vunpack.c.l.b16 %v431
    %v1799 = vunpack.c.h.b16 %v431
    %v1800 = vunpack.c.l.b16 %v432
    %v1801 = vunpack.c.h.b16 %v432
    %v1802 = vunpack.c.l.b16 %v433
    %v1803 = vunpack.c.h.b16 %v433
    %v1804 = vunpack.c.l.b16 %v434
    %v1805 = vunpack.c.h.b16 %v434
    %v1806 = vunpack.c.l.b16 %v435
    %v1807 = vunpack.c.h.b16 %v435
    %v1808 = vunpack.c.l.b16 %v436
    %v1809 = vunpack.c.h.b16 %v436
    %v1810 = vunpack.c.l.b16 %v437
    %v1811 = vunpack.c.h.b16 %v437
    %v1812 = vunpack.c.l.b16 %v438
    %v1813 = vunpack.c.h.b16 %v438
    %v1814 = vunpack.c.l.b16 %v439
    %v1815 = vunpack.c.h.b16 %v439
    %v1816 = vunpack.c.l.b16 %v440
    %v1817 = vunpack.c.h.b16 %v440
    %v1818 = vunpack.c.l.b16 %v441
    %v1819 = vunpack.c.h.b16 %v441
    %v1820 = vunpack.c.l.b16 %v442
    %v1821 = vunpack.c.h.b16 %v442
    %v1822 = vunpack.c.l.b16 %v443
    %v1823 = vunpack.c.h.b16 %v443
    %v1824 = vunpack.c.l.b16 %v444
    %v1825 = vunpack.c.h.b16 %v444
    %v1826 = vunpack.c.l.b16 %v445
    %v1827 = vunpack.c.h.b16 %v445
    %v1828 = vunpack.c.l.b16 %v446
    %v1829 = vunpack.c.h.b16 %v446
    %v1830 = vunpack.c.l.b16 %v447
    %v1831 = vunpack.c.h.b16 %v447
    %v1832 = vunpack.c.l.b16 %v448
    %v1833 = vunpack.c.h.b16 %v448
    %v1834 = vunpack.c.l.b16 %v449
    %v1835 = vunpack.c.h.b16 %v449
    %v1836 = vunpack.c.l.b16 %v450
    %v1837 = vunpack.c.h.b16 %v450
    %v1838 = vunpack.c.l.b16 %v451
    %v1839 = vunpack.c.h.b16 %v451
    %v1840 = vunpack.c.l.b16 %v452
    %v1841 = vunpack.c.h.b16 %v452
    %v1842 = vunpack.c.l.b16 %v453
    %v1843 = vunpack.c.h.b16 %v453
    %v1844 = vunpack.c.l.b16 %v454
    %v1845 = vunpack.c.h.b16 %v454
    %v1846 = vunpack.c.l.b16 %v455
    %v1847 = vunpack.c.h.b16 %v455
    %v1848 = vunpack.c.l.b16 %v456
    %v1849 = vunpack.c.h.b16 %v456
    %v1850 = vunpack.c.l.b16 %v457
    %v1851 = vunpack.c.h.b16 %v457
    %v1852 = vunpack.c.l.b16 %v458
    %v1853 = vunpack.c.h.b16 %v458
    %v1854 = vunpack.c.l.b16 %v459
    %v1855 = vunpack.c.h.b16 %v459
    %v1856 = vunpack.c.l.b16 %v460
    %v1857 = vunpack.c.h.b16 %v460
    %v1858 = vunpack.c.l.b16 %v461
    %v1859 = vunpack.c.h.b16 %v461
    %v1860 = vunpack.c.l.b16 %v462
    %v1861 = vunpack.c.h.b16 %v462
    %v1862 = vunpack.c.l.b16 %v463
    %v1863 = vunpack.c.h.b16 %v463
    %v1864 = vunpack.c.l.b16 %v464
    %v1865 = vunpack.c.h.b16 %v464
    %v1866 = vunpack.c.l.b16 %v465
    %v1867 = vunpack.c.h.b16 %v465
    %v1868 = vunpack.c.l.b16 %v466
    %v1869 = vunpack.c.h.b16 %v466
    %v1870 = vunpack.c.l.b16 %v467
    %v1871 = vunpack.c.h.b16 %v467
    %v1872 = vunpack.c.l.b16 %v468
    %v1873 = vunpack.c.h.b16 %v468
    %v1874 = vunpack.c.l.b16 %v469
    %v1875 = vunpack.c.h.b16 %v469
    %v1876 = vunpack.c.l.b16 %v470
    %v1877 = vunpack.c.h.b16 %v470
    %v1878 = vunpack.c.l.b16 %v471
    %v1879 = vunpack.c.h.b16 %v471
    %v1880 = vunpack.c.l.b16 %v472
    %v1881 = vunpack.c.h.b16 %v472
    %v1882 = vunpack.c.l.b16 %v473
    %v1883 = vunpack.c.h.b16 %v473
    %v1884 = vunpack.c.l.b16 %v474
    %v1885 = vunpack.c.h.b16 %v474
    %v1886 = vunpack.c.l.b16 %v475
    %v1887 = vunpack.c.h.b16 %v475
    %v1888 = vunpack.c.l.b16 %v476
    %v1889 = vunpack.c.h.b16 %v476
    %v1890 = vunpack.c.l.b16 %v477
    %v1891 = vunpack.c.h.b16 %v477
    %v1892 = vunpack.c.l.b16 %v478
    %v1893 = vunpack.c.h.b16 %v478
    %v1894 = vunpack.c.l.b16 %v479
    %v1895 = vunpack.c.h.b16 %v479
    %v1896 = vunpack.c.l.b16 %v480
    %v1897 = vunpack.c.h.b16 %v480
    %v1898 = vunpack.c.l.b16 %v481
    %v1899 = vunpack.c.h.b16 %v481
    %v1900 = vunpack.c.l.b16 %v482
    %v1901 = vunpack.c.h.b16 %v482
    %v1902 = vunpack.c.l.b16 %v483
    %v1903 = vunpack.c.h.b16 %v483
    %v1904 = vunpack.c.l.b16 %v484
    %v1905 = vunpack.c.h.b16 %v484
    %v1906 = vunpack.c.l.b16 %v485
    %v1907 = vunpack.c.h.b16 %v485
    %v1908 = vunpack.c.l.b16 %v486
    %v1909 = vunpack.c.h.b16 %v486
    %v1910 = vunpack.c.l.b16 %v487
    %v1911 = vunpack.c.h.b16 %v487
    %v1912 = vunpack.c.l.b16 %v488
    %v1913 = vunpack.c.h.b16 %v488
    %v1914 = vunpack.c.l.b16 %v489
    %v1915 = vunpack.c.h.b16 %v489
    %v1916 = vunpack.c.l.b16 %v490
    %v1917 = vunpack.c.h.b16 %v490
    %v1918 = vunpack.c.l.b16 %v491
    %v1919 = vunpack.c.h.b16 %v491
    %v1920 = vunpack.c.l.b16 %v492
    %v1921 = vunpack.c.h.b16 %v492
    %v1922 = vunpack.c.l.b16 %v493
    %v1923 = vunpack.c.h.b16 %v493
    %v1924 = vunpack.c.l.b16 %v494
    %v1925 = vunpack.c.h.b16 %v494
    %v1926 = vunpack.c.l.b16 %v495
    %v1927 = vunpack.c.h.b16 %v495
    %v1928 = vunpack.c.l.b16 %v496
    %v1929 = vunpack.c.h.b16 %v496
    %v1930 = vunpack.c.l.b16 %v497
    %v1931 = vunpack.c.h.b16 %v497
    %v1932 = vunpack.c.l.b16 %v498
    %v1933 = vunpack.c.h.b16 %v498
    %v1934 = vunpack.c.l.b16 %v499
    %v1935 = vunpack.c.h.b16 %v499
    %v1936 = vunpack.c.l.b16 %v500
    %v1937 = vunpack.c.h.b16 %v500
    %v1938 = vunpack.c.l.b16 %v501
    %v1939 = vunpack.c.h.b16 %v501
    %v1940 = vunpack.c.l.b16 %v502
    %v1941 = vunpack.c.h.b16 %v502
    %v1942 = vunpack.c.l.b16 %v503
    %v1943 = vunpack.c.h.b16 %v503
    %v1944 = vunpack.c.l.b16 %v504
    %v1945 = vunpack.c.h.b16 %v504
    %v1946 = vunpack.c.l.b16 %v505
    %v1947 = vunpack.c.h.b16 %v505
    %v1948 = vunpack.c.l.b16 %v506
    %v1949 = vunpack.c.h.b16 %v506
    %v1950 = vunpack.c.l.b16 %v507
    %v1951 = vunpack.c.h.b16 %v507
    %v1952 = vunpack.c.l.b16 %v508
    %v1953 = vunpack.c.h.b16 %v508
    %v1954 = vunpack.c.l.b16 %v509
    %v1955 = vunpack.c.h.b16 %v509
    %v1956 = vunpack.c.l.b16 %v510
    %v1957 = vunpack.c.h.b16 %v510
    %v1958 = vunpack.c.l.b16 %v511
    %v1959 = vunpack.c.h.b16 %v511
    %v1960 = vunpack.c.l.b16 %v512
    %v1961 = vunpack.c.h.b16 %v512
    %v1962 = vunpack.c.l.b16 %v513
    %v1963 = vunpack.c.h.b16 %v513
    %v1964 = vunpack.c.l.b16 %v514
    %v1965 = vunpack.c.h.b16 %v514
    %v1966 = vunpack.c.l.b16 %v515
    %v1967 = vunpack.c.h.b16 %v515
    %v1968 = vunpack.c.l.b16 %v516
    %v1969 = vunpack.c.h.b16 %v516
    %v1970 = vunpack.c.l.b16 %v517
    %v1971 = vunpack.c.h.b16 %v517
    %v1972 = vunpack.c.l.b16 %v518
    %v1973 = vunpack.c.h.b16 %v518
    %v1974 = vunpack.c.l.b16 %v519
    %v1975 = vunpack.c.h.b16 %v519
    %v1976 = vunpack.c.l.b16 %v520
    %v1977 = vunpack.c.h.b16 %v520
    %v1978 = vunpack.c.l.b16 %v521
    %v1979 = vunpack.c.h.b16 %v521
    %v1980 = vunpack.c.l.b16 %v522
    %v1981 = vunpack.c.h.b16 %v522
    %v1982 = vunpack.c.l.b16 %v523
    %v1983 = vunpack.c.h.b16 %v523
    %v1984 = vunpack.c.l.b16 %v524
    %v1985 = vunpack.c.h.b16 %v524
    %v1986 = vunpack.c.l.b16 %v525
    %v1987 = vunpack.c.h.b16 %v525
    %v1988 = vunpack.c.l.b16 %v526
    %v1989 = vunpack.c.h.b16 %v526
    %v1990 = vunpack.c.l.b16 %v527
    %v1991 = vunpack.c.h.b16 %v527
    %v1992 = vunpack.c.l.b16 %v528
    %v1993 = vunpack.c.h.b16 %v528
    %v1994 = vunpack.c.l.b16 %v529
    %v1995 = vunpack.c.h.b16 %v529
    %v1996 = vunpack.c.l.b16 %v530
    %v1997 = vunpack.c.h.b16 %v530
    %v1998 = vunpack.c.l.b16 %v531
    %v1999 = vunpack.c.h.b16 %v531
    %v2000 = vunpack.c.l.b16 %v532
    %v2001 = vunpack.c.h.b16 %v532
    %v2002 = vunpack.c.l.b16 %v533
    %v2003 = vunpack.c.h.b16 %v533
    %v2004 = vunpack.c.l.b16 %v534
    %v2005 = vunpack.c.h.b16 %v534
    %v2006 = vunpack.c.l.b16 %v535
    %v2007 = vunpack.c.h.b16 %v535
    %v2008 = vunpack.c.l.b16 %v536
    %v2009 = vunpack.c.h.b16 %v536
    %v2010 = vunpack.c.l.b16 %v537
    %v2011 = vunpack.c.h.b16 %v537
    %v2012 = vunpack.c.l.b16 %v538
    %v2013 = vunpack.c.h.b16 %v538
    %v2014 = vunpack.c.l.b16 %v539
    %v2015 = vunpack.c.h.b16 %v539
    %v2016 = vunpack.c.l.b16 %v540
    %v2017 = vunpack.c.h.b16 %v540
    %v2018 = vunpack.c.l.b16 %v541
    %v2019 = vunpack.c.h.b16 %v541
    %v2020 = vunpack.c.l.b16 %v542
    %v2021 = vunpack.c.h.b16 %v542
    %v2022 = vunpack.c.l.b16 %v543
    %v2023 = vunpack.c.h.b16 %v543
    %v2024 = vunpack.c.l.b16 %v544
    %v2025 = vunpack.c.h.b16 %v544
    %v2026 = vunpack.c.l.b16 %v545
    %v2027 = vunpack.c.h.b16 %v545
    %v2028 = vunpack.c.l.b16 %v546
    %v2029 = vunpack.c.h.b16 %v546
    %v2030 = vunpack.c.l.b16 %v547
    %v2031 = vunpack.c.h.b16 %v547
    %v2032 = vunpack.c.l.b16 %v548
    %v2033 = vunpack.c.h.b16 %v548
    %v2034 = vunpack.c.l.b16 %v549
    %v2035 = vunpack.c.h.b16 %v549
    %v2036 = vunpack.c.l.b16 %v550
    %v2037 = vunpack.c.h.b16 %v550
    %v2038 = vunpack.c.l.b16 %v551
    %v2039 = vunpack.c.h.b16 %v551
    %v2040 = vunpack.c.l.b16 %v552
    %v2041 = vunpack.c.h.b16 %v552
    %v2042 = vunpack.c.l.b16 %v553
    %v2043 = vunpack.c.h.b16 %v553
    %v2044 = vunpack.c.l.b16 %v554
    %v2045 = vunpack.c.h.b16 %v554
    %v2046 = vunpack.c.l.b16 %v555
    %v2047 = vunpack.c.h.b16 %v555
    %v2048 = vunpack.c.l.b16 %v556
    %v2049 = vunpack.c.h.b16 %v556
    %v2050 = vunpack.c.l.b16 %v557
    %v2051 = vunpack.c.h.b16 %v557
    %v2052 = vunpack.c.l.b16 %v558
    %v2053 = vunpack.c.h.b16 %v558
    %v2054 = vunpack.c.l.b16 %v559
    %v2055 = vunpack.c.h.b16 %v559
    %v2056 = vunpack.c.l.b16 %v560
    %v2057 = vunpack.c.h.b16 %v560
    %v2058 = vunpack.c.l.b16 %v561
    %v2059 = vunpack.c.h.b16 %v561
    %v2060 = vunpack.c.l.b16 %v562
    %v2061 = vunpack.c.h.b16 %v562
    %v2062 = vunpack.c.l.b16 %v563
    %v2063 = vunpack.c.h.b16 %v563
    %v2064 = vunpack.c.l.b16 %v564
    %v2065 = vunpack.c.h.b16 %v564
    %v2066 = vunpack.c.l.b16 %v565
    %v2067 = vunpack.c.h.b16 %v565
    %v2068 = vunpack.c.l.b16 %v566
    %v2069 = vunpack.c.h.b16 %v566
    %v2070 = vunpack.c.l.b16 %v567
    %v2071 = vunpack.c.h.b16 %v567
    %v2072 = vunpack.c.l.b16 %v568
    %v2073 = vunpack.c.h.b16 %v568
    %v2074 = vunpack.c.l.b16 %v569
    %v2075 = vunpack.c.h.b16 %v569
    %v2076 = vunpack.c.l.b16 %v570
    %v2077 = vunpack.c.h.b16 %v570
    %v2078 = vunpack.c.l.b16 %v571
    %v2079 = vunpack.c.h.b16 %v571
    %v2080 = vunpack.c.l.b16 %v572
    %v2081 = vunpack.c.h.b16 %v572
    %v2082 = vunpack.c.l.b16 %v573
    %v2083 = vunpack.c.h.b16 %v573
    %v2084 = vunpack.c.l.b16 %v574
    %v2085 = vunpack.c.h.b16 %v574
    %v2086 = vunpack.c.l.b16 %v575
    %v2087 = vunpack.c.h.b16 %v575
    %v2088 = vunpack.c.l.b16 %v576
    %v2089 = vunpack.c.h.b16 %v576
    %v2090 = vunpack.c.l.b16 %v577
    %v2091 = vunpack.c.h.b16 %v577
    %v2092 = vunpack.c.l.b16 %v578
    %v2093 = vunpack.c.h.b16 %v578
    %v2094 = vunpack.c.l.b16 %v579
    %v2095 = vunpack.c.h.b16 %v579
    %v2096 = vunpack.c.l.b16 %v580
    %v2097 = vunpack.c.h.b16 %v580
    %v2098 = vunpack.c.l.b16 %v581
    %v2099 = vunpack.c.h.b16 %v581
    %v2100 = vunpack.c.l.b16 %v582
    %v2101 = vunpack.c.h.b16 %v582
    %v2102 = vunpack.c.l.b16 %v583
    %v2103 = vunpack.c.h.b16 %v583
    %v2104 = vunpack.c.l.b16 %v584
    %v2105 = vunpack.c.h.b16 %v584
    %v2106 = vunpack.c.l.b16 %v585
    %v2107 = vunpack.c.h.b16 %v585
    %v2108 = vunpack.c.l.b16 %v586
    %v2109 = vunpack.c.h.b16 %v586
    %v2110 = vunpack.c.l.b16 %v587
    %v2111 = vunpack.c.h.b16 %v587
    %v2112 = vunpack.c.l.b16 %v588
    %v2113 = vunpack.c.h.b16 %v588
    %v2114 = vunpack.c.l.b16 %v589
    %v2115 = vunpack.c.h.b16 %v589
    %v2116 = vunpack.c.l.b16 %v590
    %v2117 = vunpack.c.h.b16 %v590
    %v2118 = vunpack.c.l.b16 %v591
    %v2119 = vunpack.c.h.b16 %v591
    %v2120 = vunpack.c.l.b16 %v592
    %v2121 = vunpack.c.h.b16 %v592
    %v2122 = vunpack.c.l.b16 %v593
    %v2123 = vunpack.c.h.b16 %v593
    %v2124 = vunpack.c.l.b16 %v594
    %v2125 = vunpack.c.h.b16 %v594
    %v2126 = vunpack.c.l.b16 %v595
    %v2127 = vunpack.c.h.b16 %v595
    %v2128 = vunpack.c.l.b16 %v596
    %v2129 = vunpack.c.h.b16 %v596
    %v2130 = vunpack.c.l.b16 %v597
    %v2131 = vunpack.c.h.b16 %v597
    %v2132 = vunpack.c.l.b16 %v598
    %v2133 = vunpack.c.h.b16 %v598
    %v2134 = vunpack.c.l.b16 %v599
    %v2135 = vunpack.c.h.b16 %v599
    %v2136 = vpack.c.b16 %v1120, %v1112
    %v2137 = vpack.c.b16 %v1121, %v1113
    %v2138 = vpack.c.b16 %v1122, %v1114
    %v2139 = vpack.c.b16 %v1123, %v1115
    %v2140 = vpack.c.b16 %v1124, %v1116
    %v2141 = vpack.c.b16 %v1125, %v1117
    %v2142 = vpack.c.b16 %v1126, %v1118
    %v2143 = vpack.c.b16 %v1127, %v1119
    %v2144 = vpack.c.b16 %v1136, %v1128
    %v2145 = vpack.c.b16 %v1137, %v1129
    %v2146 = vpack.c.b16 %v1138, %v1130
    %v2147 = vpack.c.b16 %v1139, %v1131
    %v2148 = vpack.c.b16 %v1140, %v1132
    %v2149 = vpack.c.b16 %v1141, %v1133
    %v2150 = vpack.c.b16 %v1142, %v1134
    %v2151 = vpack.c.b16 %v1143, %v1135
    %v2152 = vpack.c.b16 %v1152, %v1144
    %v2153 = vpack.c.b16 %v1153, %v1145
    %v2154 = vpack.c.b16 %v1154, %v1146
    %v2155 = vpack.c.b16 %v1155, %v1147
    %v2156 = vpack.c.b16 %v1156, %v1148
    %v2157 = vpack.c.b16 %v1157, %v1149
    %v2158 = vpack.c.b16 %v1158, %v1150
    %v2159 = vpack.c.b16 %v1159, %v1151
    %v2160 = vpack.c.b16 %v1168, %v1160
    %v2161 = vpack.c.b16 %v1169, %v1161
    %v2162 = vpack.c.b16 %v1170, %v1162
    %v2163 = vpack.c.b16 %v1171, %v1163
    %v2164 = vpack.c.b16 %v1172, %v1164
    %v2165 = vpack.c.b16 %v1173, %v1165
    %v2166 = vpack.c.b16 %v1174, %v1166
    %v2167 = vpack.c.b16 %v1175, %v1167
    %v2168 = vpack.c.b16 %v1184, %v1176
    %v2169 = vpack.c.b16 %v1185, %v1177
    %v2170 = vpack.c.b16 %v1186, %v1178
    %v2171 = vpack.c.b16 %v1187, %v1179
    %v2172 = vpack.c.b16 %v1188, %v1180
    %v2173 = vpack.c.b16 %v1189, %v1181
    %v2174 = vpack.c.b16 %v1190, %v1182
    %v2175 = vpack.c.b16 %v1191, %v1183
    %v2176 = vpack.c.b16 %v1200, %v1192
    %v2177 = vpack.c.b16 %v1201, %v1193
    %v2178 = vpack.c.b16 %v1202, %v1194
    %v2179 = vpack.c.b16 %v1203, %v1195
    %v2180 = vpack.c.b16 %v1204, %v1196
    %v2181 = vpack.c.b16 %v1205, %v1197
    %v2182 = vpack.c.b16 %v1206, %v1198
    %v2183 = vpack.c.b16 %v1207, %v1199
    %v2184 = vpack.c.b16 %v1216, %v1208
    %v2185 = vpack.c.b16 %v1217, %v1209
    %v2186 = vpack.c.b16 %v1218, %v1210
    %v2187 = vpack.c.b16 %v1219, %v1211
    %v2188 = vpack.c.b16 %v1220, %v1212
    %v2189 = vpack.c.b16 %v1221, %v1213
    %v2190 = vpack.c.b16 %v1222, %v1214
    %v2191 = vpack.c.b16 %v1223, %v1215
    %v2192 = vpack.c.b16 %v1232, %v1224
    %v2193 = vpack.c.b16 %v1233, %v1225
    %v2194 = vpack.c.b16 %v1234, %v1226
    %v2195 = vpack.c.b16 %v1235, %v1227
    %v2196 = vpack.c.b16 %v1236, %v1228
    %v2197 = vpack.c.b16 %v1237, %v1229
    %v2198 = vpack.c.b16 %v1238, %v1230
    %v2199 = vpack.c.b16 %v1239, %v1231
    %v2200 = vpack.c.b16 %v1248, %v1240
    %v2201 = vpack.c.b16 %v1249, %v1241
    %v2202 = vpack.c.b16 %v1250, %v1242
    %v2203 = vpack.c.b16 %v1251, %v1243
    %v2204 = vpack.c.b16 %v1252, %v1244
    %v2205 = vpack.c.b16 %v1253, %v1245
    %v2206 = vpack.c.b16 %v1254, %v1246
    %v2207 = vpack.c.b16 %v1255, %v1247
    %v2208 = vpack.c.b16 %v1264, %v1256
    %v2209 = vpack.c.b16 %v1265, %v1257
    %v2210 = vpack.c.b16 %v1266, %v1258
    %v2211 = vpack.c.b16 %v1267, %v1259
    %v2212 = vpack.c.b16 %v1268, %v1260
    %v2213 = vpack.c.b16 %v1269, %v1261
    %v2214 = vpack.c.b16 %v1270, %v1262
    %v2215 = vpack.c.b16 %v1271, %v1263
    %v2216 = vpack.c.b16 %v1280, %v1272
    %v2217 = vpack.c.b16 %v1281, %v1273
    %v2218 = vpack.c.b16 %v1282, %v1274
    %v2219 = vpack.c.b16 %v1283, %v1275
    %v2220 = vpack.c.b16 %v1284, %v1276
    %v2221 = vpack.c.b16 %v1285, %v1277
    %v2222 = vpack.c.b16 %v1286, %v1278
    %v2223 = vpack.c.b16 %v1287, %v1279
    %v2224 = vpack.c.b16 %v1296, %v1288
    %v2225 = vpack.c.b16 %v1297, %v1289
    %v2226 = vpack.c.b16 %v1298, %v1290
    %v2227 = vpack.c.b16 %v1299, %v1291
    %v2228 = vpack.c.b16 %v1300, %v1292
    %v2229 = vpack.c.b16 %v1301, %v1293
    %v2230 = vpack.c.b16 %v1302, %v1294
    %v2231 = vpack.c.b16 %v1303, %v1295
    %v2232 = vpack.c.b16 %v1312, %v1304
    %v2233 = vpack.c.b16 %v1313, %v1305
    %v2234 = vpack.c.b16 %v1314, %v1306
    %v2235 = vpack.c.b16 %v1315, %v1307
    %v2236 = vpack.c.b16 %v1316, %v1308
    %v2237 = vpack.c.b16 %v1317, %v1309
    %v2238 = vpack.c.b16 %v1318, %v1310
    %v2239 = vpack.c.b16 %v1319, %v1311
    %v2240 = vpack.c.b16 %v1328, %v1320
    %v2241 = vpack.c.b16 %v1329, %v1321
    %v2242 = vpack.c.b16 %v1330, %v1322
    %v2243 = vpack.c.b16 %v1331, %v1323
    %v2244 = vpack.c.b16 %v1332, %v1324
    %v2245 = vpack.c.b16 %v1333, %v1325
    %v2246 = vpack.c.b16 %v1334, %v1326
    %v2247 = vpack.c.b16 %v1335, %v1327
    %v2248 = vpack.c.b16 %v1344, %v1336
    %v2249 = vpack.c.b16 %v1345, %v1337
    %v2250 = vpack.c.b16 %v1346, %v1338
    %v2251 = vpack.c.b16 %v1347, %v1339
    %v2252 = vpack.c.b16 %v1348, %v1340
    %v2253 = vpack.c.b16 %v1349, %v1341
    %v2254 = vpack.c.b16 %v1350, %v1342
    %v2255 = vpack.c.b16 %v1351, %v1343
    %v2256 = vpack.c.b16 %v1360, %v1352
    %v2257 = vpack.c.b16 %v1361, %v1353
    %v2258 = vpack.c.b16 %v1362, %v1354
    %v2259 = vpack.c.b16 %v1363, %v1355
    %v2260 = vpack.c.b16 %v1364, %v1356
    %v2261 = vpack.c.b16 %v1365, %v1357
    %v2262 = vpack.c.b16 %v1366, %v1358
    %v2263 = vpack.c.b16 %v1367, %v1359
    %v2264 = vpack.c.b16 %v1376, %v1368
    %v2265 = vpack.c.b16 %v1377, %v1369
    %v2266 = vpack.c.b16 %v1378, %v1370
    %v2267 = vpack.c.b16 %v1379, %v1371
    %v2268 = vpack.c.b16 %v1380, %v1372
    %v2269 = vpack.c.b16 %v1381, %v1373
    %v2270 = vpack.c.b16 %v1382, %v1374
    %v2271 = vpack.c.b16 %v1383, %v1375
    %v2272 = vpack.c.b16 %v1392, %v1384
    %v2273 = vpack.c.b16 %v1393, %v1385
    %v2274 = vpack.c.b16 %v1394, %v1386
    %v2275 = vpack.c.b16 %v1395, %v1387
    %v2276 = vpack.c.b16 %v1396, %v1388
    %v2277 = vpack.c.b16 %v1397, %v1389
    %v2278 = vpack.c.b16 %v1398, %v1390
    %v2279 = vpack.c.b16 %v1399, %v1391
    %v2280 = vpack.c.b16 %v1408, %v1400
    %v2281 = vpack.c.b16 %v1409, %v1401
    %v2282 = vpack.c.b16 %v1410, %v1402
    %v2283 = vpack.c.b16 %v1411, %v1403
    %v2284 = vpack.c.b16 %v1412, %v1404
    %v2285 = vpack.c.b16 %v1413, %v1405
    %v2286 = vpack.c.b16 %v1414, %v1406
    %v2287 = vpack.c.b16 %v1415, %v1407
    %v2288 = vpack.c.b16 %v1424, %v1416
    %v2289 = vpack.c.b16 %v1425, %v1417
    %v2290 = vpack.c.b16 %v1426, %v1418
    %v2291 = vpack.c.b16 %v1427, %v1419
    %v2292 = vpack.c.b16 %v1428, %v1420
    %v2293 = vpack.c.b16 %v1429, %v1421
    %v2294 = vpack.c.b16 %v1430, %v1422
    %v2295 = vpack.c.b16 %v1431, %v1423
    %v2296 = vpack.c.b16 %v1440, %v1432
    %v2297 = vpack.c.b16 %v1441, %v1433
    %v2298 = vpack.c.b16 %v1442, %v1434
    %v2299 = vpack.c.b16 %v1443, %v1435
    %v2300 = vpack.c.b16 %v1444, %v1436
    %v2301 = vpack.c.b16 %v1445, %v1437
    %v2302 = vpack.c.b16 %v1446, %v1438
    %v2303 = vpack.c.b16 %v1447, %v1439
    %v2304 = vpack.c.b16 %v1456, %v1448
    %v2305 = vpack.c.b16 %v1457, %v1449
    %v2306 = vpack.c.b16 %v1458, %v1450
    %v2307 = vpack.c.b16 %v1459, %v1451
    %v2308 = vpack.c.b16 %v1460, %v1452
    %v2309 = vpack.c.b16 %v1461, %v1453
    %v2310 = vpack.c.b16 %v1462, %v1454
    %v2311 = vpack.c.b16 %v1463, %v1455
    %v2312 = vpack.c.b16 %v1472, %v1464
    %v2313 = vpack.c.b16 %v1473, %v1465
    %v2314 = vpack.c.b16 %v1474, %v1466
    %v2315 = vpack.c.b16 %v1475, %v1467
    %v2316 = vpack.c.b16 %v1476, %v1468
    %v2317 = vpack.c.b16 %v1477, %v1469
    %v2318 = vpack.c.b16 %v1478, %v1470
    %v2319 = vpack.c.b16 %v1479, %v1471
    %v2320 = vpack.c.b16 %v1488, %v1480
    %v2321 = vpack.c.b16 %v1489, %v1481
    %v2322 = vpack.c.b16 %v1490, %v1482
    %v2323 = vpack.c.b16 %v1491, %v1483
    %v2324 = vpack.c.b16 %v1492, %v1484
    %v2325 = vpack.c.b16 %v1493, %v1485
    %v2326 = vpack.c.b16 %v1494, %v1486
    %v2327 = vpack.c.b16 %v1495, %v1487
    %v2328 = vpack.c.b16 %v1504, %v1496
    %v2329 = vpack.c.b16 %v1505, %v1497
    %v2330 = vpack.c.b16 %v1506, %v1498
    %v2331 = vpack.c.b16 %v1507, %v1499
    %v2332 = vpack.c.b16 %v1508, %v1500
    %v2333 = vpack.c.b16 %v1509, %v1501
    %v2334 = vpack.c.b16 %v1510, %v1502
    %v2335 = vpack.c.b16 %v1511, %v1503
    %v2336 = vpack.c.b16 %v1520, %v1512
    %v2337 = vpack.c.b16 %v1521, %v1513
    %v2338 = vpack.c.b16 %v1522, %v1514
    %v2339 = vpack.c.b16 %v1523, %v1515
    %v2340 = vpack.c.b16 %v1524, %v1516
    %v2341 = vpack.c.b16 %v1525, %v1517
    %v2342 = vpack.c.b16 %v1526, %v1518
    %v2343 = vpack.c.b16 %v1527, %v1519
    %v2344 = vpack.c.b16 %v1536, %v1528
    %v2345 = vpack.c.b16 %v1537, %v1529
    %v2346 = vpack.c.b16 %v1538, %v1530
    %v2347 = vpack.c.b16 %v1539, %v1531
    %v2348 = vpack.c.b16 %v1540, %v1532
    %v2349 = vpack.c.b16 %v1541, %v1533
    %v2350 = vpack.c.b16 %v1542, %v1534
    %v2351 = vpack.c.b16 %v1543, %v1535
    %v2352 = vpack.c.b16 %v1552, %v1544
    %v2353 = vpack.c.b16 %v1553, %v1545
    %v2354 = vpack.c.b16 %v1554, %v1546
    %v2355 = vpack.c.b16 %v1555, %v1547
    %v2356 = vpack.c.b16 %v1556, %v1548
    %v2357 = vpack.c.b16 %v1557, %v1549
    %v2358 = vpack.c.b16 %v1558, %v1550
    %v2359 = vpack.c.b16 %v1559, %v1551
    %v2360 = vpack.c.b16 %v1568, %v1560
    %v2361 = vpack.c.b16 %v1569, %v1561
    %v2362 = vpack.c.b16 %v1570, %v1562
    %v2363 = vpack.c.b16 %v1571, %v1563
    %v2364 = vpack.c.b16 %v1572, %v1564
    %v2365 = vpack.c.b16 %v1573, %v1565
    %v2366 = vpack.c.b16 %v1574, %v1566
    %v2367 = vpack.c.b16 %v1575, %v1567
    %v2368 = vpack.c.b16 %v1584, %v1576
    %v2369 = vpack.c.b16 %v1585, %v1577
    %v2370 = vpack.c.b16 %v1586, %v1578
    %v2371 = vpack.c.b16 %v1587, %v1579
    %v2372 = vpack.c.b16 %v1588, %v1580
    %v2373 = vpack.c.b16 %v1589, %v1581
    %v2374 = vpack.c.b16 %v1590, %v1582
    %v2375 = vpack.c.b16 %v1591, %v1583
    %v2376 = vpack.c.b16 %v1600, %v1592
    %v2377 = vpack.c.b16 %v1601, %v1593
    %v2378 = vpack.c.b16 %v1602, %v1594
    %v2379 = vpack.c.b16 %v1603, %v1595
    %v2380 = vpack.c.b16 %v1604, %v1596
    %v2381 = vpack.c.b16 %v1605, %v1597
    %v2382 = vpack.c.b16 %v1606, %v1598
    %v2383 = vpack.c.b16 %v1607, %v1599
    %v2384 = vpack.c.b16 %v1616, %v1608
    %v2385 = vpack.c.b16 %v1617, %v1609
    %v2386 = vpack.c.b16 %v1618, %v1610
    %v2387 = vpack.c.b16 %v1619, %v1611
    %v2388 = vpack.c.b16 %v1620, %v1612
    %v2389 = vpack.c.b16 %v1621, %v1613
    %v2390 = vpack.c.b16 %v1622, %v1614
    %v2391 = vpack.c.b16 %v1623, %v1615
    %v2392 = vpack.c.b16 %v1632, %v1624
    %v2393 = vpack.c.b16 %v1633, %v1625
    %v2394 = vpack.c.b16 %v1634, %v1626
    %v2395 = vpack.c.b16 %v1635, %v1627
    %v2396 = vpack.c.b16 %v1636, %v1628
    %v2397 = vpack.c.b16 %v1637, %v1629
    %v2398 = vpack.c.b16 %v1638, %v1630
    %v2399 = vpack.c.b16 %v1639, %v1631
    %v2400 = vpack.c.b16 %v1648, %v1640
    %v2401 = vpack.c.b16 %v1649, %v1641
    %v2402 = vpack.c.b16 %v1650, %v1642
    %v2403 = vpack.c.b16 %v1651, %v1643
    %v2404 = vpack.c.b16 %v1652, %v1644
    %v2405 = vpack.c.b16 %v1653, %v1645
    %v2406 = vpack.c.b16 %v1654, %v1646
    %v2407 = vpack.c.b16 %v1655, %v1647
    %v2408 = vpack.c.b16 %v1664, %v1656
    %v2409 = vpack.c.b16 %v1665, %v1657
    %v2410 = vpack.c.b16 %v1666, %v1658
    %v2411 = vpack.c.b16 %v1667, %v1659
    %v2412 = vpack.c.b16 %v1668, %v1660
    %v2413 = vpack.c.b16 %v1669, %v1661
    %v2414 = vpack.c.b16 %v1670, %v1662
    %v2415 = vpack.c.b16 %v1671, %v1663
    %v2416 = vpack.c.b16 %v1680, %v1672
    %v2417 = vpack.c.b16 %v1681, %v1673
    %v2418 = vpack.c.b16 %v1682, %v1674
    %v2419 = vpack.c.b16 %v1683, %v1675
    %v2420 = vpack.c.b16 %v1684, %v1676
    %v2421 = vpack.c.b16 %v1685, %v1677
    %v2422 = vpack.c.b16 %v1686, %v1678
    %v2423 = vpack.c.b16 %v1687, %v1679
    %v2424 = vpack.c.b16 %v1696, %v1688
    %v2425 = vpack.c.b16 %v1697, %v1689
    %v2426 = vpack.c.b16 %v1698, %v1690
    %v2427 = vpack.c.b16 %v1699, %v1691
    %v2428 = vpack.c.b16 %v1700, %v1692
    %v2429 = vpack.c.b16 %v1701, %v1693
    %v2430 = vpack.c.b16 %v1702, %v1694
    %v2431 = vpack.c.b16 %v1703, %v1695
    %v2432 = vpack.c.b16 %v1712, %v1704
    %v2433 = vpack.c.b16 %v1713, %v1705
    %v2434 = vpack.c.b16 %v1714, %v1706
    %v2435 = vpack.c.b16 %v1715, %v1707
    %v2436 = vpack.c.b16 %v1716, %v1708
    %v2437 = vpack.c.b16 %v1717, %v1709
    %v2438 = vpack.c.b16 %v1718, %v1710
    %v2439 = vpack.c.b16 %v1719, %v1711
    %v2440 = vpack.c.b16 %v1728, %v1720
    %v2441 = vpack.c.b16 %v1729, %v1721
    %v2442 = vpack.c.b16 %v1730, %v1722
    %v2443 = vpack.c.b16 %v1731, %v1723
    %v2444 = vpack.c.b16 %v1732, %v1724
    %v2445 = vpack.c.b16 %v1733, %v1725
    %v2446 = vpack.c.b16 %v1734, %v1726
    %v2447 = vpack.c.b16 %v1735, %v1727
    %v2448 = vpack.c.b16 %v1744, %v1736
    %v2449 = vpack.c.b16 %v1745, %v1737
    %v2450 = vpack.c.b16 %v1746, %v1738
    %v2451 = vpack.c.b16 %v1747, %v1739
    %v2452 = vpack.c.b16 %v1748, %v1740
    %v2453 = vpack.c.b16 %v1749, %v1741
    %v2454 = vpack.c.b16 %v1750, %v1742
    %v2455 = vpack.c.b16 %v1751, %v1743
    %v2456 = vpack.c.b16 %v1760, %v1752
    %v2457 = vpack.c.b16 %v1761, %v1753
    %v2458 = vpack.c.b16 %v1762, %v1754
    %v2459 = vpack.c.b16 %v1763, %v1755
    %v2460 = vpack.c.b16 %v1764, %v1756
    %v2461 = vpack.c.b16 %v1765, %v1757
    %v2462 = vpack.c.b16 %v1766, %v1758
    %v2463 = vpack.c.b16 %v1767, %v1759
    %v2464 = vpack.c.b16 %v1776, %v1768
    %v2465 = vpack.c.b16 %v1777, %v1769
    %v2466 = vpack.c.b16 %v1778, %v1770
    %v2467 = vpack.c.b16 %v1779, %v1771
    %v2468 = vpack.c.b16 %v1780, %v1772
    %v2469 = vpack.c.b16 %v1781, %v1773
    %v2470 = vpack.c.b16 %v1782, %v1774
    %v2471 = vpack.c.b16 %v1783, %v1775
    %v2472 = vpack.c.b16 %v1792, %v1784
    %v2473 = vpack.c.b16 %v1793, %v1785
    %v2474 = vpack.c.b16 %v1794, %v1786
    %v2475 = vpack.c.b16 %v1795, %v1787
    %v2476 = vpack.c.b16 %v1796, %v1788
    %v2477 = vpack.c.b16 %v1797, %v1789
    %v2478 = vpack.c.b16 %v1798, %v1790
    %v2479 = vpack.c.b16 %v1799, %v1791
    %v2480 = vpack.c.b16 %v1808, %v1800
    %v2481 = vpack.c.b16 %v1809, %v1801
    %v2482 = vpack.c.b16 %v1810, %v1802
    %v2483 = vpack.c.b16 %v1811, %v1803
    %v2484 = vpack.c.b16 %v1812, %v1804
    %v2485 = vpack.c.b16 %v1813, %v1805
    %v2486 = vpack.c.b16 %v1814, %v1806
    %v2487 = vpack.c.b16 %v1815, %v1807
    %v2488 = vpack.c.b16 %v1824, %v1816
    %v2489 = vpack.c.b16 %v1825, %v1817
    %v2490 = vpack.c.b16 %v1826, %v1818
    %v2491 = vpack.c.b16 %v1827, %v1819
    %v2492 = vpack.c.b16 %v1828, %v1820
    %v2493 = vpack.c.b16 %v1829, %v1821
    %v2494 = vpack.c.b16 %v1830, %v1822
    %v2495 = vpack.c.b16 %v1831, %v1823
    %v2496 = vpack.c.b16 %v1840, %v1832
    %v2497 = vpack.c.b16 %v1841, %v1833
    %v2498 = vpack.c.b16 %v1842, %v1834
    %v2499 = vpack.c.b16 %v1843, %v1835
    %v2500 = vpack.c.b16 %v1844, %v1836
    %v2501 = vpack.c.b16 %v1845, %v1837
    %v2502 = vpack.c.b16 %v1846, %v1838
    %v2503 = vpack.c.b16 %v1847, %v1839
    %v2504 = vpack.c.b16 %v1856, %v1848
    %v2505 = vpack.c.b16 %v1857, %v1849
    %v2506 = vpack.c.b16 %v1858, %v1850
    %v2507 = vpack.c.b16 %v1859, %v1851
    %v2508 = vpack.c.b16 %v1860, %v1852
    %v2509 = vpack.c.b16 %v1861, %v1853
    %v2510 = vpack.c.b16 %v1862, %v1854
    %v2511 = vpack.c.b16 %v1863, %v1855
    %v2512 = vpack.c.b16 %v1872, %v1864
    %v2513 = vpack.c.b16 %v1873, %v1865
    %v2514 = vpack.c.b16 %v1874, %v1866
    %v2515 = vpack.c.b16 %v1875, %v1867
    %v2516 = vpack.c.b16 %v1876, %v1868
    %v2517 = vpack.c.b16 %v1877, %v1869
    %v2518 = vpack.c.b16 %v1878, %v1870
    %v2519 = vpack.c.b16 %v1879, %v1871
    %v2520 = vpack.c.b16 %v1888, %v1880
    %v2521 = vpack.c.b16 %v1889, %v1881
    %v2522 = vpack.c.b16 %v1890, %v1882
    %v2523 = vpack.c.b16 %v1891, %v1883
    %v2524 = vpack.c.b16 %v1892, %v1884
    %v2525 = vpack.c.b16 %v1893, %v1885
    %v2526 = vpack.c.b16 %v1894, %v1886
    %v2527 = vpack.c.b16 %v1895, %v1887
    %v2528 = vpack.c.b16 %v1904, %v1896
    %v2529 = vpack.c.b16 %v1905, %v1897
    %v2530 = vpack.c.b16 %v1906, %v1898
    %v2531 = vpack.c.b16 %v1907, %v1899
    %v2532 = vpack.c.b16 %v1908, %v1900
    %v2533 = vpack.c.b16 %v1909, %v1901
    %v2534 = vpack.c.b16 %v1910, %v1902
    %v2535 = vpack.c.b16 %v1911, %v1903
    %v2536 = vpack.c.b16 %v1920, %v1912
    %v2537 = vpack.c.b16 %v1921, %v1913
    %v2538 = vpack.c.b16 %v1922, %v1914
    %v2539 = vpack.c.b16 %v1923, %v1915
    %v2540 = vpack.c.b16 %v1924, %v1916
    %v2541 = vpack.c.b16 %v1925, %v1917
    %v2542 = vpack.c.b16 %v1926, %v1918
    %v2543 = vpack.c.b16 %v1927, %v1919
    %v2544 = vpack.c.b16 %v1936, %v1928
    %v2545 = vpack.c.b16 %v1937, %v1929
    %v2546 = vpack.c.b16 %v1938, %v1930
    %v2547 = vpack.c.b16 %v1939, %v1931
    %v2548 = vpack.c.b16 %v1940, %v1932
    %v2549 = vpack.c.b16 %v1941, %v1933
    %v2550 = vpack.c.b16 %v1942, %v1934
    %v2551 = vpack.c.b16 %v1943, %v1935
    %v2552 = vpack.c.b16 %v1952, %v1944
    %v2553 = vpack.c.b16 %v1953, %v1945
    %v2554 = vpack.c.b16 %v1954, %v1946
    %v2555 = vpack.c.b16 %v1955, %v1947
    %v2556 = vpack.c.b16 %v1956, %v1948
    %v2557 = vpack.c.b16 %v1957, %v1949
    %v2558 = vpack.c.b16 %v1958, %v1950
    %v2559 = vpack.c.b16 %v1959, %v1951
    %v2560 = vpack.c.b16 %v1968, %v1960
    %v2561 = vpack.c.b16 %v1969, %v1961
    %v2562 = vpack.c.b16 %v1970, %v1962
    %v2563 = vpack.c.b16 %v1971, %v1963
    %v2564 = vpack.c.b16 %v1972, %v1964
    %v2565 = vpack.c.b16 %v1973, %v1965
    %v2566 = vpack.c.b16 %v1974, %v1966
    %v2567 = vpack.c.b16 %v1975, %v1967
    %v2568 = vpack.c.b16 %v1984, %v1976
    %v2569 = vpack.c.b16 %v1985, %v1977
    %v2570 = vpack.c.b16 %v1986, %v1978
    %v2571 = vpack.c.b16 %v1987, %v1979
    %v2572 = vpack.c.b16 %v1988, %v1980
    %v2573 = vpack.c.b16 %v1989, %v1981
    %v2574 = vpack.c.b16 %v1990, %v1982
    %v2575 = vpack.c.b16 %v1991, %v1983
    %v2576 = vpack.c.b16 %v2000, %v1992
    %v2577 = vpack.c.b16 %v2001, %v1993
    %v2578 = vpack.c.b16 %v2002, %v1994
    %v2579 = vpack.c.b16 %v2003, %v1995
    %v2580 = vpack.c.b16 %v2004, %v1996
    %v2581 = vpack.c.b16 %v2005, %v1997
    %v2582 = vpack.c.b16 %v2006, %v1998
    %v2583 = vpack.c.b16 %v2007, %v1999
    %v2584 = vpack.c.b16 %v2016, %v2008
    %v2585 = vpack.c.b16 %v2017, %v2009
    %v2586 = vpack.c.b16 %v2018, %v2010
    %v2587 = vpack.c.b16 %v2019, %v2011
    %v2588 = vpack.c.b16 %v2020, %v2012
    %v2589 = vpack.c.b16 %v2021, %v2013
    %v2590 = vpack.c.b16 %v2022, %v2014
    %v2591 = vpack.c.b16 %v2023, %v2015
    %v2592 = vpack.c.b16 %v2032, %v2024
    %v2593 = vpack.c.b16 %v2033, %v2025
    %v2594 = vpack.c.b16 %v2034, %v2026
    %v2595 = vpack.c.b16 %v2035, %v2027
    %v2596 = vpack.c.b16 %v2036, %v2028
    %v2597 = vpack.c.b16 %v2037, %v2029
    %v2598 = vpack.c.b16 %v2038, %v2030
    %v2599 = vpack.c.b16 %v2039, %v2031
    %v2600 = vpack.c.b16 %v2048, %v2040
    %v2601 = vpack.c.b16 %v2049, %v2041
    %v2602 = vpack.c.b16 %v2050, %v2042
    %v2603 = vpack.c.b16 %v2051, %v2043
    %v2604 = vpack.c.b16 %v2052, %v2044
    %v2605 = vpack.c.b16 %v2053, %v2045
    %v2606 = vpack.c.b16 %v2054, %v2046
    %v2607 = vpack.c.b16 %v2055, %v2047
    %v2608 = vpack.c.b16 %v2064, %v2056
    %v2609 = vpack.c.b16 %v2065, %v2057
    %v2610 = vpack.c.b16 %v2066, %v2058
    %v2611 = vpack.c.b16 %v2067, %v2059
    %v2612 = vpack.c.b16 %v2068, %v2060
    %v2613 = vpack.c.b16 %v2069, %v2061
    %v2614 = vpack.c.b16 %v2070, %v2062
    %v2615 = vpack.c.b16 %v2071, %v2063
    %v2616 = vpack.c.b16 %v2080, %v2072
    %v2617 = vpack.c.b16 %v2081, %v2073
    %v2618 = vpack.c.b16 %v2082, %v2074
    %v2619 = vpack.c.b16 %v2083, %v2075
    %v2620 = vpack.c.b16 %v2084, %v2076
    %v2621 = vpack.c.b16 %v2085, %v2077
    %v2622 = vpack.c.b16 %v2086, %v2078
    %v2623 = vpack.c.b16 %v2087, %v2079
    %v2624 = vpack.c.b16 %v2096, %v2088
    %v2625 = vpack.c.b16 %v2097, %v2089
    %v2626 = vpack.c.b16 %v2098, %v2090
    %v2627 = vpack.c.b16 %v2099, %v2091
    %v2628 = vpack.c.b16 %v2100, %v2092
    %v2629 = vpack.c.b16 %v2101, %v2093
    %v2630 = vpack.c.b16 %v2102, %v2094
    %v2631 = vpack.c.b16 %v2103, %v2095
    %v2632 = vpack.c.b16 %v2112, %v2104
    %v2633 = vpack.c.b16 %v2113, %v2105
    %v2634 = vpack.c.b16 %v2114, %v2106
    %v2635 = vpack.c.b16 %v2115, %v2107
    %v2636 = vpack.c.b16 %v2116, %v2108
    %v2637 = vpack.c.b16 %v2117, %v2109
    %v2638 = vpack.c.b16 %v2118, %v2110
    %v2639 = vpack.c.b16 %v2119, %v2111
    %v2640 = vpack.c.b16 %v2128, %v2120
    %v2641 = vpack.c.b16 %v2129, %v2121
    %v2642 = vpack.c.b16 %v2130, %v2122
    %v2643 = vpack.c.b16 %v2131, %v2123
    %v2644 = vpack.c.b16 %v2132, %v2124
    %v2645 = vpack.c.b16 %v2133, %v2125
    %v2646 = vpack.c.b16 %v2134, %v2126
    %v2647 = vpack.c.b16 %v2135, %v2127
    %3160 = vmatprep.subr.bf16.mxu0 %v2137
    %3161 = vmatpush1.bf16.msra.mxu0 %v2136
    %3162 = vmatprep.subr.bf16.mxu0 %v2145
    %3163 = vmatpush1.bf16.msra.mxu0 %v2144
    %3164 = vmatprep.subr.bf16.mxu0 %v2153
    %3165 = vmatpush1.bf16.msra.mxu0 %v2152
    %3166 = vmatprep.subr.bf16.mxu0 %v2161
    %3167 = vmatpush1.bf16.msra.mxu0 %v2160
    %3168 = vmatprep.subr.bf16.mxu0 %v2169
    %3169 = vmatpush1.bf16.msra.mxu0 %v2168
    %3170 = vmatprep.subr.bf16.mxu0 %v2177
    %3171 = vmatpush1.bf16.msra.mxu0 %v2176
    %3172 = vmatprep.subr.bf16.mxu0 %v2185
    %3173 = vmatpush1.bf16.msra.mxu0 %v2184
    %3174 = vmatprep.subr.bf16.mxu0 %v2193
    %3175 = vmatpush1.bf16.msra.mxu0 %v2192
    %3176 = vmatprep.subr.bf16.mxu0 %v2201
    %3177 = vmatpush1.bf16.msra.mxu0 %v2200
    %3178 = vmatprep.subr.bf16.mxu0 %v2209
    %3179 = vmatpush1.bf16.msra.mxu0 %v2208
    %3180 = vmatprep.subr.bf16.mxu0 %v2217
    %3181 = vmatpush1.bf16.msra.mxu0 %v2216
    %3182 = vmatprep.subr.bf16.mxu0 %v2225
    %3183 = vmatpush1.bf16.msra.mxu0 %v2224
    %3184 = vmatprep.subr.bf16.mxu0 %v2233
    %3185 = vmatpush1.bf16.msra.mxu0 %v2232
    %3186 = vmatprep.subr.bf16.mxu0 %v2241
    %3187 = vmatpush1.bf16.msra.mxu0 %v2240
    %3188 = vmatprep.subr.bf16.mxu0 %v2249
    %3189 = vmatpush1.bf16.msra.mxu0 %v2248
    %3190 = vmatprep.subr.bf16.mxu0 %v2257
    %3191 = vmatpush1.bf16.msra.mxu0 %v2256
    %3192 = vmatprep.mubr.bf16.mxu0 %v81
    %3193 = vmatmul.mubr.bf16.gmra.mrb[0].mxu0 %v80
    %v3194 = vpop.f32.mrb[0].mxu0
    %v3195 = vadd.f32 0.0, %v3194
    %v3196 = vpop.f32.mrb[0].mxu0
    %v3197 = vadd.f32 0.0, %v3196
    %v3198 = vpop.f32.mrb[0].mxu0
    %v3199 = vpop.f32.mrb[0].mxu0
    %3200 = vdwg.mxu0
    %3201 = vmatprep.subr.bf16.mxu0 %v2265
    %3202 = vmatpush1.bf16.msra.mxu0 %v2264
    %3203 = vmatprep.subr.bf16.mxu0 %v2273
    %3204 = vmatpush1.bf16.msra.mxu0 %v2272
    %3205 = vmatprep.subr.bf16.mxu0 %v2281
    %3206 = vmatpush1.bf16.msra.mxu0 %v2280
    %3207 = vmatprep.subr.bf16.mxu0 %v2289
    %3208 = vmatpush1.bf16.msra.mxu0 %v2288
    %3209 = vmatprep.subr.bf16.mxu0 %v2297
    %3210 = vmatpush1.bf16.msra.mxu0 %v2296
    %3211 = vmatprep.subr.bf16.mxu0 %v2305
    %3212 = vmatpush1.bf16.msra.mxu0 %v2304
    %3213 = vmatprep.subr.bf16.mxu0 %v2313
    %3214 = vmatpush1.bf16.msra.mxu0 %v2312
    %3215 = vmatprep.subr.bf16.mxu0 %v2321
    %3216 = vmatpush1.bf16.msra.mxu0 %v2320
    %3217 = vmatprep.subr.bf16.mxu0 %v2329
    %3218 = vmatpush1.bf16.msra.mxu0 %v2328
    %3219 = vmatprep.subr.bf16.mxu0 %v2337
    %3220 = vmatpush1.bf16.msra.mxu0 %v2336
    %3221 = vmatprep.subr.bf16.mxu0 %v2345
    %3222 = vmatpush1.bf16.msra.mxu0 %v2344
    %3223 = vmatprep.subr.bf16.mxu0 %v2353
    %3224 = vmatpush1.bf16.msra.mxu0 %v2352
    %3225 = vmatprep.subr.bf16.mxu0 %v2361
    %3226 = vmatpush1.bf16.msra.mxu0 %v2360
    %3227 = vmatprep.subr.bf16.mxu0 %v2369
    %3228 = vmatpush1.bf16.msra.mxu0 %v2368
    %3229 = vmatprep.subr.bf16.mxu0 %v2377
    %3230 = vmatpush1.bf16.msra.mxu0 %v2376
    %3231 = vmatprep.subr.bf16.mxu0 %v2385
    %3232 = vmatpush1.bf16.msra.mxu0 %v2384
    %3233 = vmatprep.mubr.bf16.mxu0 %v83
    %3234 = vmatmul.mubr.bf16.gmra.mrb[0].mxu0 %v82
    %v3235 = vpop.f32.mrb[0].mxu0
    %v3236 = vadd.f32 %v3195, %v3235
    %v3237 = vpop.f32.mrb[0].mxu0
    %v3238 = vadd.f32 %v3197, %v3237
    %v3239 = vpop.f32.mrb[0].mxu0
    %v3240 = vpop.f32.mrb[0].mxu0
    %3241 = vdwg.mxu0
    %3242 = vmatprep.subr.bf16.mxu0 %v2393
    %3243 = vmatpush1.bf16.msra.mxu0 %v2392
    %3244 = vmatprep.subr.bf16.mxu0 %v2401
    %3245 = vmatpush1.bf16.msra.mxu0 %v2400
    %3246 = vmatprep.subr.bf16.mxu0 %v2409
    %3247 = vmatpush1.bf16.msra.mxu0 %v2408
    %3248 = vmatprep.subr.bf16.mxu0 %v2417
    %3249 = vmatpush1.bf16.msra.mxu0 %v2416
    %3250 = vmatprep.subr.bf16.mxu0 %v2425
    %3251 = vmatpush1.bf16.msra.mxu0 %v2424
    %3252 = vmatprep.subr.bf16.mxu0 %v2433
    %3253 = vmatpush1.bf16.msra.mxu0 %v2432
    %3254 = vmatprep.subr.bf16.mxu0 %v2441
    %3255 = vmatpush1.bf16.msra.mxu0 %v2440
    %3256 = vmatprep.subr.bf16.mxu0 %v2449
    %3257 = vmatpush1.bf16.msra.mxu0 %v2448
    %3258 = vmatprep.subr.bf16.mxu0 %v2457
    %3259 = vmatpush1.bf16.msra.mxu0 %v2456
    %3260 = vmatprep.subr.bf16.mxu0 %v2465
    %3261 = vmatpush1.bf16.msra.mxu0 %v2464
    %3262 = vmatprep.subr.bf16.mxu0 %v2473
    %3263 = vmatpush1.bf16.msra.mxu0 %v2472
    %3264 = vmatprep.subr.bf16.mxu0 %v2481
    %3265 = vmatpush1.bf16.msra.mxu0 %v2480
    %3266 = vmatprep.subr.bf16.mxu0 %v2489
    %3267 = vmatpush1.bf16.msra.mxu0 %v2488
    %3268 = vmatprep.subr.bf16.mxu0 %v2497
    %3269 = vmatpush1.bf16.msra.mxu0 %v2496
    %3270 = vmatprep.subr.bf16.mxu0 %v2505
    %3271 = vmatpush1.bf16.msra.mxu0 %v2504
    %3272 = vmatprep.subr.bf16.mxu0 %v2513
    %3273 = vmatpush1.bf16.msra.mxu0 %v2512
    %3274 = vmatprep.mubr.bf16.mxu0 %v85
    %3275 = vmatmul.mubr.bf16.gmra.mrb[0].mxu0 %v84
    %v3276 = vpop.f32.mrb[0].mxu0
    %v3277 = vadd.f32 %v3236, %v3276
    %v3278 = vpop.f32.mrb[0].mxu0
    %v3279 = vadd.f32 %v3238, %v3278
    %v3280 = vpop.f32.mrb[0].mxu0
    %v3281 = vpop.f32.mrb[0].mxu0
    %3282 = vdwg.mxu0
    %3283 = vmatprep.subr.bf16.mxu0 %v2521
    %3284 = vmatpush1.bf16.msra.mxu0 %v2520
    %3285 = vmatprep.subr.bf16.mxu0 %v2529
    %3286 = vmatpush1.bf16.msra.mxu0 %v2528
    %3287 = vmatprep.subr.bf16.mxu0 %v2537
    %3288 = vmatpush1.bf16.msra.mxu0 %v2536
    %3289 = vmatprep.subr.bf16.mxu0 %v2545
    %3290 = vmatpush1.bf16.msra.mxu0 %v2544
    %3291 = vmatprep.subr.bf16.mxu0 %v2553
    %3292 = vmatpush1.bf16.msra.mxu0 %v2552
    %3293 = vmatprep.subr.bf16.mxu0 %v2561
    %3294 = vmatpush1.bf16.msra.mxu0 %v2560
    %3295 = vmatprep.subr.bf16.mxu0 %v2569
    %3296 = vmatpush1.bf16.msra.mxu0 %v2568
    %3297 = vmatprep.subr.bf16.mxu0 %v2577
    %3298 = vmatpush1.bf16.msra.mxu0 %v2576
    %3299 = vmatprep.subr.bf16.mxu0 %v2585
    %3300 = vmatpush1.bf16.msra.mxu0 %v2584
    %3301 = vmatprep.subr.bf16.mxu0 %v2593
    %3302 = vmatpush1.bf16.msra.mxu0 %v2592
    %3303 = vmatprep.subr.bf16.mxu0 %v2601
    %3304 = vmatpush1.bf16.msra.mxu0 %v2600
    %3305 = vmatprep.subr.bf16.mxu0 %v2609
    %3306 = vmatpush1.bf16.msra.mxu0 %v2608
    %3307 = vmatprep.subr.bf16.mxu0 %v2617
    %3308 = vmatpush1.bf16.msra.mxu0 %v2616
    %3309 = vmatprep.subr.bf16.mxu0 %v2625
    %3310 = vmatpush1.bf16.msra.mxu0 %v2624
    %3311 = vmatprep.subr.bf16.mxu0 %v2633
    %3312 = vmatpush1.bf16.msra.mxu0 %v2632
    %3313 = vmatprep.subr.bf16.mxu0 %v2641
    %3314 = vmatpush1.bf16.msra.mxu0 %v2640
    %3315 = vmatprep.mubr.bf16.mxu0 %v87
    %3316 = vmatmul.mubr.bf16.gmra.mrb[0].mxu0 %v86
    %v3317 = vpop.f32.mrb[0].mxu0
    %v3318 = vadd.f32 %v3277, %v3317
    %v3319 = vpop.f32.mrb[0].mxu0
    %v3320 = vadd.f32 %v3279, %v3319
    %v3321 = vpop.f32.mrb[0].mxu0
    %v3322 = vpop.f32.mrb[0].mxu0
    %3323 = vdwg.mxu0
    %3324 = vmatprep.subr.bf16.mxu0 %v2139
    %3325 = vmatpush1.bf16.msra.mxu0 %v2138
    %3326 = vmatprep.subr.bf16.mxu0 %v2147
    %3327 = vmatpush1.bf16.msra.mxu0 %v2146
    %3328 = vmatprep.subr.bf16.mxu0 %v2155
    %3329 = vmatpush1.bf16.msra.mxu0 %v2154
    %3330 = vmatprep.subr.bf16.mxu0 %v2163
    %3331 = vmatpush1.bf16.msra.mxu0 %v2162
    %3332 = vmatprep.subr.bf16.mxu0 %v2171
    %3333 = vmatpush1.bf16.msra.mxu0 %v2170
    %3334 = vmatprep.subr.bf16.mxu0 %v2179
    %3335 = vmatpush1.bf16.msra.mxu0 %v2178
    %3336 = vmatprep.subr.bf16.mxu0 %v2187
    %3337 = vmatpush1.bf16.msra.mxu0 %v2186
    %3338 = vmatprep.subr.bf16.mxu0 %v2195
    %3339 = vmatpush1.bf16.msra.mxu0 %v2194
    %3340 = vmatprep.subr.bf16.mxu0 %v2203
    %3341 = vmatpush1.bf16.msra.mxu0 %v2202
    %3342 = vmatprep.subr.bf16.mxu0 %v2211
    %3343 = vmatpush1.bf16.msra.mxu0 %v2210
    %3344 = vmatprep.subr.bf16.mxu0 %v2219
    %3345 = vmatpush1.bf16.msra.mxu0 %v2218
    %3346 = vmatprep.subr.bf16.mxu0 %v2227
    %3347 = vmatpush1.bf16.msra.mxu0 %v2226
    %3348 = vmatprep.subr.bf16.mxu0 %v2235
    %3349 = vmatpush1.bf16.msra.mxu0 %v2234
    %3350 = vmatprep.subr.bf16.mxu0 %v2243
    %3351 = vmatpush1.bf16.msra.mxu0 %v2242
    %3352 = vmatprep.subr.bf16.mxu0 %v2251
    %3353 = vmatpush1.bf16.msra.mxu0 %v2250
    %3354 = vmatprep.subr.bf16.mxu0 %v2259
    %3355 = vmatpush1.bf16.msra.mxu0 %v2258
    %3356 = vmatprep.mubr.bf16.mxu0 %v81
    %3357 = vmatmul.mubr.bf16.gmra.mrb[0].mxu0 %v80
    %v3358 = vpop.f32.mrb[0].mxu0
    %v3359 = vadd.f32 0.0, %v3358
    %v3360 = vpop.f32.mrb[0].mxu0
    %v3361 = vadd.f32 0.0, %v3360
    %v3362 = vpop.f32.mrb[0].mxu0
    %v3363 = vpop.f32.mrb[0].mxu0
    %3364 = vdwg.mxu0
    %3365 = vmatprep.subr.bf16.mxu0 %v2267
    %3366 = vmatpush1.bf16.msra.mxu0 %v2266
    %3367 = vmatprep.subr.bf16.mxu0 %v2275
    %3368 = vmatpush1.bf16.msra.mxu0 %v2274
    %3369 = vmatprep.subr.bf16.mxu0 %v2283
    %3370 = vmatpush1.bf16.msra.mxu0 %v2282
    %3371 = vmatprep.subr.bf16.mxu0 %v2291
    %3372 = vmatpush1.bf16.msra.mxu0 %v2290
    %3373 = vmatprep.subr.bf16.mxu0 %v2299
    %3374 = vmatpush1.bf16.msra.mxu0 %v2298
    %3375 = vmatprep.subr.bf16.mxu0 %v2307
    %3376 = vmatpush1.bf16.msra.mxu0 %v2306
    %3377 = vmatprep.subr.bf16.mxu0 %v2315
    %3378 = vmatpush1.bf16.msra.mxu0 %v2314
    %3379 = vmatprep.subr.bf16.mxu0 %v2323
    %3380 = vmatpush1.bf16.msra.mxu0 %v2322
    %3381 = vmatprep.subr.bf16.mxu0 %v2331
    %3382 = vmatpush1.bf16.msra.mxu0 %v2330
    %3383 = vmatprep.subr.bf16.mxu0 %v2339
    %3384 = vmatpush1.bf16.msra.mxu0 %v2338
    %3385 = vmatprep.subr.bf16.mxu0 %v2347
    %3386 = vmatpush1.bf16.msra.mxu0 %v2346
    %3387 = vmatprep.subr.bf16.mxu0 %v2355
    %3388 = vmatpush1.bf16.msra.mxu0 %v2354
    %3389 = vmatprep.subr.bf16.mxu0 %v2363
    %3390 = vmatpush1.bf16.msra.mxu0 %v2362
    %3391 = vmatprep.subr.bf16.mxu0 %v2371
    %3392 = vmatpush1.bf16.msra.mxu0 %v2370
    %3393 = vmatprep.subr.bf16.mxu0 %v2379
    %3394 = vmatpush1.bf16.msra.mxu0 %v2378
    %3395 = vmatprep.subr.bf16.mxu0 %v2387
    %3396 = vmatpush1.bf16.msra.mxu0 %v2386
    %3397 = vmatprep.mubr.bf16.mxu0 %v83
    %3398 = vmatmul.mubr.bf16.gmra.mrb[0].mxu0 %v82
    %v3399 = vpop.f32.mrb[0].mxu0
    %v3400 = vadd.f32 %v3359, %v3399
    %v3401 = vpop.f32.mrb[0].mxu0
    %v3402 = vadd.f32 %v3361, %v3401
    %v3403 = vpop.f32.mrb[0].mxu0
    %v3404 = vpop.f32.mrb[0].mxu0
    %3405 = vdwg.mxu0
    %3406 = vmatprep.subr.bf16.mxu0 %v2395
    %3407 = vmatpush1.bf16.msra.mxu0 %v2394
    %3408 = vmatprep.subr.bf16.mxu0 %v2403
    %3409 = vmatpush1.bf16.msra.mxu0 %v2402
    %3410 = vmatprep.subr.bf16.mxu0 %v2411
    %3411 = vmatpush1.bf16.msra.mxu0 %v2410
    %3412 = vmatprep.subr.bf16.mxu0 %v2419
    %3413 = vmatpush1.bf16.msra.mxu0 %v2418
    %3414 = vmatprep.subr.bf16.mxu0 %v2427
    %3415 = vmatpush1.bf16.msra.mxu0 %v2426
    %3416 = vmatprep.subr.bf16.mxu0 %v2435
    %3417 = vmatpush1.bf16.msra.mxu0 %v2434
    %3418 = vmatprep.subr.bf16.mxu0 %v2443
    %3419 = vmatpush1.bf16.msra.mxu0 %v2442
    %3420 = vmatprep.subr.bf16.mxu0 %v2451
    %3421 = vmatpush1.bf16.msra.mxu0 %v2450
    %3422 = vmatprep.subr.bf16.mxu0 %v2459
    %3423 = vmatpush1.bf16.msra.mxu0 %v2458
    %3424 = vmatprep.subr.bf16.mxu0 %v2467
    %3425 = vmatpush1.bf16.msra.mxu0 %v2466
    %3426 = vmatprep.subr.bf16.mxu0 %v2475
    %3427 = vmatpush1.bf16.msra.mxu0 %v2474
    %3428 = vmatprep.subr.bf16.mxu0 %v2483
    %3429 = vmatpush1.bf16.msra.mxu0 %v2482
    %3430 = vmatprep.subr.bf16.mxu0 %v2491
    %3431 = vmatpush1.bf16.msra.mxu0 %v2490
    %3432 = vmatprep.subr.bf16.mxu0 %v2499
    %3433 = vmatpush1.bf16.msra.mxu0 %v2498
    %3434 = vmatprep.subr.bf16.mxu0 %v2507
    %3435 = vmatpush1.bf16.msra.mxu0 %v2506
    %3436 = vmatprep.subr.bf16.mxu0 %v2515
    %3437 = vmatpush1.bf16.msra.mxu0 %v2514
    %3438 = vmatprep.mubr.bf16.mxu0 %v85
    %3439 = vmatmul.mubr.bf16.gmra.mrb[0].mxu0 %v84
    %v3440 = vpop.f32.mrb[0].mxu0
    %v3441 = vadd.f32 %v3400, %v3440
    %v3442 = vpop.f32.mrb[0].mxu0
    %v3443 = vadd.f32 %v3402, %v3442
    %v3444 = vpop.f32.mrb[0].mxu0
    %v3445 = vpop.f32.mrb[0].mxu0
    %3446 = vdwg.mxu0
    %3447 = vmatprep.subr.bf16.mxu0 %v2523
    %3448 = vmatpush1.bf16.msra.mxu0 %v2522
    %3449 = vmatprep.subr.bf16.mxu0 %v2531
    %3450 = vmatpush1.bf16.msra.mxu0 %v2530
    %3451 = vmatprep.subr.bf16.mxu0 %v2539
    %3452 = vmatpush1.bf16.msra.mxu0 %v2538
    %3453 = vmatprep.subr.bf16.mxu0 %v2547
    %3454 = vmatpush1.bf16.msra.mxu0 %v2546
    %3455 = vmatprep.subr.bf16.mxu0 %v2555
    %3456 = vmatpush1.bf16.msra.mxu0 %v2554
    %3457 = vmatprep.subr.bf16.mxu0 %v2563
    %3458 = vmatpush1.bf16.msra.mxu0 %v2562
    %3459 = vmatprep.subr.bf16.mxu0 %v2571
    %3460 = vmatpush1.bf16.msra.mxu0 %v2570
    %3461 = vmatprep.subr.bf16.mxu0 %v2579
    %3462 = vmatpush1.bf16.msra.mxu0 %v2578
    %3463 = vmatprep.subr.bf16.mxu0 %v2587
    %3464 = vmatpush1.bf16.msra.mxu0 %v2586
    %3465 = vmatprep.subr.bf16.mxu0 %v2595
    %3466 = vmatpush1.bf16.msra.mxu0 %v2594
    %3467 = vmatprep.subr.bf16.mxu0 %v2603
    %3468 = vmatpush1.bf16.msra.mxu0 %v2602
    %3469 = vmatprep.subr.bf16.mxu0 %v2611
    %3470 = vmatpush1.bf16.msra.mxu0 %v2610
    %3471 = vmatprep.subr.bf16.mxu0 %v2619
    %3472 = vmatpush1.bf16.msra.mxu0 %v2618
    %3473 = vmatprep.subr.bf16.mxu0 %v2627
    %3474 = vmatpush1.bf16.msra.mxu0 %v2626
    %3475 = vmatprep.subr.bf16.mxu0 %v2635
    %3476 = vmatpush1.bf16.msra.mxu0 %v2634
    %3477 = vmatprep.subr.bf16.mxu0 %v2643
    %3478 = vmatpush1.bf16.msra.mxu0 %v2642
    %3479 = vmatprep.mubr.bf16.mxu0 %v87
    %3480 = vmatmul.mubr.bf16.gmra.mrb[0].mxu0 %v86
    %v3481 = vpop.f32.mrb[0].mxu0
    %v3482 = vadd.f32 %v3441, %v3481
    %v3483 = vpop.f32.mrb[0].mxu0
    %v3484 = vadd.f32 %v3443, %v3483
    %v3485 = vpop.f32.mrb[0].mxu0
    %v3486 = vpop.f32.mrb[0].mxu0
    %3487 = vdwg.mxu0
    %3488 = vmatprep.subr.bf16.mxu0 %v2141
    %3489 = vmatpush1.bf16.msra.mxu0 %v2140
    %3490 = vmatprep.subr.bf16.mxu0 %v2149
    %3491 = vmatpush1.bf16.msra.mxu0 %v2148
    %3492 = vmatprep.subr.bf16.mxu0 %v2157
    %3493 = vmatpush1.bf16.msra.mxu0 %v2156
    %3494 = vmatprep.subr.bf16.mxu0 %v2165
    %3495 = vmatpush1.bf16.msra.mxu0 %v2164
    %3496 = vmatprep.subr.bf16.mxu0 %v2173
    %3497 = vmatpush1.bf16.msra.mxu0 %v2172
    %3498 = vmatprep.subr.bf16.mxu0 %v2181
    %3499 = vmatpush1.bf16.msra.mxu0 %v2180
    %3500 = vmatprep.subr.bf16.mxu0 %v2189
    %3501 = vmatpush1.bf16.msra.mxu0 %v2188
    %3502 = vmatprep.subr.bf16.mxu0 %v2197
    %3503 = vmatpush1.bf16.msra.mxu0 %v2196
    %3504 = vmatprep.subr.bf16.mxu0 %v2205
    %3505 = vmatpush1.bf16.msra.mxu0 %v2204
    %3506 = vmatprep.subr.bf16.mxu0 %v2213
    %3507 = vmatpush1.bf16.msra.mxu0 %v2212
    %3508 = vmatprep.subr.bf16.mxu0 %v2221
    %3509 = vmatpush1.bf16.msra.mxu0 %v2220
    %3510 = vmatprep.subr.bf16.mxu0 %v2229
    %3511 = vmatpush1.bf16.msra.mxu0 %v2228
    %3512 = vmatprep.subr.bf16.mxu0 %v2237
    %3513 = vmatpush1.bf16.msra.mxu0 %v2236
    %3514 = vmatprep.subr.bf16.mxu0 %v2245
    %3515 = vmatpush1.bf16.msra.mxu0 %v2244
    %3516 = vmatprep.subr.bf16.mxu0 %v2253
    %3517 = vmatpush1.bf16.msra.mxu0 %v2252
    %3518 = vmatprep.subr.bf16.mxu0 %v2261
    %3519 = vmatpush1.bf16.msra.mxu0 %v2260
    %3520 = vmatprep.mubr.bf16.mxu0 %v81
    %3521 = vmatmul.mubr.bf16.gmra.mrb[0].mxu0 %v80
    %v3522 = vpop.f32.mrb[0].mxu0
    %v3523 = vadd.f32 0.0, %v3522
    %v3524 = vpop.f32.mrb[0].mxu0
    %v3525 = vadd.f32 0.0, %v3524
    %v3526 = vpop.f32.mrb[0].mxu0
    %v3527 = vpop.f32.mrb[0].mxu0
    %3528 = vdwg.mxu0
    %3529 = vmatprep.subr.bf16.mxu0 %v2269
    %3530 = vmatpush1.bf16.msra.mxu0 %v2268
    %3531 = vmatprep.subr.bf16.mxu0 %v2277
    %3532 = vmatpush1.bf16.msra.mxu0 %v2276
    %3533 = vmatprep.subr.bf16.mxu0 %v2285
    %3534 = vmatpush1.bf16.msra.mxu0 %v2284
    %3535 = vmatprep.subr.bf16.mxu0 %v2293
    %3536 = vmatpush1.bf16.msra.mxu0 %v2292
    %3537 = vmatprep.subr.bf16.mxu0 %v2301
    %3538 = vmatpush1.bf16.msra.mxu0 %v2300
    %3539 = vmatprep.subr.bf16.mxu0 %v2309
    %3540 = vmatpush1.bf16.msra.mxu0 %v2308
    %3541 = vmatprep.subr.bf16.mxu0 %v2317
    %3542 = vmatpush1.bf16.msra.mxu0 %v2316
    %3543 = vmatprep.subr.bf16.mxu0 %v2325
    %3544 = vmatpush1.bf16.msra.mxu0 %v2324
    %3545 = vmatprep.subr.bf16.mxu0 %v2333
    %3546 = vmatpush1.bf16.msra.mxu0 %v2332
    %3547 = vmatprep.subr.bf16.mxu0 %v2341
    %3548 = vmatpush1.bf16.msra.mxu0 %v2340
    %3549 = vmatprep.subr.bf16.mxu0 %v2349
    %3550 = vmatpush1.bf16.msra.mxu0 %v2348
    %3551 = vmatprep.subr.bf16.mxu0 %v2357
    %3552 = vmatpush1.bf16.msra.mxu0 %v2356
    %3553 = vmatprep.subr.bf16.mxu0 %v2365
    %3554 = vmatpush1.bf16.msra.mxu0 %v2364
    %3555 = vmatprep.subr.bf16.mxu0 %v2373
    %3556 = vmatpush1.bf16.msra.mxu0 %v2372
    %3557 = vmatprep.subr.bf16.mxu0 %v2381
    %3558 = vmatpush1.bf16.msra.mxu0 %v2380
    %3559 = vmatprep.subr.bf16.mxu0 %v2389
    %3560 = vmatpush1.bf16.msra.mxu0 %v2388
    %3561 = vmatprep.mubr.bf16.mxu0 %v83
    %3562 = vmatmul.mubr.bf16.gmra.mrb[0].mxu0 %v82
    %v3563 = vpop.f32.mrb[0].mxu0
    %v3564 = vadd.f32 %v3523, %v3563
    %v3565 = vpop.f32.mrb[0].mxu0
    %v3566 = vadd.f32 %v3525, %v3565
    %v3567 = vpop.f32.mrb[0].mxu0
    %v3568 = vpop.f32.mrb[0].mxu0
    %3569 = vdwg.mxu0
    %3570 = vmatprep.subr.bf16.mxu0 %v2397
    %3571 = vmatpush1.bf16.msra.mxu0 %v2396
    %3572 = vmatprep.subr.bf16.mxu0 %v2405
    %3573 = vmatpush1.bf16.msra.mxu0 %v2404
    %3574 = vmatprep.subr.bf16.mxu0 %v2413
    %3575 = vmatpush1.bf16.msra.mxu0 %v2412
    %3576 = vmatprep.subr.bf16.mxu0 %v2421
    %3577 = vmatpush1.bf16.msra.mxu0 %v2420
    %3578 = vmatprep.subr.bf16.mxu0 %v2429
    %3579 = vmatpush1.bf16.msra.mxu0 %v2428
    %3580 = vmatprep.subr.bf16.mxu0 %v2437
    %3581 = vmatpush1.bf16.msra.mxu0 %v2436
    %3582 = vmatprep.subr.bf16.mxu0 %v2445
    %3583 = vmatpush1.bf16.msra.mxu0 %v2444
    %3584 = vmatprep.subr.bf16.mxu0 %v2453
    %3585 = vmatpush1.bf16.msra.mxu0 %v2452
    %3586 = vmatprep.subr.bf16.mxu0 %v2461
    %3587 = vmatpush1.bf16.msra.mxu0 %v2460
    %3588 = vmatprep.subr.bf16.mxu0 %v2469
    %3589 = vmatpush1.bf16.msra.mxu0 %v2468
    %3590 = vmatprep.subr.bf16.mxu0 %v2477
    %3591 = vmatpush1.bf16.msra.mxu0 %v2476
    %3592 = vmatprep.subr.bf16.mxu0 %v2485
    %3593 = vmatpush1.bf16.msra.mxu0 %v2484
    %3594 = vmatprep.subr.bf16.mxu0 %v2493
    %3595 = vmatpush1.bf16.msra.mxu0 %v2492
    %3596 = vmatprep.subr.bf16.mxu0 %v2501
    %3597 = vmatpush1.bf16.msra.mxu0 %v2500
    %3598 = vmatprep.subr.bf16.mxu0 %v2509
    %3599 = vmatpush1.bf16.msra.mxu0 %v2508
    %3600 = vmatprep.subr.bf16.mxu0 %v2517
    %3601 = vmatpush1.bf16.msra.mxu0 %v2516
    %3602 = vmatprep.mubr.bf16.mxu0 %v85
    %3603 = vmatmul.mubr.bf16.gmra.mrb[0].mxu0 %v84
    %v3604 = vpop.f32.mrb[0].mxu0
    %v3605 = vadd.f32 %v3564, %v3604
    %v3606 = vpop.f32.mrb[0].mxu0
    %v3607 = vadd.f32 %v3566, %v3606
    %v3608 = vpop.f32.mrb[0].mxu0
    %v3609 = vpop.f32.mrb[0].mxu0
    %3610 = vdwg.mxu0
    %3611 = vmatprep.subr.bf16.mxu0 %v2525
    %3612 = vmatpush1.bf16.msra.mxu0 %v2524
    %3613 = vmatprep.subr.bf16.mxu0 %v2533
    %3614 = vmatpush1.bf16.msra.mxu0 %v2532
    %3615 = vmatprep.subr.bf16.mxu0 %v2541
    %3616 = vmatpush1.bf16.msra.mxu0 %v2540
    %3617 = vmatprep.subr.bf16.mxu0 %v2549
    %3618 = vmatpush1.bf16.msra.mxu0 %v2548
    %3619 = vmatprep.subr.bf16.mxu0 %v2557
    %3620 = vmatpush1.bf16.msra.mxu0 %v2556
    %3621 = vmatprep.subr.bf16.mxu0 %v2565
    %3622 = vmatpush1.bf16.msra.mxu0 %v2564
    %3623 = vmatprep.subr.bf16.mxu0 %v2573
    %3624 = vmatpush1.bf16.msra.mxu0 %v2572
    %3625 = vmatprep.subr.bf16.mxu0 %v2581
    %3626 = vmatpush1.bf16.msra.mxu0 %v2580
    %3627 = vmatprep.subr.bf16.mxu0 %v2589
    %3628 = vmatpush1.bf16.msra.mxu0 %v2588
    %3629 = vmatprep.subr.bf16.mxu0 %v2597
    %3630 = vmatpush1.bf16.msra.mxu0 %v2596
    %3631 = vmatprep.subr.bf16.mxu0 %v2605
    %3632 = vmatpush1.bf16.msra.mxu0 %v2604
    %3633 = vmatprep.subr.bf16.mxu0 %v2613
    %3634 = vmatpush1.bf16.msra.mxu0 %v2612
    %3635 = vmatprep.subr.bf16.mxu0 %v2621
    %3636 = vmatpush1.bf16.msra.mxu0 %v2620
    %3637 = vmatprep.subr.bf16.mxu0 %v2629
    %3638 = vmatpush1.bf16.msra.mxu0 %v2628
    %3639 = vmatprep.subr.bf16.mxu0 %v2637
    %3640 = vmatpush1.bf16.msra.mxu0 %v2636
    %3641 = vmatprep.subr.bf16.mxu0 %v2645
    %3642 = vmatpush1.bf16.msra.mxu0 %v2644
    %3643 = vmatprep.mubr.bf16.mxu0 %v87
    %3644 = vmatmul.mubr.bf16.gmra.mrb[0].mxu0 %v86
    %v3645 = vpop.f32.mrb[0].mxu0
    %v3646 = vadd.f32 %v3605, %v3645
    %v3647 = vpop.f32.mrb[0].mxu0
    %v3648 = vadd.f32 %v3607, %v3647
    %v3649 = vpop.f32.mrb[0].mxu0
    %v3650 = vpop.f32.mrb[0].mxu0
    %3651 = vdwg.mxu0
    %3652 = vmatprep.subr.bf16.mxu0 %v2143
    %3653 = vmatpush1.bf16.msra.mxu0 %v2142
    %3654 = vmatprep.subr.bf16.mxu0 %v2151
    %3655 = vmatpush1.bf16.msra.mxu0 %v2150
    %3656 = vmatprep.subr.bf16.mxu0 %v2159
    %3657 = vmatpush1.bf16.msra.mxu0 %v2158
    %3658 = vmatprep.subr.bf16.mxu0 %v2167
    %3659 = vmatpush1.bf16.msra.mxu0 %v2166
    %3660 = vmatprep.subr.bf16.mxu0 %v2175
    %3661 = vmatpush1.bf16.msra.mxu0 %v2174
    %3662 = vmatprep.subr.bf16.mxu0 %v2183
    %3663 = vmatpush1.bf16.msra.mxu0 %v2182
    %3664 = vmatprep.subr.bf16.mxu0 %v2191
    %3665 = vmatpush1.bf16.msra.mxu0 %v2190
    %3666 = vmatprep.subr.bf16.mxu0 %v2199
    %3667 = vmatpush1.bf16.msra.mxu0 %v2198
    %3668 = vmatprep.subr.bf16.mxu0 %v2207
    %3669 = vmatpush1.bf16.msra.mxu0 %v2206
    %3670 = vmatprep.subr.bf16.mxu0 %v2215
    %3671 = vmatpush1.bf16.msra.mxu0 %v2214
    %3672 = vmatprep.subr.bf16.mxu0 %v2223
    %3673 = vmatpush1.bf16.msra.mxu0 %v2222
    %3674 = vmatprep.subr.bf16.mxu0 %v2231
    %3675 = vmatpush1.bf16.msra.mxu0 %v2230
    %3676 = vmatprep.subr.bf16.mxu0 %v2239
    %3677 = vmatpush1.bf16.msra.mxu0 %v2238
    %3678 = vmatprep.subr.bf16.mxu0 %v2247
    %3679 = vmatpush1.bf16.msra.mxu0 %v2246
    %3680 = vmatprep.subr.bf16.mxu0 %v2255
    %3681 = vmatpush1.bf16.msra.mxu0 %v2254
    %3682 = vmatprep.subr.bf16.mxu0 %v2263
    %3683 = vmatpush1.bf16.msra.mxu0 %v2262
    %3684 = vmatprep.mubr.bf16.mxu0 %v81
    %3685 = vmatmul.mubr.bf16.gmra.mrb[0].mxu0 %v80
    %v3686 = vpop.f32.mrb[0].mxu0
    %v3687 = vadd.f32 0.0, %v3686
    %v3688 = vpop.f32.mrb[0].mxu0
    %v3689 = vadd.f32 0.0, %v3688
    %v3690 = vpop.f32.mrb[0].mxu0
    %v3691 = vpop.f32.mrb[0].mxu0
    %3692 = vdwg.mxu0
    %3693 = vmatprep.subr.bf16.mxu0 %v2271
    %3694 = vmatpush1.bf16.msra.mxu0 %v2270
    %3695 = vmatprep.subr.bf16.mxu0 %v2279
    %3696 = vmatpush1.bf16.msra.mxu0 %v2278
    %3697 = vmatprep.subr.bf16.mxu0 %v2287
    %3698 = vmatpush1.bf16.msra.mxu0 %v2286
    %3699 = vmatprep.subr.bf16.mxu0 %v2295
    %3700 = vmatpush1.bf16.msra.mxu0 %v2294
    %3701 = vmatprep.subr.bf16.mxu0 %v2303
    %3702 = vmatpush1.bf16.msra.mxu0 %v2302
    %3703 = vmatprep.subr.bf16.mxu0 %v2311
    %3704 = vmatpush1.bf16.msra.mxu0 %v2310
    %3705 = vmatprep.subr.bf16.mxu0 %v2319
    %3706 = vmatpush1.bf16.msra.mxu0 %v2318
    %3707 = vmatprep.subr.bf16.mxu0 %v2327
    %3708 = vmatpush1.bf16.msra.mxu0 %v2326
    %3709 = vmatprep.subr.bf16.mxu0 %v2335
    %3710 = vmatpush1.bf16.msra.mxu0 %v2334
    %3711 = vmatprep.subr.bf16.mxu0 %v2343
    %3712 = vmatpush1.bf16.msra.mxu0 %v2342
    %3713 = vmatprep.subr.bf16.mxu0 %v2351
    %3714 = vmatpush1.bf16.msra.mxu0 %v2350
    %3715 = vmatprep.subr.bf16.mxu0 %v2359
    %3716 = vmatpush1.bf16.msra.mxu0 %v2358
    %3717 = vmatprep.subr.bf16.mxu0 %v2367
    %3718 = vmatpush1.bf16.msra.mxu0 %v2366
    %3719 = vmatprep.subr.bf16.mxu0 %v2375
    %3720 = vmatpush1.bf16.msra.mxu0 %v2374
    %3721 = vmatprep.subr.bf16.mxu0 %v2383
    %3722 = vmatpush1.bf16.msra.mxu0 %v2382
    %3723 = vmatprep.subr.bf16.mxu0 %v2391
    %3724 = vmatpush1.bf16.msra.mxu0 %v2390
    %3725 = vmatprep.mubr.bf16.mxu0 %v83
    %3726 = vmatmul.mubr.bf16.gmra.mrb[0].mxu0 %v82
    %v3727 = vpop.f32.mrb[0].mxu0
    %v3728 = vadd.f32 %v3687, %v3727
    %v3729 = vpop.f32.mrb[0].mxu0
    %v3730 = vadd.f32 %v3689, %v3729
    %v3731 = vpop.f32.mrb[0].mxu0
    %v3732 = vpop.f32.mrb[0].mxu0
    %3733 = vdwg.mxu0
    %3734 = vmatprep.subr.bf16.mxu0 %v2399
    %3735 = vmatpush1.bf16.msra.mxu0 %v2398
    %3736 = vmatprep.subr.bf16.mxu0 %v2407
    %3737 = vmatpush1.bf16.msra.mxu0 %v2406
    %3738 = vmatprep.subr.bf16.mxu0 %v2415
    %3739 = vmatpush1.bf16.msra.mxu0 %v2414
    %3740 = vmatprep.subr.bf16.mxu0 %v2423
    %3741 = vmatpush1.bf16.msra.mxu0 %v2422
    %3742 = vmatprep.subr.bf16.mxu0 %v2431
    %3743 = vmatpush1.bf16.msra.mxu0 %v2430
    %3744 = vmatprep.subr.bf16.mxu0 %v2439
    %3745 = vmatpush1.bf16.msra.mxu0 %v2438
    %3746 = vmatprep.subr.bf16.mxu0 %v2447
    %3747 = vmatpush1.bf16.msra.mxu0 %v2446
    %3748 = vmatprep.subr.bf16.mxu0 %v2455
    %3749 = vmatpush1.bf16.msra.mxu0 %v2454
    %3750 = vmatprep.subr.bf16.mxu0 %v2463
    %3751 = vmatpush1.bf16.msra.mxu0 %v2462
    %3752 = vmatprep.subr.bf16.mxu0 %v2471
    %3753 = vmatpush1.bf16.msra.mxu0 %v2470
    %3754 = vmatprep.subr.bf16.mxu0 %v2479
    %3755 = vmatpush1.bf16.msra.mxu0 %v2478
    %3756 = vmatprep.subr.bf16.mxu0 %v2487
    %3757 = vmatpush1.bf16.msra.mxu0 %v2486
    %3758 = vmatprep.subr.bf16.mxu0 %v2495
    %3759 = vmatpush1.bf16.msra.mxu0 %v2494
    %3760 = vmatprep.subr.bf16.mxu0 %v2503
    %3761 = vmatpush1.bf16.msra.mxu0 %v2502
    %3762 = vmatprep.subr.bf16.mxu0 %v2511
    %3763 = vmatpush1.bf16.msra.mxu0 %v2510
    %3764 = vmatprep.subr.bf16.mxu0 %v2519
    %3765 = vmatpush1.bf16.msra.mxu0 %v2518
    %3766 = vmatprep.mubr.bf16.mxu0 %v85
    %3767 = vmatmul.mubr.bf16.gmra.mrb[0].mxu0 %v84
    %v3768 = vpop.f32.mrb[0].mxu0
    %v3769 = vadd.f32 %v3728, %v3768
    %v3770 = vpop.f32.mrb[0].mxu0
    %v3771 = vadd.f32 %v3730, %v3770
    %v3772 = vpop.f32.mrb[0].mxu0
    %v3773 = vpop.f32.mrb[0].mxu0
    %3774 = vdwg.mxu0
    %3775 = vmatprep.subr.bf16.mxu0 %v2527
    %3776 = vmatpush1.bf16.msra.mxu0 %v2526
    %3777 = vmatprep.subr.bf16.mxu0 %v2535
    %3778 = vmatpush1.bf16.msra.mxu0 %v2534
    %3779 = vmatprep.subr.bf16.mxu0 %v2543
    %3780 = vmatpush1.bf16.msra.mxu0 %v2542
    %3781 = vmatprep.subr.bf16.mxu0 %v2551
    %3782 = vmatpush1.bf16.msra.mxu0 %v2550
    %3783 = vmatprep.subr.bf16.mxu0 %v2559
    %3784 = vmatpush1.bf16.msra.mxu0 %v2558
    %3785 = vmatprep.subr.bf16.mxu0 %v2567
    %3786 = vmatpush1.bf16.msra.mxu0 %v2566
    %3787 = vmatprep.subr.bf16.mxu0 %v2575
    %3788 = vmatpush1.bf16.msra.mxu0 %v2574
    %3789 = vmatprep.subr.bf16.mxu0 %v2583
    %3790 = vmatpush1.bf16.msra.mxu0 %v2582
    %3791 = vmatprep.subr.bf16.mxu0 %v2591
    %3792 = vmatpush1.bf16.msra.mxu0 %v2590
    %3793 = vmatprep.subr.bf16.mxu0 %v2599
    %3794 = vmatpush1.bf16.msra.mxu0 %v2598
    %3795 = vmatprep.subr.bf16.mxu0 %v2607
    %3796 = vmatpush1.bf16.msra.mxu0 %v2606
    %3797 = vmatprep.subr.bf16.mxu0 %v2615
    %3798 = vmatpush1.bf16.msra.mxu0 %v2614
    %3799 = vmatprep.subr.bf16.mxu0 %v2623
    %3800 = vmatpush1.bf16.msra.mxu0 %v2622
    %3801 = vmatprep.subr.bf16.mxu0 %v2631
    %3802 = vmatpush1.bf16.msra.mxu0 %v2630
    %3803 = vmatprep.subr.bf16.mxu0 %v2639
    %3804 = vmatpush1.bf16.msra.mxu0 %v2638
    %3805 = vmatprep.subr.bf16.mxu0 %v2647
    %3806 = vmatpush1.bf16.msra.mxu0 %v2646
    %3807 = vmatprep.mubr.bf16.mxu0 %v87
    %3808 = vmatmul.mubr.bf16.gmra.mrb[0].mxu0 %v86
    %v3809 = vpop.f32.mrb[0].mxu0
    %v3810 = vadd.f32 %v3769, %v3809
    %v3811 = vpop.f32.mrb[0].mxu0
    %v3812 = vadd.f32 %v3771, %v3811
    %v3813 = vpop.f32.mrb[0].mxu0
    %v3814 = vpop.f32.mrb[0].mxu0
    %3815 = vdwg.mxu0
    %v3816 = vstv %s33
    %v3817 = vmul.f32 %v3816, %v31
    %v3818 = vmul.f32 %v3816, %v32
    %v3819 = vstv %s34
    %v3820 = vmul.f32 %v3819, %v3318
    %v3821 = vmul.f32 %v3819, %v3320
    %v3822 = vmul.f32 %v3819, %v3482
    %v3823 = vmul.f32 %v3819, %v3484
    %v3824 = vmul.f32 %v3819, %v3646
    %v3825 = vmul.f32 %v3819, %v3648
    %v3826 = vmul.f32 %v3819, %v3810
    %v3827 = vmul.f32 %v3819, %v3812
    %v3836 = vcombine.low %v3820, %v3821
    %v3837 = vcombine.low %v3822, %v3823
    %v3839 = vunpack.c.l.s4 1983009808
    %v3840 = vunpack.c.0.s8 %v3839
    %v3841 = vlaneseq
    %v3842 = vshrl.u32 %v3841, 7
    %v3843 = vsub.s32 %v3840, %v3842
    %v3844 = vrot.slane %v3836, %v3843
    %v3846 = vunpack.c.l.s4 1983009808
    %v3847 = vunpack.c.0.s8 %v3846
    %v3848 = vlaneseq
    %v3849 = vshrl.u32 %v3848, 7
    %v3850 = vsub.s32 %v3847, %v3849
    %v3851 = vrot.slane %v3837, %v3850
    %v3852 = vcombine.low %v3844, %v3851
    %v3853 = vcombine.low %v3824, %v3825
    %v3854 = vcombine.low %v3826, %v3827
    %v3856 = vunpack.c.l.s4 1983009808
    %v3857 = vunpack.c.0.s8 %v3856
    %v3858 = vlaneseq
    %v3859 = vshrl.u32 %v3858, 7
    %v3860 = vsub.s32 %v3857, %v3859
    %v3861 = vrot.slane %v3853, %v3860
    %v3863 = vunpack.c.l.s4 1983009808
    %v3864 = vunpack.c.0.s8 %v3863
    %v3865 = vlaneseq
    %v3866 = vshrl.u32 %v3865, 7
    %v3867 = vsub.s32 %v3864, %v3866
    %v3868 = vrot.slane %v3854, %v3867
    %v3869 = vcombine.low %v3861, %v3868
    %v3872 = vadd.f32 %v3817, %v3852
    %v3873 = vadd.f32 %v3818, %v3869
    %v3874 = vstv %s35
    %v3875 = vmul.f32 %v3874, %v30
    %v3877 = vlaneseq
    %v3878 = vshrl.u32 %v3877, 7
    %v3879 = vsub.s32 0, %v3878
    %v3880 = vrot.slane %v3875, %v3879
    %v3881 = vlaneseq
    %v3882 = vshrl.u32 %v3881, 7
    %v3883 = vsub.s32 1, %v3882
    %v3884 = vrot.slane %v3875, %v3883
    %v3885 = vlaneseq
    %v3886 = vshrl.u32 %v3885, 7
    %v3887 = vsub.s32 2, %v3886
    %v3888 = vrot.slane %v3875, %v3887
    %v3889 = vlaneseq
    %v3890 = vshrl.u32 %v3889, 7
    %v3891 = vsub.s32 3, %v3890
    %v3892 = vrot.slane %v3875, %v3891
    %v3893 = vlaneseq
    %v3894 = vshrl.u32 %v3893, 7
    %v3895 = vsub.s32 4, %v3894
    %v3896 = vrot.slane %v3875, %v3895
    %v3897 = vlaneseq
    %v3898 = vshrl.u32 %v3897, 7
    %v3899 = vsub.s32 5, %v3898
    %v3900 = vrot.slane %v3875, %v3899
    %v3901 = vlaneseq
    %v3902 = vshrl.u32 %v3901, 7
    %v3903 = vsub.s32 6, %v3902
    %v3904 = vrot.slane %v3875, %v3903
    %v3905 = vlaneseq
    %v3906 = vshrl.u32 %v3905, 7
    %v3907 = vsub.s32 7, %v3906
    %v3908 = vrot.slane %v3875, %v3907
    %v3909 = vcombine.low %v3880, %v3884
    %v3910 = vcombine.low %v3888, %v3892
    %v3912 = vunpack.c.l.s4 1983009808
    %v3913 = vunpack.c.0.s8 %v3912
    %v3914 = vlaneseq
    %v3915 = vshrl.u32 %v3914, 7
    %v3916 = vsub.s32 %v3913, %v3915
    %v3917 = vrot.slane %v3909, %v3916
    %v3919 = vunpack.c.l.s4 1983009808
    %v3920 = vunpack.c.0.s8 %v3919
    %v3921 = vlaneseq
    %v3922 = vshrl.u32 %v3921, 7
    %v3923 = vsub.s32 %v3920, %v3922
    %v3924 = vrot.slane %v3910, %v3923
    %v3925 = vcombine.low %v3917, %v3924
    %v3926 = vcombine.low %v3896, %v3900
    %v3927 = vcombine.low %v3904, %v3908
    %v3929 = vunpack.c.l.s4 1983009808
    %v3930 = vunpack.c.0.s8 %v3929
    %v3931 = vlaneseq
    %v3932 = vshrl.u32 %v3931, 7
    %v3933 = vsub.s32 %v3930, %v3932
    %v3934 = vrot.slane %v3926, %v3933
    %v3936 = vunpack.c.l.s4 1983009808
    %v3937 = vunpack.c.0.s8 %v3936
    %v3938 = vlaneseq
    %v3939 = vshrl.u32 %v3938, 7
    %v3940 = vsub.s32 %v3937, %v3939
    %v3941 = vrot.slane %v3927, %v3940
    %v3942 = vcombine.low %v3934, %v3941
    %v3945 = vadd.f32 %v3872, %v3925
    %v3946 = vadd.f32 %v3873, %v3942
    %s3947 = sld [smem:[#allocation2 + $0x4]]
    %s3948 = sld [smem:[#allocation2 + $0x5]]
    %s3949 = sld [smem:[#allocation2 + $0x6]]
    %v3952 = vcombine.high %v3945, %v3945
    %v3954 = vunpack.c.l.s4 1983009808
    %v3955 = vunpack.c.0.s8 %v3954
    %v3956 = vlaneseq
    %v3957 = vshrl.u32 %v3956, 7
    %v3958 = vsub.s32 %v3955, %v3957
    %v3959 = vrot.slane %v3945, %v3958
    %v3961 = vunpack.c.l.s4 1983009808
    %v3962 = vunpack.c.0.s8 %v3961
    %v3963 = vlaneseq
    %v3964 = vshrl.u32 %v3963, 7
    %v3965 = vsub.s32 %v3962, %v3964
    %v3966 = vrot.slane %v3952, %v3965
    %v3967 = vcombine.high %v3959, %v3959
    %v3968 = vcombine.high %v3966, %v3966
    %v3969 = vcombine.high %v3946, %v3946
    %v3971 = vunpack.c.l.s4 1983009808
    %v3972 = vunpack.c.0.s8 %v3971
    %v3973 = vlaneseq
    %v3974 = vshrl.u32 %v3973, 7
    %v3975 = vsub.s32 %v3972, %v3974
    %v3976 = vrot.slane %v3946, %v3975
    %v3978 = vunpack.c.l.s4 1983009808
    %v3979 = vunpack.c.0.s8 %v3978
    %v3980 = vlaneseq
    %v3981 = vshrl.u32 %v3980, 7
    %v3982 = vsub.s32 %v3979, %v3981
    %v3983 = vrot.slane %v3969, %v3982
    %v3984 = vcombine.high %v3976, %v3976
    %v3985 = vcombine.high %v3983, %v3983
    %v3994 = vpack.c.bf16 %v3959, %v3959
    %v3995 = vpack.c.bf16 %v3967, %v3967
    %v3996 = vpack.c.bf16 %v3966, %v3966
    %v3997 = vpack.c.bf16 %v3968, %v3968
    %v3998 = vpack.c.bf16 %v3976, %v3976
    %v3999 = vpack.c.bf16 %v3984, %v3984
    %v4000 = vpack.c.bf16 %v3983, %v3983
    %v4001 = vpack.c.bf16 %v3985, %v3985
    %4002 = vmatprep.subr.bf16.mxu0 %v2137
    %4003 = vmatpush1.bf16.msra.mxu0 %v2136
    %4004 = vmatprep.subr.bf16.mxu0 %v2145
    %4005 = vmatpush1.bf16.msra.mxu0 %v2144
    %4006 = vmatprep.subr.bf16.mxu0 %v2153
    %4007 = vmatpush1.bf16.msra.mxu0 %v2152
    %4008 = vmatprep.subr.bf16.mxu0 %v2161
    %4009 = vmatpush1.bf16.msra.mxu0 %v2160
    %4010 = vmatprep.subr.bf16.mxu0 %v2169
    %4011 = vmatpush1.bf16.msra.mxu0 %v2168
    %4012 = vmatprep.subr.bf16.mxu0 %v2177
    %4013 = vmatpush1.bf16.msra.mxu0 %v2176
    %4014 = vmatprep.subr.bf16.mxu0 %v2185
    %4015 = vmatpush1.bf16.msra.mxu0 %v2184
    %4016 = vmatprep.subr.bf16.mxu0 %v2193
    %4017 = vmatpush1.bf16.msra.mxu0 %v2192
    %4018 = vmatprep.subr.bf16.mxu0 %v2201
    %4019 = vmatpush1.bf16.msra.mxu0 %v2200
    %4020 = vmatprep.subr.bf16.mxu0 %v2209
    %4021 = vmatpush1.bf16.msra.mxu0 %v2208
    %4022 = vmatprep.subr.bf16.mxu0 %v2217
    %4023 = vmatpush1.bf16.msra.mxu0 %v2216
    %4024 = vmatprep.subr.bf16.mxu0 %v2225
    %4025 = vmatpush1.bf16.msra.mxu0 %v2224
    %4026 = vmatprep.subr.bf16.mxu0 %v2233
    %4027 = vmatpush1.bf16.msra.mxu0 %v2232
    %4028 = vmatprep.subr.bf16.mxu0 %v2241
    %4029 = vmatpush1.bf16.msra.mxu0 %v2240
    %4030 = vmatprep.subr.bf16.mxu0 %v2249
    %4031 = vmatpush1.bf16.msra.mxu0 %v2248
    %4032 = vmatprep.subr.bf16.mxu0 %v2257
    %4033 = vmatpush1.bf16.msra.mxu0 %v2256
    %4034 = vmatprep.mubr.bf16.mxu0 %v3995
    %4035 = vmatmul.mubr.bf16.gmra.mrb[0].mxu0 %v3994
    %v4036 = vpop.f32.mrb[0].mxu0
    %v4037 = vadd.f32 0.0, %v4036
    %v4038 = vpop.f32.mrb[0].mxu0
    %v4039 = vadd.f32 0.0, %v4038
    %v4040 = vpop.f32.mrb[0].mxu0
    %v4041 = vpop.f32.mrb[0].mxu0
    %4042 = vdwg.mxu0
    %4043 = vmatprep.subr.bf16.mxu0 %v2265
    %4044 = vmatpush1.bf16.msra.mxu0 %v2264
    %4045 = vmatprep.subr.bf16.mxu0 %v2273
    %4046 = vmatpush1.bf16.msra.mxu0 %v2272
    %4047 = vmatprep.subr.bf16.mxu0 %v2281
    %4048 = vmatpush1.bf16.msra.mxu0 %v2280
    %4049 = vmatprep.subr.bf16.mxu0 %v2289
    %4050 = vmatpush1.bf16.msra.mxu0 %v2288
    %4051 = vmatprep.subr.bf16.mxu0 %v2297
    %4052 = vmatpush1.bf16.msra.mxu0 %v2296
    %4053 = vmatprep.subr.bf16.mxu0 %v2305
    %4054 = vmatpush1.bf16.msra.mxu0 %v2304
    %4055 = vmatprep.subr.bf16.mxu0 %v2313
    %4056 = vmatpush1.bf16.msra.mxu0 %v2312
    %4057 = vmatprep.subr.bf16.mxu0 %v2321
    %4058 = vmatpush1.bf16.msra.mxu0 %v2320
    %4059 = vmatprep.subr.bf16.mxu0 %v2329
    %4060 = vmatpush1.bf16.msra.mxu0 %v2328
    %4061 = vmatprep.subr.bf16.mxu0 %v2337
    %4062 = vmatpush1.bf16.msra.mxu0 %v2336
    %4063 = vmatprep.subr.bf16.mxu0 %v2345
    %4064 = vmatpush1.bf16.msra.mxu0 %v2344
    %4065 = vmatprep.subr.bf16.mxu0 %v2353
    %4066 = vmatpush1.bf16.msra.mxu0 %v2352
    %4067 = vmatprep.subr.bf16.mxu0 %v2361
    %4068 = vmatpush1.bf16.msra.mxu0 %v2360
    %4069 = vmatprep.subr.bf16.mxu0 %v2369
    %4070 = vmatpush1.bf16.msra.mxu0 %v2368
    %4071 = vmatprep.subr.bf16.mxu0 %v2377
    %4072 = vmatpush1.bf16.msra.mxu0 %v2376
    %4073 = vmatprep.subr.bf16.mxu0 %v2385
    %4074 = vmatpush1.bf16.msra.mxu0 %v2384
    %4075 = vmatprep.mubr.bf16.mxu0 %v3997
    %4076 = vmatmul.mubr.bf16.gmra.mrb[0].mxu0 %v3996
    %v4077 = vpop.f32.mrb[0].mxu0
    %v4078 = vadd.f32 %v4037, %v4077
    %v4079 = vpop.f32.mrb[0].mxu0
    %v4080 = vadd.f32 %v4039, %v4079
    %v4081 = vpop.f32.mrb[0].mxu0
    %v4082 = vpop.f32.mrb[0].mxu0
    %4083 = vdwg.mxu0
    %4084 = vmatprep.subr.bf16.mxu0 %v2393
    %4085 = vmatpush1.bf16.msra.mxu0 %v2392
    %4086 = vmatprep.subr.bf16.mxu0 %v2401
    %4087 = vmatpush1.bf16.msra.mxu0 %v2400
    %4088 = vmatprep.subr.bf16.mxu0 %v2409
    %4089 = vmatpush1.bf16.msra.mxu0 %v2408
    %4090 = vmatprep.subr.bf16.mxu0 %v2417
    %4091 = vmatpush1.bf16.msra.mxu0 %v2416
    %4092 = vmatprep.subr.bf16.mxu0 %v2425
    %4093 = vmatpush1.bf16.msra.mxu0 %v2424
    %4094 = vmatprep.subr.bf16.mxu0 %v2433
    %4095 = vmatpush1.bf16.msra.mxu0 %v2432
    %4096 = vmatprep.subr.bf16.mxu0 %v2441
    %4097 = vmatpush1.bf16.msra.mxu0 %v2440
    %4098 = vmatprep.subr.bf16.mxu0 %v2449
    %4099 = vmatpush1.bf16.msra.mxu0 %v2448
    %4100 = vmatprep.subr.bf16.mxu0 %v2457
    %4101 = vmatpush1.bf16.msra.mxu0 %v2456
    %4102 = vmatprep.subr.bf16.mxu0 %v2465
    %4103 = vmatpush1.bf16.msra.mxu0 %v2464
    %4104 = vmatprep.subr.bf16.mxu0 %v2473
    %4105 = vmatpush1.bf16.msra.mxu0 %v2472
    %4106 = vmatprep.subr.bf16.mxu0 %v2481
    %4107 = vmatpush1.bf16.msra.mxu0 %v2480
    %4108 = vmatprep.subr.bf16.mxu0 %v2489
    %4109 = vmatpush1.bf16.msra.mxu0 %v2488
    %4110 = vmatprep.subr.bf16.mxu0 %v2497
    %4111 = vmatpush1.bf16.msra.mxu0 %v2496
    %4112 = vmatprep.subr.bf16.mxu0 %v2505
    %4113 = vmatpush1.bf16.msra.mxu0 %v2504
    %4114 = vmatprep.subr.bf16.mxu0 %v2513
    %4115 = vmatpush1.bf16.msra.mxu0 %v2512
    %4116 = vmatprep.mubr.bf16.mxu0 %v3999
    %4117 = vmatmul.mubr.bf16.gmra.mrb[0].mxu0 %v3998
    %v4118 = vpop.f32.mrb[0].mxu0
    %v4119 = vadd.f32 %v4078, %v4118
    %v4120 = vpop.f32.mrb[0].mxu0
    %v4121 = vadd.f32 %v4080, %v4120
    %v4122 = vpop.f32.mrb[0].mxu0
    %v4123 = vpop.f32.mrb[0].mxu0
    %4124 = vdwg.mxu0
    %4125 = vmatprep.subr.bf16.mxu0 %v2521
    %4126 = vmatpush1.bf16.msra.mxu0 %v2520
    %4127 = vmatprep.subr.bf16.mxu0 %v2529
    %4128 = vmatpush1.bf16.msra.mxu0 %v2528
    %4129 = vmatprep.subr.bf16.mxu0 %v2537
    %4130 = vmatpush1.bf16.msra.mxu0 %v2536
    %4131 = vmatprep.subr.bf16.mxu0 %v2545
    %4132 = vmatpush1.bf16.msra.mxu0 %v2544
    %4133 = vmatprep.subr.bf16.mxu0 %v2553
    %4134 = vmatpush1.bf16.msra.mxu0 %v2552
    %4135 = vmatprep.subr.bf16.mxu0 %v2561
    %4136 = vmatpush1.bf16.msra.mxu0 %v2560
    %4137 = vmatprep.subr.bf16.mxu0 %v2569
    %4138 = vmatpush1.bf16.msra.mxu0 %v2568
    %4139 = vmatprep.subr.bf16.mxu0 %v2577
    %4140 = vmatpush1.bf16.msra.mxu0 %v2576
    %4141 = vmatprep.subr.bf16.mxu0 %v2585
    %4142 = vmatpush1.bf16.msra.mxu0 %v2584
    %4143 = vmatprep.subr.bf16.mxu0 %v2593
    %4144 = vmatpush1.bf16.msra.mxu0 %v2592
    %4145 = vmatprep.subr.bf16.mxu0 %v2601
    %4146 = vmatpush1.bf16.msra.mxu0 %v2600
    %4147 = vmatprep.subr.bf16.mxu0 %v2609
    %4148 = vmatpush1.bf16.msra.mxu0 %v2608
    %4149 = vmatprep.subr.bf16.mxu0 %v2617
    %4150 = vmatpush1.bf16.msra.mxu0 %v2616
    %4151 = vmatprep.subr.bf16.mxu0 %v2625
    %4152 = vmatpush1.bf16.msra.mxu0 %v2624
    %4153 = vmatprep.subr.bf16.mxu0 %v2633
    %4154 = vmatpush1.bf16.msra.mxu0 %v2632
    %4155 = vmatprep.subr.bf16.mxu0 %v2641
    %4156 = vmatpush1.bf16.msra.mxu0 %v2640
    %4157 = vmatprep.mubr.bf16.mxu0 %v4001
    %4158 = vmatmul.mubr.bf16.gmra.mrb[0].mxu0 %v4000
    %v4159 = vpop.f32.mrb[0].mxu0
    %v4160 = vadd.f32 %v4119, %v4159
    %v4161 = vpop.f32.mrb[0].mxu0
    %v4162 = vadd.f32 %v4121, %v4161
    %v4163 = vpop.f32.mrb[0].mxu0
    %v4164 = vpop.f32.mrb[0].mxu0
    %4165 = vdwg.mxu0
    %4166 = vmatprep.subr.bf16.mxu0 %v2139
    %4167 = vmatpush1.bf16.msra.mxu0 %v2138
    %4168 = vmatprep.subr.bf16.mxu0 %v2147
    %4169 = vmatpush1.bf16.msra.mxu0 %v2146
    %4170 = vmatprep.subr.bf16.mxu0 %v2155
    %4171 = vmatpush1.bf16.msra.mxu0 %v2154
    %4172 = vmatprep.subr.bf16.mxu0 %v2163
    %4173 = vmatpush1.bf16.msra.mxu0 %v2162
    %4174 = vmatprep.subr.bf16.mxu0 %v2171
    %4175 = vmatpush1.bf16.msra.mxu0 %v2170
    %4176 = vmatprep.subr.bf16.mxu0 %v2179
    %4177 = vmatpush1.bf16.msra.mxu0 %v2178
    %4178 = vmatprep.subr.bf16.mxu0 %v2187
    %4179 = vmatpush1.bf16.msra.mxu0 %v2186
    %4180 = vmatprep.subr.bf16.mxu0 %v2195
    %4181 = vmatpush1.bf16.msra.mxu0 %v2194
    %4182 = vmatprep.subr.bf16.mxu0 %v2203
    %4183 = vmatpush1.bf16.msra.mxu0 %v2202
    %4184 = vmatprep.subr.bf16.mxu0 %v2211
    %4185 = vmatpush1.bf16.msra.mxu0 %v2210
    %4186 = vmatprep.subr.bf16.mxu0 %v2219
    %4187 = vmatpush1.bf16.msra.mxu0 %v2218
    %4188 = vmatprep.subr.bf16.mxu0 %v2227
    %4189 = vmatpush1.bf16.msra.mxu0 %v2226
    %4190 = vmatprep.subr.bf16.mxu0 %v2235
    %4191 = vmatpush1.bf16.msra.mxu0 %v2234
    %4192 = vmatprep.subr.bf16.mxu0 %v2243
    %4193 = vmatpush1.bf16.msra.mxu0 %v2242
    %4194 = vmatprep.subr.bf16.mxu0 %v2251
    %4195 = vmatpush1.bf16.msra.mxu0 %v2250
    %4196 = vmatprep.subr.bf16.mxu0 %v2259
    %4197 = vmatpush1.bf16.msra.mxu0 %v2258
    %4198 = vmatprep.mubr.bf16.mxu0 %v3995
    %4199 = vmatmul.mubr.bf16.gmra.mrb[0].mxu0 %v3994
    %v4200 = vpop.f32.mrb[0].mxu0
    %v4201 = vadd.f32 0.0, %v4200
    %v4202 = vpop.f32.mrb[0].mxu0
    %v4203 = vadd.f32 0.0, %v4202
    %v4204 = vpop.f32.mrb[0].mxu0
    %v4205 = vpop.f32.mrb[0].mxu0
    %4206 = vdwg.mxu0
    %4207 = vmatprep.subr.bf16.mxu0 %v2267
    %4208 = vmatpush1.bf16.msra.mxu0 %v2266
    %4209 = vmatprep.subr.bf16.mxu0 %v2275
    %4210 = vmatpush1.bf16.msra.mxu0 %v2274
    %4211 = vmatprep.subr.bf16.mxu0 %v2283
    %4212 = vmatpush1.bf16.msra.mxu0 %v2282
    %4213 = vmatprep.subr.bf16.mxu0 %v2291
    %4214 = vmatpush1.bf16.msra.mxu0 %v2290
    %4215 = vmatprep.subr.bf16.mxu0 %v2299
    %4216 = vmatpush1.bf16.msra.mxu0 %v2298
    %4217 = vmatprep.subr.bf16.mxu0 %v2307
    %4218 = vmatpush1.bf16.msra.mxu0 %v2306
    %4219 = vmatprep.subr.bf16.mxu0 %v2315
    %4220 = vmatpush1.bf16.msra.mxu0 %v2314
    %4221 = vmatprep.subr.bf16.mxu0 %v2323
    %4222 = vmatpush1.bf16.msra.mxu0 %v2322
    %4223 = vmatprep.subr.bf16.mxu0 %v2331
    %4224 = vmatpush1.bf16.msra.mxu0 %v2330
    %4225 = vmatprep.subr.bf16.mxu0 %v2339
    %4226 = vmatpush1.bf16.msra.mxu0 %v2338
    %4227 = vmatprep.subr.bf16.mxu0 %v2347
    %4228 = vmatpush1.bf16.msra.mxu0 %v2346
    %4229 = vmatprep.subr.bf16.mxu0 %v2355
    %4230 = vmatpush1.bf16.msra.mxu0 %v2354
    %4231 = vmatprep.subr.bf16.mxu0 %v2363
    %4232 = vmatpush1.bf16.msra.mxu0 %v2362
    %4233 = vmatprep.subr.bf16.mxu0 %v2371
    %4234 = vmatpush1.bf16.msra.mxu0 %v2370
    %4235 = vmatprep.subr.bf16.mxu0 %v2379
    %4236 = vmatpush1.bf16.msra.mxu0 %v2378
    %4237 = vmatprep.subr.bf16.mxu0 %v2387
    %4238 = vmatpush1.bf16.msra.mxu0 %v2386
    %4239 = vmatprep.mubr.bf16.mxu0 %v3997
    %4240 = vmatmul.mubr.bf16.gmra.mrb[0].mxu0 %v3996
    %v4241 = vpop.f32.mrb[0].mxu0
    %v4242 = vadd.f32 %v4201, %v4241
    %v4243 = vpop.f32.mrb[0].mxu0
    %v4244 = vadd.f32 %v4203, %v4243
    %v4245 = vpop.f32.mrb[0].mxu0
    %v4246 = vpop.f32.mrb[0].mxu0
    %4247 = vdwg.mxu0
    %4248 = vmatprep.subr.bf16.mxu0 %v2395
    %4249 = vmatpush1.bf16.msra.mxu0 %v2394
    %4250 = vmatprep.subr.bf16.mxu0 %v2403
    %4251 = vmatpush1.bf16.msra.mxu0 %v2402
    %4252 = vmatprep.subr.bf16.mxu0 %v2411
    %4253 = vmatpush1.bf16.msra.mxu0 %v2410
    %4254 = vmatprep.subr.bf16.mxu0 %v2419
    %4255 = vmatpush1.bf16.msra.mxu0 %v2418
    %4256 = vmatprep.subr.bf16.mxu0 %v2427
    %4257 = vmatpush1.bf16.msra.mxu0 %v2426
    %4258 = vmatprep.subr.bf16.mxu0 %v2435
    %4259 = vmatpush1.bf16.msra.mxu0 %v2434
    %4260 = vmatprep.subr.bf16.mxu0 %v2443
    %4261 = vmatpush1.bf16.msra.mxu0 %v2442
    %4262 = vmatprep.subr.bf16.mxu0 %v2451
    %4263 = vmatpush1.bf16.msra.mxu0 %v2450
    %4264 = vmatprep.subr.bf16.mxu0 %v2459
    %4265 = vmatpush1.bf16.msra.mxu0 %v2458
    %4266 = vmatprep.subr.bf16.mxu0 %v2467
    %4267 = vmatpush1.bf16.msra.mxu0 %v2466
    %4268 = vmatprep.subr.bf16.mxu0 %v2475
    %4269 = vmatpush1.bf16.msra.mxu0 %v2474
    %4270 = vmatprep.subr.bf16.mxu0 %v2483
    %4271 = vmatpush1.bf16.msra.mxu0 %v2482
    %4272 = vmatprep.subr.bf16.mxu0 %v2491
    %4273 = vmatpush1.bf16.msra.mxu0 %v2490
    %4274 = vmatprep.subr.bf16.mxu0 %v2499
    %4275 = vmatpush1.bf16.msra.mxu0 %v2498
    %4276 = vmatprep.subr.bf16.mxu0 %v2507
    %4277 = vmatpush1.bf16.msra.mxu0 %v2506
    %4278 = vmatprep.subr.bf16.mxu0 %v2515
    %4279 = vmatpush1.bf16.msra.mxu0 %v2514
    %4280 = vmatprep.mubr.bf16.mxu0 %v3999
    %4281 = vmatmul.mubr.bf16.gmra.mrb[0].mxu0 %v3998
    %v4282 = vpop.f32.mrb[0].mxu0
    %v4283 = vadd.f32 %v4242, %v4282
    %v4284 = vpop.f32.mrb[0].mxu0
    %v4285 = vadd.f32 %v4244, %v4284
    %v4286 = vpop.f32.mrb[0].mxu0
    %v4287 = vpop.f32.mrb[0].mxu0
    %4288 = vdwg.mxu0
    %4289 = vmatprep.subr.bf16.mxu0 %v2523
    %4290 = vmatpush1.bf16.msra.mxu0 %v2522
    %4291 = vmatprep.subr.bf16.mxu0 %v2531
    %4292 = vmatpush1.bf16.msra.mxu0 %v2530
    %4293 = vmatprep.subr.bf16.mxu0 %v2539
    %4294 = vmatpush1.bf16.msra.mxu0 %v2538
    %4295 = vmatprep.subr.bf16.mxu0 %v2547
    %4296 = vmatpush1.bf16.msra.mxu0 %v2546
    %4297 = vmatprep.subr.bf16.mxu0 %v2555
    %4298 = vmatpush1.bf16.msra.mxu0 %v2554
    %4299 = vmatprep.subr.bf16.mxu0 %v2563
    %4300 = vmatpush1.bf16.msra.mxu0 %v2562
    %4301 = vmatprep.subr.bf16.mxu0 %v2571
    %4302 = vmatpush1.bf16.msra.mxu0 %v2570
    %4303 = vmatprep.subr.bf16.mxu0 %v2579
    %4304 = vmatpush1.bf16.msra.mxu0 %v2578
    %4305 = vmatprep.subr.bf16.mxu0 %v2587
    %4306 = vmatpush1.bf16.msra.mxu0 %v2586
    %4307 = vmatprep.subr.bf16.mxu0 %v2595
    %4308 = vmatpush1.bf16.msra.mxu0 %v2594
    %4309 = vmatprep.subr.bf16.mxu0 %v2603
    %4310 = vmatpush1.bf16.msra.mxu0 %v2602
    %4311 = vmatprep.subr.bf16.mxu0 %v2611
    %4312 = vmatpush1.bf16.msra.mxu0 %v2610
    %4313 = vmatprep.subr.bf16.mxu0 %v2619
    %4314 = vmatpush1.bf16.msra.mxu0 %v2618
    %4315 = vmatprep.subr.bf16.mxu0 %v2627
    %4316 = vmatpush1.bf16.msra.mxu0 %v2626
    %4317 = vmatprep.subr.bf16.mxu0 %v2635
    %4318 = vmatpush1.bf16.msra.mxu0 %v2634
    %4319 = vmatprep.subr.bf16.mxu0 %v2643
    %4320 = vmatpush1.bf16.msra.mxu0 %v2642
    %4321 = vmatprep.mubr.bf16.mxu0 %v4001
    %4322 = vmatmul.mubr.bf16.gmra.mrb[0].mxu0 %v4000
    %v4323 = vpop.f32.mrb[0].mxu0
    %v4324 = vadd.f32 %v4283, %v4323
    %v4325 = vpop.f32.mrb[0].mxu0
    %v4326 = vadd.f32 %v4285, %v4325
    %v4327 = vpop.f32.mrb[0].mxu0
    %v4328 = vpop.f32.mrb[0].mxu0
    %4329 = vdwg.mxu0
    %4330 = vmatprep.subr.bf16.mxu0 %v2141
    %4331 = vmatpush1.bf16.msra.mxu0 %v2140
    %4332 = vmatprep.subr.bf16.mxu0 %v2149
    %4333 = vmatpush1.bf16.msra.mxu0 %v2148
    %4334 = vmatprep.subr.bf16.mxu0 %v2157
    %4335 = vmatpush1.bf16.msra.mxu0 %v2156
    %4336 = vmatprep.subr.bf16.mxu0 %v2165
    %4337 = vmatpush1.bf16.msra.mxu0 %v2164
    %4338 = vmatprep.subr.bf16.mxu0 %v2173
    %4339 = vmatpush1.bf16.msra.mxu0 %v2172
    %4340 = vmatprep.subr.bf16.mxu0 %v2181
    %4341 = vmatpush1.bf16.msra.mxu0 %v2180
    %4342 = vmatprep.subr.bf16.mxu0 %v2189
    %4343 = vmatpush1.bf16.msra.mxu0 %v2188
    %4344 = vmatprep.subr.bf16.mxu0 %v2197
    %4345 = vmatpush1.bf16.msra.mxu0 %v2196
    %4346 = vmatprep.subr.bf16.mxu0 %v2205
    %4347 = vmatpush1.bf16.msra.mxu0 %v2204
    %4348 = vmatprep.subr.bf16.mxu0 %v2213
    %4349 = vmatpush1.bf16.msra.mxu0 %v2212
    %4350 = vmatprep.subr.bf16.mxu0 %v2221
    %4351 = vmatpush1.bf16.msra.mxu0 %v2220
    %4352 = vmatprep.subr.bf16.mxu0 %v2229
    %4353 = vmatpush1.bf16.msra.mxu0 %v2228
    %4354 = vmatprep.subr.bf16.mxu0 %v2237
    %4355 = vmatpush1.bf16.msra.mxu0 %v2236
    %4356 = vmatprep.subr.bf16.mxu0 %v2245
    %4357 = vmatpush1.bf16.msra.mxu0 %v2244
    %4358 = vmatprep.subr.bf16.mxu0 %v2253
    %4359 = vmatpush1.bf16.msra.mxu0 %v2252
    %4360 = vmatprep.subr.bf16.mxu0 %v2261
    %4361 = vmatpush1.bf16.msra.mxu0 %v2260
    %4362 = vmatprep.mubr.bf16.mxu0 %v3995
    %4363 = vmatmul.mubr.bf16.gmra.mrb[0].mxu0 %v3994
    %v4364 = vpop.f32.mrb[0].mxu0
    %v4365 = vadd.f32 0.0, %v4364
    %v4366 = vpop.f32.mrb[0].mxu0
    %v4367 = vadd.f32 0.0, %v4366
    %v4368 = vpop.f32.mrb[0].mxu0
    %v4369 = vpop.f32.mrb[0].mxu0
    %4370 = vdwg.mxu0
    %4371 = vmatprep.subr.bf16.mxu0 %v2269
    %4372 = vmatpush1.bf16.msra.mxu0 %v2268
    %4373 = vmatprep.subr.bf16.mxu0 %v2277
    %4374 = vmatpush1.bf16.msra.mxu0 %v2276
    %4375 = vmatprep.subr.bf16.mxu0 %v2285
    %4376 = vmatpush1.bf16.msra.mxu0 %v2284
    %4377 = vmatprep.subr.bf16.mxu0 %v2293
    %4378 = vmatpush1.bf16.msra.mxu0 %v2292
    %4379 = vmatprep.subr.bf16.mxu0 %v2301
    %4380 = vmatpush1.bf16.msra.mxu0 %v2300
    %4381 = vmatprep.subr.bf16.mxu0 %v2309
    %4382 = vmatpush1.bf16.msra.mxu0 %v2308
    %4383 = vmatprep.subr.bf16.mxu0 %v2317
    %4384 = vmatpush1.bf16.msra.mxu0 %v2316
    %4385 = vmatprep.subr.bf16.mxu0 %v2325
    %4386 = vmatpush1.bf16.msra.mxu0 %v2324
    %4387 = vmatprep.subr.bf16.mxu0 %v2333
    %4388 = vmatpush1.bf16.msra.mxu0 %v2332
    %4389 = vmatprep.subr.bf16.mxu0 %v2341
    %4390 = vmatpush1.bf16.msra.mxu0 %v2340
    %4391 = vmatprep.subr.bf16.mxu0 %v2349
    %4392 = vmatpush1.bf16.msra.mxu0 %v2348
    %4393 = vmatprep.subr.bf16.mxu0 %v2357
    %4394 = vmatpush1.bf16.msra.mxu0 %v2356
    %4395 = vmatprep.subr.bf16.mxu0 %v2365
    %4396 = vmatpush1.bf16.msra.mxu0 %v2364
    %4397 = vmatprep.subr.bf16.mxu0 %v2373
    %4398 = vmatpush1.bf16.msra.mxu0 %v2372
    %4399 = vmatprep.subr.bf16.mxu0 %v2381
    %4400 = vmatpush1.bf16.msra.mxu0 %v2380
    %4401 = vmatprep.subr.bf16.mxu0 %v2389
    %4402 = vmatpush1.bf16.msra.mxu0 %v2388
    %4403 = vmatprep.mubr.bf16.mxu0 %v3997
    %4404 = vmatmul.mubr.bf16.gmra.mrb[0].mxu0 %v3996
    %v4405 = vpop.f32.mrb[0].mxu0
    %v4406 = vadd.f32 %v4365, %v4405
    %v4407 = vpop.f32.mrb[0].mxu0
    %v4408 = vadd.f32 %v4367, %v4407
    %v4409 = vpop.f32.mrb[0].mxu0
    %v4410 = vpop.f32.mrb[0].mxu0
    %4411 = vdwg.mxu0
    %4412 = vmatprep.subr.bf16.mxu0 %v2397
    %4413 = vmatpush1.bf16.msra.mxu0 %v2396
    %4414 = vmatprep.subr.bf16.mxu0 %v2405
    %4415 = vmatpush1.bf16.msra.mxu0 %v2404
    %4416 = vmatprep.subr.bf16.mxu0 %v2413
    %4417 = vmatpush1.bf16.msra.mxu0 %v2412
    %4418 = vmatprep.subr.bf16.mxu0 %v2421
    %4419 = vmatpush1.bf16.msra.mxu0 %v2420
    %4420 = vmatprep.subr.bf16.mxu0 %v2429
    %4421 = vmatpush1.bf16.msra.mxu0 %v2428
    %4422 = vmatprep.subr.bf16.mxu0 %v2437
    %4423 = vmatpush1.bf16.msra.mxu0 %v2436
    %4424 = vmatprep.subr.bf16.mxu0 %v2445
    %4425 = vmatpush1.bf16.msra.mxu0 %v2444
    %4426 = vmatprep.subr.bf16.mxu0 %v2453
    %4427 = vmatpush1.bf16.msra.mxu0 %v2452
    %4428 = vmatprep.subr.bf16.mxu0 %v2461
    %4429 = vmatpush1.bf16.msra.mxu0 %v2460
    %4430 = vmatprep.subr.bf16.mxu0 %v2469
    %4431 = vmatpush1.bf16.msra.mxu0 %v2468
    %4432 = vmatprep.subr.bf16.mxu0 %v2477
    %4433 = vmatpush1.bf16.msra.mxu0 %v2476
    %4434 = vmatprep.subr.bf16.mxu0 %v2485
    %4435 = vmatpush1.bf16.msra.mxu0 %v2484
    %4436 = vmatprep.subr.bf16.mxu0 %v2493
    %4437 = vmatpush1.bf16.msra.mxu0 %v2492
    %4438 = vmatprep.subr.bf16.mxu0 %v2501
    %4439 = vmatpush1.bf16.msra.mxu0 %v2500
    %4440 = vmatprep.subr.bf16.mxu0 %v2509
    %4441 = vmatpush1.bf16.msra.mxu0 %v2508
    %4442 = vmatprep.subr.bf16.mxu0 %v2517
    %4443 = vmatpush1.bf16.msra.mxu0 %v2516
    %4444 = vmatprep.mubr.bf16.mxu0 %v3999
    %4445 = vmatmul.mubr.bf16.gmra.mrb[0].mxu0 %v3998
    %v4446 = vpop.f32.mrb[0].mxu0
    %v4447 = vadd.f32 %v4406, %v4446
    %v4448 = vpop.f32.mrb[0].mxu0
    %v4449 = vadd.f32 %v4408, %v4448
    %v4450 = vpop.f32.mrb[0].mxu0
    %v4451 = vpop.f32.mrb[0].mxu0
    %4452 = vdwg.mxu0
    %4453 = vmatprep.subr.bf16.mxu0 %v2525
    %4454 = vmatpush1.bf16.msra.mxu0 %v2524
    %4455 = vmatprep.subr.bf16.mxu0 %v2533
    %4456 = vmatpush1.bf16.msra.mxu0 %v2532
    %4457 = vmatprep.subr.bf16.mxu0 %v2541
    %4458 = vmatpush1.bf16.msra.mxu0 %v2540
    %4459 = vmatprep.subr.bf16.mxu0 %v2549
    %4460 = vmatpush1.bf16.msra.mxu0 %v2548
    %4461 = vmatprep.subr.bf16.mxu0 %v2557
    %4462 = vmatpush1.bf16.msra.mxu0 %v2556
    %4463 = vmatprep.subr.bf16.mxu0 %v2565
    %4464 = vmatpush1.bf16.msra.mxu0 %v2564
    %4465 = vmatprep.subr.bf16.mxu0 %v2573
    %4466 = vmatpush1.bf16.msra.mxu0 %v2572
    %4467 = vmatprep.subr.bf16.mxu0 %v2581
    %4468 = vmatpush1.bf16.msra.mxu0 %v2580
    %4469 = vmatprep.subr.bf16.mxu0 %v2589
    %4470 = vmatpush1.bf16.msra.mxu0 %v2588
    %4471 = vmatprep.subr.bf16.mxu0 %v2597
    %4472 = vmatpush1.bf16.msra.mxu0 %v2596
    %4473 = vmatprep.subr.bf16.mxu0 %v2605
    %4474 = vmatpush1.bf16.msra.mxu0 %v2604
    %4475 = vmatprep.subr.bf16.mxu0 %v2613
    %4476 = vmatpush1.bf16.msra.mxu0 %v2612
    %4477 = vmatprep.subr.bf16.mxu0 %v2621
    %4478 = vmatpush1.bf16.msra.mxu0 %v2620
    %4479 = vmatprep.subr.bf16.mxu0 %v2629
    %4480 = vmatpush1.bf16.msra.mxu0 %v2628
    %4481 = vmatprep.subr.bf16.mxu0 %v2637
    %4482 = vmatpush1.bf16.msra.mxu0 %v2636
    %4483 = vmatprep.subr.bf16.mxu0 %v2645
    %4484 = vmatpush1.bf16.msra.mxu0 %v2644
    %4485 = vmatprep.mubr.bf16.mxu0 %v4001
    %4486 = vmatmul.mubr.bf16.gmra.mrb[0].mxu0 %v4000
    %v4487 = vpop.f32.mrb[0].mxu0
    %v4488 = vadd.f32 %v4447, %v4487
    %v4489 = vpop.f32.mrb[0].mxu0
    %v4490 = vadd.f32 %v4449, %v4489
    %v4491 = vpop.f32.mrb[0].mxu0
    %v4492 = vpop.f32.mrb[0].mxu0
    %4493 = vdwg.mxu0
    %4494 = vmatprep.subr.bf16.mxu0 %v2143
    %4495 = vmatpush1.bf16.msra.mxu0 %v2142
    %4496 = vmatprep.subr.bf16.mxu0 %v2151
    %4497 = vmatpush1.bf16.msra.mxu0 %v2150
    %4498 = vmatprep.subr.bf16.mxu0 %v2159
    %4499 = vmatpush1.bf16.msra.mxu0 %v2158
    %4500 = vmatprep.subr.bf16.mxu0 %v2167
    %4501 = vmatpush1.bf16.msra.mxu0 %v2166
    %4502 = vmatprep.subr.bf16.mxu0 %v2175
    %4503 = vmatpush1.bf16.msra.mxu0 %v2174
    %4504 = vmatprep.subr.bf16.mxu0 %v2183
    %4505 = vmatpush1.bf16.msra.mxu0 %v2182
    %4506 = vmatprep.subr.bf16.mxu0 %v2191
    %4507 = vmatpush1.bf16.msra.mxu0 %v2190
    %4508 = vmatprep.subr.bf16.mxu0 %v2199
    %4509 = vmatpush1.bf16.msra.mxu0 %v2198
    %4510 = vmatprep.subr.bf16.mxu0 %v2207
    %4511 = vmatpush1.bf16.msra.mxu0 %v2206
    %4512 = vmatprep.subr.bf16.mxu0 %v2215
    %4513 = vmatpush1.bf16.msra.mxu0 %v2214
    %4514 = vmatprep.subr.bf16.mxu0 %v2223
    %4515 = vmatpush1.bf16.msra.mxu0 %v2222
    %4516 = vmatprep.subr.bf16.mxu0 %v2231
    %4517 = vmatpush1.bf16.msra.mxu0 %v2230
    %4518 = vmatprep.subr.bf16.mxu0 %v2239
    %4519 = vmatpush1.bf16.msra.mxu0 %v2238
    %4520 = vmatprep.subr.bf16.mxu0 %v2247
    %4521 = vmatpush1.bf16.msra.mxu0 %v2246
    %4522 = vmatprep.subr.bf16.mxu0 %v2255
    %4523 = vmatpush1.bf16.msra.mxu0 %v2254
    %4524 = vmatprep.subr.bf16.mxu0 %v2263
    %4525 = vmatpush1.bf16.msra.mxu0 %v2262
    %4526 = vmatprep.mubr.bf16.mxu0 %v3995
    %4527 = vmatmul.mubr.bf16.gmra.mrb[0].mxu0 %v3994
    %v4528 = vpop.f32.mrb[0].mxu0
    %v4529 = vadd.f32 0.0, %v4528
    %v4530 = vpop.f32.mrb[0].mxu0
    %v4531 = vadd.f32 0.0, %v4530
    %v4532 = vpop.f32.mrb[0].mxu0
    %v4533 = vpop.f32.mrb[0].mxu0
    %4534 = vdwg.mxu0
    %4535 = vmatprep.subr.bf16.mxu0 %v2271
    %4536 = vmatpush1.bf16.msra.mxu0 %v2270
    %4537 = vmatprep.subr.bf16.mxu0 %v2279
    %4538 = vmatpush1.bf16.msra.mxu0 %v2278
    %4539 = vmatprep.subr.bf16.mxu0 %v2287
    %4540 = vmatpush1.bf16.msra.mxu0 %v2286
    %4541 = vmatprep.subr.bf16.mxu0 %v2295
    %4542 = vmatpush1.bf16.msra.mxu0 %v2294
    %4543 = vmatprep.subr.bf16.mxu0 %v2303
    %4544 = vmatpush1.bf16.msra.mxu0 %v2302
    %4545 = vmatprep.subr.bf16.mxu0 %v2311
    %4546 = vmatpush1.bf16.msra.mxu0 %v2310
    %4547 = vmatprep.subr.bf16.mxu0 %v2319
    %4548 = vmatpush1.bf16.msra.mxu0 %v2318
    %4549 = vmatprep.subr.bf16.mxu0 %v2327
    %4550 = vmatpush1.bf16.msra.mxu0 %v2326
    %4551 = vmatprep.subr.bf16.mxu0 %v2335
    %4552 = vmatpush1.bf16.msra.mxu0 %v2334
    %4553 = vmatprep.subr.bf16.mxu0 %v2343
    %4554 = vmatpush1.bf16.msra.mxu0 %v2342
    %4555 = vmatprep.subr.bf16.mxu0 %v2351
    %4556 = vmatpush1.bf16.msra.mxu0 %v2350
    %4557 = vmatprep.subr.bf16.mxu0 %v2359
    %4558 = vmatpush1.bf16.msra.mxu0 %v2358
    %4559 = vmatprep.subr.bf16.mxu0 %v2367
    %4560 = vmatpush1.bf16.msra.mxu0 %v2366
    %4561 = vmatprep.subr.bf16.mxu0 %v2375
    %4562 = vmatpush1.bf16.msra.mxu0 %v2374
    %4563 = vmatprep.subr.bf16.mxu0 %v2383
    %4564 = vmatpush1.bf16.msra.mxu0 %v2382
    %4565 = vmatprep.subr.bf16.mxu0 %v2391
    %4566 = vmatpush1.bf16.msra.mxu0 %v2390
    %4567 = vmatprep.mubr.bf16.mxu0 %v3997
    %4568 = vmatmul.mubr.bf16.gmra.mrb[0].mxu0 %v3996
    %v4569 = vpop.f32.mrb[0].mxu0
    %v4570 = vadd.f32 %v4529, %v4569
    %v4571 = vpop.f32.mrb[0].mxu0
    %v4572 = vadd.f32 %v4531, %v4571
    %v4573 = vpop.f32.mrb[0].mxu0
    %v4574 = vpop.f32.mrb[0].mxu0
    %4575 = vdwg.mxu0
    %4576 = vmatprep.subr.bf16.mxu0 %v2399
    %4577 = vmatpush1.bf16.msra.mxu0 %v2398
    %4578 = vmatprep.subr.bf16.mxu0 %v2407
    %4579 = vmatpush1.bf16.msra.mxu0 %v2406
    %4580 = vmatprep.subr.bf16.mxu0 %v2415
    %4581 = vmatpush1.bf16.msra.mxu0 %v2414
    %4582 = vmatprep.subr.bf16.mxu0 %v2423
    %4583 = vmatpush1.bf16.msra.mxu0 %v2422
    %4584 = vmatprep.subr.bf16.mxu0 %v2431
    %4585 = vmatpush1.bf16.msra.mxu0 %v2430
    %4586 = vmatprep.subr.bf16.mxu0 %v2439
    %4587 = vmatpush1.bf16.msra.mxu0 %v2438
    %4588 = vmatprep.subr.bf16.mxu0 %v2447
    %4589 = vmatpush1.bf16.msra.mxu0 %v2446
    %4590 = vmatprep.subr.bf16.mxu0 %v2455
    %4591 = vmatpush1.bf16.msra.mxu0 %v2454
    %4592 = vmatprep.subr.bf16.mxu0 %v2463
    %4593 = vmatpush1.bf16.msra.mxu0 %v2462
    %4594 = vmatprep.subr.bf16.mxu0 %v2471
    %4595 = vmatpush1.bf16.msra.mxu0 %v2470
    %4596 = vmatprep.subr.bf16.mxu0 %v2479
    %4597 = vmatpush1.bf16.msra.mxu0 %v2478
    %4598 = vmatprep.subr.bf16.mxu0 %v2487
    %4599 = vmatpush1.bf16.msra.mxu0 %v2486
    %4600 = vmatprep.subr.bf16.mxu0 %v2495
    %4601 = vmatpush1.bf16.msra.mxu0 %v2494
    %4602 = vmatprep.subr.bf16.mxu0 %v2503
    %4603 = vmatpush1.bf16.msra.mxu0 %v2502
    %4604 = vmatprep.subr.bf16.mxu0 %v2511
    %4605 = vmatpush1.bf16.msra.mxu0 %v2510
    %4606 = vmatprep.subr.bf16.mxu0 %v2519
    %4607 = vmatpush1.bf16.msra.mxu0 %v2518
    %4608 = vmatprep.mubr.bf16.mxu0 %v3999
    %4609 = vmatmul.mubr.bf16.gmra.mrb[0].mxu0 %v3998
    %v4610 = vpop.f32.mrb[0].mxu0
    %v4611 = vadd.f32 %v4570, %v4610
    %v4612 = vpop.f32.mrb[0].mxu0
    %v4613 = vadd.f32 %v4572, %v4612
    %v4614 = vpop.f32.mrb[0].mxu0
    %v4615 = vpop.f32.mrb[0].mxu0
    %4616 = vdwg.mxu0
    %4617 = vmatprep.subr.bf16.mxu0 %v2527
    %4618 = vmatpush1.bf16.msra.mxu0 %v2526
    %4619 = vmatprep.subr.bf16.mxu0 %v2535
    %4620 = vmatpush1.bf16.msra.mxu0 %v2534
    %4621 = vmatprep.subr.bf16.mxu0 %v2543
    %4622 = vmatpush1.bf16.msra.mxu0 %v2542
    %4623 = vmatprep.subr.bf16.mxu0 %v2551
    %4624 = vmatpush1.bf16.msra.mxu0 %v2550
    %4625 = vmatprep.subr.bf16.mxu0 %v2559
    %4626 = vmatpush1.bf16.msra.mxu0 %v2558
    %4627 = vmatprep.subr.bf16.mxu0 %v2567
    %4628 = vmatpush1.bf16.msra.mxu0 %v2566
    %4629 = vmatprep.subr.bf16.mxu0 %v2575
    %4630 = vmatpush1.bf16.msra.mxu0 %v2574
    %4631 = vmatprep.subr.bf16.mxu0 %v2583
    %4632 = vmatpush1.bf16.msra.mxu0 %v2582
    %4633 = vmatprep.subr.bf16.mxu0 %v2591
    %4634 = vmatpush1.bf16.msra.mxu0 %v2590
    %4635 = vmatprep.subr.bf16.mxu0 %v2599
    %4636 = vmatpush1.bf16.msra.mxu0 %v2598
    %4637 = vmatprep.subr.bf16.mxu0 %v2607
    %4638 = vmatpush1.bf16.msra.mxu0 %v2606
    %4639 = vmatprep.subr.bf16.mxu0 %v2615
    %4640 = vmatpush1.bf16.msra.mxu0 %v2614
    %4641 = vmatprep.subr.bf16.mxu0 %v2623
    %4642 = vmatpush1.bf16.msra.mxu0 %v2622
    %4643 = vmatprep.subr.bf16.mxu0 %v2631
    %4644 = vmatpush1.bf16.msra.mxu0 %v2630
    %4645 = vmatprep.subr.bf16.mxu0 %v2639
    %4646 = vmatpush1.bf16.msra.mxu0 %v2638
    %4647 = vmatprep.subr.bf16.mxu0 %v2647
    %4648 = vmatpush1.bf16.msra.mxu0 %v2646
    %4649 = vmatprep.mubr.bf16.mxu0 %v4001
    %4650 = vmatmul.mubr.bf16.gmra.mrb[0].mxu0 %v4000
    %v4651 = vpop.f32.mrb[0].mxu0
    %v4652 = vadd.f32 %v4611, %v4651
    %v4653 = vpop.f32.mrb[0].mxu0
    %v4654 = vadd.f32 %v4613, %v4653
    %v4655 = vpop.f32.mrb[0].mxu0
    %v4656 = vpop.f32.mrb[0].mxu0
    %4657 = vdwg.mxu0
    %v4658 = vstv %s3947
    %v4659 = vmul.f32 %v4658, %v3945
    %v4660 = vmul.f32 %v4658, %v3946
    %v4661 = vstv %s3948
    %v4662 = vmul.f32 %v4661, %v4160
    %v4663 = vmul.f32 %v4661, %v4162
    %v4664 = vmul.f32 %v4661, %v4324
    %v4665 = vmul.f32 %v4661, %v4326
    %v4666 = vmul.f32 %v4661, %v4488
    %v4667 = vmul.f32 %v4661, %v4490
    %v4668 = vmul.f32 %v4661, %v4652
    %v4669 = vmul.f32 %v4661, %v4654
    %v4678 = vcombine.low %v4662, %v4663
    %v4679 = vcombine.low %v4664, %v4665
    %v4681 = vunpack.c.l.s4 1983009808
    %v4682 = vunpack.c.0.s8 %v4681
    %v4683 = vlaneseq
    %v4684 = vshrl.u32 %v4683, 7
    %v4685 = vsub.s32 %v4682, %v4684
    %v4686 = vrot.slane %v4678, %v4685
    %v4688 = vunpack.c.l.s4 1983009808
    %v4689 = vunpack.c.0.s8 %v4688
    %v4690 = vlaneseq
    %v4691 = vshrl.u32 %v4690, 7
    %v4692 = vsub.s32 %v4689, %v4691
    %v4693 = vrot.slane %v4679, %v4692
    %v4694 = vcombine.low %v4686, %v4693
    %v4695 = vcombine.low %v4666, %v4667
    %v4696 = vcombine.low %v4668, %v4669
    %v4698 = vunpack.c.l.s4 1983009808
    %v4699 = vunpack.c.0.s8 %v4698
    %v4700 = vlaneseq
    %v4701 = vshrl.u32 %v4700, 7
    %v4702 = vsub.s32 %v4699, %v4701
    %v4703 = vrot.slane %v4695, %v4702
    %v4705 = vunpack.c.l.s4 1983009808
    %v4706 = vunpack.c.0.s8 %v4705
    %v4707 = vlaneseq
    %v4708 = vshrl.u32 %v4707, 7
    %v4709 = vsub.s32 %v4706, %v4708
    %v4710 = vrot.slane %v4696, %v4709
    %v4711 = vcombine.low %v4703, %v4710
    %v4714 = vadd.f32 %v4659, %v4694
    %v4715 = vadd.f32 %v4660, %v4711
    %v4716 = vstv %s3949
    %v4717 = vmul.f32 %v4716, %v30
    %v4719 = vlaneseq
    %v4720 = vshrl.u32 %v4719, 7
    %v4721 = vsub.s32 0, %v4720
    %v4722 = vrot.slane %v4717, %v4721
    %v4723 = vlaneseq
    %v4724 = vshrl.u32 %v4723, 7
    %v4725 = vsub.s32 1, %v4724
    %v4726 = vrot.slane %v4717, %v4725
    %v4727 = vlaneseq
    %v4728 = vshrl.u32 %v4727, 7
    %v4729 = vsub.s32 2, %v4728
    %v4730 = vrot.slane %v4717, %v4729
    %v4731 = vlaneseq
    %v4732 = vshrl.u32 %v4731, 7
    %v4733 = vsub.s32 3, %v4732
    %v4734 = vrot.slane %v4717, %v4733
    %v4735 = vlaneseq
    %v4736 = vshrl.u32 %v4735, 7
    %v4737 = vsub.s32 4, %v4736
    %v4738 = vrot.slane %v4717, %v4737
    %v4739 = vlaneseq
    %v4740 = vshrl.u32 %v4739, 7
    %v4741 = vsub.s32 5, %v4740
    %v4742 = vrot.slane %v4717, %v4741
    %v4743 = vlaneseq
    %v4744 = vshrl.u32 %v4743, 7
    %v4745 = vsub.s32 6, %v4744
    %v4746 = vrot.slane %v4717, %v4745
    %v4747 = vlaneseq
    %v4748 = vshrl.u32 %v4747, 7
    %v4749 = vsub.s32 7, %v4748
    %v4750 = vrot.slane %v4717, %v4749
    %v4751 = vcombine.low %v4722, %v4726
    %v4752 = vcombine.low %v4730, %v4734
    %v4754 = vunpack.c.l.s4 1983009808
    %v4755 = vunpack.c.0.s8 %v4754
    %v4756 = vlaneseq
    %v4757 = vshrl.u32 %v4756, 7
    %v4758 = vsub.s32 %v4755, %v4757
    %v4759 = vrot.slane %v4751, %v4758
    %v4761 = vunpack.c.l.s4 1983009808
    %v4762 = vunpack.c.0.s8 %v4761
    %v4763 = vlaneseq
    %v4764 = vshrl.u32 %v4763, 7
    %v4765 = vsub.s32 %v4762, %v4764
    %v4766 = vrot.slane %v4752, %v4765
    %v4767 = vcombine.low %v4759, %v4766
    %v4768 = vcombine.low %v4738, %v4742
    %v4769 = vcombine.low %v4746, %v4750
    %v4771 = vunpack.c.l.s4 1983009808
    %v4772 = vunpack.c.0.s8 %v4771
    %v4773 = vlaneseq
    %v4774 = vshrl.u32 %v4773, 7
    %v4775 = vsub.s32 %v4772, %v4774
    %v4776 = vrot.slane %v4768, %v4775
    %v4778 = vunpack.c.l.s4 1983009808
    %v4779 = vunpack.c.0.s8 %v4778
    %v4780 = vlaneseq
    %v4781 = vshrl.u32 %v4780, 7
    %v4782 = vsub.s32 %v4779, %v4781
    %v4783 = vrot.slane %v4769, %v4782
    %v4784 = vcombine.low %v4776, %v4783
    %v4787 = vadd.f32 %v4714, %v4767
    %v4788 = vadd.f32 %v4715, %v4784
    %s4789 = sld [smem:[#allocation2 + $0x8]]
    %s4790 = sld [smem:[#allocation2 + $0x9]]
    %s4791 = sld [smem:[#allocation2 + $0xa]]
    %v4794 = vcombine.high %v4787, %v4787
    %v4796 = vunpack.c.l.s4 1983009808
    %v4797 = vunpack.c.0.s8 %v4796
    %v4798 = vlaneseq
    %v4799 = vshrl.u32 %v4798, 7
    %v4800 = vsub.s32 %v4797, %v4799
    %v4801 = vrot.slane %v4787, %v4800
    %v4803 = vunpack.c.l.s4 1983009808
    %v4804 = vunpack.c.0.s8 %v4803
    %v4805 = vlaneseq
    %v4806 = vshrl.u32 %v4805, 7
    %v4807 = vsub.s32 %v4804, %v4806
    %v4808 = vrot.slane %v4794, %v4807
    %v4809 = vcombine.high %v4801, %v4801
    %v4810 = vcombine.high %v4808, %v4808
    %v4811 = vcombine.high %v4788, %v4788
    %v4813 = vunpack.c.l.s4 1983009808
    %v4814 = vunpack.c.0.s8 %v4813
    %v4815 = vlaneseq
    %v4816 = vshrl.u32 %v4815, 7
    %v4817 = vsub.s32 %v4814, %v4816
    %v4818 = vrot.slane %v4788, %v4817
    %v4820 = vunpack.c.l.s4 1983009808
    %v4821 = vunpack.c.0.s8 %v4820
    %v4822 = vlaneseq
    %v4823 = vshrl.u32 %v4822, 7
    %v4824 = vsub.s32 %v4821, %v4823
    %v4825 = vrot.slane %v4811, %v4824
    %v4826 = vcombine.high %v4818, %v4818
    %v4827 = vcombine.high %v4825, %v4825
    %v4836 = vpack.c.bf16 %v4801, %v4801
    %v4837 = vpack.c.bf16 %v4809, %v4809
    %v4838 = vpack.c.bf16 %v4808, %v4808
    %v4839 = vpack.c.bf16 %v4810, %v4810
    %v4840 = vpack.c.bf16 %v4818, %v4818
    %v4841 = vpack.c.bf16 %v4826, %v4826
    %v4842 = vpack.c.bf16 %v4825, %v4825
    %v4843 = vpack.c.bf16 %v4827, %v4827
    %4844 = vmatprep.subr.bf16.mxu0 %v2137
    %4845 = vmatpush1.bf16.msra.mxu0 %v2136
    %4846 = vmatprep.subr.bf16.mxu0 %v2145
    %4847 = vmatpush1.bf16.msra.mxu0 %v2144
    %4848 = vmatprep.subr.bf16.mxu0 %v2153
    %4849 = vmatpush1.bf16.msra.mxu0 %v2152
    %4850 = vmatprep.subr.bf16.mxu0 %v2161
    %4851 = vmatpush1.bf16.msra.mxu0 %v2160
    %4852 = vmatprep.subr.bf16.mxu0 %v2169
    %4853 = vmatpush1.bf16.msra.mxu0 %v2168
    %4854 = vmatprep.subr.bf16.mxu0 %v2177
    %4855 = vmatpush1.bf16.msra.mxu0 %v2176
    %4856 = vmatprep.subr.bf16.mxu0 %v2185
    %4857 = vmatpush1.bf16.msra.mxu0 %v2184
    %4858 = vmatprep.subr.bf16.mxu0 %v2193
    %4859 = vmatpush1.bf16.msra.mxu0 %v2192
    %4860 = vmatprep.subr.bf16.mxu0 %v2201
    %4861 = vmatpush1.bf16.msra.mxu0 %v2200
    %4862 = vmatprep.subr.bf16.mxu0 %v2209
    %4863 = vmatpush1.bf16.msra.mxu0 %v2208
    %4864 = vmatprep.subr.bf16.mxu0 %v2217
    %4865 = vmatpush1.bf16.msra.mxu0 %v2216
    %4866 = vmatprep.subr.bf16.mxu0 %v2225
    %4867 = vmatpush1.bf16.msra.mxu0 %v2224
    %4868 = vmatprep.subr.bf16.mxu0 %v2233
    %4869 = vmatpush1.bf16.msra.mxu0 %v2232
    %4870 = vmatprep.subr.bf16.mxu0 %v2241
    %4871 = vmatpush1.bf16.msra.mxu0 %v2240
    %4872 = vmatprep.subr.bf16.mxu0 %v2249
    %4873 = vmatpush1.bf16.msra.mxu0 %v2248
    %4874 = vmatprep.subr.bf16.mxu0 %v2257
    %4875 = vmatpush1.bf16.msra.mxu0 %v2256
    %4876 = vmatprep.mubr.bf16.mxu0 %v4837
    %4877 = vmatmul.mubr.bf16.gmra.mrb[0].mxu0 %v4836
    %v4878 = vpop.f32.mrb[0].mxu0
    %v4879 = vadd.f32 0.0, %v4878
    %v4880 = vpop.f32.mrb[0].mxu0
    %v4881 = vadd.f32 0.0, %v4880
    %v4882 = vpop.f32.mrb[0].mxu0
    %v4883 = vpop.f32.mrb[0].mxu0
    %4884 = vdwg.mxu0
    %4885 = vmatprep.subr.bf16.mxu0 %v2265
    %4886 = vmatpush1.bf16.msra.mxu0 %v2264
    %4887 = vmatprep.subr.bf16.mxu0 %v2273
    %4888 = vmatpush1.bf16.msra.mxu0 %v2272
    %4889 = vmatprep.subr.bf16.mxu0 %v2281
    %4890 = vmatpush1.bf16.msra.mxu0 %v2280
    %4891 = vmatprep.subr.bf16.mxu0 %v2289
    %4892 = vmatpush1.bf16.msra.mxu0 %v2288
    %4893 = vmatprep.subr.bf16.mxu0 %v2297
    %4894 = vmatpush1.bf16.msra.mxu0 %v2296
    %4895 = vmatprep.subr.bf16.mxu0 %v2305
    %4896 = vmatpush1.bf16.msra.mxu0 %v2304
    %4897 = vmatprep.subr.bf16.mxu0 %v2313
    %4898 = vmatpush1.bf16.msra.mxu0 %v2312
    %4899 = vmatprep.subr.bf16.mxu0 %v2321
    %4900 = vmatpush1.bf16.msra.mxu0 %v2320
    %4901 = vmatprep.subr.bf16.mxu0 %v2329
    %4902 = vmatpush1.bf16.msra.mxu0 %v2328
    %4903 = vmatprep.subr.bf16.mxu0 %v2337
    %4904 = vmatpush1.bf16.msra.mxu0 %v2336
    %4905 = vmatprep.subr.bf16.mxu0 %v2345
    %4906 = vmatpush1.bf16.msra.mxu0 %v2344
    %4907 = vmatprep.subr.bf16.mxu0 %v2353
    %4908 = vmatpush1.bf16.msra.mxu0 %v2352
    %4909 = vmatprep.subr.bf16.mxu0 %v2361
    %4910 = vmatpush1.bf16.msra.mxu0 %v2360
    %4911 = vmatprep.subr.bf16.mxu0 %v2369
    %4912 = vmatpush1.bf16.msra.mxu0 %v2368
    %4913 = vmatprep.subr.bf16.mxu0 %v2377
    %4914 = vmatpush1.bf16.msra.mxu0 %v2376
    %4915 = vmatprep.subr.bf16.mxu0 %v2385
    %4916 = vmatpush1.bf16.msra.mxu0 %v2384
    %4917 = vmatprep.mubr.bf16.mxu0 %v4839
    %4918 = vmatmul.mubr.bf16.gmra.mrb[0].mxu0 %v4838
    %v4919 = vpop.f32.mrb[0].mxu0
    %v4920 = vadd.f32 %v4879, %v4919
    %v4921 = vpop.f32.mrb[0].mxu0
    %v4922 = vadd.f32 %v4881, %v4921
    %v4923 = vpop.f32.mrb[0].mxu0
    %v4924 = vpop.f32.mrb[0].mxu0
    %4925 = vdwg.mxu0
    %4926 = vmatprep.subr.bf16.mxu0 %v2393
    %4927 = vmatpush1.bf16.msra.mxu0 %v2392
    %4928 = vmatprep.subr.bf16.mxu0 %v2401
    %4929 = vmatpush1.bf16.msra.mxu0 %v2400
    %4930 = vmatprep.subr.bf16.mxu0 %v2409
    %4931 = vmatpush1.bf16.msra.mxu0 %v2408
    %4932 = vmatprep.subr.bf16.mxu0 %v2417
    %4933 = vmatpush1.bf16.msra.mxu0 %v2416
    %4934 = vmatprep.subr.bf16.mxu0 %v2425
    %4935 = vmatpush1.bf16.msra.mxu0 %v2424
    %4936 = vmatprep.subr.bf16.mxu0 %v2433
    %4937 = vmatpush1.bf16.msra.mxu0 %v2432
    %4938 = vmatprep.subr.bf16.mxu0 %v2441
    %4939 = vmatpush1.bf16.msra.mxu0 %v2440
    %4940 = vmatprep.subr.bf16.mxu0 %v2449
    %4941 = vmatpush1.bf16.msra.mxu0 %v2448
    %4942 = vmatprep.subr.bf16.mxu0 %v2457
    %4943 = vmatpush1.bf16.msra.mxu0 %v2456
    %4944 = vmatprep.subr.bf16.mxu0 %v2465
    %4945 = vmatpush1.bf16.msra.mxu0 %v2464
    %4946 = vmatprep.subr.bf16.mxu0 %v2473
    %4947 = vmatpush1.bf16.msra.mxu0 %v2472
    %4948 = vmatprep.subr.bf16.mxu0 %v2481
    %4949 = vmatpush1.bf16.msra.mxu0 %v2480
    %4950 = vmatprep.subr.bf16.mxu0 %v2489
    %4951 = vmatpush1.bf16.msra.mxu0 %v2488
    %4952 = vmatprep.subr.bf16.mxu0 %v2497
    %4953 = vmatpush1.bf16.msra.mxu0 %v2496
    %4954 = vmatprep.subr.bf16.mxu0 %v2505
    %4955 = vmatpush1.bf16.msra.mxu0 %v2504
    %4956 = vmatprep.subr.bf16.mxu0 %v2513
    %4957 = vmatpush1.bf16.msra.mxu0 %v2512
    %4958 = vmatprep.mubr.bf16.mxu0 %v4841
    %4959 = vmatmul.mubr.bf16.gmra.mrb[0].mxu0 %v4840
    %v4960 = vpop.f32.mrb[0].mxu0
    %v4961 = vadd.f32 %v4920, %v4960
    %v4962 = vpop.f32.mrb[0].mxu0
    %v4963 = vadd.f32 %v4922, %v4962
    %v4964 = vpop.f32.mrb[0].mxu0
    %v4965 = vpop.f32.mrb[0].mxu0
    %4966 = vdwg.mxu0
    %4967 = vmatprep.subr.bf16.mxu0 %v2521
    %4968 = vmatpush1.bf16.msra.mxu0 %v2520
    %4969 = vmatprep.subr.bf16.mxu0 %v2529
    %4970 = vmatpush1.bf16.msra.mxu0 %v2528
    %4971 = vmatprep.subr.bf16.mxu0 %v2537
    %4972 = vmatpush1.bf16.msra.mxu0 %v2536
    %4973 = vmatprep.subr.bf16.mxu0 %v2545
    %4974 = vmatpush1.bf16.msra.mxu0 %v2544
    %4975 = vmatprep.subr.bf16.mxu0 %v2553
    %4976 = vmatpush1.bf16.msra.mxu0 %v2552
    %4977 = vmatprep.subr.bf16.mxu0 %v2561
    %4978 = vmatpush1.bf16.msra.mxu0 %v2560
    %4979 = vmatprep.subr.bf16.mxu0 %v2569
    %4980 = vmatpush1.bf16.msra.mxu0 %v2568
    %4981 = vmatprep.subr.bf16.mxu0 %v2577
    %4982 = vmatpush1.bf16.msra.mxu0 %v2576
    %4983 = vmatprep.subr.bf16.mxu0 %v2585
    %4984 = vmatpush1.bf16.msra.mxu0 %v2584
    %4985 = vmatprep.subr.bf16.mxu0 %v2593
    %4986 = vmatpush1.bf16.msra.mxu0 %v2592
    %4987 = vmatprep.subr.bf16.mxu0 %v2601
    %4988 = vmatpush1.bf16.msra.mxu0 %v2600
    %4989 = vmatprep.subr.bf16.mxu0 %v2609
    %4990 = vmatpush1.bf16.msra.mxu0 %v2608
    %4991 = vmatprep.subr.bf16.mxu0 %v2617
    %4992 = vmatpush1.bf16.msra.mxu0 %v2616
    %4993 = vmatprep.subr.bf16.mxu0 %v2625
    %4994 = vmatpush1.bf16.msra.mxu0 %v2624
    %4995 = vmatprep.subr.bf16.mxu0 %v2633
    %4996 = vmatpush1.bf16.msra.mxu0 %v2632
    %4997 = vmatprep.subr.bf16.mxu0 %v2641
    %4998 = vmatpush1.bf16.msra.mxu0 %v2640
    %4999 = vmatprep.mubr.bf16.mxu0 %v4843
    %5000 = vmatmul.mubr.bf16.gmra.mrb[0].mxu0 %v4842
    %v5001 = vpop.f32.mrb[0].mxu0
    %v5002 = vadd.f32 %v4961, %v5001
    %v5003 = vpop.f32.mrb[0].mxu0
    %v5004 = vadd.f32 %v4963, %v5003
    %v5005 = vpop.f32.mrb[0].mxu0
    %v5006 = vpop.f32.mrb[0].mxu0
    %5007 = vdwg.mxu0
    %5008 = vmatprep.subr.bf16.mxu0 %v2139
    %5009 = vmatpush1.bf16.msra.mxu0 %v2138
    %5010 = vmatprep.subr.bf16.mxu0 %v2147
    %5011 = vmatpush1.bf16.msra.mxu0 %v2146
    %5012 = vmatprep.subr.bf16.mxu0 %v2155
    %5013 = vmatpush1.bf16.msra.mxu0 %v2154
    %5014 = vmatprep.subr.bf16.mxu0 %v2163
    %5015 = vmatpush1.bf16.msra.mxu0 %v2162
    %5016 = vmatprep.subr.bf16.mxu0 %v2171
    %5017 = vmatpush1.bf16.msra.mxu0 %v2170
    %5018 = vmatprep.subr.bf16.mxu0 %v2179
    %5019 = vmatpush1.bf16.msra.mxu0 %v2178
    %5020 = vmatprep.subr.bf16.mxu0 %v2187
    %5021 = vmatpush1.bf16.msra.mxu0 %v2186
    %5022 = vmatprep.subr.bf16.mxu0 %v2195
    %5023 = vmatpush1.bf16.msra.mxu0 %v2194
    %5024 = vmatprep.subr.bf16.mxu0 %v2203
    %5025 = vmatpush1.bf16.msra.mxu0 %v2202
    %5026 = vmatprep.subr.bf16.mxu0 %v2211
    %5027 = vmatpush1.bf16.msra.mxu0 %v2210
    %5028 = vmatprep.subr.bf16.mxu0 %v2219
    %5029 = vmatpush1.bf16.msra.mxu0 %v2218
    %5030 = vmatprep.subr.bf16.mxu0 %v2227
    %5031 = vmatpush1.bf16.msra.mxu0 %v2226
    %5032 = vmatprep.subr.bf16.mxu0 %v2235
    %5033 = vmatpush1.bf16.msra.mxu0 %v2234
    %5034 = vmatprep.subr.bf16.mxu0 %v2243
    %5035 = vmatpush1.bf16.msra.mxu0 %v2242
    %5036 = vmatprep.subr.bf16.mxu0 %v2251
    %5037 = vmatpush1.bf16.msra.mxu0 %v2250
    %5038 = vmatprep.subr.bf16.mxu0 %v2259
    %5039 = vmatpush1.bf16.msra.mxu0 %v2258
    %5040 = vmatprep.mubr.bf16.mxu0 %v4837
    %5041 = vmatmul.mubr.bf16.gmra.mrb[0].mxu0 %v4836
    %v5042 = vpop.f32.mrb[0].mxu0
    %v5043 = vadd.f32 0.0, %v5042
    %v5044 = vpop.f32.mrb[0].mxu0
    %v5045 = vadd.f32 0.0, %v5044
    %v5046 = vpop.f32.mrb[0].mxu0
    %v5047 = vpop.f32.mrb[0].mxu0
    %5048 = vdwg.mxu0
    %5049 = vmatprep.subr.bf16.mxu0 %v2267
    %5050 = vmatpush1.bf16.msra.mxu0 %v2266
    %5051 = vmatprep.subr.bf16.mxu0 %v2275
    %5052 = vmatpush1.bf16.msra.mxu0 %v2274
    %5053 = vmatprep.subr.bf16.mxu0 %v2283
    %5054 = vmatpush1.bf16.msra.mxu0 %v2282
    %5055 = vmatprep.subr.bf16.mxu0 %v2291
    %5056 = vmatpush1.bf16.msra.mxu0 %v2290
    %5057 = vmatprep.subr.bf16.mxu0 %v2299
    %5058 = vmatpush1.bf16.msra.mxu0 %v2298
    %5059 = vmatprep.subr.bf16.mxu0 %v2307
    %5060 = vmatpush1.bf16.msra.mxu0 %v2306
    %5061 = vmatprep.subr.bf16.mxu0 %v2315
    %5062 = vmatpush1.bf16.msra.mxu0 %v2314
    %5063 = vmatprep.subr.bf16.mxu0 %v2323
    %5064 = vmatpush1.bf16.msra.mxu0 %v2322
    %5065 = vmatprep.subr.bf16.mxu0 %v2331
    %5066 = vmatpush1.bf16.msra.mxu0 %v2330
    %5067 = vmatprep.subr.bf16.mxu0 %v2339
    %5068 = vmatpush1.bf16.msra.mxu0 %v2338
    %5069 = vmatprep.subr.bf16.mxu0 %v2347
    %5070 = vmatpush1.bf16.msra.mxu0 %v2346
    %5071 = vmatprep.subr.bf16.mxu0 %v2355
    %5072 = vmatpush1.bf16.msra.mxu0 %v2354
    %5073 = vmatprep.subr.bf16.mxu0 %v2363
    %5074 = vmatpush1.bf16.msra.mxu0 %v2362
    %5075 = vmatprep.subr.bf16.mxu0 %v2371
    %5076 = vmatpush1.bf16.msra.mxu0 %v2370
    %5077 = vmatprep.subr.bf16.mxu0 %v2379
    %5078 = vmatpush1.bf16.msra.mxu0 %v2378
    %5079 = vmatprep.subr.bf16.mxu0 %v2387
    %5080 = vmatpush1.bf16.msra.mxu0 %v2386
    %5081 = vmatprep.mubr.bf16.mxu0 %v4839
    %5082 = vmatmul.mubr.bf16.gmra.mrb[0].mxu0 %v4838
    %v5083 = vpop.f32.mrb[0].mxu0
    %v5084 = vadd.f32 %v5043, %v5083
    %v5085 = vpop.f32.mrb[0].mxu0
    %v5086 = vadd.f32 %v5045, %v5085
    %v5087 = vpop.f32.mrb[0].mxu0
    %v5088 = vpop.f32.mrb[0].mxu0
    %5089 = vdwg.mxu0
    %5090 = vmatprep.subr.bf16.mxu0 %v2395
    %5091 = vmatpush1.bf16.msra.mxu0 %v2394
    %5092 = vmatprep.subr.bf16.mxu0 %v2403
    %5093 = vmatpush1.bf16.msra.mxu0 %v2402
    %5094 = vmatprep.subr.bf16.mxu0 %v2411
    %5095 = vmatpush1.bf16.msra.mxu0 %v2410
    %5096 = vmatprep.subr.bf16.mxu0 %v2419
    %5097 = vmatpush1.bf16.msra.mxu0 %v2418
    %5098 = vmatprep.subr.bf16.mxu0 %v2427
    %5099 = vmatpush1.bf16.msra.mxu0 %v2426
    %5100 = vmatprep.subr.bf16.mxu0 %v2435
    %5101 = vmatpush1.bf16.msra.mxu0 %v2434
    %5102 = vmatprep.subr.bf16.mxu0 %v2443
    %5103 = vmatpush1.bf16.msra.mxu0 %v2442
    %5104 = vmatprep.subr.bf16.mxu0 %v2451
    %5105 = vmatpush1.bf16.msra.mxu0 %v2450
    %5106 = vmatprep.subr.bf16.mxu0 %v2459
    %5107 = vmatpush1.bf16.msra.mxu0 %v2458
    %5108 = vmatprep.subr.bf16.mxu0 %v2467
    %5109 = vmatpush1.bf16.msra.mxu0 %v2466
    %5110 = vmatprep.subr.bf16.mxu0 %v2475
    %5111 = vmatpush1.bf16.msra.mxu0 %v2474
    %5112 = vmatprep.subr.bf16.mxu0 %v2483
    %5113 = vmatpush1.bf16.msra.mxu0 %v2482
    %5114 = vmatprep.subr.bf16.mxu0 %v2491
    %5115 = vmatpush1.bf16.msra.mxu0 %v2490
    %5116 = vmatprep.subr.bf16.mxu0 %v2499
    %5117 = vmatpush1.bf16.msra.mxu0 %v2498
    %5118 = vmatprep.subr.bf16.mxu0 %v2507
    %5119 = vmatpush1.bf16.msra.mxu0 %v2506
    %5120 = vmatprep.subr.bf16.mxu0 %v2515
    %5121 = vmatpush1.bf16.msra.mxu0 %v2514
    %5122 = vmatprep.mubr.bf16.mxu0 %v4841
    %5123 = vmatmul.mubr.bf16.gmra.mrb[0].mxu0 %v4840
    %v5124 = vpop.f32.mrb[0].mxu0
    %v5125 = vadd.f32 %v5084, %v5124
    %v5126 = vpop.f32.mrb[0].mxu0
    %v5127 = vadd.f32 %v5086, %v5126
    %v5128 = vpop.f32.mrb[0].mxu0
    %v5129 = vpop.f32.mrb[0].mxu0
    %5130 = vdwg.mxu0
    %5131 = vmatprep.subr.bf16.mxu0 %v2523
    %5132 = vmatpush1.bf16.msra.mxu0 %v2522
    %5133 = vmatprep.subr.bf16.mxu0 %v2531
    %5134 = vmatpush1.bf16.msra.mxu0 %v2530
    %5135 = vmatprep.subr.bf16.mxu0 %v2539
    %5136 = vmatpush1.bf16.msra.mxu0 %v2538
    %5137 = vmatprep.subr.bf16.mxu0 %v2547
    %5138 = vmatpush1.bf16.msra.mxu0 %v2546
    %5139 = vmatprep.subr.bf16.mxu0 %v2555
    %5140 = vmatpush1.bf16.msra.mxu0 %v2554
    %5141 = vmatprep.subr.bf16.mxu0 %v2563
    %5142 = vmatpush1.bf16.msra.mxu0 %v2562
    %5143 = vmatprep.subr.bf16.mxu0 %v2571
    %5144 = vmatpush1.bf16.msra.mxu0 %v2570
    %5145 = vmatprep.subr.bf16.mxu0 %v2579
    %5146 = vmatpush1.bf16.msra.mxu0 %v2578
    %5147 = vmatprep.subr.bf16.mxu0 %v2587
    %5148 = vmatpush1.bf16.msra.mxu0 %v2586
    %5149 = vmatprep.subr.bf16.mxu0 %v2595
    %5150 = vmatpush1.bf16.msra.mxu0 %v2594
    %5151 = vmatprep.subr.bf16.mxu0 %v2603
    %5152 = vmatpush1.bf16.msra.mxu0 %v2602
    %5153 = vmatprep.subr.bf16.mxu0 %v2611
    %5154 = vmatpush1.bf16.msra.mxu0 %v2610
    %5155 = vmatprep.subr.bf16.mxu0 %v2619
    %5156 = vmatpush1.bf16.msra.mxu0 %v2618
    %5157 = vmatprep.subr.bf16.mxu0 %v2627
    %5158 = vmatpush1.bf16.msra.mxu0 %v2626
    %5159 = vmatprep.subr.bf16.mxu0 %v2635
    %5160 = vmatpush1.bf16.msra.mxu0 %v2634
    %5161 = vmatprep.subr.bf16.mxu0 %v2643
    %5162 = vmatpush1.bf16.msra.mxu0 %v2642
    %5163 = vmatprep.mubr.bf16.mxu0 %v4843
    %5164 = vmatmul.mubr.bf16.gmra.mrb[0].mxu0 %v4842
    %v5165 = vpop.f32.mrb[0].mxu0
    %v5166 = vadd.f32 %v5125, %v5165
    %v5167 = vpop.f32.mrb[0].mxu0
    %v5168 = vadd.f32 %v5127, %v5167
    %v5169 = vpop.f32.mrb[0].mxu0
    %v5170 = vpop.f32.mrb[0].mxu0
    %5171 = vdwg.mxu0
    %5172 = vmatprep.subr.bf16.mxu0 %v2141
    %5173 = vmatpush1.bf16.msra.mxu0 %v2140
    %5174 = vmatprep.subr.bf16.mxu0 %v2149
    %5175 = vmatpush1.bf16.msra.mxu0 %v2148
    %5176 = vmatprep.subr.bf16.mxu0 %v2157
    %5177 = vmatpush1.bf16.msra.mxu0 %v2156
    %5178 = vmatprep.subr.bf16.mxu0 %v2165
    %5179 = vmatpush1.bf16.msra.mxu0 %v2164
    %5180 = vmatprep.subr.bf16.mxu0 %v2173
    %5181 = vmatpush1.bf16.msra.mxu0 %v2172
    %5182 = vmatprep.subr.bf16.mxu0 %v2181
    %5183 = vmatpush1.bf16.msra.mxu0 %v2180
    %5184 = vmatprep.subr.bf16.mxu0 %v2189
    %5185 = vmatpush1.bf16.msra.mxu0 %v2188
    %5186 = vmatprep.subr.bf16.mxu0 %v2197
    %5187 = vmatpush1.bf16.msra.mxu0 %v2196
    %5188 = vmatprep.subr.bf16.mxu0 %v2205
    %5189 = vmatpush1.bf16.msra.mxu0 %v2204
    %5190 = vmatprep.subr.bf16.mxu0 %v2213
    %5191 = vmatpush1.bf16.msra.mxu0 %v2212
    %5192 = vmatprep.subr.bf16.mxu0 %v2221
    %5193 = vmatpush1.bf16.msra.mxu0 %v2220
    %5194 = vmatprep.subr.bf16.mxu0 %v2229
    %5195 = vmatpush1.bf16.msra.mxu0 %v2228
    %5196 = vmatprep.subr.bf16.mxu0 %v2237
    %5197 = vmatpush1.bf16.msra.mxu0 %v2236
    %5198 = vmatprep.subr.bf16.mxu0 %v2245
    %5199 = vmatpush1.bf16.msra.mxu0 %v2244
    %5200 = vmatprep.subr.bf16.mxu0 %v2253
    %5201 = vmatpush1.bf16.msra.mxu0 %v2252
    %5202 = vmatprep.subr.bf16.mxu0 %v2261
    %5203 = vmatpush1.bf16.msra.mxu0 %v2260
    %5204 = vmatprep.mubr.bf16.mxu0 %v4837
    %5205 = vmatmul.mubr.bf16.gmra.mrb[0].mxu0 %v4836
    %v5206 = vpop.f32.mrb[0].mxu0
    %v5207 = vadd.f32 0.0, %v5206
    %v5208 = vpop.f32.mrb[0].mxu0
    %v5209 = vadd.f32 0.0, %v5208
    %v5210 = vpop.f32.mrb[0].mxu0
    %v5211 = vpop.f32.mrb[0].mxu0
    %5212 = vdwg.mxu0
    %5213 = vmatprep.subr.bf16.mxu0 %v2269
    %5214 = vmatpush1.bf16.msra.mxu0 %v2268
    %5215 = vmatprep.subr.bf16.mxu0 %v2277
    %5216 = vmatpush1.bf16.msra.mxu0 %v2276
    %5217 = vmatprep.subr.bf16.mxu0 %v2285
    %5218 = vmatpush1.bf16.msra.mxu0 %v2284
    %5219 = vmatprep.subr.bf16.mxu0 %v2293
    %5220 = vmatpush1.bf16.msra.mxu0 %v2292
    %5221 = vmatprep.subr.bf16.mxu0 %v2301
    %5222 = vmatpush1.bf16.msra.mxu0 %v2300
    %5223 = vmatprep.subr.bf16.mxu0 %v2309
    %5224 = vmatpush1.bf16.msra.mxu0 %v2308
    %5225 = vmatprep.subr.bf16.mxu0 %v2317
    %5226 = vmatpush1.bf16.msra.mxu0 %v2316
    %5227 = vmatprep.subr.bf16.mxu0 %v2325
    %5228 = vmatpush1.bf16.msra.mxu0 %v2324
    %5229 = vmatprep.subr.bf16.mxu0 %v2333
    %5230 = vmatpush1.bf16.msra.mxu0 %v2332
    %5231 = vmatprep.subr.bf16.mxu0 %v2341
    %5232 = vmatpush1.bf16.msra.mxu0 %v2340
    %5233 = vmatprep.subr.bf16.mxu0 %v2349
    %5234 = vmatpush1.bf16.msra.mxu0 %v2348
    %5235 = vmatprep.subr.bf16.mxu0 %v2357
    %5236 = vmatpush1.bf16.msra.mxu0 %v2356
    %5237 = vmatprep.subr.bf16.mxu0 %v2365
    %5238 = vmatpush1.bf16.msra.mxu0 %v2364
    %5239 = vmatprep.subr.bf16.mxu0 %v2373
    %5240 = vmatpush1.bf16.msra.mxu0 %v2372
    %5241 = vmatprep.subr.bf16.mxu0 %v2381
    %5242 = vmatpush1.bf16.msra.mxu0 %v2380
    %5243 = vmatprep.subr.bf16.mxu0 %v2389
    %5244 = vmatpush1.bf16.msra.mxu0 %v2388
    %5245 = vmatprep.mubr.bf16.mxu0 %v4839
    %5246 = vmatmul.mubr.bf16.gmra.mrb[0].mxu0 %v4838
    %v5247 = vpop.f32.mrb[0].mxu0
    %v5248 = vadd.f32 %v5207, %v5247
    %v5249 = vpop.f32.mrb[0].mxu0
    %v5250 = vadd.f32 %v5209, %v5249
    %v5251 = vpop.f32.mrb[0].mxu0
    %v5252 = vpop.f32.mrb[0].mxu0
    %5253 = vdwg.mxu0
    %5254 = vmatprep.subr.bf16.mxu0 %v2397
    %5255 = vmatpush1.bf16.msra.mxu0 %v2396
    %5256 = vmatprep.subr.bf16.mxu0 %v2405
    %5257 = vmatpush1.bf16.msra.mxu0 %v2404
    %5258 = vmatprep.subr.bf16.mxu0 %v2413
    %5259 = vmatpush1.bf16.msra.mxu0 %v2412
    %5260 = vmatprep.subr.bf16.mxu0 %v2421
    %5261 = vmatpush1.bf16.msra.mxu0 %v2420
    %5262 = vmatprep.subr.bf16.mxu0 %v2429
    %5263 = vmatpush1.bf16.msra.mxu0 %v2428
    %5264 = vmatprep.subr.bf16.mxu0 %v2437
    %5265 = vmatpush1.bf16.msra.mxu0 %v2436
    %5266 = vmatprep.subr.bf16.mxu0 %v2445
    %5267 = vmatpush1.bf16.msra.mxu0 %v2444
    %5268 = vmatprep.subr.bf16.mxu0 %v2453
    %5269 = vmatpush1.bf16.msra.mxu0 %v2452
    %5270 = vmatprep.subr.bf16.mxu0 %v2461
    %5271 = vmatpush1.bf16.msra.mxu0 %v2460
    %5272 = vmatprep.subr.bf16.mxu0 %v2469
    %5273 = vmatpush1.bf16.msra.mxu0 %v2468
    %5274 = vmatprep.subr.bf16.mxu0 %v2477
    %5275 = vmatpush1.bf16.msra.mxu0 %v2476
    %5276 = vmatprep.subr.bf16.mxu0 %v2485
    %5277 = vmatpush1.bf16.msra.mxu0 %v2484
    %5278 = vmatprep.subr.bf16.mxu0 %v2493
    %5279 = vmatpush1.bf16.msra.mxu0 %v2492
    %5280 = vmatprep.subr.bf16.mxu0 %v2501
    %5281 = vmatpush1.bf16.msra.mxu0 %v2500
    %5282 = vmatprep.subr.bf16.mxu0 %v2509
    %5283 = vmatpush1.bf16.msra.mxu0 %v2508
    %5284 = vmatprep.subr.bf16.mxu0 %v2517
    %5285 = vmatpush1.bf16.msra.mxu0 %v2516
    %5286 = vmatprep.mubr.bf16.mxu0 %v4841
    %5287 = vmatmul.mubr.bf16.gmra.mrb[0].mxu0 %v4840
    %v5288 = vpop.f32.mrb[0].mxu0
    %v5289 = vadd.f32 %v5248, %v5288
    %v5290 = vpop.f32.mrb[0].mxu0
    %v5291 = vadd.f32 %v5250, %v5290
    %v5292 = vpop.f32.mrb[0].mxu0
    %v5293 = vpop.f32.mrb[0].mxu0
    %5294 = vdwg.mxu0
    %5295 = vmatprep.subr.bf16.mxu0 %v2525
    %5296 = vmatpush1.bf16.msra.mxu0 %v2524
    %5297 = vmatprep.subr.bf16.mxu0 %v2533
    %5298 = vmatpush1.bf16.msra.mxu0 %v2532
    %5299 = vmatprep.subr.bf16.mxu0 %v2541
    %5300 = vmatpush1.bf16.msra.mxu0 %v2540
    %5301 = vmatprep.subr.bf16.mxu0 %v2549
    %5302 = vmatpush1.bf16.msra.mxu0 %v2548
    %5303 = vmatprep.subr.bf16.mxu0 %v2557
    %5304 = vmatpush1.bf16.msra.mxu0 %v2556
    %5305 = vmatprep.subr.bf16.mxu0 %v2565
    %5306 = vmatpush1.bf16.msra.mxu0 %v2564
    %5307 = vmatprep.subr.bf16.mxu0 %v2573
    %5308 = vmatpush1.bf16.msra.mxu0 %v2572
    %5309 = vmatprep.subr.bf16.mxu0 %v2581
    %5310 = vmatpush1.bf16.msra.mxu0 %v2580
    %5311 = vmatprep.subr.bf16.mxu0 %v2589
    %5312 = vmatpush1.bf16.msra.mxu0 %v2588
    %5313 = vmatprep.subr.bf16.mxu0 %v2597
    %5314 = vmatpush1.bf16.msra.mxu0 %v2596
    %5315 = vmatprep.subr.bf16.mxu0 %v2605
    %5316 = vmatpush1.bf16.msra.mxu0 %v2604
    %5317 = vmatprep.subr.bf16.mxu0 %v2613
    %5318 = vmatpush1.bf16.msra.mxu0 %v2612
    %5319 = vmatprep.subr.bf16.mxu0 %v2621
    %5320 = vmatpush1.bf16.msra.mxu0 %v2620
    %5321 = vmatprep.subr.bf16.mxu0 %v2629
    %5322 = vmatpush1.bf16.msra.mxu0 %v2628
    %5323 = vmatprep.subr.bf16.mxu0 %v2637
    %5324 = vmatpush1.bf16.msra.mxu0 %v2636
    %5325 = vmatprep.subr.bf16.mxu0 %v2645
    %5326 = vmatpush1.bf16.msra.mxu0 %v2644
    %5327 = vmatprep.mubr.bf16.mxu0 %v4843
    %5328 = vmatmul.mubr.bf16.gmra.mrb[0].mxu0 %v4842
    %v5329 = vpop.f32.mrb[0].mxu0
    %v5330 = vadd.f32 %v5289, %v5329
    %v5331 = vpop.f32.mrb[0].mxu0
    %v5332 = vadd.f32 %v5291, %v5331
    %v5333 = vpop.f32.mrb[0].mxu0
    %v5334 = vpop.f32.mrb[0].mxu0
    %5335 = vdwg.mxu0
    %5336 = vmatprep.subr.bf16.mxu0 %v2143
    %5337 = vmatpush1.bf16.msra.mxu0 %v2142
    %5338 = vmatprep.subr.bf16.mxu0 %v2151
    %5339 = vmatpush1.bf16.msra.mxu0 %v2150
    %5340 = vmatprep.subr.bf16.mxu0 %v2159
    %5341 = vmatpush1.bf16.msra.mxu0 %v2158
    %5342 = vmatprep.subr.bf16.mxu0 %v2167
    %5343 = vmatpush1.bf16.msra.mxu0 %v2166
    %5344 = vmatprep.subr.bf16.mxu0 %v2175
    %5345 = vmatpush1.bf16.msra.mxu0 %v2174
    %5346 = vmatprep.subr.bf16.mxu0 %v2183
    %5347 = vmatpush1.bf16.msra.mxu0 %v2182
    %5348 = vmatprep.subr.bf16.mxu0 %v2191
    %5349 = vmatpush1.bf16.msra.mxu0 %v2190
    %5350 = vmatprep.subr.bf16.mxu0 %v2199
    %5351 = vmatpush1.bf16.msra.mxu0 %v2198
    %5352 = vmatprep.subr.bf16.mxu0 %v2207
    %5353 = vmatpush1.bf16.msra.mxu0 %v2206
    %5354 = vmatprep.subr.bf16.mxu0 %v2215
    %5355 = vmatpush1.bf16.msra.mxu0 %v2214
    %5356 = vmatprep.subr.bf16.mxu0 %v2223
    %5357 = vmatpush1.bf16.msra.mxu0 %v2222
    %5358 = vmatprep.subr.bf16.mxu0 %v2231
    %5359 = vmatpush1.bf16.msra.mxu0 %v2230
    %5360 = vmatprep.subr.bf16.mxu0 %v2239
    %5361 = vmatpush1.bf16.msra.mxu0 %v2238
    %5362 = vmatprep.subr.bf16.mxu0 %v2247
    %5363 = vmatpush1.bf16.msra.mxu0 %v2246
    %5364 = vmatprep.subr.bf16.mxu0 %v2255
    %5365 = vmatpush1.bf16.msra.mxu0 %v2254
    %5366 = vmatprep.subr.bf16.mxu0 %v2263
    %5367 = vmatpush1.bf16.msra.mxu0 %v2262
    %5368 = vmatprep.mubr.bf16.mxu0 %v4837
    %5369 = vmatmul.mubr.bf16.gmra.mrb[0].mxu0 %v4836
    %v5370 = vpop.f32.mrb[0].mxu0
    %v5371 = vadd.f32 0.0, %v5370
    %v5372 = vpop.f32.mrb[0].mxu0
    %v5373 = vadd.f32 0.0, %v5372
    %v5374 = vpop.f32.mrb[0].mxu0
    %v5375 = vpop.f32.mrb[0].mxu0
    %5376 = vdwg.mxu0
    %5377 = vmatprep.subr.bf16.mxu0 %v2271
    %5378 = vmatpush1.bf16.msra.mxu0 %v2270
    %5379 = vmatprep.subr.bf16.mxu0 %v2279
    %5380 = vmatpush1.bf16.msra.mxu0 %v2278
    %5381 = vmatprep.subr.bf16.mxu0 %v2287
    %5382 = vmatpush1.bf16.msra.mxu0 %v2286
    %5383 = vmatprep.subr.bf16.mxu0 %v2295
    %5384 = vmatpush1.bf16.msra.mxu0 %v2294
    %5385 = vmatprep.subr.bf16.mxu0 %v2303
    %5386 = vmatpush1.bf16.msra.mxu0 %v2302
    %5387 = vmatprep.subr.bf16.mxu0 %v2311
    %5388 = vmatpush1.bf16.msra.mxu0 %v2310
    %5389 = vmatprep.subr.bf16.mxu0 %v2319
    %5390 = vmatpush1.bf16.msra.mxu0 %v2318
    %5391 = vmatprep.subr.bf16.mxu0 %v2327
    %5392 = vmatpush1.bf16.msra.mxu0 %v2326
    %5393 = vmatprep.subr.bf16.mxu0 %v2335
    %5394 = vmatpush1.bf16.msra.mxu0 %v2334
    %5395 = vmatprep.subr.bf16.mxu0 %v2343
    %5396 = vmatpush1.bf16.msra.mxu0 %v2342
    %5397 = vmatprep.subr.bf16.mxu0 %v2351
    %5398 = vmatpush1.bf16.msra.mxu0 %v2350
    %5399 = vmatprep.subr.bf16.mxu0 %v2359
    %5400 = vmatpush1.bf16.msra.mxu0 %v2358
    %5401 = vmatprep.subr.bf16.mxu0 %v2367
    %5402 = vmatpush1.bf16.msra.mxu0 %v2366
    %5403 = vmatprep.subr.bf16.mxu0 %v2375
    %5404 = vmatpush1.bf16.msra.mxu0 %v2374
    %5405 = vmatprep.subr.bf16.mxu0 %v2383
    %5406 = vmatpush1.bf16.msra.mxu0 %v2382
    %5407 = vmatprep.subr.bf16.mxu0 %v2391
    %5408 = vmatpush1.bf16.msra.mxu0 %v2390
    %5409 = vmatprep.mubr.bf16.mxu0 %v4839
    %5410 = vmatmul.mubr.bf16.gmra.mrb[0].mxu0 %v4838
    %v5411 = vpop.f32.mrb[0].mxu0
    %v5412 = vadd.f32 %v5371, %v5411
    %v5413 = vpop.f32.mrb[0].mxu0
    %v5414 = vadd.f32 %v5373, %v5413
    %v5415 = vpop.f32.mrb[0].mxu0
    %v5416 = vpop.f32.mrb[0].mxu0
    %5417 = vdwg.mxu0
    %5418 = vmatprep.subr.bf16.mxu0 %v2399
    %5419 = vmatpush1.bf16.msra.mxu0 %v2398
    %5420 = vmatprep.subr.bf16.mxu0 %v2407
    %5421 = vmatpush1.bf16.msra.mxu0 %v2406
    %5422 = vmatprep.subr.bf16.mxu0 %v2415
    %5423 = vmatpush1.bf16.msra.mxu0 %v2414
    %5424 = vmatprep.subr.bf16.mxu0 %v2423
    %5425 = vmatpush1.bf16.msra.mxu0 %v2422
    %5426 = vmatprep.subr.bf16.mxu0 %v2431
    %5427 = vmatpush1.bf16.msra.mxu0 %v2430
    %5428 = vmatprep.subr.bf16.mxu0 %v2439
    %5429 = vmatpush1.bf16.msra.mxu0 %v2438
    %5430 = vmatprep.subr.bf16.mxu0 %v2447
    %5431 = vmatpush1.bf16.msra.mxu0 %v2446
    %5432 = vmatprep.subr.bf16.mxu0 %v2455
    %5433 = vmatpush1.bf16.msra.mxu0 %v2454
    %5434 = vmatprep.subr.bf16.mxu0 %v2463
    %5435 = vmatpush1.bf16.msra.mxu0 %v2462
    %5436 = vmatprep.subr.bf16.mxu0 %v2471
    %5437 = vmatpush1.bf16.msra.mxu0 %v2470
    %5438 = vmatprep.subr.bf16.mxu0 %v2479
    %5439 = vmatpush1.bf16.msra.mxu0 %v2478
    %5440 = vmatprep.subr.bf16.mxu0 %v2487
    %5441 = vmatpush1.bf16.msra.mxu0 %v2486
    %5442 = vmatprep.subr.bf16.mxu0 %v2495
    %5443 = vmatpush1.bf16.msra.mxu0 %v2494
    %5444 = vmatprep.subr.bf16.mxu0 %v2503
    %5445 = vmatpush1.bf16.msra.mxu0 %v2502
    %5446 = vmatprep.subr.bf16.mxu0 %v2511
    %5447 = vmatpush1.bf16.msra.mxu0 %v2510
    %5448 = vmatprep.subr.bf16.mxu0 %v2519
    %5449 = vmatpush1.bf16.msra.mxu0 %v2518
    %5450 = vmatprep.mubr.bf16.mxu0 %v4841
    %5451 = vmatmul.mubr.bf16.gmra.mrb[0].mxu0 %v4840
    %v5452 = vpop.f32.mrb[0].mxu0
    %v5453 = vadd.f32 %v5412, %v5452
    %v5454 = vpop.f32.mrb[0].mxu0
    %v5455 = vadd.f32 %v5414, %v5454
    %v5456 = vpop.f32.mrb[0].mxu0
    %v5457 = vpop.f32.mrb[0].mxu0
    %5458 = vdwg.mxu0
    %5459 = vmatprep.subr.bf16.mxu0 %v2527
    %5460 = vmatpush1.bf16.msra.mxu0 %v2526
    %5461 = vmatprep.subr.bf16.mxu0 %v2535
    %5462 = vmatpush1.bf16.msra.mxu0 %v2534
    %5463 = vmatprep.subr.bf16.mxu0 %v2543
    %5464 = vmatpush1.bf16.msra.mxu0 %v2542
    %5465 = vmatprep.subr.bf16.mxu0 %v2551
    %5466 = vmatpush1.bf16.msra.mxu0 %v2550
    %5467 = vmatprep.subr.bf16.mxu0 %v2559
    %5468 = vmatpush1.bf16.msra.mxu0 %v2558
    %5469 = vmatprep.subr.bf16.mxu0 %v2567
    %5470 = vmatpush1.bf16.msra.mxu0 %v2566
    %5471 = vmatprep.subr.bf16.mxu0 %v2575
    %5472 = vmatpush1.bf16.msra.mxu0 %v2574
    %5473 = vmatprep.subr.bf16.mxu0 %v2583
    %5474 = vmatpush1.bf16.msra.mxu0 %v2582
    %5475 = vmatprep.subr.bf16.mxu0 %v2591
    %5476 = vmatpush1.bf16.msra.mxu0 %v2590
    %5477 = vmatprep.subr.bf16.mxu0 %v2599
    %5478 = vmatpush1.bf16.msra.mxu0 %v2598
    %5479 = vmatprep.subr.bf16.mxu0 %v2607
    %5480 = vmatpush1.bf16.msra.mxu0 %v2606
    %5481 = vmatprep.subr.bf16.mxu0 %v2615
    %5482 = vmatpush1.bf16.msra.mxu0 %v2614
    %5483 = vmatprep.subr.bf16.mxu0 %v2623
    %5484 = vmatpush1.bf16.msra.mxu0 %v2622
    %5485 = vmatprep.subr.bf16.mxu0 %v2631
    %5486 = vmatpush1.bf16.msra.mxu0 %v2630
    %5487 = vmatprep.subr.bf16.mxu0 %v2639
    %5488 = vmatpush1.bf16.msra.mxu0 %v2638
    %5489 = vmatprep.subr.bf16.mxu0 %v2647
    %5490 = vmatpush1.bf16.msra.mxu0 %v2646
    %5491 = vmatprep.mubr.bf16.mxu0 %v4843
    %5492 = vmatmul.mubr.bf16.gmra.mrb[0].mxu0 %v4842
    %v5493 = vpop.f32.mrb[0].mxu0
    %v5494 = vadd.f32 %v5453, %v5493
    %v5495 = vpop.f32.mrb[0].mxu0
    %v5496 = vadd.f32 %v5455, %v5495
    %v5497 = vpop.f32.mrb[0].mxu0
    %v5498 = vpop.f32.mrb[0].mxu0
    %5499 = vdwg.mxu0
    %v5500 = vstv %s4789
    %v5501 = vmul.f32 %v5500, %v4787
    %v5502 = vmul.f32 %v5500, %v4788
    %v5503 = vstv %s4790
    %v5504 = vmul.f32 %v5503, %v5002
    %v5505 = vmul.f32 %v5503, %v5004
    %v5506 = vmul.f32 %v5503, %v5166
    %v5507 = vmul.f32 %v5503, %v5168
    %v5508 = vmul.f32 %v5503, %v5330
    %v5509 = vmul.f32 %v5503, %v5332
    %v5510 = vmul.f32 %v5503, %v5494
    %v5511 = vmul.f32 %v5503, %v5496
    %v5520 = vcombine.low %v5504, %v5505
    %v5521 = vcombine.low %v5506, %v5507
    %v5523 = vunpack.c.l.s4 1983009808
    %v5524 = vunpack.c.0.s8 %v5523
    %v5525 = vlaneseq
    %v5526 = vshrl.u32 %v5525, 7
    %v5527 = vsub.s32 %v5524, %v5526
    %v5528 = vrot.slane %v5520, %v5527
    %v5530 = vunpack.c.l.s4 1983009808
    %v5531 = vunpack.c.0.s8 %v5530
    %v5532 = vlaneseq
    %v5533 = vshrl.u32 %v5532, 7
    %v5534 = vsub.s32 %v5531, %v5533
    %v5535 = vrot.slane %v5521, %v5534
    %v5536 = vcombine.low %v5528, %v5535
    %v5537 = vcombine.low %v5508, %v5509
    %v5538 = vcombine.low %v5510, %v5511
    %v5540 = vunpack.c.l.s4 1983009808
    %v5541 = vunpack.c.0.s8 %v5540
    %v5542 = vlaneseq
    %v5543 = vshrl.u32 %v5542, 7
    %v5544 = vsub.s32 %v5541, %v5543
    %v5545 = vrot.slane %v5537, %v5544
    %v5547 = vunpack.c.l.s4 1983009808
    %v5548 = vunpack.c.0.s8 %v5547
    %v5549 = vlaneseq
    %v5550 = vshrl.u32 %v5549, 7
    %v5551 = vsub.s32 %v5548, %v5550
    %v5552 = vrot.slane %v5538, %v5551
    %v5553 = vcombine.low %v5545, %v5552
    %v5556 = vadd.f32 %v5501, %v5536
    %v5557 = vadd.f32 %v5502, %v5553
    %v5558 = vstv %s4791
    %v5559 = vmul.f32 %v5558, %v30
    %v5561 = vlaneseq
    %v5562 = vshrl.u32 %v5561, 7
    %v5563 = vsub.s32 0, %v5562
    %v5564 = vrot.slane %v5559, %v5563
    %v5565 = vlaneseq
    %v5566 = vshrl.u32 %v5565, 7
    %v5567 = vsub.s32 1, %v5566
    %v5568 = vrot.slane %v5559, %v5567
    %v5569 = vlaneseq
    %v5570 = vshrl.u32 %v5569, 7
    %v5571 = vsub.s32 2, %v5570
    %v5572 = vrot.slane %v5559, %v5571
    %v5573 = vlaneseq
    %v5574 = vshrl.u32 %v5573, 7
    %v5575 = vsub.s32 3, %v5574
    %v5576 = vrot.slane %v5559, %v5575
    %v5577 = vlaneseq
    %v5578 = vshrl.u32 %v5577, 7
    %v5579 = vsub.s32 4, %v5578
    %v5580 = vrot.slane %v5559, %v5579
    %v5581 = vlaneseq
    %v5582 = vshrl.u32 %v5581, 7
    %v5583 = vsub.s32 5, %v5582
    %v5584 = vrot.slane %v5559, %v5583
    %v5585 = vlaneseq
    %v5586 = vshrl.u32 %v5585, 7
    %v5587 = vsub.s32 6, %v5586
    %v5588 = vrot.slane %v5559, %v5587
    %v5589 = vlaneseq
    %v5590 = vshrl.u32 %v5589, 7
    %v5591 = vsub.s32 7, %v5590
    %v5592 = vrot.slane %v5559, %v5591
    %v5593 = vcombine.low %v5564, %v5568
    %v5594 = vcombine.low %v5572, %v5576
    %v5596 = vunpack.c.l.s4 1983009808
    %v5597 = vunpack.c.0.s8 %v5596
    %v5598 = vlaneseq
    %v5599 = vshrl.u32 %v5598, 7
    %v5600 = vsub.s32 %v5597, %v5599
    %v5601 = vrot.slane %v5593, %v5600
    %v5603 = vunpack.c.l.s4 1983009808
    %v5604 = vunpack.c.0.s8 %v5603
    %v5605 = vlaneseq
    %v5606 = vshrl.u32 %v5605, 7
    %v5607 = vsub.s32 %v5604, %v5606
    %v5608 = vrot.slane %v5594, %v5607
    %v5609 = vcombine.low %v5601, %v5608
    %v5610 = vcombine.low %v5580, %v5584
    %v5611 = vcombine.low %v5588, %v5592
    %v5613 = vunpack.c.l.s4 1983009808
    %v5614 = vunpack.c.0.s8 %v5613
    %v5615 = vlaneseq
    %v5616 = vshrl.u32 %v5615, 7
    %v5617 = vsub.s32 %v5614, %v5616
    %v5618 = vrot.slane %v5610, %v5617
    %v5620 = vunpack.c.l.s4 1983009808
    %v5621 = vunpack.c.0.s8 %v5620
    %v5622 = vlaneseq
    %v5623 = vshrl.u32 %v5622, 7
    %v5624 = vsub.s32 %v5621, %v5623
    %v5625 = vrot.slane %v5611, %v5624
    %v5626 = vcombine.low %v5618, %v5625
    %v5629 = vadd.f32 %v5556, %v5609
    %v5630 = vadd.f32 %v5557, %v5626
    %s5631 = sld [smem:[#allocation2 + $0xc]]
    %s5632 = sld [smem:[#allocation2 + $0xd]]
    %s5633 = sld [smem:[#allocation2 + $0xe]]
    %v5636 = vcombine.high %v5629, %v5629
    %v5638 = vunpack.c.l.s4 1983009808
    %v5639 = vunpack.c.0.s8 %v5638
    %v5640 = vlaneseq
    %v5641 = vshrl.u32 %v5640, 7
    %v5642 = vsub.s32 %v5639, %v5641
    %v5643 = vrot.slane %v5629, %v5642
    %v5645 = vunpack.c.l.s4 1983009808
    %v5646 = vunpack.c.0.s8 %v5645
    %v5647 = vlaneseq
    %v5648 = vshrl.u32 %v5647, 7
    %v5649 = vsub.s32 %v5646, %v5648
    %v5650 = vrot.slane %v5636, %v5649
    %v5651 = vcombine.high %v5643, %v5643
    %v5652 = vcombine.high %v5650, %v5650
    %v5653 = vcombine.high %v5630, %v5630
    %v5655 = vunpack.c.l.s4 1983009808
    %v5656 = vunpack.c.0.s8 %v5655
    %v5657 = vlaneseq
    %v5658 = vshrl.u32 %v5657, 7
    %v5659 = vsub.s32 %v5656, %v5658
    %v5660 = vrot.slane %v5630, %v5659
    %v5662 = vunpack.c.l.s4 1983009808
    %v5663 = vunpack.c.0.s8 %v5662
    %v5664 = vlaneseq
    %v5665 = vshrl.u32 %v5664, 7
    %v5666 = vsub.s32 %v5663, %v5665
    %v5667 = vrot.slane %v5653, %v5666
    %v5668 = vcombine.high %v5660, %v5660
    %v5669 = vcombine.high %v5667, %v5667
    %v5678 = vpack.c.bf16 %v5643, %v5643
    %v5679 = vpack.c.bf16 %v5651, %v5651
    %v5680 = vpack.c.bf16 %v5650, %v5650
    %v5681 = vpack.c.bf16 %v5652, %v5652
    %v5682 = vpack.c.bf16 %v5660, %v5660
    %v5683 = vpack.c.bf16 %v5668, %v5668
    %v5684 = vpack.c.bf16 %v5667, %v5667
    %v5685 = vpack.c.bf16 %v5669, %v5669
    %5686 = vmatprep.subr.bf16.mxu0 %v2137
    %5687 = vmatpush1.bf16.msra.mxu0 %v2136
    %5688 = vmatprep.subr.bf16.mxu0 %v2145
    %5689 = vmatpush1.bf16.msra.mxu0 %v2144
    %5690 = vmatprep.subr.bf16.mxu0 %v2153
    %5691 = vmatpush1.bf16.msra.mxu0 %v2152
    %5692 = vmatprep.subr.bf16.mxu0 %v2161
    %5693 = vmatpush1.bf16.msra.mxu0 %v2160
    %5694 = vmatprep.subr.bf16.mxu0 %v2169
    %5695 = vmatpush1.bf16.msra.mxu0 %v2168
    %5696 = vmatprep.subr.bf16.mxu0 %v2177
    %5697 = vmatpush1.bf16.msra.mxu0 %v2176
    %5698 = vmatprep.subr.bf16.mxu0 %v2185
    %5699 = vmatpush1.bf16.msra.mxu0 %v2184
    %5700 = vmatprep.subr.bf16.mxu0 %v2193
    %5701 = vmatpush1.bf16.msra.mxu0 %v2192
    %5702 = vmatprep.subr.bf16.mxu0 %v2201
    %5703 = vmatpush1.bf16.msra.mxu0 %v2200
    %5704 = vmatprep.subr.bf16.mxu0 %v2209
    %5705 = vmatpush1.bf16.msra.mxu0 %v2208
    %5706 = vmatprep.subr.bf16.mxu0 %v2217
    %5707 = vmatpush1.bf16.msra.mxu0 %v2216
    %5708 = vmatprep.subr.bf16.mxu0 %v2225
    %5709 = vmatpush1.bf16.msra.mxu0 %v2224
    %5710 = vmatprep.subr.bf16.mxu0 %v2233
    %5711 = vmatpush1.bf16.msra.mxu0 %v2232
    %5712 = vmatprep.subr.bf16.mxu0 %v2241
    %5713 = vmatpush1.bf16.msra.mxu0 %v2240
    %5714 = vmatprep.subr.bf16.mxu0 %v2249
    %5715 = vmatpush1.bf16.msra.mxu0 %v2248
    %5716 = vmatprep.subr.bf16.mxu0 %v2257
    %5717 = vmatpush1.bf16.msra.mxu0 %v2256
    %5718 = vmatprep.mubr.bf16.mxu0 %v5679
    %5719 = vmatmul.mubr.bf16.gmra.mrb[0].mxu0 %v5678
    %v5720 = vpop.f32.mrb[0].mxu0
    %v5721 = vadd.f32 0.0, %v5720
    %v5722 = vpop.f32.mrb[0].mxu0
    %v5723 = vadd.f32 0.0, %v5722
    %v5724 = vpop.f32.mrb[0].mxu0
    %v5725 = vpop.f32.mrb[0].mxu0
    %5726 = vdwg.mxu0
    %5727 = vmatprep.subr.bf16.mxu0 %v2265
    %5728 = vmatpush1.bf16.msra.mxu0 %v2264
    %5729 = vmatprep.subr.bf16.mxu0 %v2273
    %5730 = vmatpush1.bf16.msra.mxu0 %v2272
    %5731 = vmatprep.subr.bf16.mxu0 %v2281
    %5732 = vmatpush1.bf16.msra.mxu0 %v2280
    %5733 = vmatprep.subr.bf16.mxu0 %v2289
    %5734 = vmatpush1.bf16.msra.mxu0 %v2288
    %5735 = vmatprep.subr.bf16.mxu0 %v2297
    %5736 = vmatpush1.bf16.msra.mxu0 %v2296
    %5737 = vmatprep.subr.bf16.mxu0 %v2305
    %5738 = vmatpush1.bf16.msra.mxu0 %v2304
    %5739 = vmatprep.subr.bf16.mxu0 %v2313
    %5740 = vmatpush1.bf16.msra.mxu0 %v2312
    %5741 = vmatprep.subr.bf16.mxu0 %v2321
    %5742 = vmatpush1.bf16.msra.mxu0 %v2320
    %5743 = vmatprep.subr.bf16.mxu0 %v2329
    %5744 = vmatpush1.bf16.msra.mxu0 %v2328
    %5745 = vmatprep.subr.bf16.mxu0 %v2337
    %5746 = vmatpush1.bf16.msra.mxu0 %v2336
    %5747 = vmatprep.subr.bf16.mxu0 %v2345
    %5748 = vmatpush1.bf16.msra.mxu0 %v2344
    %5749 = vmatprep.subr.bf16.mxu0 %v2353
    %5750 = vmatpush1.bf16.msra.mxu0 %v2352
    %5751 = vmatprep.subr.bf16.mxu0 %v2361
    %5752 = vmatpush1.bf16.msra.mxu0 %v2360
    %5753 = vmatprep.subr.bf16.mxu0 %v2369
    %5754 = vmatpush1.bf16.msra.mxu0 %v2368
    %5755 = vmatprep.subr.bf16.mxu0 %v2377
    %5756 = vmatpush1.bf16.msra.mxu0 %v2376
    %5757 = vmatprep.subr.bf16.mxu0 %v2385
    %5758 = vmatpush1.bf16.msra.mxu0 %v2384
    %5759 = vmatprep.mubr.bf16.mxu0 %v5681
    %5760 = vmatmul.mubr.bf16.gmra.mrb[0].mxu0 %v5680
    %v5761 = vpop.f32.mrb[0].mxu0
    %v5762 = vadd.f32 %v5721, %v5761
    %v5763 = vpop.f32.mrb[0].mxu0
    %v5764 = vadd.f32 %v5723, %v5763
    %v5765 = vpop.f32.mrb[0].mxu0
    %v5766 = vpop.f32.mrb[0].mxu0
    %5767 = vdwg.mxu0
    %5768 = vmatprep.subr.bf16.mxu0 %v2393
    %5769 = vmatpush1.bf16.msra.mxu0 %v2392
    %5770 = vmatprep.subr.bf16.mxu0 %v2401
    %5771 = vmatpush1.bf16.msra.mxu0 %v2400
    %5772 = vmatprep.subr.bf16.mxu0 %v2409
    %5773 = vmatpush1.bf16.msra.mxu0 %v2408
    %5774 = vmatprep.subr.bf16.mxu0 %v2417
    %5775 = vmatpush1.bf16.msra.mxu0 %v2416
    %5776 = vmatprep.subr.bf16.mxu0 %v2425
    %5777 = vmatpush1.bf16.msra.mxu0 %v2424
    %5778 = vmatprep.subr.bf16.mxu0 %v2433
    %5779 = vmatpush1.bf16.msra.mxu0 %v2432
    %5780 = vmatprep.subr.bf16.mxu0 %v2441
    %5781 = vmatpush1.bf16.msra.mxu0 %v2440
    %5782 = vmatprep.subr.bf16.mxu0 %v2449
    %5783 = vmatpush1.bf16.msra.mxu0 %v2448
    %5784 = vmatprep.subr.bf16.mxu0 %v2457
    %5785 = vmatpush1.bf16.msra.mxu0 %v2456
    %5786 = vmatprep.subr.bf16.mxu0 %v2465
    %5787 = vmatpush1.bf16.msra.mxu0 %v2464
    %5788 = vmatprep.subr.bf16.mxu0 %v2473
    %5789 = vmatpush1.bf16.msra.mxu0 %v2472
    %5790 = vmatprep.subr.bf16.mxu0 %v2481
    %5791 = vmatpush1.bf16.msra.mxu0 %v2480
    %5792 = vmatprep.subr.bf16.mxu0 %v2489
    %5793 = vmatpush1.bf16.msra.mxu0 %v2488
    %5794 = vmatprep.subr.bf16.mxu0 %v2497
    %5795 = vmatpush1.bf16.msra.mxu0 %v2496
    %5796 = vmatprep.subr.bf16.mxu0 %v2505
    %5797 = vmatpush1.bf16.msra.mxu0 %v2504
    %5798 = vmatprep.subr.bf16.mxu0 %v2513
    %5799 = vmatpush1.bf16.msra.mxu0 %v2512
    %5800 = vmatprep.mubr.bf16.mxu0 %v5683
    %5801 = vmatmul.mubr.bf16.gmra.mrb[0].mxu0 %v5682
    %v5802 = vpop.f32.mrb[0].mxu0
    %v5803 = vadd.f32 %v5762, %v5802
    %v5804 = vpop.f32.mrb[0].mxu0
    %v5805 = vadd.f32 %v5764, %v5804
    %v5806 = vpop.f32.mrb[0].mxu0
    %v5807 = vpop.f32.mrb[0].mxu0
    %5808 = vdwg.mxu0
    %5809 = vmatprep.subr.bf16.mxu0 %v2521
    %5810 = vmatpush1.bf16.msra.mxu0 %v2520
    %5811 = vmatprep.subr.bf16.mxu0 %v2529
    %5812 = vmatpush1.bf16.msra.mxu0 %v2528
    %5813 = vmatprep.subr.bf16.mxu0 %v2537
    %5814 = vmatpush1.bf16.msra.mxu0 %v2536
    %5815 = vmatprep.subr.bf16.mxu0 %v2545
    %5816 = vmatpush1.bf16.msra.mxu0 %v2544
    %5817 = vmatprep.subr.bf16.mxu0 %v2553
    %5818 = vmatpush1.bf16.msra.mxu0 %v2552
    %5819 = vmatprep.subr.bf16.mxu0 %v2561
    %5820 = vmatpush1.bf16.msra.mxu0 %v2560
    %5821 = vmatprep.subr.bf16.mxu0 %v2569
    %5822 = vmatpush1.bf16.msra.mxu0 %v2568
    %5823 = vmatprep.subr.bf16.mxu0 %v2577
    %5824 = vmatpush1.bf16.msra.mxu0 %v2576
    %5825 = vmatprep.subr.bf16.mxu0 %v2585
    %5826 = vmatpush1.bf16.msra.mxu0 %v2584
    %5827 = vmatprep.subr.bf16.mxu0 %v2593
    %5828 = vmatpush1.bf16.msra.mxu0 %v2592
    %5829 = vmatprep.subr.bf16.mxu0 %v2601
    %5830 = vmatpush1.bf16.msra.mxu0 %v2600
    %5831 = vmatprep.subr.bf16.mxu0 %v2609
    %5832 = vmatpush1.bf16.msra.mxu0 %v2608
    %5833 = vmatprep.subr.bf16.mxu0 %v2617
    %5834 = vmatpush1.bf16.msra.mxu0 %v2616
    %5835 = vmatprep.subr.bf16.mxu0 %v2625
    %5836 = vmatpush1.bf16.msra.mxu0 %v2624
    %5837 = vmatprep.subr.bf16.mxu0 %v2633
    %5838 = vmatpush1.bf16.msra.mxu0 %v2632
    %5839 = vmatprep.subr.bf16.mxu0 %v2641
    %5840 = vmatpush1.bf16.msra.mxu0 %v2640
    %5841 = vmatprep.mubr.bf16.mxu0 %v5685
    %5842 = vmatmul.mubr.bf16.gmra.mrb[0].mxu0 %v5684
    %v5843 = vpop.f32.mrb[0].mxu0
    %v5844 = vadd.f32 %v5803, %v5843
    %v5845 = vpop.f32.mrb[0].mxu0
    %v5846 = vadd.f32 %v5805, %v5845
    %v5847 = vpop.f32.mrb[0].mxu0
    %v5848 = vpop.f32.mrb[0].mxu0
    %5849 = vdwg.mxu0
    %5850 = vmatprep.subr.bf16.mxu0 %v2139
    %5851 = vmatpush1.bf16.msra.mxu0 %v2138
    %5852 = vmatprep.subr.bf16.mxu0 %v2147
    %5853 = vmatpush1.bf16.msra.mxu0 %v2146
    %5854 = vmatprep.subr.bf16.mxu0 %v2155
    %5855 = vmatpush1.bf16.msra.mxu0 %v2154
    %5856 = vmatprep.subr.bf16.mxu0 %v2163
    %5857 = vmatpush1.bf16.msra.mxu0 %v2162
    %5858 = vmatprep.subr.bf16.mxu0 %v2171
    %5859 = vmatpush1.bf16.msra.mxu0 %v2170
    %5860 = vmatprep.subr.bf16.mxu0 %v2179
    %5861 = vmatpush1.bf16.msra.mxu0 %v2178
    %5862 = vmatprep.subr.bf16.mxu0 %v2187
    %5863 = vmatpush1.bf16.msra.mxu0 %v2186
    %5864 = vmatprep.subr.bf16.mxu0 %v2195
    %5865 = vmatpush1.bf16.msra.mxu0 %v2194
    %5866 = vmatprep.subr.bf16.mxu0 %v2203
    %5867 = vmatpush1.bf16.msra.mxu0 %v2202
    %5868 = vmatprep.subr.bf16.mxu0 %v2211
    %5869 = vmatpush1.bf16.msra.mxu0 %v2210
    %5870 = vmatprep.subr.bf16.mxu0 %v2219
    %5871 = vmatpush1.bf16.msra.mxu0 %v2218
    %5872 = vmatprep.subr.bf16.mxu0 %v2227
    %5873 = vmatpush1.bf16.msra.mxu0 %v2226
    %5874 = vmatprep.subr.bf16.mxu0 %v2235
    %5875 = vmatpush1.bf16.msra.mxu0 %v2234
    %5876 = vmatprep.subr.bf16.mxu0 %v2243
    %5877 = vmatpush1.bf16.msra.mxu0 %v2242
    %5878 = vmatprep.subr.bf16.mxu0 %v2251
    %5879 = vmatpush1.bf16.msra.mxu0 %v2250
    %5880 = vmatprep.subr.bf16.mxu0 %v2259
    %5881 = vmatpush1.bf16.msra.mxu0 %v2258
    %5882 = vmatprep.mubr.bf16.mxu0 %v5679
    %5883 = vmatmul.mubr.bf16.gmra.mrb[0].mxu0 %v5678
    %v5884 = vpop.f32.mrb[0].mxu0
    %v5885 = vadd.f32 0.0, %v5884
    %v5886 = vpop.f32.mrb[0].mxu0
    %v5887 = vadd.f32 0.0, %v5886
    %v5888 = vpop.f32.mrb[0].mxu0
    %v5889 = vpop.f32.mrb[0].mxu0
    %5890 = vdwg.mxu0
    %5891 = vmatprep.subr.bf16.mxu0 %v2267
    %5892 = vmatpush1.bf16.msra.mxu0 %v2266
    %5893 = vmatprep.subr.bf16.mxu0 %v2275
    %5894 = vmatpush1.bf16.msra.mxu0 %v2274
    %5895 = vmatprep.subr.bf16.mxu0 %v2283
    %5896 = vmatpush1.bf16.msra.mxu0 %v2282
    %5897 = vmatprep.subr.bf16.mxu0 %v2291
    %5898 = vmatpush1.bf16.msra.mxu0 %v2290
    %5899 = vmatprep.subr.bf16.mxu0 %v2299
    %5900 = vmatpush1.bf16.msra.mxu0 %v2298
    %5901 = vmatprep.subr.bf16.mxu0 %v2307
    %5902 = vmatpush1.bf16.msra.mxu0 %v2306
    %5903 = vmatprep.subr.bf16.mxu0 %v2315
    %5904 = vmatpush1.bf16.msra.mxu0 %v2314
    %5905 = vmatprep.subr.bf16.mxu0 %v2323
    %5906 = vmatpush1.bf16.msra.mxu0 %v2322
    %5907 = vmatprep.subr.bf16.mxu0 %v2331
    %5908 = vmatpush1.bf16.msra.mxu0 %v2330
    %5909 = vmatprep.subr.bf16.mxu0 %v2339
    %5910 = vmatpush1.bf16.msra.mxu0 %v2338
    %5911 = vmatprep.subr.bf16.mxu0 %v2347
    %5912 = vmatpush1.bf16.msra.mxu0 %v2346
    %5913 = vmatprep.subr.bf16.mxu0 %v2355
    %5914 = vmatpush1.bf16.msra.mxu0 %v2354
    %5915 = vmatprep.subr.bf16.mxu0 %v2363
    %5916 = vmatpush1.bf16.msra.mxu0 %v2362
    %5917 = vmatprep.subr.bf16.mxu0 %v2371
    %5918 = vmatpush1.bf16.msra.mxu0 %v2370
    %5919 = vmatprep.subr.bf16.mxu0 %v2379
    %5920 = vmatpush1.bf16.msra.mxu0 %v2378
    %5921 = vmatprep.subr.bf16.mxu0 %v2387
    %5922 = vmatpush1.bf16.msra.mxu0 %v2386
    %5923 = vmatprep.mubr.bf16.mxu0 %v5681
    %5924 = vmatmul.mubr.bf16.gmra.mrb[0].mxu0 %v5680
    %v5925 = vpop.f32.mrb[0].mxu0
    %v5926 = vadd.f32 %v5885, %v5925
    %v5927 = vpop.f32.mrb[0].mxu0
    %v5928 = vadd.f32 %v5887, %v5927
    %v5929 = vpop.f32.mrb[0].mxu0
    %v5930 = vpop.f32.mrb[0].mxu0
    %5931 = vdwg.mxu0
    %5932 = vmatprep.subr.bf16.mxu0 %v2395
    %5933 = vmatpush1.bf16.msra.mxu0 %v2394
    %5934 = vmatprep.subr.bf16.mxu0 %v2403
    %5935 = vmatpush1.bf16.msra.mxu0 %v2402
    %5936 = vmatprep.subr.bf16.mxu0 %v2411
    %5937 = vmatpush1.bf16.msra.mxu0 %v2410
    %5938 = vmatprep.subr.bf16.mxu0 %v2419
    %5939 = vmatpush1.bf16.msra.mxu0 %v2418
    %5940 = vmatprep.subr.bf16.mxu0 %v2427
    %5941 = vmatpush1.bf16.msra.mxu0 %v2426
    %5942 = vmatprep.subr.bf16.mxu0 %v2435
    %5943 = vmatpush1.bf16.msra.mxu0 %v2434
    %5944 = vmatprep.subr.bf16.mxu0 %v2443
    %5945 = vmatpush1.bf16.msra.mxu0 %v2442
    %5946 = vmatprep.subr.bf16.mxu0 %v2451
    %5947 = vmatpush1.bf16.msra.mxu0 %v2450
    %5948 = vmatprep.subr.bf16.mxu0 %v2459
    %5949 = vmatpush1.bf16.msra.mxu0 %v2458
    %5950 = vmatprep.subr.bf16.mxu0 %v2467
    %5951 = vmatpush1.bf16.msra.mxu0 %v2466
    %5952 = vmatprep.subr.bf16.mxu0 %v2475
    %5953 = vmatpush1.bf16.msra.mxu0 %v2474
    %5954 = vmatprep.subr.bf16.mxu0 %v2483
    %5955 = vmatpush1.bf16.msra.mxu0 %v2482
    %5956 = vmatprep.subr.bf16.mxu0 %v2491
    %5957 = vmatpush1.bf16.msra.mxu0 %v2490
    %5958 = vmatprep.subr.bf16.mxu0 %v2499
    %5959 = vmatpush1.bf16.msra.mxu0 %v2498
    %5960 = vmatprep.subr.bf16.mxu0 %v2507
    %5961 = vmatpush1.bf16.msra.mxu0 %v2506
    %5962 = vmatprep.subr.bf16.mxu0 %v2515
    %5963 = vmatpush1.bf16.msra.mxu0 %v2514
    %5964 = vmatprep.mubr.bf16.mxu0 %v5683
    %5965 = vmatmul.mubr.bf16.gmra.mrb[0].mxu0 %v5682
    %v5966 = vpop.f32.mrb[0].mxu0
    %v5967 = vadd.f32 %v5926, %v5966
    %v5968 = vpop.f32.mrb[0].mxu0
    %v5969 = vadd.f32 %v5928, %v5968
    %v5970 = vpop.f32.mrb[0].mxu0
    %v5971 = vpop.f32.mrb[0].mxu0
    %5972 = vdwg.mxu0
    %5973 = vmatprep.subr.bf16.mxu0 %v2523
    %5974 = vmatpush1.bf16.msra.mxu0 %v2522
    %5975 = vmatprep.subr.bf16.mxu0 %v2531
    %5976 = vmatpush1.bf16.msra.mxu0 %v2530
    %5977 = vmatprep.subr.bf16.mxu0 %v2539
    %5978 = vmatpush1.bf16.msra.mxu0 %v2538
    %5979 = vmatprep.subr.bf16.mxu0 %v2547
    %5980 = vmatpush1.bf16.msra.mxu0 %v2546
    %5981 = vmatprep.subr.bf16.mxu0 %v2555
    %5982 = vmatpush1.bf16.msra.mxu0 %v2554
    %5983 = vmatprep.subr.bf16.mxu0 %v2563
    %5984 = vmatpush1.bf16.msra.mxu0 %v2562
    %5985 = vmatprep.subr.bf16.mxu0 %v2571
    %5986 = vmatpush1.bf16.msra.mxu0 %v2570
    %5987 = vmatprep.subr.bf16.mxu0 %v2579
    %5988 = vmatpush1.bf16.msra.mxu0 %v2578
    %5989 = vmatprep.subr.bf16.mxu0 %v2587
    %5990 = vmatpush1.bf16.msra.mxu0 %v2586
    %5991 = vmatprep.subr.bf16.mxu0 %v2595
    %5992 = vmatpush1.bf16.msra.mxu0 %v2594
    %5993 = vmatprep.subr.bf16.mxu0 %v2603
    %5994 = vmatpush1.bf16.msra.mxu0 %v2602
    %5995 = vmatprep.subr.bf16.mxu0 %v2611
    %5996 = vmatpush1.bf16.msra.mxu0 %v2610
    %5997 = vmatprep.subr.bf16.mxu0 %v2619
    %5998 = vmatpush1.bf16.msra.mxu0 %v2618
    %5999 = vmatprep.subr.bf16.mxu0 %v2627
    %6000 = vmatpush1.bf16.msra.mxu0 %v2626
    %6001 = vmatprep.subr.bf16.mxu0 %v2635
    %6002 = vmatpush1.bf16.msra.mxu0 %v2634
    %6003 = vmatprep.subr.bf16.mxu0 %v2643
    %6004 = vmatpush1.bf16.msra.mxu0 %v2642
    %6005 = vmatprep.mubr.bf16.mxu0 %v5685
    %6006 = vmatmul.mubr.bf16.gmra.mrb[0].mxu0 %v5684
    %v6007 = vpop.f32.mrb[0].mxu0
    %v6008 = vadd.f32 %v5967, %v6007
    %v6009 = vpop.f32.mrb[0].mxu0
    %v6010 = vadd.f32 %v5969, %v6009
    %v6011 = vpop.f32.mrb[0].mxu0
    %v6012 = vpop.f32.mrb[0].mxu0
    %6013 = vdwg.mxu0
    %6014 = vmatprep.subr.bf16.mxu0 %v2141
    %6015 = vmatpush1.bf16.msra.mxu0 %v2140
    %6016 = vmatprep.subr.bf16.mxu0 %v2149
    %6017 = vmatpush1.bf16.msra.mxu0 %v2148
    %6018 = vmatprep.subr.bf16.mxu0 %v2157
    %6019 = vmatpush1.bf16.msra.mxu0 %v2156
    %6020 = vmatprep.subr.bf16.mxu0 %v2165
    %6021 = vmatpush1.bf16.msra.mxu0 %v2164
    %6022 = vmatprep.subr.bf16.mxu0 %v2173
    %6023 = vmatpush1.bf16.msra.mxu0 %v2172
    %6024 = vmatprep.subr.bf16.mxu0 %v2181
    %6025 = vmatpush1.bf16.msra.mxu0 %v2180
    %6026 = vmatprep.subr.bf16.mxu0 %v2189
    %6027 = vmatpush1.bf16.msra.mxu0 %v2188
    %6028 = vmatprep.subr.bf16.mxu0 %v2197
    %6029 = vmatpush1.bf16.msra.mxu0 %v2196
    %6030 = vmatprep.subr.bf16.mxu0 %v2205
    %6031 = vmatpush1.bf16.msra.mxu0 %v2204
    %6032 = vmatprep.subr.bf16.mxu0 %v2213
    %6033 = vmatpush1.bf16.msra.mxu0 %v2212
    %6034 = vmatprep.subr.bf16.mxu0 %v2221
    %6035 = vmatpush1.bf16.msra.mxu0 %v2220
    %6036 = vmatprep.subr.bf16.mxu0 %v2229
    %6037 = vmatpush1.bf16.msra.mxu0 %v2228
    %6038 = vmatprep.subr.bf16.mxu0 %v2237
    %6039 = vmatpush1.bf16.msra.mxu0 %v2236
    %6040 = vmatprep.subr.bf16.mxu0 %v2245
    %6041 = vmatpush1.bf16.msra.mxu0 %v2244
    %6042 = vmatprep.subr.bf16.mxu0 %v2253
    %6043 = vmatpush1.bf16.msra.mxu0 %v2252
    %6044 = vmatprep.subr.bf16.mxu0 %v2261
    %6045 = vmatpush1.bf16.msra.mxu0 %v2260
    %6046 = vmatprep.mubr.bf16.mxu0 %v5679
    %6047 = vmatmul.mubr.bf16.gmra.mrb[0].mxu0 %v5678
    %v6048 = vpop.f32.mrb[0].mxu0
    %v6049 = vadd.f32 0.0, %v6048
    %v6050 = vpop.f32.mrb[0].mxu0
    %v6051 = vadd.f32 0.0, %v6050
    %v6052 = vpop.f32.mrb[0].mxu0
    %v6053 = vpop.f32.mrb[0].mxu0
    %6054 = vdwg.mxu0
    %6055 = vmatprep.subr.bf16.mxu0 %v2269
    %6056 = vmatpush1.bf16.msra.mxu0 %v2268
    %6057 = vmatprep.subr.bf16.mxu0 %v2277
    %6058 = vmatpush1.bf16.msra.mxu0 %v2276
    %6059 = vmatprep.subr.bf16.mxu0 %v2285
    %6060 = vmatpush1.bf16.msra.mxu0 %v2284
    %6061 = vmatprep.subr.bf16.mxu0 %v2293
    %6062 = vmatpush1.bf16.msra.mxu0 %v2292
    %6063 = vmatprep.subr.bf16.mxu0 %v2301
    %6064 = vmatpush1.bf16.msra.mxu0 %v2300
    %6065 = vmatprep.subr.bf16.mxu0 %v2309
    %6066 = vmatpush1.bf16.msra.mxu0 %v2308
    %6067 = vmatprep.subr.bf16.mxu0 %v2317
    %6068 = vmatpush1.bf16.msra.mxu0 %v2316
    %6069 = vmatprep.subr.bf16.mxu0 %v2325
    %6070 = vmatpush1.bf16.msra.mxu0 %v2324
    %6071 = vmatprep.subr.bf16.mxu0 %v2333
    %6072 = vmatpush1.bf16.msra.mxu0 %v2332
    %6073 = vmatprep.subr.bf16.mxu0 %v2341
    %6074 = vmatpush1.bf16.msra.mxu0 %v2340
    %6075 = vmatprep.subr.bf16.mxu0 %v2349
    %6076 = vmatpush1.bf16.msra.mxu0 %v2348
    %6077 = vmatprep.subr.bf16.mxu0 %v2357
    %6078 = vmatpush1.bf16.msra.mxu0 %v2356
    %6079 = vmatprep.subr.bf16.mxu0 %v2365
    %6080 = vmatpush1.bf16.msra.mxu0 %v2364
    %6081 = vmatprep.subr.bf16.mxu0 %v2373
    %6082 = vmatpush1.bf16.msra.mxu0 %v2372
    %6083 = vmatprep.subr.bf16.mxu0 %v2381
    %6084 = vmatpush1.bf16.msra.mxu0 %v2380
    %6085 = vmatprep.subr.bf16.mxu0 %v2389
    %6086 = vmatpush1.bf16.msra.mxu0 %v2388
    %6087 = vmatprep.mubr.bf16.mxu0 %v5681
    %6088 = vmatmul.mubr.bf16.gmra.mrb[0].mxu0 %v5680
    %v6089 = vpop.f32.mrb[0].mxu0
    %v6090 = vadd.f32 %v6049, %v6089
    %v6091 = vpop.f32.mrb[0].mxu0
    %v6092 = vadd.f32 %v6051, %v6091
    %v6093 = vpop.f32.mrb[0].mxu0
    %v6094 = vpop.f32.mrb[0].mxu0
    %6095 = vdwg.mxu0
    %6096 = vmatprep.subr.bf16.mxu0 %v2397
    %6097 = vmatpush1.bf16.msra.mxu0 %v2396
    %6098 = vmatprep.subr.bf16.mxu0 %v2405
    %6099 = vmatpush1.bf16.msra.mxu0 %v2404
    %6100 = vmatprep.subr.bf16.mxu0 %v2413
    %6101 = vmatpush1.bf16.msra.mxu0 %v2412
    %6102 = vmatprep.subr.bf16.mxu0 %v2421
    %6103 = vmatpush1.bf16.msra.mxu0 %v2420
    %6104 = vmatprep.subr.bf16.mxu0 %v2429
    %6105 = vmatpush1.bf16.msra.mxu0 %v2428
    %6106 = vmatprep.subr.bf16.mxu0 %v2437
    %6107 = vmatpush1.bf16.msra.mxu0 %v2436
    %6108 = vmatprep.subr.bf16.mxu0 %v2445
    %6109 = vmatpush1.bf16.msra.mxu0 %v2444
    %6110 = vmatprep.subr.bf16.mxu0 %v2453
    %6111 = vmatpush1.bf16.msra.mxu0 %v2452
    %6112 = vmatprep.subr.bf16.mxu0 %v2461
    %6113 = vmatpush1.bf16.msra.mxu0 %v2460
    %6114 = vmatprep.subr.bf16.mxu0 %v2469
    %6115 = vmatpush1.bf16.msra.mxu0 %v2468
    %6116 = vmatprep.subr.bf16.mxu0 %v2477
    %6117 = vmatpush1.bf16.msra.mxu0 %v2476
    %6118 = vmatprep.subr.bf16.mxu0 %v2485
    %6119 = vmatpush1.bf16.msra.mxu0 %v2484
    %6120 = vmatprep.subr.bf16.mxu0 %v2493
    %6121 = vmatpush1.bf16.msra.mxu0 %v2492
    %6122 = vmatprep.subr.bf16.mxu0 %v2501
    %6123 = vmatpush1.bf16.msra.mxu0 %v2500
    %6124 = vmatprep.subr.bf16.mxu0 %v2509
    %6125 = vmatpush1.bf16.msra.mxu0 %v2508
    %6126 = vmatprep.subr.bf16.mxu0 %v2517
    %6127 = vmatpush1.bf16.msra.mxu0 %v2516
    %6128 = vmatprep.mubr.bf16.mxu0 %v5683
    %6129 = vmatmul.mubr.bf16.gmra.mrb[0].mxu0 %v5682
    %v6130 = vpop.f32.mrb[0].mxu0
    %v6131 = vadd.f32 %v6090, %v6130
    %v6132 = vpop.f32.mrb[0].mxu0
    %v6133 = vadd.f32 %v6092, %v6132
    %v6134 = vpop.f32.mrb[0].mxu0
    %v6135 = vpop.f32.mrb[0].mxu0
    %6136 = vdwg.mxu0
    %6137 = vmatprep.subr.bf16.mxu0 %v2525
    %6138 = vmatpush1.bf16.msra.mxu0 %v2524
    %6139 = vmatprep.subr.bf16.mxu0 %v2533
    %6140 = vmatpush1.bf16.msra.mxu0 %v2532
    %6141 = vmatprep.subr.bf16.mxu0 %v2541
    %6142 = vmatpush1.bf16.msra.mxu0 %v2540
    %6143 = vmatprep.subr.bf16.mxu0 %v2549
    %6144 = vmatpush1.bf16.msra.mxu0 %v2548
    %6145 = vmatprep.subr.bf16.mxu0 %v2557
    %6146 = vmatpush1.bf16.msra.mxu0 %v2556
    %6147 = vmatprep.subr.bf16.mxu0 %v2565
    %6148 = vmatpush1.bf16.msra.mxu0 %v2564
    %6149 = vmatprep.subr.bf16.mxu0 %v2573
    %6150 = vmatpush1.bf16.msra.mxu0 %v2572
    %6151 = vmatprep.subr.bf16.mxu0 %v2581
    %6152 = vmatpush1.bf16.msra.mxu0 %v2580
    %6153 = vmatprep.subr.bf16.mxu0 %v2589
    %6154 = vmatpush1.bf16.msra.mxu0 %v2588
    %6155 = vmatprep.subr.bf16.mxu0 %v2597
    %6156 = vmatpush1.bf16.msra.mxu0 %v2596
    %6157 = vmatprep.subr.bf16.mxu0 %v2605
    %6158 = vmatpush1.bf16.msra.mxu0 %v2604
    %6159 = vmatprep.subr.bf16.mxu0 %v2613
    %6160 = vmatpush1.bf16.msra.mxu0 %v2612
    %6161 = vmatprep.subr.bf16.mxu0 %v2621
    %6162 = vmatpush1.bf16.msra.mxu0 %v2620
    %6163 = vmatprep.subr.bf16.mxu0 %v2629
    %6164 = vmatpush1.bf16.msra.mxu0 %v2628
    %6165 = vmatprep.subr.bf16.mxu0 %v2637
    %6166 = vmatpush1.bf16.msra.mxu0 %v2636
    %6167 = vmatprep.subr.bf16.mxu0 %v2645
    %6168 = vmatpush1.bf16.msra.mxu0 %v2644
    %6169 = vmatprep.mubr.bf16.mxu0 %v5685
    %6170 = vmatmul.mubr.bf16.gmra.mrb[0].mxu0 %v5684
    %v6171 = vpop.f32.mrb[0].mxu0
    %v6172 = vadd.f32 %v6131, %v6171
    %v6173 = vpop.f32.mrb[0].mxu0
    %v6174 = vadd.f32 %v6133, %v6173
    %v6175 = vpop.f32.mrb[0].mxu0
    %v6176 = vpop.f32.mrb[0].mxu0
    %6177 = vdwg.mxu0
    %6178 = vmatprep.subr.bf16.mxu0 %v2143
    %6179 = vmatpush1.bf16.msra.mxu0 %v2142
    %6180 = vmatprep.subr.bf16.mxu0 %v2151
    %6181 = vmatpush1.bf16.msra.mxu0 %v2150
    %6182 = vmatprep.subr.bf16.mxu0 %v2159
    %6183 = vmatpush1.bf16.msra.mxu0 %v2158
    %6184 = vmatprep.subr.bf16.mxu0 %v2167
    %6185 = vmatpush1.bf16.msra.mxu0 %v2166
    %6186 = vmatprep.subr.bf16.mxu0 %v2175
    %6187 = vmatpush1.bf16.msra.mxu0 %v2174
    %6188 = vmatprep.subr.bf16.mxu0 %v2183
    %6189 = vmatpush1.bf16.msra.mxu0 %v2182
    %6190 = vmatprep.subr.bf16.mxu0 %v2191
    %6191 = vmatpush1.bf16.msra.mxu0 %v2190
    %6192 = vmatprep.subr.bf16.mxu0 %v2199
    %6193 = vmatpush1.bf16.msra.mxu0 %v2198
    %6194 = vmatprep.subr.bf16.mxu0 %v2207
    %6195 = vmatpush1.bf16.msra.mxu0 %v2206
    %6196 = vmatprep.subr.bf16.mxu0 %v2215
    %6197 = vmatpush1.bf16.msra.mxu0 %v2214
    %6198 = vmatprep.subr.bf16.mxu0 %v2223
    %6199 = vmatpush1.bf16.msra.mxu0 %v2222
    %6200 = vmatprep.subr.bf16.mxu0 %v2231
    %6201 = vmatpush1.bf16.msra.mxu0 %v2230
    %6202 = vmatprep.subr.bf16.mxu0 %v2239
    %6203 = vmatpush1.bf16.msra.mxu0 %v2238
    %6204 = vmatprep.subr.bf16.mxu0 %v2247
    %6205 = vmatpush1.bf16.msra.mxu0 %v2246
    %6206 = vmatprep.subr.bf16.mxu0 %v2255
    %6207 = vmatpush1.bf16.msra.mxu0 %v2254
    %6208 = vmatprep.subr.bf16.mxu0 %v2263
    %6209 = vmatpush1.bf16.msra.mxu0 %v2262
    %6210 = vmatprep.mubr.bf16.mxu0 %v5679
    %6211 = vmatmul.mubr.bf16.gmra.mrb[0].mxu0 %v5678
    %v6212 = vpop.f32.mrb[0].mxu0
    %v6213 = vadd.f32 0.0, %v6212
    %v6214 = vpop.f32.mrb[0].mxu0
    %v6215 = vadd.f32 0.0, %v6214
    %v6216 = vpop.f32.mrb[0].mxu0
    %v6217 = vpop.f32.mrb[0].mxu0
    %6218 = vdwg.mxu0
    %6219 = vmatprep.subr.bf16.mxu0 %v2271
    %6220 = vmatpush1.bf16.msra.mxu0 %v2270
    %6221 = vmatprep.subr.bf16.mxu0 %v2279
    %6222 = vmatpush1.bf16.msra.mxu0 %v2278
    %6223 = vmatprep.subr.bf16.mxu0 %v2287
    %6224 = vmatpush1.bf16.msra.mxu0 %v2286
    %6225 = vmatprep.subr.bf16.mxu0 %v2295
    %6226 = vmatpush1.bf16.msra.mxu0 %v2294
    %6227 = vmatprep.subr.bf16.mxu0 %v2303
    %6228 = vmatpush1.bf16.msra.mxu0 %v2302
    %6229 = vmatprep.subr.bf16.mxu0 %v2311
    %6230 = vmatpush1.bf16.msra.mxu0 %v2310
    %6231 = vmatprep.subr.bf16.mxu0 %v2319
    %6232 = vmatpush1.bf16.msra.mxu0 %v2318
    %6233 = vmatprep.subr.bf16.mxu0 %v2327
    %6234 = vmatpush1.bf16.msra.mxu0 %v2326
    %6235 = vmatprep.subr.bf16.mxu0 %v2335
    %6236 = vmatpush1.bf16.msra.mxu0 %v2334
    %6237 = vmatprep.subr.bf16.mxu0 %v2343
    %6238 = vmatpush1.bf16.msra.mxu0 %v2342
    %6239 = vmatprep.subr.bf16.mxu0 %v2351
    %6240 = vmatpush1.bf16.msra.mxu0 %v2350
    %6241 = vmatprep.subr.bf16.mxu0 %v2359
    %6242 = vmatpush1.bf16.msra.mxu0 %v2358
    %6243 = vmatprep.subr.bf16.mxu0 %v2367
    %6244 = vmatpush1.bf16.msra.mxu0 %v2366
    %6245 = vmatprep.subr.bf16.mxu0 %v2375
    %6246 = vmatpush1.bf16.msra.mxu0 %v2374
    %6247 = vmatprep.subr.bf16.mxu0 %v2383
    %6248 = vmatpush1.bf16.msra.mxu0 %v2382
    %6249 = vmatprep.subr.bf16.mxu0 %v2391
    %6250 = vmatpush1.bf16.msra.mxu0 %v2390
    %6251 = vmatprep.mubr.bf16.mxu0 %v5681
    %6252 = vmatmul.mubr.bf16.gmra.mrb[0].mxu0 %v5680
    %v6253 = vpop.f32.mrb[0].mxu0
    %v6254 = vadd.f32 %v6213, %v6253
    %v6255 = vpop.f32.mrb[0].mxu0
    %v6256 = vadd.f32 %v6215, %v6255
    %v6257 = vpop.f32.mrb[0].mxu0
    %v6258 = vpop.f32.mrb[0].mxu0
    %6259 = vdwg.mxu0
    %6260 = vmatprep.subr.bf16.mxu0 %v2399
    %6261 = vmatpush1.bf16.msra.mxu0 %v2398
    %6262 = vmatprep.subr.bf16.mxu0 %v2407
    %6263 = vmatpush1.bf16.msra.mxu0 %v2406
    %6264 = vmatprep.subr.bf16.mxu0 %v2415
    %6265 = vmatpush1.bf16.msra.mxu0 %v2414
    %6266 = vmatprep.subr.bf16.mxu0 %v2423
    %6267 = vmatpush1.bf16.msra.mxu0 %v2422
    %6268 = vmatprep.subr.bf16.mxu0 %v2431
    %6269 = vmatpush1.bf16.msra.mxu0 %v2430
    %6270 = vmatprep.subr.bf16.mxu0 %v2439
    %6271 = vmatpush1.bf16.msra.mxu0 %v2438
    %6272 = vmatprep.subr.bf16.mxu0 %v2447
    %6273 = vmatpush1.bf16.msra.mxu0 %v2446
    %6274 = vmatprep.subr.bf16.mxu0 %v2455
    %6275 = vmatpush1.bf16.msra.mxu0 %v2454
    %6276 = vmatprep.subr.bf16.mxu0 %v2463
    %6277 = vmatpush1.bf16.msra.mxu0 %v2462
    %6278 = vmatprep.subr.bf16.mxu0 %v2471
    %6279 = vmatpush1.bf16.msra.mxu0 %v2470
    %6280 = vmatprep.subr.bf16.mxu0 %v2479
    %6281 = vmatpush1.bf16.msra.mxu0 %v2478
    %6282 = vmatprep.subr.bf16.mxu0 %v2487
    %6283 = vmatpush1.bf16.msra.mxu0 %v2486
    %6284 = vmatprep.subr.bf16.mxu0 %v2495
    %6285 = vmatpush1.bf16.msra.mxu0 %v2494
    %6286 = vmatprep.subr.bf16.mxu0 %v2503
    %6287 = vmatpush1.bf16.msra.mxu0 %v2502
    %6288 = vmatprep.subr.bf16.mxu0 %v2511
    %6289 = vmatpush1.bf16.msra.mxu0 %v2510
    %6290 = vmatprep.subr.bf16.mxu0 %v2519
    %6291 = vmatpush1.bf16.msra.mxu0 %v2518
    %6292 = vmatprep.mubr.bf16.mxu0 %v5683
    %6293 = vmatmul.mubr.bf16.gmra.mrb[0].mxu0 %v5682
    %v6294 = vpop.f32.mrb[0].mxu0
    %v6295 = vadd.f32 %v6254, %v6294
    %v6296 = vpop.f32.mrb[0].mxu0
    %v6297 = vadd.f32 %v6256, %v6296
    %v6298 = vpop.f32.mrb[0].mxu0
    %v6299 = vpop.f32.mrb[0].mxu0
    %6300 = vdwg.mxu0
    %6301 = vmatprep.subr.bf16.mxu0 %v2527
    %6302 = vmatpush1.bf16.msra.mxu0 %v2526
    %6303 = vmatprep.subr.bf16.mxu0 %v2535
    %6304 = vmatpush1.bf16.msra.mxu0 %v2534
    %6305 = vmatprep.subr.bf16.mxu0 %v2543
    %6306 = vmatpush1.bf16.msra.mxu0 %v2542
    %6307 = vmatprep.subr.bf16.mxu0 %v2551
    %6308 = vmatpush1.bf16.msra.mxu0 %v2550
    %6309 = vmatprep.subr.bf16.mxu0 %v2559
    %6310 = vmatpush1.bf16.msra.mxu0 %v2558
    %6311 = vmatprep.subr.bf16.mxu0 %v2567
    %6312 = vmatpush1.bf16.msra.mxu0 %v2566
    %6313 = vmatprep.subr.bf16.mxu0 %v2575
    %6314 = vmatpush1.bf16.msra.mxu0 %v2574
    %6315 = vmatprep.subr.bf16.mxu0 %v2583
    %6316 = vmatpush1.bf16.msra.mxu0 %v2582
    %6317 = vmatprep.subr.bf16.mxu0 %v2591
    %6318 = vmatpush1.bf16.msra.mxu0 %v2590
    %6319 = vmatprep.subr.bf16.mxu0 %v2599
    %6320 = vmatpush1.bf16.msra.mxu0 %v2598
    %6321 = vmatprep.subr.bf16.mxu0 %v2607
    %6322 = vmatpush1.bf16.msra.mxu0 %v2606
    %6323 = vmatprep.subr.bf16.mxu0 %v2615
    %6324 = vmatpush1.bf16.msra.mxu0 %v2614
    %6325 = vmatprep.subr.bf16.mxu0 %v2623
    %6326 = vmatpush1.bf16.msra.mxu0 %v2622
    %6327 = vmatprep.subr.bf16.mxu0 %v2631
    %6328 = vmatpush1.bf16.msra.mxu0 %v2630
    %6329 = vmatprep.subr.bf16.mxu0 %v2639
    %6330 = vmatpush1.bf16.msra.mxu0 %v2638
    %6331 = vmatprep.subr.bf16.mxu0 %v2647
    %6332 = vmatpush1.bf16.msra.mxu0 %v2646
    %6333 = vmatprep.mubr.bf16.mxu0 %v5685
    %6334 = vmatmul.mubr.bf16.gmra.mrb[0].mxu0 %v5684
    %v6335 = vpop.f32.mrb[0].mxu0
    %v6336 = vadd.f32 %v6295, %v6335
    %v6337 = vpop.f32.mrb[0].mxu0
    %v6338 = vadd.f32 %v6297, %v6337
    %v6339 = vpop.f32.mrb[0].mxu0
    %v6340 = vpop.f32.mrb[0].mxu0
    %6341 = vdwg.mxu0
    %v6342 = vstv %s5631
    %v6343 = vmul.f32 %v6342, %v5629
    %v6344 = vmul.f32 %v6342, %v5630
    %v6345 = vstv %s5632
    %v6346 = vmul.f32 %v6345, %v5844
    %v6347 = vmul.f32 %v6345, %v5846
    %v6348 = vmul.f32 %v6345, %v6008
    %v6349 = vmul.f32 %v6345, %v6010
    %v6350 = vmul.f32 %v6345, %v6172
    %v6351 = vmul.f32 %v6345, %v6174
    %v6352 = vmul.f32 %v6345, %v6336
    %v6353 = vmul.f32 %v6345, %v6338
    %v6362 = vcombine.low %v6346, %v6347
    %v6363 = vcombine.low %v6348, %v6349
    %v6365 = vunpack.c.l.s4 1983009808
    %v6366 = vunpack.c.0.s8 %v6365
    %v6367 = vlaneseq
    %v6368 = vshrl.u32 %v6367, 7
    %v6369 = vsub.s32 %v6366, %v6368
    %v6370 = vrot.slane %v6362, %v6369
    %v6372 = vunpack.c.l.s4 1983009808
    %v6373 = vunpack.c.0.s8 %v6372
    %v6374 = vlaneseq
    %v6375 = vshrl.u32 %v6374, 7
    %v6376 = vsub.s32 %v6373, %v6375
    %v6377 = vrot.slane %v6363, %v6376
    %v6378 = vcombine.low %v6370, %v6377
    %v6379 = vcombine.low %v6350, %v6351
    %v6380 = vcombine.low %v6352, %v6353
    %v6382 = vunpack.c.l.s4 1983009808
    %v6383 = vunpack.c.0.s8 %v6382
    %v6384 = vlaneseq
    %v6385 = vshrl.u32 %v6384, 7
    %v6386 = vsub.s32 %v6383, %v6385
    %v6387 = vrot.slane %v6379, %v6386
    %v6389 = vunpack.c.l.s4 1983009808
    %v6390 = vunpack.c.0.s8 %v6389
    %v6391 = vlaneseq
    %v6392 = vshrl.u32 %v6391, 7
    %v6393 = vsub.s32 %v6390, %v6392
    %v6394 = vrot.slane %v6380, %v6393
    %v6395 = vcombine.low %v6387, %v6394
    %v6398 = vadd.f32 %v6343, %v6378
    %v6399 = vadd.f32 %v6344, %v6395
    %v6400 = vstv %s5633
    %v6401 = vmul.f32 %v6400, %v30
    %v6403 = vlaneseq
    %v6404 = vshrl.u32 %v6403, 7
    %v6405 = vsub.s32 0, %v6404
    %v6406 = vrot.slane %v6401, %v6405
    %v6407 = vlaneseq
    %v6408 = vshrl.u32 %v6407, 7
    %v6409 = vsub.s32 1, %v6408
    %v6410 = vrot.slane %v6401, %v6409
    %v6411 = vlaneseq
    %v6412 = vshrl.u32 %v6411, 7
    %v6413 = vsub.s32 2, %v6412
    %v6414 = vrot.slane %v6401, %v6413
    %v6415 = vlaneseq
    %v6416 = vshrl.u32 %v6415, 7
    %v6417 = vsub.s32 3, %v6416
    %v6418 = vrot.slane %v6401, %v6417
    %v6419 = vlaneseq
    %v6420 = vshrl.u32 %v6419, 7
    %v6421 = vsub.s32 4, %v6420
    %v6422 = vrot.slane %v6401, %v6421
    %v6423 = vlaneseq
    %v6424 = vshrl.u32 %v6423, 7
    %v6425 = vsub.s32 5, %v6424
    %v6426 = vrot.slane %v6401, %v6425
    %v6427 = vlaneseq
    %v6428 = vshrl.u32 %v6427, 7
    %v6429 = vsub.s32 6, %v6428
    %v6430 = vrot.slane %v6401, %v6429
    %v6431 = vlaneseq
    %v6432 = vshrl.u32 %v6431, 7
    %v6433 = vsub.s32 7, %v6432
    %v6434 = vrot.slane %v6401, %v6433
    %v6435 = vcombine.low %v6406, %v6410
    %v6436 = vcombine.low %v6414, %v6418
    %v6438 = vunpack.c.l.s4 1983009808
    %v6439 = vunpack.c.0.s8 %v6438
    %v6440 = vlaneseq
    %v6441 = vshrl.u32 %v6440, 7
    %v6442 = vsub.s32 %v6439, %v6441
    %v6443 = vrot.slane %v6435, %v6442
    %v6445 = vunpack.c.l.s4 1983009808
    %v6446 = vunpack.c.0.s8 %v6445
    %v6447 = vlaneseq
    %v6448 = vshrl.u32 %v6447, 7
    %v6449 = vsub.s32 %v6446, %v6448
    %v6450 = vrot.slane %v6436, %v6449
    %v6451 = vcombine.low %v6443, %v6450
    %v6452 = vcombine.low %v6422, %v6426
    %v6453 = vcombine.low %v6430, %v6434
    %v6455 = vunpack.c.l.s4 1983009808
    %v6456 = vunpack.c.0.s8 %v6455
    %v6457 = vlaneseq
    %v6458 = vshrl.u32 %v6457, 7
    %v6459 = vsub.s32 %v6456, %v6458
    %v6460 = vrot.slane %v6452, %v6459
    %v6462 = vunpack.c.l.s4 1983009808
    %v6463 = vunpack.c.0.s8 %v6462
    %v6464 = vlaneseq
    %v6465 = vshrl.u32 %v6464, 7
    %v6466 = vsub.s32 %v6463, %v6465
    %v6467 = vrot.slane %v6453, %v6466
    %v6468 = vcombine.low %v6460, %v6467
    %v6471 = vadd.f32 %v6398, %v6451
    %v6472 = vadd.f32 %v6399, %v6468
    %s6473 = sld [smem:[#allocation2 + $0x10]]
    %s6474 = sld [smem:[#allocation2 + $0x11]]
    %s6475 = sld [smem:[#allocation2 + $0x12]]
    %v6478 = vcombine.high %v6471, %v6471
    %v6480 = vunpack.c.l.s4 1983009808
    %v6481 = vunpack.c.0.s8 %v6480
    %v6482 = vlaneseq
    %v6483 = vshrl.u32 %v6482, 7
    %v6484 = vsub.s32 %v6481, %v6483
    %v6485 = vrot.slane %v6471, %v6484
    %v6487 = vunpack.c.l.s4 1983009808
    %v6488 = vunpack.c.0.s8 %v6487
    %v6489 = vlaneseq
    %v6490 = vshrl.u32 %v6489, 7
    %v6491 = vsub.s32 %v6488, %v6490
    %v6492 = vrot.slane %v6478, %v6491
    %v6493 = vcombine.high %v6485, %v6485
    %v6494 = vcombine.high %v6492, %v6492
    %v6495 = vcombine.high %v6472, %v6472
    %v6497 = vunpack.c.l.s4 1983009808
    %v6498 = vunpack.c.0.s8 %v6497
    %v6499 = vlaneseq
    %v6500 = vshrl.u32 %v6499, 7
    %v6501 = vsub.s32 %v6498, %v6500
    %v6502 = vrot.slane %v6472, %v6501
    %v6504 = vunpack.c.l.s4 1983009808
    %v6505 = vunpack.c.0.s8 %v6504
    %v6506 = vlaneseq
    %v6507 = vshrl.u32 %v6506, 7
    %v6508 = vsub.s32 %v6505, %v6507
    %v6509 = vrot.slane %v6495, %v6508
    %v6510 = vcombine.high %v6502, %v6502
    %v6511 = vcombine.high %v6509, %v6509
    %v6520 = vpack.c.bf16 %v6485, %v6485
    %v6521 = vpack.c.bf16 %v6493, %v6493
    %v6522 = vpack.c.bf16 %v6492, %v6492
    %v6523 = vpack.c.bf16 %v6494, %v6494
    %v6524 = vpack.c.bf16 %v6502, %v6502
    %v6525 = vpack.c.bf16 %v6510, %v6510
    %v6526 = vpack.c.bf16 %v6509, %v6509
    %v6527 = vpack.c.bf16 %v6511, %v6511
    %6528 = vmatprep.subr.bf16.mxu0 %v2137
    %6529 = vmatpush1.bf16.msra.mxu0 %v2136
    %6530 = vmatprep.subr.bf16.mxu0 %v2145
    %6531 = vmatpush1.bf16.msra.mxu0 %v2144
    %6532 = vmatprep.subr.bf16.mxu0 %v2153
    %6533 = vmatpush1.bf16.msra.mxu0 %v2152
    %6534 = vmatprep.subr.bf16.mxu0 %v2161
    %6535 = vmatpush1.bf16.msra.mxu0 %v2160
    %6536 = vmatprep.subr.bf16.mxu0 %v2169
    %6537 = vmatpush1.bf16.msra.mxu0 %v2168
    %6538 = vmatprep.subr.bf16.mxu0 %v2177
    %6539 = vmatpush1.bf16.msra.mxu0 %v2176
    %6540 = vmatprep.subr.bf16.mxu0 %v2185
    %6541 = vmatpush1.bf16.msra.mxu0 %v2184
    %6542 = vmatprep.subr.bf16.mxu0 %v2193
    %6543 = vmatpush1.bf16.msra.mxu0 %v2192
    %6544 = vmatprep.subr.bf16.mxu0 %v2201
    %6545 = vmatpush1.bf16.msra.mxu0 %v2200
    %6546 = vmatprep.subr.bf16.mxu0 %v2209
    %6547 = vmatpush1.bf16.msra.mxu0 %v2208
    %6548 = vmatprep.subr.bf16.mxu0 %v2217
    %6549 = vmatpush1.bf16.msra.mxu0 %v2216
    %6550 = vmatprep.subr.bf16.mxu0 %v2225
    %6551 = vmatpush1.bf16.msra.mxu0 %v2224
    %6552 = vmatprep.subr.bf16.mxu0 %v2233
    %6553 = vmatpush1.bf16.msra.mxu0 %v2232
    %6554 = vmatprep.subr.bf16.mxu0 %v2241
    %6555 = vmatpush1.bf16.msra.mxu0 %v2240
    %6556 = vmatprep.subr.bf16.mxu0 %v2249
    %6557 = vmatpush1.bf16.msra.mxu0 %v2248
    %6558 = vmatprep.subr.bf16.mxu0 %v2257
    %6559 = vmatpush1.bf16.msra.mxu0 %v2256
    %6560 = vmatprep.mubr.bf16.mxu0 %v6521
    %6561 = vmatmul.mubr.bf16.gmra.mrb[0].mxu0 %v6520
    %v6562 = vpop.f32.mrb[0].mxu0
    %v6563 = vadd.f32 0.0, %v6562
    %v6564 = vpop.f32.mrb[0].mxu0
    %v6565 = vadd.f32 0.0, %v6564
    %v6566 = vpop.f32.mrb[0].mxu0
    %v6567 = vpop.f32.mrb[0].mxu0
    %6568 = vdwg.mxu0
    %6569 = vmatprep.subr.bf16.mxu0 %v2265
    %6570 = vmatpush1.bf16.msra.mxu0 %v2264
    %6571 = vmatprep.subr.bf16.mxu0 %v2273
    %6572 = vmatpush1.bf16.msra.mxu0 %v2272
    %6573 = vmatprep.subr.bf16.mxu0 %v2281
    %6574 = vmatpush1.bf16.msra.mxu0 %v2280
    %6575 = vmatprep.subr.bf16.mxu0 %v2289
    %6576 = vmatpush1.bf16.msra.mxu0 %v2288
    %6577 = vmatprep.subr.bf16.mxu0 %v2297
    %6578 = vmatpush1.bf16.msra.mxu0 %v2296
    %6579 = vmatprep.subr.bf16.mxu0 %v2305
    %6580 = vmatpush1.bf16.msra.mxu0 %v2304
    %6581 = vmatprep.subr.bf16.mxu0 %v2313
    %6582 = vmatpush1.bf16.msra.mxu0 %v2312
    %6583 = vmatprep.subr.bf16.mxu0 %v2321
    %6584 = vmatpush1.bf16.msra.mxu0 %v2320
    %6585 = vmatprep.subr.bf16.mxu0 %v2329
    %6586 = vmatpush1.bf16.msra.mxu0 %v2328
    %6587 = vmatprep.subr.bf16.mxu0 %v2337
    %6588 = vmatpush1.bf16.msra.mxu0 %v2336
    %6589 = vmatprep.subr.bf16.mxu0 %v2345
    %6590 = vmatpush1.bf16.msra.mxu0 %v2344
    %6591 = vmatprep.subr.bf16.mxu0 %v2353
    %6592 = vmatpush1.bf16.msra.mxu0 %v2352
    %6593 = vmatprep.subr.bf16.mxu0 %v2361
    %6594 = vmatpush1.bf16.msra.mxu0 %v2360
    %6595 = vmatprep.subr.bf16.mxu0 %v2369
    %6596 = vmatpush1.bf16.msra.mxu0 %v2368
    %6597 = vmatprep.subr.bf16.mxu0 %v2377
    %6598 = vmatpush1.bf16.msra.mxu0 %v2376
    %6599 = vmatprep.subr.bf16.mxu0 %v2385
    %6600 = vmatpush1.bf16.msra.mxu0 %v2384
    %6601 = vmatprep.mubr.bf16.mxu0 %v6523
    %6602 = vmatmul.mubr.bf16.gmra.mrb[0].mxu0 %v6522
    %v6603 = vpop.f32.mrb[0].mxu0
    %v6604 = vadd.f32 %v6563, %v6603
    %v6605 = vpop.f32.mrb[0].mxu0
    %v6606 = vadd.f32 %v6565, %v6605
    %v6607 = vpop.f32.mrb[0].mxu0
    %v6608 = vpop.f32.mrb[0].mxu0
    %6609 = vdwg.mxu0
    %6610 = vmatprep.subr.bf16.mxu0 %v2393
    %6611 = vmatpush1.bf16.msra.mxu0 %v2392
    %6612 = vmatprep.subr.bf16.mxu0 %v2401
    %6613 = vmatpush1.bf16.msra.mxu0 %v2400
    %6614 = vmatprep.subr.bf16.mxu0 %v2409
    %6615 = vmatpush1.bf16.msra.mxu0 %v2408
    %6616 = vmatprep.subr.bf16.mxu0 %v2417
    %6617 = vmatpush1.bf16.msra.mxu0 %v2416
    %6618 = vmatprep.subr.bf16.mxu0 %v2425
    %6619 = vmatpush1.bf16.msra.mxu0 %v2424
    %6620 = vmatprep.subr.bf16.mxu0 %v2433
    %6621 = vmatpush1.bf16.msra.mxu0 %v2432
    %6622 = vmatprep.subr.bf16.mxu0 %v2441
    %6623 = vmatpush1.bf16.msra.mxu0 %v2440
    %6624 = vmatprep.subr.bf16.mxu0 %v2449
    %6625 = vmatpush1.bf16.msra.mxu0 %v2448
    %6626 = vmatprep.subr.bf16.mxu0 %v2457
    %6627 = vmatpush1.bf16.msra.mxu0 %v2456
    %6628 = vmatprep.subr.bf16.mxu0 %v2465
    %6629 = vmatpush1.bf16.msra.mxu0 %v2464
    %6630 = vmatprep.subr.bf16.mxu0 %v2473
    %6631 = vmatpush1.bf16.msra.mxu0 %v2472
    %6632 = vmatprep.subr.bf16.mxu0 %v2481
    %6633 = vmatpush1.bf16.msra.mxu0 %v2480
    %6634 = vmatprep.subr.bf16.mxu0 %v2489
    %6635 = vmatpush1.bf16.msra.mxu0 %v2488
    %6636 = vmatprep.subr.bf16.mxu0 %v2497
    %6637 = vmatpush1.bf16.msra.mxu0 %v2496
    %6638 = vmatprep.subr.bf16.mxu0 %v2505
    %6639 = vmatpush1.bf16.msra.mxu0 %v2504
    %6640 = vmatprep.subr.bf16.mxu0 %v2513
    %6641 = vmatpush1.bf16.msra.mxu0 %v2512
    %6642 = vmatprep.mubr.bf16.mxu0 %v6525
    %6643 = vmatmul.mubr.bf16.gmra.mrb[0].mxu0 %v6524
    %v6644 = vpop.f32.mrb[0].mxu0
    %v6645 = vadd.f32 %v6604, %v6644
    %v6646 = vpop.f32.mrb[0].mxu0
    %v6647 = vadd.f32 %v6606, %v6646
    %v6648 = vpop.f32.mrb[0].mxu0
    %v6649 = vpop.f32.mrb[0].mxu0
    %6650 = vdwg.mxu0
    %6651 = vmatprep.subr.bf16.mxu0 %v2521
    %6652 = vmatpush1.bf16.msra.mxu0 %v2520
    %6653 = vmatprep.subr.bf16.mxu0 %v2529
    %6654 = vmatpush1.bf16.msra.mxu0 %v2528
    %6655 = vmatprep.subr.bf16.mxu0 %v2537
    %6656 = vmatpush1.bf16.msra.mxu0 %v2536
    %6657 = vmatprep.subr.bf16.mxu0 %v2545
    %6658 = vmatpush1.bf16.msra.mxu0 %v2544
    %6659 = vmatprep.subr.bf16.mxu0 %v2553
    %6660 = vmatpush1.bf16.msra.mxu0 %v2552
    %6661 = vmatprep.subr.bf16.mxu0 %v2561
    %6662 = vmatpush1.bf16.msra.mxu0 %v2560
    %6663 = vmatprep.subr.bf16.mxu0 %v2569
    %6664 = vmatpush1.bf16.msra.mxu0 %v2568
    %6665 = vmatprep.subr.bf16.mxu0 %v2577
    %6666 = vmatpush1.bf16.msra.mxu0 %v2576
    %6667 = vmatprep.subr.bf16.mxu0 %v2585
    %6668 = vmatpush1.bf16.msra.mxu0 %v2584
    %6669 = vmatprep.subr.bf16.mxu0 %v2593
    %6670 = vmatpush1.bf16.msra.mxu0 %v2592
    %6671 = vmatprep.subr.bf16.mxu0 %v2601
    %6672 = vmatpush1.bf16.msra.mxu0 %v2600
    %6673 = vmatprep.subr.bf16.mxu0 %v2609
    %6674 = vmatpush1.bf16.msra.mxu0 %v2608
    %6675 = vmatprep.subr.bf16.mxu0 %v2617
    %6676 = vmatpush1.bf16.msra.mxu0 %v2616
    %6677 = vmatprep.subr.bf16.mxu0 %v2625
    %6678 = vmatpush1.bf16.msra.mxu0 %v2624
    %6679 = vmatprep.subr.bf16.mxu0 %v2633
    %6680 = vmatpush1.bf16.msra.mxu0 %v2632
    %6681 = vmatprep.subr.bf16.mxu0 %v2641
    %6682 = vmatpush1.bf16.msra.mxu0 %v2640
    %6683 = vmatprep.mubr.bf16.mxu0 %v6527
    %6684 = vmatmul.mubr.bf16.gmra.mrb[0].mxu0 %v6526
    %v6685 = vpop.f32.mrb[0].mxu0
    %v6686 = vadd.f32 %v6645, %v6685
    %v6687 = vpop.f32.mrb[0].mxu0
    %v6688 = vadd.f32 %v6647, %v6687
    %v6689 = vpop.f32.mrb[0].mxu0
    %v6690 = vpop.f32.mrb[0].mxu0
    %6691 = vdwg.mxu0
    %6692 = vmatprep.subr.bf16.mxu0 %v2139
    %6693 = vmatpush1.bf16.msra.mxu0 %v2138
    %6694 = vmatprep.subr.bf16.mxu0 %v2147
    %6695 = vmatpush1.bf16.msra.mxu0 %v2146
    %6696 = vmatprep.subr.bf16.mxu0 %v2155
    %6697 = vmatpush1.bf16.msra.mxu0 %v2154
    %6698 = vmatprep.subr.bf16.mxu0 %v2163
    %6699 = vmatpush1.bf16.msra.mxu0 %v2162
    %6700 = vmatprep.subr.bf16.mxu0 %v2171
    %6701 = vmatpush1.bf16.msra.mxu0 %v2170
    %6702 = vmatprep.subr.bf16.mxu0 %v2179
    %6703 = vmatpush1.bf16.msra.mxu0 %v2178
    %6704 = vmatprep.subr.bf16.mxu0 %v2187
    %6705 = vmatpush1.bf16.msra.mxu0 %v2186
    %6706 = vmatprep.subr.bf16.mxu0 %v2195
    %6707 = vmatpush1.bf16.msra.mxu0 %v2194
    %6708 = vmatprep.subr.bf16.mxu0 %v2203
    %6709 = vmatpush1.bf16.msra.mxu0 %v2202
    %6710 = vmatprep.subr.bf16.mxu0 %v2211
    %6711 = vmatpush1.bf16.msra.mxu0 %v2210
    %6712 = vmatprep.subr.bf16.mxu0 %v2219
    %6713 = vmatpush1.bf16.msra.mxu0 %v2218
    %6714 = vmatprep.subr.bf16.mxu0 %v2227
    %6715 = vmatpush1.bf16.msra.mxu0 %v2226
    %6716 = vmatprep.subr.bf16.mxu0 %v2235
    %6717 = vmatpush1.bf16.msra.mxu0 %v2234
    %6718 = vmatprep.subr.bf16.mxu0 %v2243
    %6719 = vmatpush1.bf16.msra.mxu0 %v2242
    %6720 = vmatprep.subr.bf16.mxu0 %v2251
    %6721 = vmatpush1.bf16.msra.mxu0 %v2250
    %6722 = vmatprep.subr.bf16.mxu0 %v2259
    %6723 = vmatpush1.bf16.msra.mxu0 %v2258
    %6724 = vmatprep.mubr.bf16.mxu0 %v6521
    %6725 = vmatmul.mubr.bf16.gmra.mrb[0].mxu0 %v6520
    %v6726 = vpop.f32.mrb[0].mxu0
    %v6727 = vadd.f32 0.0, %v6726
    %v6728 = vpop.f32.mrb[0].mxu0
    %v6729 = vadd.f32 0.0, %v6728
    %v6730 = vpop.f32.mrb[0].mxu0
    %v6731 = vpop.f32.mrb[0].mxu0
    %6732 = vdwg.mxu0
    %6733 = vmatprep.subr.bf16.mxu0 %v2267
    %6734 = vmatpush1.bf16.msra.mxu0 %v2266
    %6735 = vmatprep.subr.bf16.mxu0 %v2275
    %6736 = vmatpush1.bf16.msra.mxu0 %v2274
    %6737 = vmatprep.subr.bf16.mxu0 %v2283
    %6738 = vmatpush1.bf16.msra.mxu0 %v2282
    %6739 = vmatprep.subr.bf16.mxu0 %v2291
    %6740 = vmatpush1.bf16.msra.mxu0 %v2290
    %6741 = vmatprep.subr.bf16.mxu0 %v2299
    %6742 = vmatpush1.bf16.msra.mxu0 %v2298
    %6743 = vmatprep.subr.bf16.mxu0 %v2307
    %6744 = vmatpush1.bf16.msra.mxu0 %v2306
    %6745 = vmatprep.subr.bf16.mxu0 %v2315
    %6746 = vmatpush1.bf16.msra.mxu0 %v2314
    %6747 = vmatprep.subr.bf16.mxu0 %v2323
    %6748 = vmatpush1.bf16.msra.mxu0 %v2322
    %6749 = vmatprep.subr.bf16.mxu0 %v2331
    %6750 = vmatpush1.bf16.msra.mxu0 %v2330
    %6751 = vmatprep.subr.bf16.mxu0 %v2339
    %6752 = vmatpush1.bf16.msra.mxu0 %v2338
    %6753 = vmatprep.subr.bf16.mxu0 %v2347
    %6754 = vmatpush1.bf16.msra.mxu0 %v2346
    %6755 = vmatprep.subr.bf16.mxu0 %v2355
    %6756 = vmatpush1.bf16.msra.mxu0 %v2354
    %6757 = vmatprep.subr.bf16.mxu0 %v2363
    %6758 = vmatpush1.bf16.msra.mxu0 %v2362
    %6759 = vmatprep.subr.bf16.mxu0 %v2371
    %6760 = vmatpush1.bf16.msra.mxu0 %v2370
    %6761 = vmatprep.subr.bf16.mxu0 %v2379
    %6762 = vmatpush1.bf16.msra.mxu0 %v2378
    %6763 = vmatprep.subr.bf16.mxu0 %v2387
    %6764 = vmatpush1.bf16.msra.mxu0 %v2386
    %6765 = vmatprep.mubr.bf16.mxu0 %v6523
    %6766 = vmatmul.mubr.bf16.gmra.mrb[0].mxu0 %v6522
    %v6767 = vpop.f32.mrb[0].mxu0
    %v6768 = vadd.f32 %v6727, %v6767
    %v6769 = vpop.f32.mrb[0].mxu0
    %v6770 = vadd.f32 %v6729, %v6769
    %v6771 = vpop.f32.mrb[0].mxu0
    %v6772 = vpop.f32.mrb[0].mxu0
    %6773 = vdwg.mxu0
    %6774 = vmatprep.subr.bf16.mxu0 %v2395
    %6775 = vmatpush1.bf16.msra.mxu0 %v2394
    %6776 = vmatprep.subr.bf16.mxu0 %v2403
    %6777 = vmatpush1.bf16.msra.mxu0 %v2402
    %6778 = vmatprep.subr.bf16.mxu0 %v2411
    %6779 = vmatpush1.bf16.msra.mxu0 %v2410
    %6780 = vmatprep.subr.bf16.mxu0 %v2419
    %6781 = vmatpush1.bf16.msra.mxu0 %v2418
    %6782 = vmatprep.subr.bf16.mxu0 %v2427
    %6783 = vmatpush1.bf16.msra.mxu0 %v2426
    %6784 = vmatprep.subr.bf16.mxu0 %v2435
    %6785 = vmatpush1.bf16.msra.mxu0 %v2434
    %6786 = vmatprep.subr.bf16.mxu0 %v2443
    %6787 = vmatpush1.bf16.msra.mxu0 %v2442
    %6788 = vmatprep.subr.bf16.mxu0 %v2451
    %6789 = vmatpush1.bf16.msra.mxu0 %v2450
    %6790 = vmatprep.subr.bf16.mxu0 %v2459
    %6791 = vmatpush1.bf16.msra.mxu0 %v2458
    %6792 = vmatprep.subr.bf16.mxu0 %v2467
    %6793 = vmatpush1.bf16.msra.mxu0 %v2466
    %6794 = vmatprep.subr.bf16.mxu0 %v2475
    %6795 = vmatpush1.bf16.msra.mxu0 %v2474
    %6796 = vmatprep.subr.bf16.mxu0 %v2483
    %6797 = vmatpush1.bf16.msra.mxu0 %v2482
    %6798 = vmatprep.subr.bf16.mxu0 %v2491
    %6799 = vmatpush1.bf16.msra.mxu0 %v2490
    %6800 = vmatprep.subr.bf16.mxu0 %v2499
    %6801 = vmatpush1.bf16.msra.mxu0 %v2498
    %6802 = vmatprep.subr.bf16.mxu0 %v2507
    %6803 = vmatpush1.bf16.msra.mxu0 %v2506
    %6804 = vmatprep.subr.bf16.mxu0 %v2515
    %6805 = vmatpush1.bf16.msra.mxu0 %v2514
    %6806 = vmatprep.mubr.bf16.mxu0 %v6525
    %6807 = vmatmul.mubr.bf16.gmra.mrb[0].mxu0 %v6524
    %v6808 = vpop.f32.mrb[0].mxu0
    %v6809 = vadd.f32 %v6768, %v6808
    %v6810 = vpop.f32.mrb[0].mxu0
    %v6811 = vadd.f32 %v6770, %v6810
    %v6812 = vpop.f32.mrb[0].mxu0
    %v6813 = vpop.f32.mrb[0].mxu0
    %6814 = vdwg.mxu0
    %6815 = vmatprep.subr.bf16.mxu0 %v2523
    %6816 = vmatpush1.bf16.msra.mxu0 %v2522
    %6817 = vmatprep.subr.bf16.mxu0 %v2531
    %6818 = vmatpush1.bf16.msra.mxu0 %v2530
    %6819 = vmatprep.subr.bf16.mxu0 %v2539
    %6820 = vmatpush1.bf16.msra.mxu0 %v2538
    %6821 = vmatprep.subr.bf16.mxu0 %v2547
    %6822 = vmatpush1.bf16.msra.mxu0 %v2546
    %6823 = vmatprep.subr.bf16.mxu0 %v2555
    %6824 = vmatpush1.bf16.msra.mxu0 %v2554
    %6825 = vmatprep.subr.bf16.mxu0 %v2563
    %6826 = vmatpush1.bf16.msra.mxu0 %v2562
    %6827 = vmatprep.subr.bf16.mxu0 %v2571
    %6828 = vmatpush1.bf16.msra.mxu0 %v2570
    %6829 = vmatprep.subr.bf16.mxu0 %v2579
    %6830 = vmatpush1.bf16.msra.mxu0 %v2578
    %6831 = vmatprep.subr.bf16.mxu0 %v2587
    %6832 = vmatpush1.bf16.msra.mxu0 %v2586
    %6833 = vmatprep.subr.bf16.mxu0 %v2595
    %6834 = vmatpush1.bf16.msra.mxu0 %v2594
    %6835 = vmatprep.subr.bf16.mxu0 %v2603
    %6836 = vmatpush1.bf16.msra.mxu0 %v2602
    %6837 = vmatprep.subr.bf16.mxu0 %v2611
    %6838 = vmatpush1.bf16.msra.mxu0 %v2610
    %6839 = vmatprep.subr.bf16.mxu0 %v2619
    %6840 = vmatpush1.bf16.msra.mxu0 %v2618
    %6841 = vmatprep.subr.bf16.mxu0 %v2627
    %6842 = vmatpush1.bf16.msra.mxu0 %v2626
    %6843 = vmatprep.subr.bf16.mxu0 %v2635
    %6844 = vmatpush1.bf16.msra.mxu0 %v2634
    %6845 = vmatprep.subr.bf16.mxu0 %v2643
    %6846 = vmatpush1.bf16.msra.mxu0 %v2642
    %6847 = vmatprep.mubr.bf16.mxu0 %v6527
    %6848 = vmatmul.mubr.bf16.gmra.mrb[0].mxu0 %v6526
    %v6849 = vpop.f32.mrb[0].mxu0
    %v6850 = vadd.f32 %v6809, %v6849
    %v6851 = vpop.f32.mrb[0].mxu0
    %v6852 = vadd.f32 %v6811, %v6851
    %v6853 = vpop.f32.mrb[0].mxu0
    %v6854 = vpop.f32.mrb[0].mxu0
    %6855 = vdwg.mxu0
    %6856 = vmatprep.subr.bf16.mxu0 %v2141
    %6857 = vmatpush1.bf16.msra.mxu0 %v2140
    %6858 = vmatprep.subr.bf16.mxu0 %v2149
    %6859 = vmatpush1.bf16.msra.mxu0 %v2148
    %6860 = vmatprep.subr.bf16.mxu0 %v2157
    %6861 = vmatpush1.bf16.msra.mxu0 %v2156
    %6862 = vmatprep.subr.bf16.mxu0 %v2165
    %6863 = vmatpush1.bf16.msra.mxu0 %v2164
    %6864 = vmatprep.subr.bf16.mxu0 %v2173
    %6865 = vmatpush1.bf16.msra.mxu0 %v2172
    %6866 = vmatprep.subr.bf16.mxu0 %v2181
    %6867 = vmatpush1.bf16.msra.mxu0 %v2180
    %6868 = vmatprep.subr.bf16.mxu0 %v2189
    %6869 = vmatpush1.bf16.msra.mxu0 %v2188
    %6870 = vmatprep.subr.bf16.mxu0 %v2197
    %6871 = vmatpush1.bf16.msra.mxu0 %v2196
    %6872 = vmatprep.subr.bf16.mxu0 %v2205
    %6873 = vmatpush1.bf16.msra.mxu0 %v2204
    %6874 = vmatprep.subr.bf16.mxu0 %v2213
    %6875 = vmatpush1.bf16.msra.mxu0 %v2212
    %6876 = vmatprep.subr.bf16.mxu0 %v2221
    %6877 = vmatpush1.bf16.msra.mxu0 %v2220
    %6878 = vmatprep.subr.bf16.mxu0 %v2229
    %6879 = vmatpush1.bf16.msra.mxu0 %v2228
    %6880 = vmatprep.subr.bf16.mxu0 %v2237
    %6881 = vmatpush1.bf16.msra.mxu0 %v2236
    %6882 = vmatprep.subr.bf16.mxu0 %v2245
    %6883 = vmatpush1.bf16.msra.mxu0 %v2244
    %6884 = vmatprep.subr.bf16.mxu0 %v2253
    %6885 = vmatpush1.bf16.msra.mxu0 %v2252
    %6886 = vmatprep.subr.bf16.mxu0 %v2261
    %6887 = vmatpush1.bf16.msra.mxu0 %v2260
    %6888 = vmatprep.mubr.bf16.mxu0 %v6521
    %6889 = vmatmul.mubr.bf16.gmra.mrb[0].mxu0 %v6520
    %v6890 = vpop.f32.mrb[0].mxu0
    %v6891 = vadd.f32 0.0, %v6890
    %v6892 = vpop.f32.mrb[0].mxu0
    %v6893 = vadd.f32 0.0, %v6892
    %v6894 = vpop.f32.mrb[0].mxu0
    %v6895 = vpop.f32.mrb[0].mxu0
    %6896 = vdwg.mxu0
    %6897 = vmatprep.subr.bf16.mxu0 %v2269
    %6898 = vmatpush1.bf16.msra.mxu0 %v2268
    %6899 = vmatprep.subr.bf16.mxu0 %v2277
    %6900 = vmatpush1.bf16.msra.mxu0 %v2276
    %6901 = vmatprep.subr.bf16.mxu0 %v2285
    %6902 = vmatpush1.bf16.msra.mxu0 %v2284
    %6903 = vmatprep.subr.bf16.mxu0 %v2293
    %6904 = vmatpush1.bf16.msra.mxu0 %v2292
    %6905 = vmatprep.subr.bf16.mxu0 %v2301
    %6906 = vmatpush1.bf16.msra.mxu0 %v2300
    %6907 = vmatprep.subr.bf16.mxu0 %v2309
    %6908 = vmatpush1.bf16.msra.mxu0 %v2308
    %6909 = vmatprep.subr.bf16.mxu0 %v2317
    %6910 = vmatpush1.bf16.msra.mxu0 %v2316
    %6911 = vmatprep.subr.bf16.mxu0 %v2325
    %6912 = vmatpush1.bf16.msra.mxu0 %v2324
    %6913 = vmatprep.subr.bf16.mxu0 %v2333
    %6914 = vmatpush1.bf16.msra.mxu0 %v2332
    %6915 = vmatprep.subr.bf16.mxu0 %v2341
    %6916 = vmatpush1.bf16.msra.mxu0 %v2340
    %6917 = vmatprep.subr.bf16.mxu0 %v2349
    %6918 = vmatpush1.bf16.msra.mxu0 %v2348
    %6919 = vmatprep.subr.bf16.mxu0 %v2357
    %6920 = vmatpush1.bf16.msra.mxu0 %v2356
    %6921 = vmatprep.subr.bf16.mxu0 %v2365
    %6922 = vmatpush1.bf16.msra.mxu0 %v2364
    %6923 = vmatprep.subr.bf16.mxu0 %v2373
    %6924 = vmatpush1.bf16.msra.mxu0 %v2372
    %6925 = vmatprep.subr.bf16.mxu0 %v2381
    %6926 = vmatpush1.bf16.msra.mxu0 %v2380
    %6927 = vmatprep.subr.bf16.mxu0 %v2389
    %6928 = vmatpush1.bf16.msra.mxu0 %v2388
    %6929 = vmatprep.mubr.bf16.mxu0 %v6523
    %6930 = vmatmul.mubr.bf16.gmra.mrb[0].mxu0 %v6522
    %v6931 = vpop.f32.mrb[0].mxu0
    %v6932 = vadd.f32 %v6891, %v6931
    %v6933 = vpop.f32.mrb[0].mxu0
    %v6934 = vadd.f32 %v6893, %v6933
    %v6935 = vpop.f32.mrb[0].mxu0
    %v6936 = vpop.f32.mrb[0].mxu0
    %6937 = vdwg.mxu0
    %6938 = vmatprep.subr.bf16.mxu0 %v2397
    %6939 = vmatpush1.bf16.msra.mxu0 %v2396
    %6940 = vmatprep.subr.bf16.mxu0 %v2405
    %6941 = vmatpush1.bf16.msra.mxu0 %v2404
    %6942 = vmatprep.subr.bf16.mxu0 %v2413
    %6943 = vmatpush1.bf16.msra.mxu0 %v2412
    %6944 = vmatprep.subr.bf16.mxu0 %v2421
    %6945 = vmatpush1.bf16.msra.mxu0 %v2420
    %6946 = vmatprep.subr.bf16.mxu0 %v2429
    %6947 = vmatpush1.bf16.msra.mxu0 %v2428
    %6948 = vmatprep.subr.bf16.mxu0 %v2437
    %6949 = vmatpush1.bf16.msra.mxu0 %v2436
    %6950 = vmatprep.subr.bf16.mxu0 %v2445
    %6951 = vmatpush1.bf16.msra.mxu0 %v2444
    %6952 = vmatprep.subr.bf16.mxu0 %v2453
    %6953 = vmatpush1.bf16.msra.mxu0 %v2452
    %6954 = vmatprep.subr.bf16.mxu0 %v2461
    %6955 = vmatpush1.bf16.msra.mxu0 %v2460
    %6956 = vmatprep.subr.bf16.mxu0 %v2469
    %6957 = vmatpush1.bf16.msra.mxu0 %v2468
    %6958 = vmatprep.subr.bf16.mxu0 %v2477
    %6959 = vmatpush1.bf16.msra.mxu0 %v2476
    %6960 = vmatprep.subr.bf16.mxu0 %v2485
    %6961 = vmatpush1.bf16.msra.mxu0 %v2484
    %6962 = vmatprep.subr.bf16.mxu0 %v2493
    %6963 = vmatpush1.bf16.msra.mxu0 %v2492
    %6964 = vmatprep.subr.bf16.mxu0 %v2501
    %6965 = vmatpush1.bf16.msra.mxu0 %v2500
    %6966 = vmatprep.subr.bf16.mxu0 %v2509
    %6967 = vmatpush1.bf16.msra.mxu0 %v2508
    %6968 = vmatprep.subr.bf16.mxu0 %v2517
    %6969 = vmatpush1.bf16.msra.mxu0 %v2516
    %6970 = vmatprep.mubr.bf16.mxu0 %v6525
    %6971 = vmatmul.mubr.bf16.gmra.mrb[0].mxu0 %v6524
    %v6972 = vpop.f32.mrb[0].mxu0
    %v6973 = vadd.f32 %v6932, %v6972
    %v6974 = vpop.f32.mrb[0].mxu0
    %v6975 = vadd.f32 %v6934, %v6974
    %v6976 = vpop.f32.mrb[0].mxu0
    %v6977 = vpop.f32.mrb[0].mxu0
    %6978 = vdwg.mxu0
    %6979 = vmatprep.subr.bf16.mxu0 %v2525
    %6980 = vmatpush1.bf16.msra.mxu0 %v2524
    %6981 = vmatprep.subr.bf16.mxu0 %v2533
    %6982 = vmatpush1.bf16.msra.mxu0 %v2532
    %6983 = vmatprep.subr.bf16.mxu0 %v2541
    %6984 = vmatpush1.bf16.msra.mxu0 %v2540
    %6985 = vmatprep.subr.bf16.mxu0 %v2549
    %6986 = vmatpush1.bf16.msra.mxu0 %v2548
    %6987 = vmatprep.subr.bf16.mxu0 %v2557
    %6988 = vmatpush1.bf16.msra.mxu0 %v2556
    %6989 = vmatprep.subr.bf16.mxu0 %v2565
    %6990 = vmatpush1.bf16.msra.mxu0 %v2564
    %6991 = vmatprep.subr.bf16.mxu0 %v2573
    %6992 = vmatpush1.bf16.msra.mxu0 %v2572
    %6993 = vmatprep.subr.bf16.mxu0 %v2581
    %6994 = vmatpush1.bf16.msra.mxu0 %v2580
    %6995 = vmatprep.subr.bf16.mxu0 %v2589
    %6996 = vmatpush1.bf16.msra.mxu0 %v2588
    %6997 = vmatprep.subr.bf16.mxu0 %v2597
    %6998 = vmatpush1.bf16.msra.mxu0 %v2596
    %6999 = vmatprep.subr.bf16.mxu0 %v2605
    %7000 = vmatpush1.bf16.msra.mxu0 %v2604
    %7001 = vmatprep.subr.bf16.mxu0 %v2613
    %7002 = vmatpush1.bf16.msra.mxu0 %v2612
    %7003 = vmatprep.subr.bf16.mxu0 %v2621
    %7004 = vmatpush1.bf16.msra.mxu0 %v2620
    %7005 = vmatprep.subr.bf16.mxu0 %v2629
    %7006 = vmatpush1.bf16.msra.mxu0 %v2628
    %7007 = vmatprep.subr.bf16.mxu0 %v2637
    %7008 = vmatpush1.bf16.msra.mxu0 %v2636
    %7009 = vmatprep.subr.bf16.mxu0 %v2645
    %7010 = vmatpush1.bf16.msra.mxu0 %v2644
    %7011 = vmatprep.mubr.bf16.mxu0 %v6527
    %7012 = vmatmul.mubr.bf16.gmra.mrb[0].mxu0 %v6526
    %v7013 = vpop.f32.mrb[0].mxu0
    %v7014 = vadd.f32 %v6973, %v7013
    %v7015 = vpop.f32.mrb[0].mxu0
    %v7016 = vadd.f32 %v6975, %v7015
    %v7017 = vpop.f32.mrb[0].mxu0
    %v7018 = vpop.f32.mrb[0].mxu0
    %7019 = vdwg.mxu0
    %7020 = vmatprep.subr.bf16.mxu0 %v2143
    %7021 = vmatpush1.bf16.msra.mxu0 %v2142
    %7022 = vmatprep.subr.bf16.mxu0 %v2151
    %7023 = vmatpush1.bf16.msra.mxu0 %v2150
    %7024 = vmatprep.subr.bf16.mxu0 %v2159
    %7025 = vmatpush1.bf16.msra.mxu0 %v2158
    %7026 = vmatprep.subr.bf16.mxu0 %v2167
    %7027 = vmatpush1.bf16.msra.mxu0 %v2166
    %7028 = vmatprep.subr.bf16.mxu0 %v2175
    %7029 = vmatpush1.bf16.msra.mxu0 %v2174
    %7030 = vmatprep.subr.bf16.mxu0 %v2183
    %7031 = vmatpush1.bf16.msra.mxu0 %v2182
    %7032 = vmatprep.subr.bf16.mxu0 %v2191
    %7033 = vmatpush1.bf16.msra.mxu0 %v2190
    %7034 = vmatprep.subr.bf16.mxu0 %v2199
    %7035 = vmatpush1.bf16.msra.mxu0 %v2198
    %7036 = vmatprep.subr.bf16.mxu0 %v2207
    %7037 = vmatpush1.bf16.msra.mxu0 %v2206
    %7038 = vmatprep.subr.bf16.mxu0 %v2215
    %7039 = vmatpush1.bf16.msra.mxu0 %v2214
    %7040 = vmatprep.subr.bf16.mxu0 %v2223
    %7041 = vmatpush1.bf16.msra.mxu0 %v2222
    %7042 = vmatprep.subr.bf16.mxu0 %v2231
    %7043 = vmatpush1.bf16.msra.mxu0 %v2230
    %7044 = vmatprep.subr.bf16.mxu0 %v2239
    %7045 = vmatpush1.bf16.msra.mxu0 %v2238
    %7046 = vmatprep.subr.bf16.mxu0 %v2247
    %7047 = vmatpush1.bf16.msra.mxu0 %v2246
    %7048 = vmatprep.subr.bf16.mxu0 %v2255
    %7049 = vmatpush1.bf16.msra.mxu0 %v2254
    %7050 = vmatprep.subr.bf16.mxu0 %v2263
    %7051 = vmatpush1.bf16.msra.mxu0 %v2262
    %7052 = vmatprep.mubr.bf16.mxu0 %v6521
    %7053 = vmatmul.mubr.bf16.gmra.mrb[0].mxu0 %v6520
    %v7054 = vpop.f32.mrb[0].mxu0
    %v7055 = vadd.f32 0.0, %v7054
    %v7056 = vpop.f32.mrb[0].mxu0
    %v7057 = vadd.f32 0.0, %v7056
    %v7058 = vpop.f32.mrb[0].mxu0
    %v7059 = vpop.f32.mrb[0].mxu0
    %7060 = vdwg.mxu0
    %7061 = vmatprep.subr.bf16.mxu0 %v2271
    %7062 = vmatpush1.bf16.msra.mxu0 %v2270
    %7063 = vmatprep.subr.bf16.mxu0 %v2279
    %7064 = vmatpush1.bf16.msra.mxu0 %v2278
    %7065 = vmatprep.subr.bf16.mxu0 %v2287
    %7066 = vmatpush1.bf16.msra.mxu0 %v2286
    %7067 = vmatprep.subr.bf16.mxu0 %v2295
    %7068 = vmatpush1.bf16.msra.mxu0 %v2294
    %7069 = vmatprep.subr.bf16.mxu0 %v2303
    %7070 = vmatpush1.bf16.msra.mxu0 %v2302
    %7071 = vmatprep.subr.bf16.mxu0 %v2311
    %7072 = vmatpush1.bf16.msra.mxu0 %v2310
    %7073 = vmatprep.subr.bf16.mxu0 %v2319
    %7074 = vmatpush1.bf16.msra.mxu0 %v2318
    %7075 = vmatprep.subr.bf16.mxu0 %v2327
    %7076 = vmatpush1.bf16.msra.mxu0 %v2326
    %7077 = vmatprep.subr.bf16.mxu0 %v2335
    %7078 = vmatpush1.bf16.msra.mxu0 %v2334
    %7079 = vmatprep.subr.bf16.mxu0 %v2343
    %7080 = vmatpush1.bf16.msra.mxu0 %v2342
    %7081 = vmatprep.subr.bf16.mxu0 %v2351
    %7082 = vmatpush1.bf16.msra.mxu0 %v2350
    %7083 = vmatprep.subr.bf16.mxu0 %v2359
    %7084 = vmatpush1.bf16.msra.mxu0 %v2358
    %7085 = vmatprep.subr.bf16.mxu0 %v2367
    %7086 = vmatpush1.bf16.msra.mxu0 %v2366
    %7087 = vmatprep.subr.bf16.mxu0 %v2375
    %7088 = vmatpush1.bf16.msra.mxu0 %v2374
    %7089 = vmatprep.subr.bf16.mxu0 %v2383
    %7090 = vmatpush1.bf16.msra.mxu0 %v2382
    %7091 = vmatprep.subr.bf16.mxu0 %v2391
    %7092 = vmatpush1.bf16.msra.mxu0 %v2390
    %7093 = vmatprep.mubr.bf16.mxu0 %v6523
    %7094 = vmatmul.mubr.bf16.gmra.mrb[0].mxu0 %v6522
    %v7095 = vpop.f32.mrb[0].mxu0
    %v7096 = vadd.f32 %v7055, %v7095
    %v7097 = vpop.f32.mrb[0].mxu0
    %v7098 = vadd.f32 %v7057, %v7097
    %v7099 = vpop.f32.mrb[0].mxu0
    %v7100 = vpop.f32.mrb[0].mxu0
    %7101 = vdwg.mxu0
    %7102 = vmatprep.subr.bf16.mxu0 %v2399
    %7103 = vmatpush1.bf16.msra.mxu0 %v2398
    %7104 = vmatprep.subr.bf16.mxu0 %v2407
    %7105 = vmatpush1.bf16.msra.mxu0 %v2406
    %7106 = vmatprep.subr.bf16.mxu0 %v2415
    %7107 = vmatpush1.bf16.msra.mxu0 %v2414
    %7108 = vmatprep.subr.bf16.mxu0 %v2423
    %7109 = vmatpush1.bf16.msra.mxu0 %v2422
    %7110 = vmatprep.subr.bf16.mxu0 %v2431
    %7111 = vmatpush1.bf16.msra.mxu0 %v2430
    %7112 = vmatprep.subr.bf16.mxu0 %v2439
    %7113 = vmatpush1.bf16.msra.mxu0 %v2438
    %7114 = vmatprep.subr.bf16.mxu0 %v2447
    %7115 = vmatpush1.bf16.msra.mxu0 %v2446
    %7116 = vmatprep.subr.bf16.mxu0 %v2455
    %7117 = vmatpush1.bf16.msra.mxu0 %v2454
    %7118 = vmatprep.subr.bf16.mxu0 %v2463
    %7119 = vmatpush1.bf16.msra.mxu0 %v2462
    %7120 = vmatprep.subr.bf16.mxu0 %v2471
    %7121 = vmatpush1.bf16.msra.mxu0 %v2470
    %7122 = vmatprep.subr.bf16.mxu0 %v2479
    %7123 = vmatpush1.bf16.msra.mxu0 %v2478
    %7124 = vmatprep.subr.bf16.mxu0 %v2487
    %7125 = vmatpush1.bf16.msra.mxu0 %v2486
    %7126 = vmatprep.subr.bf16.mxu0 %v2495
    %7127 = vmatpush1.bf16.msra.mxu0 %v2494
    %7128 = vmatprep.subr.bf16.mxu0 %v2503
    %7129 = vmatpush1.bf16.msra.mxu0 %v2502
    %7130 = vmatprep.subr.bf16.mxu0 %v2511
    %7131 = vmatpush1.bf16.msra.mxu0 %v2510
    %7132 = vmatprep.subr.bf16.mxu0 %v2519
    %7133 = vmatpush1.bf16.msra.mxu0 %v2518
    %7134 = vmatprep.mubr.bf16.mxu0 %v6525
    %7135 = vmatmul.mubr.bf16.gmra.mrb[0].mxu0 %v6524
    %v7136 = vpop.f32.mrb[0].mxu0
    %v7137 = vadd.f32 %v7096, %v7136
    %v7138 = vpop.f32.mrb[0].mxu0
    %v7139 = vadd.f32 %v7098, %v7138
    %v7140 = vpop.f32.mrb[0].mxu0
    %v7141 = vpop.f32.mrb[0].mxu0
    %7142 = vdwg.mxu0
    %7143 = vmatprep.subr.bf16.mxu0 %v2527
    %7144 = vmatpush1.bf16.msra.mxu0 %v2526
    %7145 = vmatprep.subr.bf16.mxu0 %v2535
    %7146 = vmatpush1.bf16.msra.mxu0 %v2534
    %7147 = vmatprep.subr.bf16.mxu0 %v2543
    %7148 = vmatpush1.bf16.msra.mxu0 %v2542
    %7149 = vmatprep.subr.bf16.mxu0 %v2551
    %7150 = vmatpush1.bf16.msra.mxu0 %v2550
    %7151 = vmatprep.subr.bf16.mxu0 %v2559
    %7152 = vmatpush1.bf16.msra.mxu0 %v2558
    %7153 = vmatprep.subr.bf16.mxu0 %v2567
    %7154 = vmatpush1.bf16.msra.mxu0 %v2566
    %7155 = vmatprep.subr.bf16.mxu0 %v2575
    %7156 = vmatpush1.bf16.msra.mxu0 %v2574
    %7157 = vmatprep.subr.bf16.mxu0 %v2583
    %7158 = vmatpush1.bf16.msra.mxu0 %v2582
    %7159 = vmatprep.subr.bf16.mxu0 %v2591
    %7160 = vmatpush1.bf16.msra.mxu0 %v2590
    %7161 = vmatprep.subr.bf16.mxu0 %v2599
    %7162 = vmatpush1.bf16.msra.mxu0 %v2598
    %7163 = vmatprep.subr.bf16.mxu0 %v2607
    %7164 = vmatpush1.bf16.msra.mxu0 %v2606
    %7165 = vmatprep.subr.bf16.mxu0 %v2615
    %7166 = vmatpush1.bf16.msra.mxu0 %v2614
    %7167 = vmatprep.subr.bf16.mxu0 %v2623
    %7168 = vmatpush1.bf16.msra.mxu0 %v2622
    %7169 = vmatprep.subr.bf16.mxu0 %v2631
    %7170 = vmatpush1.bf16.msra.mxu0 %v2630
    %7171 = vmatprep.subr.bf16.mxu0 %v2639
    %7172 = vmatpush1.bf16.msra.mxu0 %v2638
    %7173 = vmatprep.subr.bf16.mxu0 %v2647
    %7174 = vmatpush1.bf16.msra.mxu0 %v2646
    %7175 = vmatprep.mubr.bf16.mxu0 %v6527
    %7176 = vmatmul.mubr.bf16.gmra.mrb[0].mxu0 %v6526
    %v7177 = vpop.f32.mrb[0].mxu0
    %v7178 = vadd.f32 %v7137, %v7177
    %v7179 = vpop.f32.mrb[0].mxu0
    %v7180 = vadd.f32 %v7139, %v7179
    %v7181 = vpop.f32.mrb[0].mxu0
    %v7182 = vpop.f32.mrb[0].mxu0
    %7183 = vdwg.mxu0
    %v7184 = vstv %s6473
    %v7185 = vmul.f32 %v7184, %v6471
    %v7186 = vmul.f32 %v7184, %v6472
    %v7187 = vstv %s6474
    %v7188 = vmul.f32 %v7187, %v6686
    %v7189 = vmul.f32 %v7187, %v6688
    %v7190 = vmul.f32 %v7187, %v6850
    %v7191 = vmul.f32 %v7187, %v6852
    %v7192 = vmul.f32 %v7187, %v7014
    %v7193 = vmul.f32 %v7187, %v7016
    %v7194 = vmul.f32 %v7187, %v7178
    %v7195 = vmul.f32 %v7187, %v7180
    %v7204 = vcombine.low %v7188, %v7189
    %v7205 = vcombine.low %v7190, %v7191
    %v7207 = vunpack.c.l.s4 1983009808
    %v7208 = vunpack.c.0.s8 %v7207
    %v7209 = vlaneseq
    %v7210 = vshrl.u32 %v7209, 7
    %v7211 = vsub.s32 %v7208, %v7210
    %v7212 = vrot.slane %v7204, %v7211
    %v7214 = vunpack.c.l.s4 1983009808
    %v7215 = vunpack.c.0.s8 %v7214
    %v7216 = vlaneseq
    %v7217 = vshrl.u32 %v7216, 7
    %v7218 = vsub.s32 %v7215, %v7217
    %v7219 = vrot.slane %v7205, %v7218
    %v7220 = vcombine.low %v7212, %v7219
    %v7221 = vcombine.low %v7192, %v7193
    %v7222 = vcombine.low %v7194, %v7195
    %v7224 = vunpack.c.l.s4 1983009808
    %v7225 = vunpack.c.0.s8 %v7224
    %v7226 = vlaneseq
    %v7227 = vshrl.u32 %v7226, 7
    %v7228 = vsub.s32 %v7225, %v7227
    %v7229 = vrot.slane %v7221, %v7228
    %v7231 = vunpack.c.l.s4 1983009808
    %v7232 = vunpack.c.0.s8 %v7231
    %v7233 = vlaneseq
    %v7234 = vshrl.u32 %v7233, 7
    %v7235 = vsub.s32 %v7232, %v7234
    %v7236 = vrot.slane %v7222, %v7235
    %v7237 = vcombine.low %v7229, %v7236
    %v7240 = vadd.f32 %v7185, %v7220
    %v7241 = vadd.f32 %v7186, %v7237
    %v7242 = vstv %s6475
    %v7243 = vmul.f32 %v7242, %v30
    %v7245 = vlaneseq
    %v7246 = vshrl.u32 %v7245, 7
    %v7247 = vsub.s32 0, %v7246
    %v7248 = vrot.slane %v7243, %v7247
    %v7249 = vlaneseq
    %v7250 = vshrl.u32 %v7249, 7
    %v7251 = vsub.s32 1, %v7250
    %v7252 = vrot.slane %v7243, %v7251
    %v7253 = vlaneseq
    %v7254 = vshrl.u32 %v7253, 7
    %v7255 = vsub.s32 2, %v7254
    %v7256 = vrot.slane %v7243, %v7255
    %v7257 = vlaneseq
    %v7258 = vshrl.u32 %v7257, 7
    %v7259 = vsub.s32 3, %v7258
    %v7260 = vrot.slane %v7243, %v7259
    %v7261 = vlaneseq
    %v7262 = vshrl.u32 %v7261, 7
    %v7263 = vsub.s32 4, %v7262
    %v7264 = vrot.slane %v7243, %v7263
    %v7265 = vlaneseq
    %v7266 = vshrl.u32 %v7265, 7
    %v7267 = vsub.s32 5, %v7266
    %v7268 = vrot.slane %v7243, %v7267
    %v7269 = vlaneseq
    %v7270 = vshrl.u32 %v7269, 7
    %v7271 = vsub.s32 6, %v7270
    %v7272 = vrot.slane %v7243, %v7271
    %v7273 = vlaneseq
    %v7274 = vshrl.u32 %v7273, 7
    %v7275 = vsub.s32 7, %v7274
    %v7276 = vrot.slane %v7243, %v7275
    %v7277 = vcombine.low %v7248, %v7252
    %v7278 = vcombine.low %v7256, %v7260
    %v7280 = vunpack.c.l.s4 1983009808
    %v7281 = vunpack.c.0.s8 %v7280
    %v7282 = vlaneseq
    %v7283 = vshrl.u32 %v7282, 7
    %v7284 = vsub.s32 %v7281, %v7283
    %v7285 = vrot.slane %v7277, %v7284
    %v7287 = vunpack.c.l.s4 1983009808
    %v7288 = vunpack.c.0.s8 %v7287
    %v7289 = vlaneseq
    %v7290 = vshrl.u32 %v7289, 7
    %v7291 = vsub.s32 %v7288, %v7290
    %v7292 = vrot.slane %v7278, %v7291
    %v7293 = vcombine.low %v7285, %v7292
    %v7294 = vcombine.low %v7264, %v7268
    %v7295 = vcombine.low %v7272, %v7276
    %v7297 = vunpack.c.l.s4 1983009808
    %v7298 = vunpack.c.0.s8 %v7297
    %v7299 = vlaneseq
    %v7300 = vshrl.u32 %v7299, 7
    %v7301 = vsub.s32 %v7298, %v7300
    %v7302 = vrot.slane %v7294, %v7301
    %v7304 = vunpack.c.l.s4 1983009808
    %v7305 = vunpack.c.0.s8 %v7304
    %v7306 = vlaneseq
    %v7307 = vshrl.u32 %v7306, 7
    %v7308 = vsub.s32 %v7305, %v7307
    %v7309 = vrot.slane %v7295, %v7308
    %v7310 = vcombine.low %v7302, %v7309
    %v7313 = vadd.f32 %v7240, %v7293
    %v7314 = vadd.f32 %v7241, %v7310
    %s7315 = sld [smem:[#allocation2 + $0x14]]
    %s7316 = sld [smem:[#allocation2 + $0x15]]
    %s7317 = sld [smem:[#allocation2 + $0x16]]
    %v7320 = vcombine.high %v7313, %v7313
    %v7322 = vunpack.c.l.s4 1983009808
    %v7323 = vunpack.c.0.s8 %v7322
    %v7324 = vlaneseq
    %v7325 = vshrl.u32 %v7324, 7
    %v7326 = vsub.s32 %v7323, %v7325
    %v7327 = vrot.slane %v7313, %v7326
    %v7329 = vunpack.c.l.s4 1983009808
    %v7330 = vunpack.c.0.s8 %v7329
    %v7331 = vlaneseq
    %v7332 = vshrl.u32 %v7331, 7
    %v7333 = vsub.s32 %v7330, %v7332
    %v7334 = vrot.slane %v7320, %v7333
    %v7335 = vcombine.high %v7327, %v7327
    %v7336 = vcombine.high %v7334, %v7334
    %v7337 = vcombine.high %v7314, %v7314
    %v7339 = vunpack.c.l.s4 1983009808
    %v7340 = vunpack.c.0.s8 %v7339
    %v7341 = vlaneseq
    %v7342 = vshrl.u32 %v7341, 7
    %v7343 = vsub.s32 %v7340, %v7342
    %v7344 = vrot.slane %v7314, %v7343
    %v7346 = vunpack.c.l.s4 1983009808
    %v7347 = vunpack.c.0.s8 %v7346
    %v7348 = vlaneseq
    %v7349 = vshrl.u32 %v7348, 7
    %v7350 = vsub.s32 %v7347, %v7349
    %v7351 = vrot.slane %v7337, %v7350
    %v7352 = vcombine.high %v7344, %v7344
    %v7353 = vcombine.high %v7351, %v7351
    %v7362 = vpack.c.bf16 %v7327, %v7327
    %v7363 = vpack.c.bf16 %v7335, %v7335
    %v7364 = vpack.c.bf16 %v7334, %v7334
    %v7365 = vpack.c.bf16 %v7336, %v7336
    %v7366 = vpack.c.bf16 %v7344, %v7344
    %v7367 = vpack.c.bf16 %v7352, %v7352
    %v7368 = vpack.c.bf16 %v7351, %v7351
    %v7369 = vpack.c.bf16 %v7353, %v7353
    %7370 = vmatprep.subr.bf16.mxu0 %v2137
    %7371 = vmatpush1.bf16.msra.mxu0 %v2136
    %7372 = vmatprep.subr.bf16.mxu0 %v2145
    %7373 = vmatpush1.bf16.msra.mxu0 %v2144
    %7374 = vmatprep.subr.bf16.mxu0 %v2153
    %7375 = vmatpush1.bf16.msra.mxu0 %v2152
    %7376 = vmatprep.subr.bf16.mxu0 %v2161
    %7377 = vmatpush1.bf16.msra.mxu0 %v2160
    %7378 = vmatprep.subr.bf16.mxu0 %v2169
    %7379 = vmatpush1.bf16.msra.mxu0 %v2168
    %7380 = vmatprep.subr.bf16.mxu0 %v2177
    %7381 = vmatpush1.bf16.msra.mxu0 %v2176
    %7382 = vmatprep.subr.bf16.mxu0 %v2185
    %7383 = vmatpush1.bf16.msra.mxu0 %v2184
    %7384 = vmatprep.subr.bf16.mxu0 %v2193
    %7385 = vmatpush1.bf16.msra.mxu0 %v2192
    %7386 = vmatprep.subr.bf16.mxu0 %v2201
    %7387 = vmatpush1.bf16.msra.mxu0 %v2200
    %7388 = vmatprep.subr.bf16.mxu0 %v2209
    %7389 = vmatpush1.bf16.msra.mxu0 %v2208
    %7390 = vmatprep.subr.bf16.mxu0 %v2217
    %7391 = vmatpush1.bf16.msra.mxu0 %v2216
    %7392 = vmatprep.subr.bf16.mxu0 %v2225
    %7393 = vmatpush1.bf16.msra.mxu0 %v2224
    %7394 = vmatprep.subr.bf16.mxu0 %v2233
    %7395 = vmatpush1.bf16.msra.mxu0 %v2232
    %7396 = vmatprep.subr.bf16.mxu0 %v2241
    %7397 = vmatpush1.bf16.msra.mxu0 %v2240
    %7398 = vmatprep.subr.bf16.mxu0 %v2249
    %7399 = vmatpush1.bf16.msra.mxu0 %v2248
    %7400 = vmatprep.subr.bf16.mxu0 %v2257
    %7401 = vmatpush1.bf16.msra.mxu0 %v2256
    %7402 = vmatprep.mubr.bf16.mxu0 %v7363
    %7403 = vmatmul.mubr.bf16.gmra.mrb[0].mxu0 %v7362
    %v7404 = vpop.f32.mrb[0].mxu0
    %v7405 = vadd.f32 0.0, %v7404
    %v7406 = vpop.f32.mrb[0].mxu0
    %v7407 = vadd.f32 0.0, %v7406
    %v7408 = vpop.f32.mrb[0].mxu0
    %v7409 = vpop.f32.mrb[0].mxu0
    %7410 = vdwg.mxu0
    %7411 = vmatprep.subr.bf16.mxu0 %v2265
    %7412 = vmatpush1.bf16.msra.mxu0 %v2264
    %7413 = vmatprep.subr.bf16.mxu0 %v2273
    %7414 = vmatpush1.bf16.msra.mxu0 %v2272
    %7415 = vmatprep.subr.bf16.mxu0 %v2281
    %7416 = vmatpush1.bf16.msra.mxu0 %v2280
    %7417 = vmatprep.subr.bf16.mxu0 %v2289
    %7418 = vmatpush1.bf16.msra.mxu0 %v2288
    %7419 = vmatprep.subr.bf16.mxu0 %v2297
    %7420 = vmatpush1.bf16.msra.mxu0 %v2296
    %7421 = vmatprep.subr.bf16.mxu0 %v2305
    %7422 = vmatpush1.bf16.msra.mxu0 %v2304
    %7423 = vmatprep.subr.bf16.mxu0 %v2313
    %7424 = vmatpush1.bf16.msra.mxu0 %v2312
    %7425 = vmatprep.subr.bf16.mxu0 %v2321
    %7426 = vmatpush1.bf16.msra.mxu0 %v2320
    %7427 = vmatprep.subr.bf16.mxu0 %v2329
    %7428 = vmatpush1.bf16.msra.mxu0 %v2328
    %7429 = vmatprep.subr.bf16.mxu0 %v2337
    %7430 = vmatpush1.bf16.msra.mxu0 %v2336
    %7431 = vmatprep.subr.bf16.mxu0 %v2345
    %7432 = vmatpush1.bf16.msra.mxu0 %v2344
    %7433 = vmatprep.subr.bf16.mxu0 %v2353
    %7434 = vmatpush1.bf16.msra.mxu0 %v2352
    %7435 = vmatprep.subr.bf16.mxu0 %v2361
    %7436 = vmatpush1.bf16.msra.mxu0 %v2360
    %7437 = vmatprep.subr.bf16.mxu0 %v2369
    %7438 = vmatpush1.bf16.msra.mxu0 %v2368
    %7439 = vmatprep.subr.bf16.mxu0 %v2377
    %7440 = vmatpush1.bf16.msra.mxu0 %v2376
    %7441 = vmatprep.subr.bf16.mxu0 %v2385
    %7442 = vmatpush1.bf16.msra.mxu0 %v2384
    %7443 = vmatprep.mubr.bf16.mxu0 %v7365
    %7444 = vmatmul.mubr.bf16.gmra.mrb[0].mxu0 %v7364
    %v7445 = vpop.f32.mrb[0].mxu0
    %v7446 = vadd.f32 %v7405, %v7445
    %v7447 = vpop.f32.mrb[0].mxu0
    %v7448 = vadd.f32 %v7407, %v7447
    %v7449 = vpop.f32.mrb[0].mxu0
    %v7450 = vpop.f32.mrb[0].mxu0
    %7451 = vdwg.mxu0
    %7452 = vmatprep.subr.bf16.mxu0 %v2393
    %7453 = vmatpush1.bf16.msra.mxu0 %v2392
    %7454 = vmatprep.subr.bf16.mxu0 %v2401
    %7455 = vmatpush1.bf16.msra.mxu0 %v2400
    %7456 = vmatprep.subr.bf16.mxu0 %v2409
    %7457 = vmatpush1.bf16.msra.mxu0 %v2408
    %7458 = vmatprep.subr.bf16.mxu0 %v2417
    %7459 = vmatpush1.bf16.msra.mxu0 %v2416
    %7460 = vmatprep.subr.bf16.mxu0 %v2425
    %7461 = vmatpush1.bf16.msra.mxu0 %v2424
    %7462 = vmatprep.subr.bf16.mxu0 %v2433
    %7463 = vmatpush1.bf16.msra.mxu0 %v2432
    %7464 = vmatprep.subr.bf16.mxu0 %v2441
    %7465 = vmatpush1.bf16.msra.mxu0 %v2440
    %7466 = vmatprep.subr.bf16.mxu0 %v2449
    %7467 = vmatpush1.bf16.msra.mxu0 %v2448
    %7468 = vmatprep.subr.bf16.mxu0 %v2457
    %7469 = vmatpush1.bf16.msra.mxu0 %v2456
    %7470 = vmatprep.subr.bf16.mxu0 %v2465
    %7471 = vmatpush1.bf16.msra.mxu0 %v2464
    %7472 = vmatprep.subr.bf16.mxu0 %v2473
    %7473 = vmatpush1.bf16.msra.mxu0 %v2472
    %7474 = vmatprep.subr.bf16.mxu0 %v2481
    %7475 = vmatpush1.bf16.msra.mxu0 %v2480
    %7476 = vmatprep.subr.bf16.mxu0 %v2489
    %7477 = vmatpush1.bf16.msra.mxu0 %v2488
    %7478 = vmatprep.subr.bf16.mxu0 %v2497
    %7479 = vmatpush1.bf16.msra.mxu0 %v2496
    %7480 = vmatprep.subr.bf16.mxu0 %v2505
    %7481 = vmatpush1.bf16.msra.mxu0 %v2504
    %7482 = vmatprep.subr.bf16.mxu0 %v2513
    %7483 = vmatpush1.bf16.msra.mxu0 %v2512
    %7484 = vmatprep.mubr.bf16.mxu0 %v7367
    %7485 = vmatmul.mubr.bf16.gmra.mrb[0].mxu0 %v7366
    %v7486 = vpop.f32.mrb[0].mxu0
    %v7487 = vadd.f32 %v7446, %v7486
    %v7488 = vpop.f32.mrb[0].mxu0
    %v7489 = vadd.f32 %v7448, %v7488
    %v7490 = vpop.f32.mrb[0].mxu0
    %v7491 = vpop.f32.mrb[0].mxu0
    %7492 = vdwg.mxu0
    %7493 = vmatprep.subr.bf16.mxu0 %v2521
    %7494 = vmatpush1.bf16.msra.mxu0 %v2520
    %7495 = vmatprep.subr.bf16.mxu0 %v2529
    %7496 = vmatpush1.bf16.msra.mxu0 %v2528
    %7497 = vmatprep.subr.bf16.mxu0 %v2537
    %7498 = vmatpush1.bf16.msra.mxu0 %v2536
    %7499 = vmatprep.subr.bf16.mxu0 %v2545
    %7500 = vmatpush1.bf16.msra.mxu0 %v2544
    %7501 = vmatprep.subr.bf16.mxu0 %v2553
    %7502 = vmatpush1.bf16.msra.mxu0 %v2552
    %7503 = vmatprep.subr.bf16.mxu0 %v2561
    %7504 = vmatpush1.bf16.msra.mxu0 %v2560
    %7505 = vmatprep.subr.bf16.mxu0 %v2569
    %7506 = vmatpush1.bf16.msra.mxu0 %v2568
    %7507 = vmatprep.subr.bf16.mxu0 %v2577
    %7508 = vmatpush1.bf16.msra.mxu0 %v2576
    %7509 = vmatprep.subr.bf16.mxu0 %v2585
    %7510 = vmatpush1.bf16.msra.mxu0 %v2584
    %7511 = vmatprep.subr.bf16.mxu0 %v2593
    %7512 = vmatpush1.bf16.msra.mxu0 %v2592
    %7513 = vmatprep.subr.bf16.mxu0 %v2601
    %7514 = vmatpush1.bf16.msra.mxu0 %v2600
    %7515 = vmatprep.subr.bf16.mxu0 %v2609
    %7516 = vmatpush1.bf16.msra.mxu0 %v2608
    %7517 = vmatprep.subr.bf16.mxu0 %v2617
    %7518 = vmatpush1.bf16.msra.mxu0 %v2616
    %7519 = vmatprep.subr.bf16.mxu0 %v2625
    %7520 = vmatpush1.bf16.msra.mxu0 %v2624
    %7521 = vmatprep.subr.bf16.mxu0 %v2633
    %7522 = vmatpush1.bf16.msra.mxu0 %v2632
    %7523 = vmatprep.subr.bf16.mxu0 %v2641
    %7524 = vmatpush1.bf16.msra.mxu0 %v2640
    %7525 = vmatprep.mubr.bf16.mxu0 %v7369
    %7526 = vmatmul.mubr.bf16.gmra.mrb[0].mxu0 %v7368
    %v7527 = vpop.f32.mrb[0].mxu0
    %v7528 = vadd.f32 %v7487, %v7527
    %v7529 = vpop.f32.mrb[0].mxu0
    %v7530 = vadd.f32 %v7489, %v7529
    %v7531 = vpop.f32.mrb[0].mxu0
    %v7532 = vpop.f32.mrb[0].mxu0
    %7533 = vdwg.mxu0
    %7534 = vmatprep.subr.bf16.mxu0 %v2139
    %7535 = vmatpush1.bf16.msra.mxu0 %v2138
    %7536 = vmatprep.subr.bf16.mxu0 %v2147
    %7537 = vmatpush1.bf16.msra.mxu0 %v2146
    %7538 = vmatprep.subr.bf16.mxu0 %v2155
    %7539 = vmatpush1.bf16.msra.mxu0 %v2154
    %7540 = vmatprep.subr.bf16.mxu0 %v2163
    %7541 = vmatpush1.bf16.msra.mxu0 %v2162
    %7542 = vmatprep.subr.bf16.mxu0 %v2171
    %7543 = vmatpush1.bf16.msra.mxu0 %v2170
    %7544 = vmatprep.subr.bf16.mxu0 %v2179
    %7545 = vmatpush1.bf16.msra.mxu0 %v2178
    %7546 = vmatprep.subr.bf16.mxu0 %v2187
    %7547 = vmatpush1.bf16.msra.mxu0 %v2186
    %7548 = vmatprep.subr.bf16.mxu0 %v2195
    %7549 = vmatpush1.bf16.msra.mxu0 %v2194
    %7550 = vmatprep.subr.bf16.mxu0 %v2203
    %7551 = vmatpush1.bf16.msra.mxu0 %v2202
    %7552 = vmatprep.subr.bf16.mxu0 %v2211
    %7553 = vmatpush1.bf16.msra.mxu0 %v2210
    %7554 = vmatprep.subr.bf16.mxu0 %v2219
    %7555 = vmatpush1.bf16.msra.mxu0 %v2218
    %7556 = vmatprep.subr.bf16.mxu0 %v2227
    %7557 = vmatpush1.bf16.msra.mxu0 %v2226
    %7558 = vmatprep.subr.bf16.mxu0 %v2235
    %7559 = vmatpush1.bf16.msra.mxu0 %v2234
    %7560 = vmatprep.subr.bf16.mxu0 %v2243
    %7561 = vmatpush1.bf16.msra.mxu0 %v2242
    %7562 = vmatprep.subr.bf16.mxu0 %v2251
    %7563 = vmatpush1.bf16.msra.mxu0 %v2250
    %7564 = vmatprep.subr.bf16.mxu0 %v2259
    %7565 = vmatpush1.bf16.msra.mxu0 %v2258
    %7566 = vmatprep.mubr.bf16.mxu0 %v7363
    %7567 = vmatmul.mubr.bf16.gmra.mrb[0].mxu0 %v7362
    %v7568 = vpop.f32.mrb[0].mxu0
    %v7569 = vadd.f32 0.0, %v7568
    %v7570 = vpop.f32.mrb[0].mxu0
    %v7571 = vadd.f32 0.0, %v7570
    %v7572 = vpop.f32.mrb[0].mxu0
    %v7573 = vpop.f32.mrb[0].mxu0
    %7574 = vdwg.mxu0
    %7575 = vmatprep.subr.bf16.mxu0 %v2267
    %7576 = vmatpush1.bf16.msra.mxu0 %v2266
    %7577 = vmatprep.subr.bf16.mxu0 %v2275
    %7578 = vmatpush1.bf16.msra.mxu0 %v2274
    %7579 = vmatprep.subr.bf16.mxu0 %v2283
    %7580 = vmatpush1.bf16.msra.mxu0 %v2282
    %7581 = vmatprep.subr.bf16.mxu0 %v2291
    %7582 = vmatpush1.bf16.msra.mxu0 %v2290
    %7583 = vmatprep.subr.bf16.mxu0 %v2299
    %7584 = vmatpush1.bf16.msra.mxu0 %v2298
    %7585 = vmatprep.subr.bf16.mxu0 %v2307
    %7586 = vmatpush1.bf16.msra.mxu0 %v2306
    %7587 = vmatprep.subr.bf16.mxu0 %v2315
    %7588 = vmatpush1.bf16.msra.mxu0 %v2314
    %7589 = vmatprep.subr.bf16.mxu0 %v2323
    %7590 = vmatpush1.bf16.msra.mxu0 %v2322
    %7591 = vmatprep.subr.bf16.mxu0 %v2331
    %7592 = vmatpush1.bf16.msra.mxu0 %v2330
    %7593 = vmatprep.subr.bf16.mxu0 %v2339
    %7594 = vmatpush1.bf16.msra.mxu0 %v2338
    %7595 = vmatprep.subr.bf16.mxu0 %v2347
    %7596 = vmatpush1.bf16.msra.mxu0 %v2346
    %7597 = vmatprep.subr.bf16.mxu0 %v2355
    %7598 = vmatpush1.bf16.msra.mxu0 %v2354
    %7599 = vmatprep.subr.bf16.mxu0 %v2363
    %7600 = vmatpush1.bf16.msra.mxu0 %v2362
    %7601 = vmatprep.subr.bf16.mxu0 %v2371
    %7602 = vmatpush1.bf16.msra.mxu0 %v2370
    %7603 = vmatprep.subr.bf16.mxu0 %v2379
    %7604 = vmatpush1.bf16.msra.mxu0 %v2378
    %7605 = vmatprep.subr.bf16.mxu0 %v2387
    %7606 = vmatpush1.bf16.msra.mxu0 %v2386
    %7607 = vmatprep.mubr.bf16.mxu0 %v7365
    %7608 = vmatmul.mubr.bf16.gmra.mrb[0].mxu0 %v7364
    %v7609 = vpop.f32.mrb[0].mxu0
    %v7610 = vadd.f32 %v7569, %v7609
    %v7611 = vpop.f32.mrb[0].mxu0
    %v7612 = vadd.f32 %v7571, %v7611
    %v7613 = vpop.f32.mrb[0].mxu0
    %v7614 = vpop.f32.mrb[0].mxu0
    %7615 = vdwg.mxu0
    %7616 = vmatprep.subr.bf16.mxu0 %v2395
    %7617 = vmatpush1.bf16.msra.mxu0 %v2394
    %7618 = vmatprep.subr.bf16.mxu0 %v2403
    %7619 = vmatpush1.bf16.msra.mxu0 %v2402
    %7620 = vmatprep.subr.bf16.mxu0 %v2411
    %7621 = vmatpush1.bf16.msra.mxu0 %v2410
    %7622 = vmatprep.subr.bf16.mxu0 %v2419
    %7623 = vmatpush1.bf16.msra.mxu0 %v2418
    %7624 = vmatprep.subr.bf16.mxu0 %v2427
    %7625 = vmatpush1.bf16.msra.mxu0 %v2426
    %7626 = vmatprep.subr.bf16.mxu0 %v2435
    %7627 = vmatpush1.bf16.msra.mxu0 %v2434
    %7628 = vmatprep.subr.bf16.mxu0 %v2443
    %7629 = vmatpush1.bf16.msra.mxu0 %v2442
    %7630 = vmatprep.subr.bf16.mxu0 %v2451
    %7631 = vmatpush1.bf16.msra.mxu0 %v2450
    %7632 = vmatprep.subr.bf16.mxu0 %v2459
    %7633 = vmatpush1.bf16.msra.mxu0 %v2458
    %7634 = vmatprep.subr.bf16.mxu0 %v2467
    %7635 = vmatpush1.bf16.msra.mxu0 %v2466
    %7636 = vmatprep.subr.bf16.mxu0 %v2475
    %7637 = vmatpush1.bf16.msra.mxu0 %v2474
    %7638 = vmatprep.subr.bf16.mxu0 %v2483
    %7639 = vmatpush1.bf16.msra.mxu0 %v2482
    %7640 = vmatprep.subr.bf16.mxu0 %v2491
    %7641 = vmatpush1.bf16.msra.mxu0 %v2490
    %7642 = vmatprep.subr.bf16.mxu0 %v2499
    %7643 = vmatpush1.bf16.msra.mxu0 %v2498
    %7644 = vmatprep.subr.bf16.mxu0 %v2507
    %7645 = vmatpush1.bf16.msra.mxu0 %v2506
    %7646 = vmatprep.subr.bf16.mxu0 %v2515
    %7647 = vmatpush1.bf16.msra.mxu0 %v2514
    %7648 = vmatprep.mubr.bf16.mxu0 %v7367
    %7649 = vmatmul.mubr.bf16.gmra.mrb[0].mxu0 %v7366
    %v7650 = vpop.f32.mrb[0].mxu0
    %v7651 = vadd.f32 %v7610, %v7650
    %v7652 = vpop.f32.mrb[0].mxu0
    %v7653 = vadd.f32 %v7612, %v7652
    %v7654 = vpop.f32.mrb[0].mxu0
    %v7655 = vpop.f32.mrb[0].mxu0
    %7656 = vdwg.mxu0
    %7657 = vmatprep.subr.bf16.mxu0 %v2523
    %7658 = vmatpush1.bf16.msra.mxu0 %v2522
    %7659 = vmatprep.subr.bf16.mxu0 %v2531
    %7660 = vmatpush1.bf16.msra.mxu0 %v2530
    %7661 = vmatprep.subr.bf16.mxu0 %v2539
    %7662 = vmatpush1.bf16.msra.mxu0 %v2538
    %7663 = vmatprep.subr.bf16.mxu0 %v2547
    %7664 = vmatpush1.bf16.msra.mxu0 %v2546
    %7665 = vmatprep.subr.bf16.mxu0 %v2555
    %7666 = vmatpush1.bf16.msra.mxu0 %v2554
    %7667 = vmatprep.subr.bf16.mxu0 %v2563
    %7668 = vmatpush1.bf16.msra.mxu0 %v2562
    %7669 = vmatprep.subr.bf16.mxu0 %v2571
    %7670 = vmatpush1.bf16.msra.mxu0 %v2570
    %7671 = vmatprep.subr.bf16.mxu0 %v2579
    %7672 = vmatpush1.bf16.msra.mxu0 %v2578
    %7673 = vmatprep.subr.bf16.mxu0 %v2587
    %7674 = vmatpush1.bf16.msra.mxu0 %v2586
    %7675 = vmatprep.subr.bf16.mxu0 %v2595
    %7676 = vmatpush1.bf16.msra.mxu0 %v2594
    %7677 = vmatprep.subr.bf16.mxu0 %v2603
    %7678 = vmatpush1.bf16.msra.mxu0 %v2602
    %7679 = vmatprep.subr.bf16.mxu0 %v2611
    %7680 = vmatpush1.bf16.msra.mxu0 %v2610
    %7681 = vmatprep.subr.bf16.mxu0 %v2619
    %7682 = vmatpush1.bf16.msra.mxu0 %v2618
    %7683 = vmatprep.subr.bf16.mxu0 %v2627
    %7684 = vmatpush1.bf16.msra.mxu0 %v2626
    %7685 = vmatprep.subr.bf16.mxu0 %v2635
    %7686 = vmatpush1.bf16.msra.mxu0 %v2634
    %7687 = vmatprep.subr.bf16.mxu0 %v2643
    %7688 = vmatpush1.bf16.msra.mxu0 %v2642
    %7689 = vmatprep.mubr.bf16.mxu0 %v7369
    %7690 = vmatmul.mubr.bf16.gmra.mrb[0].mxu0 %v7368
    %v7691 = vpop.f32.mrb[0].mxu0
    %v7692 = vadd.f32 %v7651, %v7691
    %v7693 = vpop.f32.mrb[0].mxu0
    %v7694 = vadd.f32 %v7653, %v7693
    %v7695 = vpop.f32.mrb[0].mxu0
    %v7696 = vpop.f32.mrb[0].mxu0
    %7697 = vdwg.mxu0
    %7698 = vmatprep.subr.bf16.mxu0 %v2141
    %7699 = vmatpush1.bf16.msra.mxu0 %v2140
    %7700 = vmatprep.subr.bf16.mxu0 %v2149
    %7701 = vmatpush1.bf16.msra.mxu0 %v2148
    %7702 = vmatprep.subr.bf16.mxu0 %v2157
    %7703 = vmatpush1.bf16.msra.mxu0 %v2156
    %7704 = vmatprep.subr.bf16.mxu0 %v2165
    %7705 = vmatpush1.bf16.msra.mxu0 %v2164
    %7706 = vmatprep.subr.bf16.mxu0 %v2173
    %7707 = vmatpush1.bf16.msra.mxu0 %v2172
    %7708 = vmatprep.subr.bf16.mxu0 %v2181
    %7709 = vmatpush1.bf16.msra.mxu0 %v2180
    %7710 = vmatprep.subr.bf16.mxu0 %v2189
    %7711 = vmatpush1.bf16.msra.mxu0 %v2188
    %7712 = vmatprep.subr.bf16.mxu0 %v2197
    %7713 = vmatpush1.bf16.msra.mxu0 %v2196
    %7714 = vmatprep.subr.bf16.mxu0 %v2205
    %7715 = vmatpush1.bf16.msra.mxu0 %v2204
    %7716 = vmatprep.subr.bf16.mxu0 %v2213
    %7717 = vmatpush1.bf16.msra.mxu0 %v2212
    %7718 = vmatprep.subr.bf16.mxu0 %v2221
    %7719 = vmatpush1.bf16.msra.mxu0 %v2220
    %7720 = vmatprep.subr.bf16.mxu0 %v2229
    %7721 = vmatpush1.bf16.msra.mxu0 %v2228
    %7722 = vmatprep.subr.bf16.mxu0 %v2237
    %7723 = vmatpush1.bf16.msra.mxu0 %v2236
    %7724 = vmatprep.subr.bf16.mxu0 %v2245
    %7725 = vmatpush1.bf16.msra.mxu0 %v2244
    %7726 = vmatprep.subr.bf16.mxu0 %v2253
    %7727 = vmatpush1.bf16.msra.mxu0 %v2252
    %7728 = vmatprep.subr.bf16.mxu0 %v2261
    %7729 = vmatpush1.bf16.msra.mxu0 %v2260
    %7730 = vmatprep.mubr.bf16.mxu0 %v7363
    %7731 = vmatmul.mubr.bf16.gmra.mrb[0].mxu0 %v7362
    %v7732 = vpop.f32.mrb[0].mxu0
    %v7733 = vadd.f32 0.0, %v7732
    %v7734 = vpop.f32.mrb[0].mxu0
    %v7735 = vadd.f32 0.0, %v7734
    %v7736 = vpop.f32.mrb[0].mxu0
    %v7737 = vpop.f32.mrb[0].mxu0
    %7738 = vdwg.mxu0
    %7739 = vmatprep.subr.bf16.mxu0 %v2269
    %7740 = vmatpush1.bf16.msra.mxu0 %v2268
    %7741 = vmatprep.subr.bf16.mxu0 %v2277
    %7742 = vmatpush1.bf16.msra.mxu0 %v2276
    %7743 = vmatprep.subr.bf16.mxu0 %v2285
    %7744 = vmatpush1.bf16.msra.mxu0 %v2284
    %7745 = vmatprep.subr.bf16.mxu0 %v2293
    %7746 = vmatpush1.bf16.msra.mxu0 %v2292
    %7747 = vmatprep.subr.bf16.mxu0 %v2301
    %7748 = vmatpush1.bf16.msra.mxu0 %v2300
    %7749 = vmatprep.subr.bf16.mxu0 %v2309
    %7750 = vmatpush1.bf16.msra.mxu0 %v2308
    %7751 = vmatprep.subr.bf16.mxu0 %v2317
    %7752 = vmatpush1.bf16.msra.mxu0 %v2316
    %7753 = vmatprep.subr.bf16.mxu0 %v2325
    %7754 = vmatpush1.bf16.msra.mxu0 %v2324
    %7755 = vmatprep.subr.bf16.mxu0 %v2333
    %7756 = vmatpush1.bf16.msra.mxu0 %v2332
    %7757 = vmatprep.subr.bf16.mxu0 %v2341
    %7758 = vmatpush1.bf16.msra.mxu0 %v2340
    %7759 = vmatprep.subr.bf16.mxu0 %v2349
    %7760 = vmatpush1.bf16.msra.mxu0 %v2348
    %7761 = vmatprep.subr.bf16.mxu0 %v2357
    %7762 = vmatpush1.bf16.msra.mxu0 %v2356
    %7763 = vmatprep.subr.bf16.mxu0 %v2365
    %7764 = vmatpush1.bf16.msra.mxu0 %v2364
    %7765 = vmatprep.subr.bf16.mxu0 %v2373
    %7766 = vmatpush1.bf16.msra.mxu0 %v2372
    %7767 = vmatprep.subr.bf16.mxu0 %v2381
    %7768 = vmatpush1.bf16.msra.mxu0 %v2380
    %7769 = vmatprep.subr.bf16.mxu0 %v2389
    %7770 = vmatpush1.bf16.msra.mxu0 %v2388
    %7771 = vmatprep.mubr.bf16.mxu0 %v7365
    %7772 = vmatmul.mubr.bf16.gmra.mrb[0].mxu0 %v7364
    %v7773 = vpop.f32.mrb[0].mxu0
    %v7774 = vadd.f32 %v7733, %v7773
    %v7775 = vpop.f32.mrb[0].mxu0
    %v7776 = vadd.f32 %v7735, %v7775
    %v7777 = vpop.f32.mrb[0].mxu0
    %v7778 = vpop.f32.mrb[0].mxu0
    %7779 = vdwg.mxu0
    %7780 = vmatprep.subr.bf16.mxu0 %v2397
    %7781 = vmatpush1.bf16.msra.mxu0 %v2396
    %7782 = vmatprep.subr.bf16.mxu0 %v2405
    %7783 = vmatpush1.bf16.msra.mxu0 %v2404
    %7784 = vmatprep.subr.bf16.mxu0 %v2413
    %7785 = vmatpush1.bf16.msra.mxu0 %v2412
    %7786 = vmatprep.subr.bf16.mxu0 %v2421
    %7787 = vmatpush1.bf16.msra.mxu0 %v2420
    %7788 = vmatprep.subr.bf16.mxu0 %v2429
    %7789 = vmatpush1.bf16.msra.mxu0 %v2428
    %7790 = vmatprep.subr.bf16.mxu0 %v2437
    %7791 = vmatpush1.bf16.msra.mxu0 %v2436
    %7792 = vmatprep.subr.bf16.mxu0 %v2445
    %7793 = vmatpush1.bf16.msra.mxu0 %v2444
    %7794 = vmatprep.subr.bf16.mxu0 %v2453
    %7795 = vmatpush1.bf16.msra.mxu0 %v2452
    %7796 = vmatprep.subr.bf16.mxu0 %v2461
    %7797 = vmatpush1.bf16.msra.mxu0 %v2460
    %7798 = vmatprep.subr.bf16.mxu0 %v2469
    %7799 = vmatpush1.bf16.msra.mxu0 %v2468
    %7800 = vmatprep.subr.bf16.mxu0 %v2477
    %7801 = vmatpush1.bf16.msra.mxu0 %v2476
    %7802 = vmatprep.subr.bf16.mxu0 %v2485
    %7803 = vmatpush1.bf16.msra.mxu0 %v2484
    %7804 = vmatprep.subr.bf16.mxu0 %v2493
    %7805 = vmatpush1.bf16.msra.mxu0 %v2492
    %7806 = vmatprep.subr.bf16.mxu0 %v2501
    %7807 = vmatpush1.bf16.msra.mxu0 %v2500
    %7808 = vmatprep.subr.bf16.mxu0 %v2509
    %7809 = vmatpush1.bf16.msra.mxu0 %v2508
    %7810 = vmatprep.subr.bf16.mxu0 %v2517
    %7811 = vmatpush1.bf16.msra.mxu0 %v2516
    %7812 = vmatprep.mubr.bf16.mxu0 %v7367
    %7813 = vmatmul.mubr.bf16.gmra.mrb[0].mxu0 %v7366
    %v7814 = vpop.f32.mrb[0].mxu0
    %v7815 = vadd.f32 %v7774, %v7814
    %v7816 = vpop.f32.mrb[0].mxu0
    %v7817 = vadd.f32 %v7776, %v7816
    %v7818 = vpop.f32.mrb[0].mxu0
    %v7819 = vpop.f32.mrb[0].mxu0
    %7820 = vdwg.mxu0
    %7821 = vmatprep.subr.bf16.mxu0 %v2525
    %7822 = vmatpush1.bf16.msra.mxu0 %v2524
    %7823 = vmatprep.subr.bf16.mxu0 %v2533
    %7824 = vmatpush1.bf16.msra.mxu0 %v2532
    %7825 = vmatprep.subr.bf16.mxu0 %v2541
    %7826 = vmatpush1.bf16.msra.mxu0 %v2540
    %7827 = vmatprep.subr.bf16.mxu0 %v2549
    %7828 = vmatpush1.bf16.msra.mxu0 %v2548
    %7829 = vmatprep.subr.bf16.mxu0 %v2557
    %7830 = vmatpush1.bf16.msra.mxu0 %v2556
    %7831 = vmatprep.subr.bf16.mxu0 %v2565
    %7832 = vmatpush1.bf16.msra.mxu0 %v2564
    %7833 = vmatprep.subr.bf16.mxu0 %v2573
    %7834 = vmatpush1.bf16.msra.mxu0 %v2572
    %7835 = vmatprep.subr.bf16.mxu0 %v2581
    %7836 = vmatpush1.bf16.msra.mxu0 %v2580
    %7837 = vmatprep.subr.bf16.mxu0 %v2589
    %7838 = vmatpush1.bf16.msra.mxu0 %v2588
    %7839 = vmatprep.subr.bf16.mxu0 %v2597
    %7840 = vmatpush1.bf16.msra.mxu0 %v2596
    %7841 = vmatprep.subr.bf16.mxu0 %v2605
    %7842 = vmatpush1.bf16.msra.mxu0 %v2604
    %7843 = vmatprep.subr.bf16.mxu0 %v2613
    %7844 = vmatpush1.bf16.msra.mxu0 %v2612
    %7845 = vmatprep.subr.bf16.mxu0 %v2621
    %7846 = vmatpush1.bf16.msra.mxu0 %v2620
    %7847 = vmatprep.subr.bf16.mxu0 %v2629
    %7848 = vmatpush1.bf16.msra.mxu0 %v2628
    %7849 = vmatprep.subr.bf16.mxu0 %v2637
    %7850 = vmatpush1.bf16.msra.mxu0 %v2636
    %7851 = vmatprep.subr.bf16.mxu0 %v2645
    %7852 = vmatpush1.bf16.msra.mxu0 %v2644
    %7853 = vmatprep.mubr.bf16.mxu0 %v7369
    %7854 = vmatmul.mubr.bf16.gmra.mrb[0].mxu0 %v7368
    %v7855 = vpop.f32.mrb[0].mxu0
    %v7856 = vadd.f32 %v7815, %v7855
    %v7857 = vpop.f32.mrb[0].mxu0
    %v7858 = vadd.f32 %v7817, %v7857
    %v7859 = vpop.f32.mrb[0].mxu0
    %v7860 = vpop.f32.mrb[0].mxu0
    %7861 = vdwg.mxu0
    %7862 = vmatprep.subr.bf16.mxu0 %v2143
    %7863 = vmatpush1.bf16.msra.mxu0 %v2142
    %7864 = vmatprep.subr.bf16.mxu0 %v2151
    %7865 = vmatpush1.bf16.msra.mxu0 %v2150
    %7866 = vmatprep.subr.bf16.mxu0 %v2159
    %7867 = vmatpush1.bf16.msra.mxu0 %v2158
    %7868 = vmatprep.subr.bf16.mxu0 %v2167
    %7869 = vmatpush1.bf16.msra.mxu0 %v2166
    %7870 = vmatprep.subr.bf16.mxu0 %v2175
    %7871 = vmatpush1.bf16.msra.mxu0 %v2174
    %7872 = vmatprep.subr.bf16.mxu0 %v2183
    %7873 = vmatpush1.bf16.msra.mxu0 %v2182
    %7874 = vmatprep.subr.bf16.mxu0 %v2191
    %7875 = vmatpush1.bf16.msra.mxu0 %v2190
    %7876 = vmatprep.subr.bf16.mxu0 %v2199
    %7877 = vmatpush1.bf16.msra.mxu0 %v2198
    %7878 = vmatprep.subr.bf16.mxu0 %v2207
    %7879 = vmatpush1.bf16.msra.mxu0 %v2206
    %7880 = vmatprep.subr.bf16.mxu0 %v2215
    %7881 = vmatpush1.bf16.msra.mxu0 %v2214
    %7882 = vmatprep.subr.bf16.mxu0 %v2223
    %7883 = vmatpush1.bf16.msra.mxu0 %v2222
    %7884 = vmatprep.subr.bf16.mxu0 %v2231
    %7885 = vmatpush1.bf16.msra.mxu0 %v2230
    %7886 = vmatprep.subr.bf16.mxu0 %v2239
    %7887 = vmatpush1.bf16.msra.mxu0 %v2238
    %7888 = vmatprep.subr.bf16.mxu0 %v2247
    %7889 = vmatpush1.bf16.msra.mxu0 %v2246
    %7890 = vmatprep.subr.bf16.mxu0 %v2255
    %7891 = vmatpush1.bf16.msra.mxu0 %v2254
    %7892 = vmatprep.subr.bf16.mxu0 %v2263
    %7893 = vmatpush1.bf16.msra.mxu0 %v2262
    %7894 = vmatprep.mubr.bf16.mxu0 %v7363
    %7895 = vmatmul.mubr.bf16.gmra.mrb[0].mxu0 %v7362
    %v7896 = vpop.f32.mrb[0].mxu0
    %v7897 = vadd.f32 0.0, %v7896
    %v7898 = vpop.f32.mrb[0].mxu0
    %v7899 = vadd.f32 0.0, %v7898
    %v7900 = vpop.f32.mrb[0].mxu0
    %v7901 = vpop.f32.mrb[0].mxu0
    %7902 = vdwg.mxu0
    %7903 = vmatprep.subr.bf16.mxu0 %v2271
    %7904 = vmatpush1.bf16.msra.mxu0 %v2270
    %7905 = vmatprep.subr.bf16.mxu0 %v2279
    %7906 = vmatpush1.bf16.msra.mxu0 %v2278
    %7907 = vmatprep.subr.bf16.mxu0 %v2287
    %7908 = vmatpush1.bf16.msra.mxu0 %v2286
    %7909 = vmatprep.subr.bf16.mxu0 %v2295
    %7910 = vmatpush1.bf16.msra.mxu0 %v2294
    %7911 = vmatprep.subr.bf16.mxu0 %v2303
    %7912 = vmatpush1.bf16.msra.mxu0 %v2302
    %7913 = vmatprep.subr.bf16.mxu0 %v2311
    %7914 = vmatpush1.bf16.msra.mxu0 %v2310
    %7915 = vmatprep.subr.bf16.mxu0 %v2319
    %7916 = vmatpush1.bf16.msra.mxu0 %v2318
    %7917 = vmatprep.subr.bf16.mxu0 %v2327
    %7918 = vmatpush1.bf16.msra.mxu0 %v2326
    %7919 = vmatprep.subr.bf16.mxu0 %v2335
    %7920 = vmatpush1.bf16.msra.mxu0 %v2334
    %7921 = vmatprep.subr.bf16.mxu0 %v2343
    %7922 = vmatpush1.bf16.msra.mxu0 %v2342
    %7923 = vmatprep.subr.bf16.mxu0 %v2351
    %7924 = vmatpush1.bf16.msra.mxu0 %v2350
    %7925 = vmatprep.subr.bf16.mxu0 %v2359
    %7926 = vmatpush1.bf16.msra.mxu0 %v2358
    %7927 = vmatprep.subr.bf16.mxu0 %v2367
    %7928 = vmatpush1.bf16.msra.mxu0 %v2366
    %7929 = vmatprep.subr.bf16.mxu0 %v2375
    %7930 = vmatpush1.bf16.msra.mxu0 %v2374
    %7931 = vmatprep.subr.bf16.mxu0 %v2383
    %7932 = vmatpush1.bf16.msra.mxu0 %v2382
    %7933 = vmatprep.subr.bf16.mxu0 %v2391
    %7934 = vmatpush1.bf16.msra.mxu0 %v2390
    %7935 = vmatprep.mubr.bf16.mxu0 %v7365
    %7936 = vmatmul.mubr.bf16.gmra.mrb[0].mxu0 %v7364
    %v7937 = vpop.f32.mrb[0].mxu0
    %v7938 = vadd.f32 %v7897, %v7937
    %v7939 = vpop.f32.mrb[0].mxu0
    %v7940 = vadd.f32 %v7899, %v7939
    %v7941 = vpop.f32.mrb[0].mxu0
    %v7942 = vpop.f32.mrb[0].mxu0
    %7943 = vdwg.mxu0
    %7944 = vmatprep.subr.bf16.mxu0 %v2399
    %7945 = vmatpush1.bf16.msra.mxu0 %v2398
    %7946 = vmatprep.subr.bf16.mxu0 %v2407
    %7947 = vmatpush1.bf16.msra.mxu0 %v2406
    %7948 = vmatprep.subr.bf16.mxu0 %v2415
    %7949 = vmatpush1.bf16.msra.mxu0 %v2414
    %7950 = vmatprep.subr.bf16.mxu0 %v2423
    %7951 = vmatpush1.bf16.msra.mxu0 %v2422
    %7952 = vmatprep.subr.bf16.mxu0 %v2431
    %7953 = vmatpush1.bf16.msra.mxu0 %v2430
    %7954 = vmatprep.subr.bf16.mxu0 %v2439
    %7955 = vmatpush1.bf16.msra.mxu0 %v2438
    %7956 = vmatprep.subr.bf16.mxu0 %v2447
    %7957 = vmatpush1.bf16.msra.mxu0 %v2446
    %7958 = vmatprep.subr.bf16.mxu0 %v2455
    %7959 = vmatpush1.bf16.msra.mxu0 %v2454
    %7960 = vmatprep.subr.bf16.mxu0 %v2463
    %7961 = vmatpush1.bf16.msra.mxu0 %v2462
    %7962 = vmatprep.subr.bf16.mxu0 %v2471
    %7963 = vmatpush1.bf16.msra.mxu0 %v2470
    %7964 = vmatprep.subr.bf16.mxu0 %v2479
    %7965 = vmatpush1.bf16.msra.mxu0 %v2478
    %7966 = vmatprep.subr.bf16.mxu0 %v2487
    %7967 = vmatpush1.bf16.msra.mxu0 %v2486
    %7968 = vmatprep.subr.bf16.mxu0 %v2495
    %7969 = vmatpush1.bf16.msra.mxu0 %v2494
    %7970 = vmatprep.subr.bf16.mxu0 %v2503
    %7971 = vmatpush1.bf16.msra.mxu0 %v2502
    %7972 = vmatprep.subr.bf16.mxu0 %v2511
    %7973 = vmatpush1.bf16.msra.mxu0 %v2510
    %7974 = vmatprep.subr.bf16.mxu0 %v2519
    %7975 = vmatpush1.bf16.msra.mxu0 %v2518
    %7976 = vmatprep.mubr.bf16.mxu0 %v7367
    %7977 = vmatmul.mubr.bf16.gmra.mrb[0].mxu0 %v7366
    %v7978 = vpop.f32.mrb[0].mxu0
    %v7979 = vadd.f32 %v7938, %v7978
    %v7980 = vpop.f32.mrb[0].mxu0
    %v7981 = vadd.f32 %v7940, %v7980
    %v7982 = vpop.f32.mrb[0].mxu0
    %v7983 = vpop.f32.mrb[0].mxu0
    %7984 = vdwg.mxu0
    %7985 = vmatprep.subr.bf16.mxu0 %v2527
    %7986 = vmatpush1.bf16.msra.mxu0 %v2526
    %7987 = vmatprep.subr.bf16.mxu0 %v2535
    %7988 = vmatpush1.bf16.msra.mxu0 %v2534
    %7989 = vmatprep.subr.bf16.mxu0 %v2543
    %7990 = vmatpush1.bf16.msra.mxu0 %v2542
    %7991 = vmatprep.subr.bf16.mxu0 %v2551
    %7992 = vmatpush1.bf16.msra.mxu0 %v2550
    %7993 = vmatprep.subr.bf16.mxu0 %v2559
    %7994 = vmatpush1.bf16.msra.mxu0 %v2558
    %7995 = vmatprep.subr.bf16.mxu0 %v2567
    %7996 = vmatpush1.bf16.msra.mxu0 %v2566
    %7997 = vmatprep.subr.bf16.mxu0 %v2575
    %7998 = vmatpush1.bf16.msra.mxu0 %v2574
    %7999 = vmatprep.subr.bf16.mxu0 %v2583
    %8000 = vmatpush1.bf16.msra.mxu0 %v2582
    %8001 = vmatprep.subr.bf16.mxu0 %v2591
    %8002 = vmatpush1.bf16.msra.mxu0 %v2590
    %8003 = vmatprep.subr.bf16.mxu0 %v2599
    %8004 = vmatpush1.bf16.msra.mxu0 %v2598
    %8005 = vmatprep.subr.bf16.mxu0 %v2607
    %8006 = vmatpush1.bf16.msra.mxu0 %v2606
    %8007 = vmatprep.subr.bf16.mxu0 %v2615
    %8008 = vmatpush1.bf16.msra.mxu0 %v2614
    %8009 = vmatprep.subr.bf16.mxu0 %v2623
    %8010 = vmatpush1.bf16.msra.mxu0 %v2622
    %8011 = vmatprep.subr.bf16.mxu0 %v2631
    %8012 = vmatpush1.bf16.msra.mxu0 %v2630
    %8013 = vmatprep.subr.bf16.mxu0 %v2639
    %8014 = vmatpush1.bf16.msra.mxu0 %v2638
    %8015 = vmatprep.subr.bf16.mxu0 %v2647
    %8016 = vmatpush1.bf16.msra.mxu0 %v2646
    %8017 = vmatprep.mubr.bf16.mxu0 %v7369
    %8018 = vmatmul.mubr.bf16.gmra.mrb[0].mxu0 %v7368
    %v8019 = vpop.f32.mrb[0].mxu0
    %v8020 = vadd.f32 %v7979, %v8019
    %v8021 = vpop.f32.mrb[0].mxu0
    %v8022 = vadd.f32 %v7981, %v8021
    %v8023 = vpop.f32.mrb[0].mxu0
    %v8024 = vpop.f32.mrb[0].mxu0
    %8025 = vdwg.mxu0
    %v8026 = vstv %s7315
    %v8027 = vmul.f32 %v8026, %v7313
    %v8028 = vmul.f32 %v8026, %v7314
    %v8029 = vstv %s7316
    %v8030 = vmul.f32 %v8029, %v7528
    %v8031 = vmul.f32 %v8029, %v7530
    %v8032 = vmul.f32 %v8029, %v7692
    %v8033 = vmul.f32 %v8029, %v7694
    %v8034 = vmul.f32 %v8029, %v7856
    %v8035 = vmul.f32 %v8029, %v7858
    %v8036 = vmul.f32 %v8029, %v8020
    %v8037 = vmul.f32 %v8029, %v8022
    %v8046 = vcombine.low %v8030, %v8031
    %v8047 = vcombine.low %v8032, %v8033
    %v8049 = vunpack.c.l.s4 1983009808
    %v8050 = vunpack.c.0.s8 %v8049
    %v8051 = vlaneseq
    %v8052 = vshrl.u32 %v8051, 7
    %v8053 = vsub.s32 %v8050, %v8052
    %v8054 = vrot.slane %v8046, %v8053
    %v8056 = vunpack.c.l.s4 1983009808
    %v8057 = vunpack.c.0.s8 %v8056
    %v8058 = vlaneseq
    %v8059 = vshrl.u32 %v8058, 7
    %v8060 = vsub.s32 %v8057, %v8059
    %v8061 = vrot.slane %v8047, %v8060
    %v8062 = vcombine.low %v8054, %v8061
    %v8063 = vcombine.low %v8034, %v8035
    %v8064 = vcombine.low %v8036, %v8037
    %v8066 = vunpack.c.l.s4 1983009808
    %v8067 = vunpack.c.0.s8 %v8066
    %v8068 = vlaneseq
    %v8069 = vshrl.u32 %v8068, 7
    %v8070 = vsub.s32 %v8067, %v8069
    %v8071 = vrot.slane %v8063, %v8070
    %v8073 = vunpack.c.l.s4 1983009808
    %v8074 = vunpack.c.0.s8 %v8073
    %v8075 = vlaneseq
    %v8076 = vshrl.u32 %v8075, 7
    %v8077 = vsub.s32 %v8074, %v8076
    %v8078 = vrot.slane %v8064, %v8077
    %v8079 = vcombine.low %v8071, %v8078
    %v8082 = vadd.f32 %v8027, %v8062
    %v8083 = vadd.f32 %v8028, %v8079
    %v8084 = vstv %s7317
    %v8085 = vmul.f32 %v8084, %v30
    %v8087 = vlaneseq
    %v8088 = vshrl.u32 %v8087, 7
    %v8089 = vsub.s32 0, %v8088
    %v8090 = vrot.slane %v8085, %v8089
    %v8091 = vlaneseq
    %v8092 = vshrl.u32 %v8091, 7
    %v8093 = vsub.s32 1, %v8092
    %v8094 = vrot.slane %v8085, %v8093
    %v8095 = vlaneseq
    %v8096 = vshrl.u32 %v8095, 7
    %v8097 = vsub.s32 2, %v8096
    %v8098 = vrot.slane %v8085, %v8097
    %v8099 = vlaneseq
    %v8100 = vshrl.u32 %v8099, 7
    %v8101 = vsub.s32 3, %v8100
    %v8102 = vrot.slane %v8085, %v8101
    %v8103 = vlaneseq
    %v8104 = vshrl.u32 %v8103, 7
    %v8105 = vsub.s32 4, %v8104
    %v8106 = vrot.slane %v8085, %v8105
    %v8107 = vlaneseq
    %v8108 = vshrl.u32 %v8107, 7
    %v8109 = vsub.s32 5, %v8108
    %v8110 = vrot.slane %v8085, %v8109
    %v8111 = vlaneseq
    %v8112 = vshrl.u32 %v8111, 7
    %v8113 = vsub.s32 6, %v8112
    %v8114 = vrot.slane %v8085, %v8113
    %v8115 = vlaneseq
    %v8116 = vshrl.u32 %v8115, 7
    %v8117 = vsub.s32 7, %v8116
    %v8118 = vrot.slane %v8085, %v8117
    %v8119 = vcombine.low %v8090, %v8094
    %v8120 = vcombine.low %v8098, %v8102
    %v8122 = vunpack.c.l.s4 1983009808
    %v8123 = vunpack.c.0.s8 %v8122
    %v8124 = vlaneseq
    %v8125 = vshrl.u32 %v8124, 7
    %v8126 = vsub.s32 %v8123, %v8125
    %v8127 = vrot.slane %v8119, %v8126
    %v8129 = vunpack.c.l.s4 1983009808
    %v8130 = vunpack.c.0.s8 %v8129
    %v8131 = vlaneseq
    %v8132 = vshrl.u32 %v8131, 7
    %v8133 = vsub.s32 %v8130, %v8132
    %v8134 = vrot.slane %v8120, %v8133
    %v8135 = vcombine.low %v8127, %v8134
    %v8136 = vcombine.low %v8106, %v8110
    %v8137 = vcombine.low %v8114, %v8118
    %v8139 = vunpack.c.l.s4 1983009808
    %v8140 = vunpack.c.0.s8 %v8139
    %v8141 = vlaneseq
    %v8142 = vshrl.u32 %v8141, 7
    %v8143 = vsub.s32 %v8140, %v8142
    %v8144 = vrot.slane %v8136, %v8143
    %v8146 = vunpack.c.l.s4 1983009808
    %v8147 = vunpack.c.0.s8 %v8146
    %v8148 = vlaneseq
    %v8149 = vshrl.u32 %v8148, 7
    %v8150 = vsub.s32 %v8147, %v8149
    %v8151 = vrot.slane %v8137, %v8150
    %v8152 = vcombine.low %v8144, %v8151
    %v8155 = vadd.f32 %v8082, %v8135
    %v8156 = vadd.f32 %v8083, %v8152
    %v8157 = vmax.f32 %v8155, -1.0
    %v8158 = vmax.f32 %v8156, -1.0
    %v8159 = vmin.f32 %v8157, 1.0
    %v8160 = vmin.f32 %v8158, 1.0
    %8161 = vst [vmem:[%s4] sm:$0xff] %v8159
    %8162 = vst [vmem:[%s4 + $0x8] sm:$0xff] %v8160
    // Predicated region
    $region22: #{dpm_sampler_forward.1} parent=1 // pred_check
      _
    $region23: #{dpm_sampler_forward.1} parent=1 // pred_check_branch
      %8164 = sbr.rel (0) target = $region25
    $region24: #{dpm_sampler_forward.1} parent=1 // pred_region
      _
    $region25: #{dpm_sampler_forward.1} parent=1 // pred_fallthru
      _
    // Predicated region
    $region26: #{dpm_sampler_forward.1} parent=1 // pred_check
      _
    $region27: #{dpm_sampler_forward.1} parent=1 // pred_check_branch
      %8166 = sbr.rel (0) target = $region29
    $region28: #{dpm_sampler_forward.1} parent=1 // pred_region
      _
    $region29: #{dpm_sampler_forward.1} parent=1 // pred_fallthru
      _
    %8167 = vsyncpa [#allocation3], 1

</llo_original>
